<compile_context>
chip_gen: v7x
topology: tpu7x:2x2x1
jax: 0.10.0
libtpu: 0.0.40
codegen_flags: <defaults>
</compile_context>

<pallas_src>
import functools

import jax
import jax.numpy as jnp
from jax.experimental import pallas as pl
from jax.experimental.pallas import tpu as pltpu


_COMPILER_PARAMS = pltpu.CompilerParams(
    dimension_semantics=("parallel",),      # shard the batch grid across TCs
    vmem_limit_bytes=64 * 1024 * 1024,      # <= physical VMEM on v5e/v6e/v7x
)


# ----------------------------- BlockSpec helpers -----------------------------

def _rep_spec(*shape):
    """Whole-array block, replicated across the batch grid (weights/biases)."""
    zeros = (0,) * len(shape)
    return pl.BlockSpec(tuple(shape), lambda b: zeros)


def _bat_spec(*tail):
    """Per-batch-element block: leading axis indexed by the grid."""
    zeros = (0,) * len(tail)
    return pl.BlockSpec((1,) + tuple(tail), lambda b: (b,) + zeros)


# ----------------------------- in-kernel helpers -----------------------------

def _add_ln(x, res, g, b):
    """LayerNorm(x + res) over the last dim, eps=1e-5 (PyTorch default), f32."""
    y = x + res
    mean = jnp.mean(y, axis=-1, keepdims=True)
    var = jnp.mean((y - mean) ** 2, axis=-1, keepdims=True)
    return (y - mean) * jax.lax.rsqrt(var + 1e-5) * g + b


def _softmax_attend(q, k, v, bias, nhead):
    """Multi-head softmax attention.

    q: [Sq, P] f32 (scale already folded into Wq), k/v: [Sk, P] f32,
    bias: [1, Sk] f32 key-padding bias (0 / -1e30). Heads are lane slices of
    the P axis; bf16 operands feed the MXU, scores/softmax stay f32.
    """
    p_dim = q.shape[-1]
    dh = p_dim // nhead
    outs = []
    for h in range(nhead):
        lo, hi = h * dh, (h + 1) * dh
        qh = q[:, lo:hi].astype(jnp.bfloat16)
        kh = k[:, lo:hi].astype(jnp.bfloat16)
        vh = v[:, lo:hi].astype(jnp.bfloat16)
        # q @ k^T via dot_general contracting both last dims (no .T relayout).
        s = jax.lax.dot_general(qh, kh, (((1,), (1,)), ((), ())),
                                preferred_element_type=jnp.float32)   # [Sq, Sk]
        s = s + bias                                                   # f32 add
        m = jnp.max(s, axis=-1, keepdims=True)
        e = jnp.exp(s - m)
        denom = jnp.sum(e, axis=-1, keepdims=True)
        p = e * pl.reciprocal(denom, approx=True)
        outs.append(jnp.dot(p.astype(jnp.bfloat16), vh,
                            preferred_element_type=jnp.float32))       # [Sq, dh]
    return jnp.concatenate(outs, axis=-1)                              # [Sq, P]


def _ffn(x, w1, b1, w2, b2):
    """linear -> ReLU -> linear (bf16 matmuls, f32 accumulation/elementwise)."""
    h = jnp.dot(x.astype(jnp.bfloat16), w1,
                preferred_element_type=jnp.float32) + b1
    h = jnp.maximum(h, 0.0)
    return jnp.dot(h.astype(jnp.bfloat16), w2,
                   preferred_element_type=jnp.float32) + b2


# ----------------------------- fused forward kernel -----------------------------

def _fused_forward_kernel(
        # per-batch inputs
        pe_ref, ped_ref, types_ref, mem_bias_ref, tgt_bias_ref,
        # projection weights
        enc_proj_ref, dec_proj_ref,
        # stacked encoder params (leading layer axis)
        e_wqkv, e_bqkv, e_wo, e_bo, e_w1, e_b1, e_w2, e_b2,
        e_g1, e_be1, e_g2, e_be2,
        # stacked decoder params (leading layer axis)
        d_wqkv, d_bqkv, d_wo, d_bo,
        d_cwq, d_cbq, d_cwkv, d_cbkv, d_cwo, d_cbo,
        d_w1, d_b1, d_w2, d_b2,
        d_g1, d_be1, d_g2, d_be2, d_g3, d_be3,
        # output
        o_ref,
        *, nhead, num_enc_layers, num_dec_layers):
    """Whole TransformerGlobalGraph forward for one batch element, in VMEM."""
    mem_bias = mem_bias_ref[0]                 # [1, N] f32
    tgt_bias = tgt_bias_ref[0]                 # [1, M] f32

    # encoder projection (no bias) + type embedding add
    x = jnp.dot(pe_ref[0].astype(jnp.bfloat16), enc_proj_ref[...],
                preferred_element_type=jnp.float32) + types_ref[0]     # [N, P]
    p_dim = x.shape[-1]

    # ---- encoder stack (post-norm) ----
    for l in range(num_enc_layers):
        qkv = jnp.dot(x.astype(jnp.bfloat16), e_wqkv[l],
                      preferred_element_type=jnp.float32) + e_bqkv[l]  # [N, 3P]
        attn = _softmax_attend(qkv[:, :p_dim], qkv[:, p_dim:2 * p_dim],
                               qkv[:, 2 * p_dim:], mem_bias, nhead)
        attn = jnp.dot(attn.astype(jnp.bfloat16), e_wo[l],
                       preferred_element_type=jnp.float32) + e_bo[l]
        x = _add_ln(attn, x, e_g1[l], e_be1[l])
        ff = _ffn(x, e_w1[l], e_b1[l], e_w2[l], e_b2[l])
        x = _add_ln(ff, x, e_g2[l], e_be2[l])

    memory_bf16 = x.astype(jnp.bfloat16)       # cast once, reused by all layers

    # decoder-query projection (no bias)
    tgt = jnp.dot(ped_ref[0].astype(jnp.bfloat16), dec_proj_ref[...],
                  preferred_element_type=jnp.float32)                  # [M, P]

    # ---- decoder stack (post-norm) ----
    for l in range(num_dec_layers):
        # self-attention (fused QKV)
        qkv = jnp.dot(tgt.astype(jnp.bfloat16), d_wqkv[l],
                      preferred_element_type=jnp.float32) + d_bqkv[l]
        sa = _softmax_attend(qkv[:, :p_dim], qkv[:, p_dim:2 * p_dim],
                             qkv[:, 2 * p_dim:], tgt_bias, nhead)
        sa = jnp.dot(sa.astype(jnp.bfloat16), d_wo[l],
                     preferred_element_type=jnp.float32) + d_bo[l]
        tgt = _add_ln(sa, tgt, d_g1[l], d_be1[l])

        # cross-attention: Q from tgt, fused KV from encoder memory
        q = jnp.dot(tgt.astype(jnp.bfloat16), d_cwq[l],
                    preferred_element_type=jnp.float32) + d_cbq[l]
        kv = jnp.dot(memory_bf16, d_cwkv[l],
                     preferred_element_type=jnp.float32) + d_cbkv[l]
        ca = _softmax_attend(q, kv[:, :p_dim], kv[:, p_dim:], mem_bias, nhead)
        ca = jnp.dot(ca.astype(jnp.bfloat16), d_cwo[l],
                     preferred_element_type=jnp.float32) + d_cbo[l]
        tgt = _add_ln(ca, tgt, d_g2[l], d_be2[l])

        # feedforward
        ff = _ffn(tgt, d_w1[l], d_b1[l], d_w2[l], d_b2[l])
        tgt = _add_ln(ff, tgt, d_g3[l], d_be3[l])

    o_ref[0] = tgt


# ----------------------------- model glue -----------------------------

def transformer_global_graph(params, polys_embed, polys_embed_decoder,
                             invalid_mask, tgt_invalid_mask, types, nhead):
    """Matches TransformerGlobalGraph.forward (eval mode / dropout disabled)."""
    assert polys_embed.shape[-1] == params["enc_proj_w"].shape[0]
    assert polys_embed.shape[:-1] == invalid_mask.shape
    assert invalid_mask.dtype == jnp.bool_
    assert polys_embed.shape[:-1] == types.shape[:-1]

    B, N, Din = polys_embed.shape
    M = polys_embed_decoder.shape[1]
    P = params["enc_proj_w"].shape[-1]
    e, d = params["enc"], params["dec"]
    Le, Ld = e["wqkv"].shape[0], d["wqkv"].shape[0]
    F = e["w1"].shape[-1]

    # Key-padding biases: computed ONCE per forward, reused by every layer.
    # Kept f32 (never bf16: -1e30 would saturate).
    mem_bias = jnp.where(invalid_mask[:, None, :], -1e30, 0.0).astype(jnp.float32)
    if tgt_invalid_mask is None:
        tgt_bias = jnp.zeros((B, 1, M), jnp.float32)
    else:
        assert tgt_invalid_mask.dtype == jnp.bool_
        tgt_bias = jnp.where(tgt_invalid_mask[:, None, :], -1e30,
                             0.0).astype(jnp.float32)

    kernel = functools.partial(_fused_forward_kernel, nhead=nhead,
                               num_enc_layers=Le, num_dec_layers=Ld)

    in_specs = [
        _bat_spec(N, Din),             # polys_embed
        _bat_spec(M, Din),             # polys_embed_decoder
        _bat_spec(N, P),               # types
        _bat_spec(1, N),               # memory key-padding bias
        _bat_spec(1, M),               # tgt key-padding bias
        _rep_spec(Din, P),             # encoder projection W
        _rep_spec(Din, P),             # decoder projection W
        # encoder stacks
        _rep_spec(Le, P, 3 * P), _rep_spec(Le, 1, 3 * P),
        _rep_spec(Le, P, P), _rep_spec(Le, 1, P),
        _rep_spec(Le, P, F), _rep_spec(Le, 1, F),
        _rep_spec(Le, F, P), _rep_spec(Le, 1, P),
        _rep_spec(Le, 1, P), _rep_spec(Le, 1, P),
        _rep_spec(Le, 1, P), _rep_spec(Le, 1, P),
        # decoder stacks
        _rep_spec(Ld, P, 3 * P), _rep_spec(Ld, 1, 3 * P),
        _rep_spec(Ld, P, P), _rep_spec(Ld, 1, P),
        _rep_spec(Ld, P, P), _rep_spec(Ld, 1, P),
        _rep_spec(Ld, P, 2 * P), _rep_spec(Ld, 1, 2 * P),
        _rep_spec(Ld, P, P), _rep_spec(Ld, 1, P),
        _rep_spec(Ld, P, F), _rep_spec(Ld, 1, F),
        _rep_spec(Ld, F, P), _rep_spec(Ld, 1, P),
        _rep_spec(Ld, 1, P), _rep_spec(Ld, 1, P),
        _rep_spec(Ld, 1, P), _rep_spec(Ld, 1, P),
        _rep_spec(Ld, 1, P), _rep_spec(Ld, 1, P),
    ]

    return pl.pallas_call(
        kernel,
        out_shape=jax.ShapeDtypeStruct((B, M, P), jnp.float32),
        grid=(B,),
        in_specs=in_specs,
        out_specs=_bat_spec(M, P),
        compiler_params=_COMPILER_PARAMS,
    )(polys_embed, polys_embed_decoder, types.astype(jnp.float32),
      mem_bias, tgt_bias,
      params["enc_proj_w"], params["dec_proj_w"],
      e["wqkv"], e["bqkv"], e["wo"], e["bo"],
      e["w1"], e["b1"], e["w2"], e["b2"],
      e["ln1_g"], e["ln1_b"], e["ln2_g"], e["ln2_b"],
      d["wqkv"], d["bqkv"], d["wo"], d["bo"],
      d["ca_wq"], d["ca_bq"], d["ca_wkv"], d["ca_bkv"], d["ca_wo"], d["ca_bo"],
      d["w1"], d["b1"], d["w2"], d["b2"],
      d["ln1_g"], d["ln1_b"], d["ln2_g"], d["ln2_b"], d["ln3_g"], d["ln3_b"])


# ----------------------------- parameters -----------------------------

def init_torch_params(key, dim_in, proj_dim, nhead, dim_ff,
                      num_layers, num_dec_layers):
    """PyTorch-convention parameters ([Dout, Din] weights)."""
    keys = iter(jax.random.split(key, 256))

    def xavier(shape):
        fan_out, fan_in = shape[0], shape[-1]
        lim = (6.0 / (fan_in + fan_out)) ** 0.5
        return jax.random.uniform(next(keys), shape, jnp.float32, -lim, lim)

    def attn():
        return dict(
            in_proj_w=xavier((3 * proj_dim, proj_dim)),
            in_proj_b=jnp.zeros((3 * proj_dim,), jnp.float32),
            out_proj_w=xavier((proj_dim, proj_dim)),
            out_proj_b=jnp.zeros((proj_dim,), jnp.float32),
        )

    def enc_layer():
        return dict(
            self_attn=attn(),
            lin1_w=xavier((dim_ff, proj_dim)), lin1_b=jnp.zeros((dim_ff,), jnp.float32),
            lin2_w=xavier((proj_dim, dim_ff)), lin2_b=jnp.zeros((proj_dim,), jnp.float32),
            norm1_g=jnp.ones((proj_dim,), jnp.float32), norm1_b=jnp.zeros((proj_dim,), jnp.float32),
            norm2_g=jnp.ones((proj_dim,), jnp.float32), norm2_b=jnp.zeros((proj_dim,), jnp.float32),
        )

    def dec_layer():
        dl = enc_layer()
        dl["cross_attn"] = attn()
        dl["norm3_g"] = jnp.ones((proj_dim,), jnp.float32)
        dl["norm3_b"] = jnp.zeros((proj_dim,), jnp.float32)
        return dl

    return dict(
        enc_proj_w=xavier((proj_dim, dim_in)),
        dec_proj_w=xavier((proj_dim, dim_in)),
        encoder_layers=[enc_layer() for _ in range(num_layers)],
        decoder_layers=[dec_layer() for _ in range(num_dec_layers)],
    )


def prepare_params(raw, nhead):
    """PyTorch layout -> kernel layout (done once, outside the hot path):
       * matmul weights transposed to [Din, Dout] and cast to bf16
       * biases / LayerNorm params as [1, D] f32 rows
       * attention scale 1/sqrt(head_dim) folded into Wq / bq
       * per-layer params STACKED along a leading layer axis (single fused call)
    """
    def t(w):                                   # [Dout, Din] -> [Din, Dout] bf16
        return jnp.transpose(w).astype(jnp.bfloat16)

    def row(b):                                 # [D] -> [1, D] f32
        return b.reshape(1, -1).astype(jnp.float32)

    def enc_flat(l):
        a = l["self_attn"]
        p_dim = a["out_proj_w"].shape[0]
        scale = float(p_dim // nhead) ** -0.5
        w = a["in_proj_w"].at[:p_dim].multiply(scale)
        b = a["in_proj_b"].at[:p_dim].multiply(scale)
        return dict(
            wqkv=t(w), bqkv=row(b),
            wo=t(a["out_proj_w"]), bo=row(a["out_proj_b"]),
            w1=t(l["lin1_w"]), b1=row(l["lin1_b"]),
            w2=t(l["lin2_w"]), b2=row(l["lin2_b"]),
            ln1_g=row(l["norm1_g"]), ln1_b=row(l["norm1_b"]),
            ln2_g=row(l["norm2_g"]), ln2_b=row(l["norm2_b"]))

    def dec_flat(l):
        dl = enc_flat(l)
        a = l["cross_attn"]
        p_dim = a["out_proj_w"].shape[0]
        scale = float(p_dim // nhead) ** -0.5
        w, b = a["in_proj_w"], a["in_proj_b"]
        dl.update(
            ca_wq=t(w[:p_dim] * scale), ca_bq=row(b[:p_dim] * scale),
            ca_wkv=t(w[p_dim:]), ca_bkv=row(b[p_dim:]),
            ca_wo=t(a["out_proj_w"]), ca_bo=row(a["out_proj_b"]),
            ln3_g=row(l["norm3_g"]), ln3_b=row(l["norm3_b"]))
        return dl

    def stack(dicts):
        return {k: jnp.stack([dd[k] for dd in dicts]) for k in dicts[0]}

    return dict(
        enc_proj_w=t(raw["enc_proj_w"]),
        dec_proj_w=t(raw["dec_proj_w"]),
        enc=stack([enc_flat(l) for l in raw["encoder_layers"]]),
        dec=stack([dec_flat(l) for l in raw["decoder_layers"]]),
    )


# ----------------------------- pure-JAX reference -----------------------------

def reference_forward(raw, polys_embed, polys_embed_decoder, invalid_mask,
                      tgt_invalid_mask, types, nhead):
    """f32 reference of the PyTorch module (eval mode) for validation."""
    def lin(x, w, b=None):
        y = x @ w.T
        return y if b is None else y + b

    def ln(x, g, b):
        m = x.mean(-1, keepdims=True)
        v = ((x - m) ** 2).mean(-1, keepdims=True)
        return (x - m) / jnp.sqrt(v + 1e-5) * g + b

    def mha(xq, xkv, mask, a):
        p_dim = a["out_proj_w"].shape[0]
        dh = p_dim // nhead
        wq, wk, wv = jnp.split(a["in_proj_w"], 3, 0)
        bq, bk, bv = jnp.split(a["in_proj_b"], 3, 0)
        q, k, v = lin(xq, wq, bq), lin(xkv, wk, bk), lin(xkv, wv, bv)
        B, Sq, _ = q.shape
        Sk = k.shape[1]
        q = q.reshape(B, Sq, nhead, dh).transpose(0, 2, 1, 3) * dh ** -0.5
        k = k.reshape(B, Sk, nhead, dh).transpose(0, 2, 1, 3)
        v = v.reshape(B, Sk, nhead, dh).transpose(0, 2, 1, 3)
        s = jnp.einsum("bhqd,bhkd->bhqk", q, k)
        s = s + jnp.where(mask, -1e30, 0.0)[:, None, None, :]
        p = jax.nn.softmax(s, axis=-1)
        o = jnp.einsum("bhqk,bhkd->bhqd", p, v)
        o = o.transpose(0, 2, 1, 3).reshape(B, Sq, p_dim)
        return lin(o, a["out_proj_w"], a["out_proj_b"])

    def enc_layer(x, l):
        x = ln(x + mha(x, x, invalid_mask, l["self_attn"]), l["norm1_g"], l["norm1_b"])
        ff = lin(jax.nn.relu(lin(x, l["lin1_w"], l["lin1_b"])), l["lin2_w"], l["lin2_b"])
        return ln(x + ff, l["norm2_g"], l["norm2_b"])

    def dec_layer(t, mem, l):
        t = ln(t + mha(t, t, tgt_invalid_mask, l["self_attn"]), l["norm1_g"], l["norm1_b"])
        t = ln(t + mha(t, mem, invalid_mask, l["cross_attn"]), l["norm2_g"], l["norm2_b"])
        ff = lin(jax.nn.relu(lin(t, l["lin1_w"], l["lin1_b"])), l["lin2_w"], l["lin2_b"])
        return ln(t + ff, l["norm3_g"], l["norm3_b"])

    x = lin(polys_embed, raw["enc_proj_w"]) + types
    for l in raw["encoder_layers"]:
        x = enc_layer(x, l)
    t = lin(polys_embed_decoder, raw["dec_proj_w"])
    for l in raw["decoder_layers"]:
        t = dec_layer(t, x, l)
    return t


# ----------------------------- main -----------------------------

if __name__ == "__main__":
    # Small, module-consistent, lane-dense shapes.
    B, N, M = 2, 8, 8                    # batch, num_polylines, num_output_polylines
    DIM_IN, PROJ, NHEAD, FF = 32, 128, 4, 128
    NUM_LAYERS, NUM_DEC_LAYERS = 2, 2

    root = jax.random.PRNGKey(0)
    k_par, k_pe, k_ped, k_types = jax.random.split(root, 4)

    raw_params = init_torch_params(k_par, DIM_IN, PROJ, NHEAD, FF,
                                   NUM_LAYERS, NUM_DEC_LAYERS)
    params = prepare_params(raw_params, NHEAD)

    polys_embed = jax.random.normal(k_pe, (B, N, DIM_IN), jnp.float32)
    polys_embed_decoder = jax.random.normal(k_ped, (B, M, DIM_IN), jnp.float32)
    types = 0.1 * jax.random.normal(k_types, (B, N, PROJ), jnp.float32)
    # Mark the last two polylines of each batch element as invalid.
    invalid_mask = jnp.broadcast_to(jnp.arange(N) >= N - 2, (B, N))
    tgt_invalid_mask = jnp.zeros((B, M), dtype=jnp.bool_)

    fwd = jax.jit(functools.partial(transformer_global_graph, nhead=NHEAD))
    out = fwd(params, polys_embed, polys_embed_decoder,
              invalid_mask, tgt_invalid_mask, types)
    out = jax.block_until_ready(out)

    assert out.shape == (B, M, PROJ), out.shape
    assert bool(jnp.all(jnp.isfinite(out)))

    # Validate against the f32 pure-JAX reference (bf16 matmuls -> loose tol).
    ref = reference_forward(raw_params, polys_embed, polys_embed_decoder,
                            invalid_mask, tgt_invalid_mask, types, NHEAD)
    rel_err = float(jnp.linalg.norm(out - ref) / jnp.linalg.norm(ref))
    assert rel_err < 0.1, f"relative error too large: {rel_err}"

    print("KERNEL_OK")
</pallas_src>

<mosaic_0001>
module attributes {stable_mosaic.version = 11 : i64} {
  func.func @_fused_forward_kernel(%arg0: i32, %arg1: memref<1x8x32xf32, #tpu.memory_space<vmem>>, %arg2: memref<1x8x32xf32, #tpu.memory_space<vmem>>, %arg3: memref<1x8x128xf32, #tpu.memory_space<vmem>>, %arg4: memref<1x1x8xf32, #tpu.memory_space<vmem>>, %arg5: memref<1x1x8xf32, #tpu.memory_space<vmem>>, %arg6: memref<32x128xbf16, #tpu.memory_space<vmem>>, %arg7: memref<32x128xbf16, #tpu.memory_space<vmem>>, %arg8: memref<2x128x384xbf16, #tpu.memory_space<vmem>>, %arg9: memref<2x1x384xf32, #tpu.memory_space<vmem>>, %arg10: memref<2x128x128xbf16, #tpu.memory_space<vmem>>, %arg11: memref<2x1x128xf32, #tpu.memory_space<vmem>>, %arg12: memref<2x128x128xbf16, #tpu.memory_space<vmem>>, %arg13: memref<2x1x128xf32, #tpu.memory_space<vmem>>, %arg14: memref<2x128x128xbf16, #tpu.memory_space<vmem>>, %arg15: memref<2x1x128xf32, #tpu.memory_space<vmem>>, %arg16: memref<2x1x128xf32, #tpu.memory_space<vmem>>, %arg17: memref<2x1x128xf32, #tpu.memory_space<vmem>>, %arg18: memref<2x1x128xf32, #tpu.memory_space<vmem>>, %arg19: memref<2x1x128xf32, #tpu.memory_space<vmem>>, %arg20: memref<2x128x384xbf16, #tpu.memory_space<vmem>>, %arg21: memref<2x1x384xf32, #tpu.memory_space<vmem>>, %arg22: memref<2x128x128xbf16, #tpu.memory_space<vmem>>, %arg23: memref<2x1x128xf32, #tpu.memory_space<vmem>>, %arg24: memref<2x128x128xbf16, #tpu.memory_space<vmem>>, %arg25: memref<2x1x128xf32, #tpu.memory_space<vmem>>, %arg26: memref<2x128x256xbf16, #tpu.memory_space<vmem>>, %arg27: memref<2x1x256xf32, #tpu.memory_space<vmem>>, %arg28: memref<2x128x128xbf16, #tpu.memory_space<vmem>>, %arg29: memref<2x1x128xf32, #tpu.memory_space<vmem>>, %arg30: memref<2x128x128xbf16, #tpu.memory_space<vmem>>, %arg31: memref<2x1x128xf32, #tpu.memory_space<vmem>>, %arg32: memref<2x128x128xbf16, #tpu.memory_space<vmem>>, %arg33: memref<2x1x128xf32, #tpu.memory_space<vmem>>, %arg34: memref<2x1x128xf32, #tpu.memory_space<vmem>>, %arg35: memref<2x1x128xf32, #tpu.memory_space<vmem>>, %arg36: memref<2x1x128xf32, #tpu.memory_space<vmem>>, %arg37: memref<2x1x128xf32, #tpu.memory_space<vmem>>, %arg38: memref<2x1x128xf32, #tpu.memory_space<vmem>>, %arg39: memref<2x1x128xf32, #tpu.memory_space<vmem>>, %arg40: memref<1x8x128xf32, #tpu.memory_space<vmem>>) attributes {dimension_semantics = [#tpu.dimension_semantics<parallel>], iteration_bounds = array<i64: 2>, scalar_prefetch = 0 : i64, scratch_operands = 0 : i64, tpu.core_type = #tpu.core_type<tc>, window_params = [{transform_indices = @transform_0, window_bounds = array<i64: 1, 8, 32>}, {transform_indices = @transform_1, window_bounds = array<i64: 1, 8, 32>}, {transform_indices = @transform_2, window_bounds = array<i64: 1, 8, 128>}, {transform_indices = @transform_3, window_bounds = array<i64: 1, 1, 8>}, {transform_indices = @transform_4, window_bounds = array<i64: 1, 1, 8>}, {pipeline_mode = #tpu.pipeline_mode<synchronous>, transform_indices = @transform_5, window_bounds = array<i64: 32, 128>}, {pipeline_mode = #tpu.pipeline_mode<synchronous>, transform_indices = @transform_6, window_bounds = array<i64: 32, 128>}, {pipeline_mode = #tpu.pipeline_mode<synchronous>, transform_indices = @transform_7, window_bounds = array<i64: 2, 128, 384>}, {pipeline_mode = #tpu.pipeline_mode<synchronous>, transform_indices = @transform_8, window_bounds = array<i64: 2, 1, 384>}, {pipeline_mode = #tpu.pipeline_mode<synchronous>, transform_indices = @transform_9, window_bounds = array<i64: 2, 128, 128>}, {pipeline_mode = #tpu.pipeline_mode<synchronous>, transform_indices = @transform_10, window_bounds = array<i64: 2, 1, 128>}, {pipeline_mode = #tpu.pipeline_mode<synchronous>, transform_indices = @transform_11, window_bounds = array<i64: 2, 128, 128>}, {pipeline_mode = #tpu.pipeline_mode<synchronous>, transform_indices = @transform_12, window_bounds = array<i64: 2, 1, 128>}, {pipeline_mode = #tpu.pipeline_mode<synchronous>, transform_indices = @transform_13, window_bounds = array<i64: 2, 128, 128>}, {pipeline_mode = #tpu.pipeline_mode<synchronous>, transform_indices = @transform_14, window_bounds = array<i64: 2, 1, 128>}, {pipeline_mode = #tpu.pipeline_mode<synchronous>, transform_indices = @transform_15, window_bounds = array<i64: 2, 1, 128>}, {pipeline_mode = #tpu.pipeline_mode<synchronous>, transform_indices = @transform_16, window_bounds = array<i64: 2, 1, 128>}, {pipeline_mode = #tpu.pipeline_mode<synchronous>, transform_indices = @transform_17, window_bounds = array<i64: 2, 1, 128>}, {pipeline_mode = #tpu.pipeline_mode<synchronous>, transform_indices = @transform_18, window_bounds = array<i64: 2, 1, 128>}, {pipeline_mode = #tpu.pipeline_mode<synchronous>, transform_indices = @transform_19, window_bounds = array<i64: 2, 128, 384>}, {pipeline_mode = #tpu.pipeline_mode<synchronous>, transform_indices = @transform_20, window_bounds = array<i64: 2, 1, 384>}, {pipeline_mode = #tpu.pipeline_mode<synchronous>, transform_indices = @transform_21, window_bounds = array<i64: 2, 128, 128>}, {pipeline_mode = #tpu.pipeline_mode<synchronous>, transform_indices = @transform_22, window_bounds = array<i64: 2, 1, 128>}, {pipeline_mode = #tpu.pipeline_mode<synchronous>, transform_indices = @transform_23, window_bounds = array<i64: 2, 128, 128>}, {pipeline_mode = #tpu.pipeline_mode<synchronous>, transform_indices = @transform_24, window_bounds = array<i64: 2, 1, 128>}, {pipeline_mode = #tpu.pipeline_mode<synchronous>, transform_indices = @transform_25, window_bounds = array<i64: 2, 128, 256>}, {pipeline_mode = #tpu.pipeline_mode<synchronous>, transform_indices = @transform_26, window_bounds = array<i64: 2, 1, 256>}, {pipeline_mode = #tpu.pipeline_mode<synchronous>, transform_indices = @transform_27, window_bounds = array<i64: 2, 128, 128>}, {pipeline_mode = #tpu.pipeline_mode<synchronous>, transform_indices = @transform_28, window_bounds = array<i64: 2, 1, 128>}, {pipeline_mode = #tpu.pipeline_mode<synchronous>, transform_indices = @transform_29, window_bounds = array<i64: 2, 128, 128>}, {pipeline_mode = #tpu.pipeline_mode<synchronous>, transform_indices = @transform_30, window_bounds = array<i64: 2, 1, 128>}, {pipeline_mode = #tpu.pipeline_mode<synchronous>, transform_indices = @transform_31, window_bounds = array<i64: 2, 128, 128>}, {pipeline_mode = #tpu.pipeline_mode<synchronous>, transform_indices = @transform_32, window_bounds = array<i64: 2, 1, 128>}, {pipeline_mode = #tpu.pipeline_mode<synchronous>, transform_indices = @transform_33, window_bounds = array<i64: 2, 1, 128>}, {pipeline_mode = #tpu.pipeline_mode<synchronous>, transform_indices = @transform_34, window_bounds = array<i64: 2, 1, 128>}, {pipeline_mode = #tpu.pipeline_mode<synchronous>, transform_indices = @transform_35, window_bounds = array<i64: 2, 1, 128>}, {pipeline_mode = #tpu.pipeline_mode<synchronous>, transform_indices = @transform_36, window_bounds = array<i64: 2, 1, 128>}, {pipeline_mode = #tpu.pipeline_mode<synchronous>, transform_indices = @transform_37, window_bounds = array<i64: 2, 1, 128>}, {pipeline_mode = #tpu.pipeline_mode<synchronous>, transform_indices = @transform_38, window_bounds = array<i64: 2, 1, 128>}, {transform_indices = @transform_39, window_bounds = array<i64: 1, 8, 128>}]} {
    %c0 = arith.constant 0 : index
    %c0_0 = arith.constant 0 : index
    %c0_1 = arith.constant 0 : index
    %0 = vector.load %arg4[%c0, %c0_0, %c0_1] : memref<1x1x8xf32, #tpu.memory_space<vmem>>, vector<1x1x8xf32>
    %1 = vector.shape_cast %0 : vector<1x1x8xf32> to vector<1x8xf32>
    %c0_2 = arith.constant 0 : index
    %c0_3 = arith.constant 0 : index
    %c0_4 = arith.constant 0 : index
    %2 = vector.load %arg5[%c0_2, %c0_3, %c0_4] : memref<1x1x8xf32, #tpu.memory_space<vmem>>, vector<1x1x8xf32>
    %3 = vector.shape_cast %2 : vector<1x1x8xf32> to vector<1x8xf32>
    %c0_5 = arith.constant 0 : index
    %c0_6 = arith.constant 0 : index
    %c0_7 = arith.constant 0 : index
    %4 = vector.load %arg1[%c0_5, %c0_6, %c0_7] : memref<1x8x32xf32, #tpu.memory_space<vmem>>, vector<1x8x32xf32>
    %5 = vector.shape_cast %4 : vector<1x8x32xf32> to vector<8x32xf32>
    %6 = arith.truncf %5 : vector<8x32xf32> to vector<8x32xbf16>
    %c0_8 = arith.constant 0 : index
    %c0_9 = arith.constant 0 : index
    %7 = vector.load %arg6[%c0_8, %c0_9] : memref<32x128xbf16, #tpu.memory_space<vmem>>, vector<32x128xbf16>
    %cst = arith.constant dense<0.000000e+00> : vector<8x128xf32>
    %8 = tpu.matmul %6, %7, %cst {dimension_numbers = #tpu.dot_dimension_numbers<[1], [0], [0], [1], [0, 0, 1, 1], [], []>} : vector<8x32xbf16>, vector<32x128xbf16>, vector<8x128xf32> -> vector<8x128xf32>
    %c0_10 = arith.constant 0 : index
    %c0_11 = arith.constant 0 : index
    %c0_12 = arith.constant 0 : index
    %9 = vector.load %arg3[%c0_10, %c0_11, %c0_12] : memref<1x8x128xf32, #tpu.memory_space<vmem>>, vector<1x8x128xf32>
    %10 = vector.shape_cast %9 : vector<1x8x128xf32> to vector<8x128xf32>
    %11 = arith.addf %8, %10 : vector<8x128xf32>
    %12 = arith.truncf %11 : vector<8x128xf32> to vector<8x128xbf16>
    %c0_13 = arith.constant 0 : index
    %c0_14 = arith.constant 0 : index
    %c0_15 = arith.constant 0 : index
    %13 = vector.load %arg8[%c0_13, %c0_14, %c0_15] : memref<2x128x384xbf16, #tpu.memory_space<vmem>>, vector<1x128x384xbf16>
    %14 = vector.shape_cast %13 : vector<1x128x384xbf16> to vector<128x384xbf16>
    %cst_16 = arith.constant dense<0.000000e+00> : vector<8x384xf32>
    %15 = tpu.matmul %12, %14, %cst_16 {dimension_numbers = #tpu.dot_dimension_numbers<[1], [0], [0], [1], [0, 0, 1, 1], [], []>} : vector<8x128xbf16>, vector<128x384xbf16>, vector<8x384xf32> -> vector<8x384xf32>
    %c0_17 = arith.constant 0 : index
    %c0_18 = arith.constant 0 : index
    %c0_19 = arith.constant 0 : index
    %16 = vector.load %arg9[%c0_17, %c0_18, %c0_19] : memref<2x1x384xf32, #tpu.memory_space<vmem>>, vector<1x1x384xf32>
    %17 = vector.shape_cast %16 : vector<1x1x384xf32> to vector<1x384xf32>
    %18 = vector.broadcast %17 : vector<1x384xf32> to vector<8x384xf32>
    %19 = arith.addf %15, %18 : vector<8x384xf32>
    %20 = vector.extract_strided_slice %19 {offsets = [0, 0], sizes = [8, 128], strides = [1, 1]} : vector<8x384xf32> to vector<8x128xf32>
    %21 = vector.extract_strided_slice %19 {offsets = [0, 128], sizes = [8, 128], strides = [1, 1]} : vector<8x384xf32> to vector<8x128xf32>
    %22 = vector.extract_strided_slice %19 {offsets = [0, 256], sizes = [8, 128], strides = [1, 1]} : vector<8x384xf32> to vector<8x128xf32>
    %23 = vector.extract_strided_slice %20 {offsets = [0, 0], sizes = [8, 32], strides = [1, 1]} : vector<8x128xf32> to vector<8x32xf32>
    %24 = arith.truncf %23 : vector<8x32xf32> to vector<8x32xbf16>
    %25 = vector.extract_strided_slice %21 {offsets = [0, 0], sizes = [8, 32], strides = [1, 1]} : vector<8x128xf32> to vector<8x32xf32>
    %26 = arith.truncf %25 : vector<8x32xf32> to vector<8x32xbf16>
    %27 = vector.extract_strided_slice %22 {offsets = [0, 0], sizes = [8, 32], strides = [1, 1]} : vector<8x128xf32> to vector<8x32xf32>
    %28 = arith.truncf %27 : vector<8x32xf32> to vector<8x32xbf16>
    %cst_20 = arith.constant dense<0.000000e+00> : vector<8x8xf32>
    %29 = tpu.matmul %24, %26, %cst_20 {dimension_numbers = #tpu.dot_dimension_numbers<[1], [1], [0], [0], [0, 0, 1, 0], [], []>} : vector<8x32xbf16>, vector<8x32xbf16>, vector<8x8xf32> -> vector<8x8xf32>
    %30 = vector.broadcast %1 : vector<1x8xf32> to vector<8x8xf32>
    %31 = arith.addf %29, %30 : vector<8x8xf32>
    %cst_21 = arith.constant dense<0xFF800000> : vector<8xf32>
    %32 = vector.multi_reduction <maximumf>, %31, %cst_21 [1] : vector<8x8xf32> to vector<8xf32>
    %33 = vector.shape_cast %32 : vector<8xf32> to vector<8x1xf32>
    %34 = vector.broadcast %33 : vector<8x1xf32> to vector<8x8xf32>
    %35 = arith.subf %31, %34 : vector<8x8xf32>
    %36 = math.exp %35 : vector<8x8xf32>
    %cst_22 = arith.constant dense<0.000000e+00> : vector<8xf32>
    %37 = vector.multi_reduction <add>, %36, %cst_22 [1] : vector<8x8xf32> to vector<8xf32>
    %38 = vector.shape_cast %37 : vector<8xf32> to vector<8x1xf32>
    %39 = tpu.reciprocal %38 {approx = true} : vector<8x1xf32> -> vector<8x1xf32>
    %40 = vector.broadcast %39 : vector<8x1xf32> to vector<8x8xf32>
    %41 = arith.mulf %36, %40 : vector<8x8xf32>
    %42 = arith.truncf %41 : vector<8x8xf32> to vector<8x8xbf16>
    %cst_23 = arith.constant dense<0.000000e+00> : vector<8x32xf32>
    %43 = tpu.matmul %42, %28, %cst_23 {dimension_numbers = #tpu.dot_dimension_numbers<[1], [0], [0], [1], [0, 0, 1, 1], [], []>} : vector<8x8xbf16>, vector<8x32xbf16>, vector<8x32xf32> -> vector<8x32xf32>
    %44 = vector.extract_strided_slice %20 {offsets = [0, 32], sizes = [8, 32], strides = [1, 1]} : vector<8x128xf32> to vector<8x32xf32>
    %45 = arith.truncf %44 : vector<8x32xf32> to vector<8x32xbf16>
    %46 = vector.extract_strided_slice %21 {offsets = [0, 32], sizes = [8, 32], strides = [1, 1]} : vector<8x128xf32> to vector<8x32xf32>
    %47 = arith.truncf %46 : vector<8x32xf32> to vector<8x32xbf16>
    %48 = vector.extract_strided_slice %22 {offsets = [0, 32], sizes = [8, 32], strides = [1, 1]} : vector<8x128xf32> to vector<8x32xf32>
    %49 = arith.truncf %48 : vector<8x32xf32> to vector<8x32xbf16>
    %cst_24 = arith.constant dense<0.000000e+00> : vector<8x8xf32>
    %50 = tpu.matmul %45, %47, %cst_24 {dimension_numbers = #tpu.dot_dimension_numbers<[1], [1], [0], [0], [0, 0, 1, 0], [], []>} : vector<8x32xbf16>, vector<8x32xbf16>, vector<8x8xf32> -> vector<8x8xf32>
    %51 = vector.broadcast %1 : vector<1x8xf32> to vector<8x8xf32>
    %52 = arith.addf %50, %51 : vector<8x8xf32>
    %cst_25 = arith.constant dense<0xFF800000> : vector<8xf32>
    %53 = vector.multi_reduction <maximumf>, %52, %cst_25 [1] : vector<8x8xf32> to vector<8xf32>
    %54 = vector.shape_cast %53 : vector<8xf32> to vector<8x1xf32>
    %55 = vector.broadcast %54 : vector<8x1xf32> to vector<8x8xf32>
    %56 = arith.subf %52, %55 : vector<8x8xf32>
    %57 = math.exp %56 : vector<8x8xf32>
    %cst_26 = arith.constant dense<0.000000e+00> : vector<8xf32>
    %58 = vector.multi_reduction <add>, %57, %cst_26 [1] : vector<8x8xf32> to vector<8xf32>
    %59 = vector.shape_cast %58 : vector<8xf32> to vector<8x1xf32>
    %60 = tpu.reciprocal %59 {approx = true} : vector<8x1xf32> -> vector<8x1xf32>
    %61 = vector.broadcast %60 : vector<8x1xf32> to vector<8x8xf32>
    %62 = arith.mulf %57, %61 : vector<8x8xf32>
    %63 = arith.truncf %62 : vector<8x8xf32> to vector<8x8xbf16>
    %cst_27 = arith.constant dense<0.000000e+00> : vector<8x32xf32>
    %64 = tpu.matmul %63, %49, %cst_27 {dimension_numbers = #tpu.dot_dimension_numbers<[1], [0], [0], [1], [0, 0, 1, 1], [], []>} : vector<8x8xbf16>, vector<8x32xbf16>, vector<8x32xf32> -> vector<8x32xf32>
    %65 = vector.extract_strided_slice %20 {offsets = [0, 64], sizes = [8, 32], strides = [1, 1]} : vector<8x128xf32> to vector<8x32xf32>
    %66 = arith.truncf %65 : vector<8x32xf32> to vector<8x32xbf16>
    %67 = vector.extract_strided_slice %21 {offsets = [0, 64], sizes = [8, 32], strides = [1, 1]} : vector<8x128xf32> to vector<8x32xf32>
    %68 = arith.truncf %67 : vector<8x32xf32> to vector<8x32xbf16>
    %69 = vector.extract_strided_slice %22 {offsets = [0, 64], sizes = [8, 32], strides = [1, 1]} : vector<8x128xf32> to vector<8x32xf32>
    %70 = arith.truncf %69 : vector<8x32xf32> to vector<8x32xbf16>
    %cst_28 = arith.constant dense<0.000000e+00> : vector<8x8xf32>
    %71 = tpu.matmul %66, %68, %cst_28 {dimension_numbers = #tpu.dot_dimension_numbers<[1], [1], [0], [0], [0, 0, 1, 0], [], []>} : vector<8x32xbf16>, vector<8x32xbf16>, vector<8x8xf32> -> vector<8x8xf32>
    %72 = vector.broadcast %1 : vector<1x8xf32> to vector<8x8xf32>
    %73 = arith.addf %71, %72 : vector<8x8xf32>
    %cst_29 = arith.constant dense<0xFF800000> : vector<8xf32>
    %74 = vector.multi_reduction <maximumf>, %73, %cst_29 [1] : vector<8x8xf32> to vector<8xf32>
    %75 = vector.shape_cast %74 : vector<8xf32> to vector<8x1xf32>
    %76 = vector.broadcast %75 : vector<8x1xf32> to vector<8x8xf32>
    %77 = arith.subf %73, %76 : vector<8x8xf32>
    %78 = math.exp %77 : vector<8x8xf32>
    %cst_30 = arith.constant dense<0.000000e+00> : vector<8xf32>
    %79 = vector.multi_reduction <add>, %78, %cst_30 [1] : vector<8x8xf32> to vector<8xf32>
    %80 = vector.shape_cast %79 : vector<8xf32> to vector<8x1xf32>
    %81 = tpu.reciprocal %80 {approx = true} : vector<8x1xf32> -> vector<8x1xf32>
    %82 = vector.broadcast %81 : vector<8x1xf32> to vector<8x8xf32>
    %83 = arith.mulf %78, %82 : vector<8x8xf32>
    %84 = arith.truncf %83 : vector<8x8xf32> to vector<8x8xbf16>
    %cst_31 = arith.constant dense<0.000000e+00> : vector<8x32xf32>
    %85 = tpu.matmul %84, %70, %cst_31 {dimension_numbers = #tpu.dot_dimension_numbers<[1], [0], [0], [1], [0, 0, 1, 1], [], []>} : vector<8x8xbf16>, vector<8x32xbf16>, vector<8x32xf32> -> vector<8x32xf32>
    %86 = vector.extract_strided_slice %20 {offsets = [0, 96], sizes = [8, 32], strides = [1, 1]} : vector<8x128xf32> to vector<8x32xf32>
    %87 = arith.truncf %86 : vector<8x32xf32> to vector<8x32xbf16>
    %88 = vector.extract_strided_slice %21 {offsets = [0, 96], sizes = [8, 32], strides = [1, 1]} : vector<8x128xf32> to vector<8x32xf32>
    %89 = arith.truncf %88 : vector<8x32xf32> to vector<8x32xbf16>
    %90 = vector.extract_strided_slice %22 {offsets = [0, 96], sizes = [8, 32], strides = [1, 1]} : vector<8x128xf32> to vector<8x32xf32>
    %91 = arith.truncf %90 : vector<8x32xf32> to vector<8x32xbf16>
    %cst_32 = arith.constant dense<0.000000e+00> : vector<8x8xf32>
    %92 = tpu.matmul %87, %89, %cst_32 {dimension_numbers = #tpu.dot_dimension_numbers<[1], [1], [0], [0], [0, 0, 1, 0], [], []>} : vector<8x32xbf16>, vector<8x32xbf16>, vector<8x8xf32> -> vector<8x8xf32>
    %93 = vector.broadcast %1 : vector<1x8xf32> to vector<8x8xf32>
    %94 = arith.addf %92, %93 : vector<8x8xf32>
    %cst_33 = arith.constant dense<0xFF800000> : vector<8xf32>
    %95 = vector.multi_reduction <maximumf>, %94, %cst_33 [1] : vector<8x8xf32> to vector<8xf32>
    %96 = vector.shape_cast %95 : vector<8xf32> to vector<8x1xf32>
    %97 = vector.broadcast %96 : vector<8x1xf32> to vector<8x8xf32>
    %98 = arith.subf %94, %97 : vector<8x8xf32>
    %99 = math.exp %98 : vector<8x8xf32>
    %cst_34 = arith.constant dense<0.000000e+00> : vector<8xf32>
    %100 = vector.multi_reduction <add>, %99, %cst_34 [1] : vector<8x8xf32> to vector<8xf32>
    %101 = vector.shape_cast %100 : vector<8xf32> to vector<8x1xf32>
    %102 = tpu.reciprocal %101 {approx = true} : vector<8x1xf32> -> vector<8x1xf32>
    %103 = vector.broadcast %102 : vector<8x1xf32> to vector<8x8xf32>
    %104 = arith.mulf %99, %103 : vector<8x8xf32>
    %105 = arith.truncf %104 : vector<8x8xf32> to vector<8x8xbf16>
    %cst_35 = arith.constant dense<0.000000e+00> : vector<8x32xf32>
    %106 = tpu.matmul %105, %91, %cst_35 {dimension_numbers = #tpu.dot_dimension_numbers<[1], [0], [0], [1], [0, 0, 1, 1], [], []>} : vector<8x8xbf16>, vector<8x32xbf16>, vector<8x32xf32> -> vector<8x32xf32>
    %107 = tpu.concatenate %43, %64, %85, %106 in 1 : vector<8x32xf32>, vector<8x32xf32>, vector<8x32xf32>, vector<8x32xf32> -> vector<8x128xf32>
    %108 = arith.truncf %107 : vector<8x128xf32> to vector<8x128xbf16>
    %c0_36 = arith.constant 0 : index
    %c0_37 = arith.constant 0 : index
    %c0_38 = arith.constant 0 : index
    %109 = vector.load %arg10[%c0_36, %c0_37, %c0_38] : memref<2x128x128xbf16, #tpu.memory_space<vmem>>, vector<1x128x128xbf16>
    %110 = vector.shape_cast %109 : vector<1x128x128xbf16> to vector<128x128xbf16>
    %cst_39 = arith.constant dense<0.000000e+00> : vector<8x128xf32>
    %111 = tpu.matmul %108, %110, %cst_39 {dimension_numbers = #tpu.dot_dimension_numbers<[1], [0], [0], [1], [0, 0, 1, 1], [], []>} : vector<8x128xbf16>, vector<128x128xbf16>, vector<8x128xf32> -> vector<8x128xf32>
    %c0_40 = arith.constant 0 : index
    %c0_41 = arith.constant 0 : index
    %c0_42 = arith.constant 0 : index
    %112 = vector.load %arg11[%c0_40, %c0_41, %c0_42] : memref<2x1x128xf32, #tpu.memory_space<vmem>>, vector<1x1x128xf32>
    %113 = vector.shape_cast %112 : vector<1x1x128xf32> to vector<1x128xf32>
    %114 = vector.broadcast %113 : vector<1x128xf32> to vector<8x128xf32>
    %115 = arith.addf %111, %114 : vector<8x128xf32>
    %c0_43 = arith.constant 0 : index
    %c0_44 = arith.constant 0 : index
    %c0_45 = arith.constant 0 : index
    %116 = vector.load %arg16[%c0_43, %c0_44, %c0_45] : memref<2x1x128xf32, #tpu.memory_space<vmem>>, vector<1x1x128xf32>
    %117 = vector.shape_cast %116 : vector<1x1x128xf32> to vector<1x128xf32>
    %c0_46 = arith.constant 0 : index
    %c0_47 = arith.constant 0 : index
    %c0_48 = arith.constant 0 : index
    %118 = vector.load %arg17[%c0_46, %c0_47, %c0_48] : memref<2x1x128xf32, #tpu.memory_space<vmem>>, vector<1x1x128xf32>
    %119 = vector.shape_cast %118 : vector<1x1x128xf32> to vector<1x128xf32>
    %120 = arith.addf %115, %11 : vector<8x128xf32>
    %cst_49 = arith.constant dense<0.000000e+00> : vector<8xf32>
    %121 = vector.multi_reduction <add>, %120, %cst_49 [1] : vector<8x128xf32> to vector<8xf32>
    %122 = vector.shape_cast %121 : vector<8xf32> to vector<8x1xf32>
    %cst_50 = arith.constant 1.280000e+02 : f32
    %123 = vector.broadcast %cst_50 : f32 to vector<8x1xf32>
    %124 = arith.divf %122, %123 : vector<8x1xf32>
    %125 = vector.broadcast %124 : vector<8x1xf32> to vector<8x128xf32>
    %126 = arith.subf %120, %125 : vector<8x128xf32>
    %127 = arith.mulf %126, %126 : vector<8x128xf32>
    %cst_51 = arith.constant dense<0.000000e+00> : vector<8xf32>
    %128 = vector.multi_reduction <add>, %127, %cst_51 [1] : vector<8x128xf32> to vector<8xf32>
    %129 = vector.shape_cast %128 : vector<8xf32> to vector<8x1xf32>
    %cst_52 = arith.constant 1.280000e+02 : f32
    %130 = vector.broadcast %cst_52 : f32 to vector<8x1xf32>
    %131 = arith.divf %129, %130 : vector<8x1xf32>
    %132 = vector.broadcast %124 : vector<8x1xf32> to vector<8x128xf32>
    %133 = arith.subf %120, %132 : vector<8x128xf32>
    %cst_53 = arith.constant 9.99999974E-6 : f32
    %134 = vector.broadcast %cst_53 : f32 to vector<8x1xf32>
    %135 = arith.addf %131, %134 : vector<8x1xf32>
    %136 = math.rsqrt %135 : vector<8x1xf32>
    %137 = vector.broadcast %136 : vector<8x1xf32> to vector<8x128xf32>
    %138 = arith.mulf %133, %137 : vector<8x128xf32>
    %139 = vector.broadcast %117 : vector<1x128xf32> to vector<8x128xf32>
    %140 = arith.mulf %138, %139 : vector<8x128xf32>
    %141 = vector.broadcast %119 : vector<1x128xf32> to vector<8x128xf32>
    %142 = arith.addf %140, %141 : vector<8x128xf32>
    %c0_54 = arith.constant 0 : index
    %c0_55 = arith.constant 0 : index
    %c0_56 = arith.constant 0 : index
    %143 = vector.load %arg12[%c0_54, %c0_55, %c0_56] : memref<2x128x128xbf16, #tpu.memory_space<vmem>>, vector<1x128x128xbf16>
    %144 = vector.shape_cast %143 : vector<1x128x128xbf16> to vector<128x128xbf16>
    %c0_57 = arith.constant 0 : index
    %c0_58 = arith.constant 0 : index
    %c0_59 = arith.constant 0 : index
    %145 = vector.load %arg13[%c0_57, %c0_58, %c0_59] : memref<2x1x128xf32, #tpu.memory_space<vmem>>, vector<1x1x128xf32>
    %146 = vector.shape_cast %145 : vector<1x1x128xf32> to vector<1x128xf32>
    %c0_60 = arith.constant 0 : index
    %c0_61 = arith.constant 0 : index
    %c0_62 = arith.constant 0 : index
    %147 = vector.load %arg14[%c0_60, %c0_61, %c0_62] : memref<2x128x128xbf16, #tpu.memory_space<vmem>>, vector<1x128x128xbf16>
    %148 = vector.shape_cast %147 : vector<1x128x128xbf16> to vector<128x128xbf16>
    %c0_63 = arith.constant 0 : index
    %c0_64 = arith.constant 0 : index
    %c0_65 = arith.constant 0 : index
    %149 = vector.load %arg15[%c0_63, %c0_64, %c0_65] : memref<2x1x128xf32, #tpu.memory_space<vmem>>, vector<1x1x128xf32>
    %150 = vector.shape_cast %149 : vector<1x1x128xf32> to vector<1x128xf32>
    %151 = arith.truncf %142 : vector<8x128xf32> to vector<8x128xbf16>
    %cst_66 = arith.constant dense<0.000000e+00> : vector<8x128xf32>
    %152 = tpu.matmul %151, %144, %cst_66 {dimension_numbers = #tpu.dot_dimension_numbers<[1], [0], [0], [1], [0, 0, 1, 1], [], []>} : vector<8x128xbf16>, vector<128x128xbf16>, vector<8x128xf32> -> vector<8x128xf32>
    %153 = vector.broadcast %146 : vector<1x128xf32> to vector<8x128xf32>
    %154 = arith.addf %152, %153 : vector<8x128xf32>
    %cst_67 = arith.constant 0.000000e+00 : f32
    %155 = vector.broadcast %cst_67 : f32 to vector<8x128xf32>
    %156 = arith.maximumf %154, %155 : vector<8x128xf32>
    %157 = arith.truncf %156 : vector<8x128xf32> to vector<8x128xbf16>
    %cst_68 = arith.constant dense<0.000000e+00> : vector<8x128xf32>
    %158 = tpu.matmul %157, %148, %cst_68 {dimension_numbers = #tpu.dot_dimension_numbers<[1], [0], [0], [1], [0, 0, 1, 1], [], []>} : vector<8x128xbf16>, vector<128x128xbf16>, vector<8x128xf32> -> vector<8x128xf32>
    %159 = vector.broadcast %150 : vector<1x128xf32> to vector<8x128xf32>
    %160 = arith.addf %158, %159 : vector<8x128xf32>
    %c0_69 = arith.constant 0 : index
    %c0_70 = arith.constant 0 : index
    %c0_71 = arith.constant 0 : index
    %161 = vector.load %arg18[%c0_69, %c0_70, %c0_71] : memref<2x1x128xf32, #tpu.memory_space<vmem>>, vector<1x1x128xf32>
    %162 = vector.shape_cast %161 : vector<1x1x128xf32> to vector<1x128xf32>
    %c0_72 = arith.constant 0 : index
    %c0_73 = arith.constant 0 : index
    %c0_74 = arith.constant 0 : index
    %163 = vector.load %arg19[%c0_72, %c0_73, %c0_74] : memref<2x1x128xf32, #tpu.memory_space<vmem>>, vector<1x1x128xf32>
    %164 = vector.shape_cast %163 : vector<1x1x128xf32> to vector<1x128xf32>
    %165 = arith.addf %160, %142 : vector<8x128xf32>
    %cst_75 = arith.constant dense<0.000000e+00> : vector<8xf32>
    %166 = vector.multi_reduction <add>, %165, %cst_75 [1] : vector<8x128xf32> to vector<8xf32>
    %167 = vector.shape_cast %166 : vector<8xf32> to vector<8x1xf32>
    %cst_76 = arith.constant 1.280000e+02 : f32
    %168 = vector.broadcast %cst_76 : f32 to vector<8x1xf32>
    %169 = arith.divf %167, %168 : vector<8x1xf32>
    %170 = vector.broadcast %169 : vector<8x1xf32> to vector<8x128xf32>
    %171 = arith.subf %165, %170 : vector<8x128xf32>
    %172 = arith.mulf %171, %171 : vector<8x128xf32>
    %cst_77 = arith.constant dense<0.000000e+00> : vector<8xf32>
    %173 = vector.multi_reduction <add>, %172, %cst_77 [1] : vector<8x128xf32> to vector<8xf32>
    %174 = vector.shape_cast %173 : vector<8xf32> to vector<8x1xf32>
    %cst_78 = arith.constant 1.280000e+02 : f32
    %175 = vector.broadcast %cst_78 : f32 to vector<8x1xf32>
    %176 = arith.divf %174, %175 : vector<8x1xf32>
    %177 = vector.broadcast %169 : vector<8x1xf32> to vector<8x128xf32>
    %178 = arith.subf %165, %177 : vector<8x128xf32>
    %cst_79 = arith.constant 9.99999974E-6 : f32
    %179 = vector.broadcast %cst_79 : f32 to vector<8x1xf32>
    %180 = arith.addf %176, %179 : vector<8x1xf32>
    %181 = math.rsqrt %180 : vector<8x1xf32>
    %182 = vector.broadcast %181 : vector<8x1xf32> to vector<8x128xf32>
    %183 = arith.mulf %178, %182 : vector<8x128xf32>
    %184 = vector.broadcast %162 : vector<1x128xf32> to vector<8x128xf32>
    %185 = arith.mulf %183, %184 : vector<8x128xf32>
    %186 = vector.broadcast %164 : vector<1x128xf32> to vector<8x128xf32>
    %187 = arith.addf %185, %186 : vector<8x128xf32>
    %188 = arith.truncf %187 : vector<8x128xf32> to vector<8x128xbf16>
    %c1 = arith.constant 1 : index
    %c0_80 = arith.constant 0 : index
    %c0_81 = arith.constant 0 : index
    %189 = vector.load %arg8[%c1, %c0_80, %c0_81] : memref<2x128x384xbf16, #tpu.memory_space<vmem>>, vector<1x128x384xbf16>
    %190 = vector.shape_cast %189 : vector<1x128x384xbf16> to vector<128x384xbf16>
    %cst_82 = arith.constant dense<0.000000e+00> : vector<8x384xf32>
    %191 = tpu.matmul %188, %190, %cst_82 {dimension_numbers = #tpu.dot_dimension_numbers<[1], [0], [0], [1], [0, 0, 1, 1], [], []>} : vector<8x128xbf16>, vector<128x384xbf16>, vector<8x384xf32> -> vector<8x384xf32>
    %c1_83 = arith.constant 1 : index
    %c0_84 = arith.constant 0 : index
    %c0_85 = arith.constant 0 : index
    %192 = vector.load %arg9[%c1_83, %c0_84, %c0_85] : memref<2x1x384xf32, #tpu.memory_space<vmem>>, vector<1x1x384xf32>
    %193 = vector.shape_cast %192 : vector<1x1x384xf32> to vector<1x384xf32>
    %194 = vector.broadcast %193 : vector<1x384xf32> to vector<8x384xf32>
    %195 = arith.addf %191, %194 : vector<8x384xf32>
    %196 = vector.extract_strided_slice %195 {offsets = [0, 0], sizes = [8, 128], strides = [1, 1]} : vector<8x384xf32> to vector<8x128xf32>
    %197 = vector.extract_strided_slice %195 {offsets = [0, 128], sizes = [8, 128], strides = [1, 1]} : vector<8x384xf32> to vector<8x128xf32>
    %198 = vector.extract_strided_slice %195 {offsets = [0, 256], sizes = [8, 128], strides = [1, 1]} : vector<8x384xf32> to vector<8x128xf32>
    %199 = vector.extract_strided_slice %196 {offsets = [0, 0], sizes = [8, 32], strides = [1, 1]} : vector<8x128xf32> to vector<8x32xf32>
    %200 = arith.truncf %199 : vector<8x32xf32> to vector<8x32xbf16>
    %201 = vector.extract_strided_slice %197 {offsets = [0, 0], sizes = [8, 32], strides = [1, 1]} : vector<8x128xf32> to vector<8x32xf32>
    %202 = arith.truncf %201 : vector<8x32xf32> to vector<8x32xbf16>
    %203 = vector.extract_strided_slice %198 {offsets = [0, 0], sizes = [8, 32], strides = [1, 1]} : vector<8x128xf32> to vector<8x32xf32>
    %204 = arith.truncf %203 : vector<8x32xf32> to vector<8x32xbf16>
    %cst_86 = arith.constant dense<0.000000e+00> : vector<8x8xf32>
    %205 = tpu.matmul %200, %202, %cst_86 {dimension_numbers = #tpu.dot_dimension_numbers<[1], [1], [0], [0], [0, 0, 1, 0], [], []>} : vector<8x32xbf16>, vector<8x32xbf16>, vector<8x8xf32> -> vector<8x8xf32>
    %206 = vector.broadcast %1 : vector<1x8xf32> to vector<8x8xf32>
    %207 = arith.addf %205, %206 : vector<8x8xf32>
    %cst_87 = arith.constant dense<0xFF800000> : vector<8xf32>
    %208 = vector.multi_reduction <maximumf>, %207, %cst_87 [1] : vector<8x8xf32> to vector<8xf32>
    %209 = vector.shape_cast %208 : vector<8xf32> to vector<8x1xf32>
    %210 = vector.broadcast %209 : vector<8x1xf32> to vector<8x8xf32>
    %211 = arith.subf %207, %210 : vector<8x8xf32>
    %212 = math.exp %211 : vector<8x8xf32>
    %cst_88 = arith.constant dense<0.000000e+00> : vector<8xf32>
    %213 = vector.multi_reduction <add>, %212, %cst_88 [1] : vector<8x8xf32> to vector<8xf32>
    %214 = vector.shape_cast %213 : vector<8xf32> to vector<8x1xf32>
    %215 = tpu.reciprocal %214 {approx = true} : vector<8x1xf32> -> vector<8x1xf32>
    %216 = vector.broadcast %215 : vector<8x1xf32> to vector<8x8xf32>
    %217 = arith.mulf %212, %216 : vector<8x8xf32>
    %218 = arith.truncf %217 : vector<8x8xf32> to vector<8x8xbf16>
    %cst_89 = arith.constant dense<0.000000e+00> : vector<8x32xf32>
    %219 = tpu.matmul %218, %204, %cst_89 {dimension_numbers = #tpu.dot_dimension_numbers<[1], [0], [0], [1], [0, 0, 1, 1], [], []>} : vector<8x8xbf16>, vector<8x32xbf16>, vector<8x32xf32> -> vector<8x32xf32>
    %220 = vector.extract_strided_slice %196 {offsets = [0, 32], sizes = [8, 32], strides = [1, 1]} : vector<8x128xf32> to vector<8x32xf32>
    %221 = arith.truncf %220 : vector<8x32xf32> to vector<8x32xbf16>
    %222 = vector.extract_strided_slice %197 {offsets = [0, 32], sizes = [8, 32], strides = [1, 1]} : vector<8x128xf32> to vector<8x32xf32>
    %223 = arith.truncf %222 : vector<8x32xf32> to vector<8x32xbf16>
    %224 = vector.extract_strided_slice %198 {offsets = [0, 32], sizes = [8, 32], strides = [1, 1]} : vector<8x128xf32> to vector<8x32xf32>
    %225 = arith.truncf %224 : vector<8x32xf32> to vector<8x32xbf16>
    %cst_90 = arith.constant dense<0.000000e+00> : vector<8x8xf32>
    %226 = tpu.matmul %221, %223, %cst_90 {dimension_numbers = #tpu.dot_dimension_numbers<[1], [1], [0], [0], [0, 0, 1, 0], [], []>} : vector<8x32xbf16>, vector<8x32xbf16>, vector<8x8xf32> -> vector<8x8xf32>
    %227 = vector.broadcast %1 : vector<1x8xf32> to vector<8x8xf32>
    %228 = arith.addf %226, %227 : vector<8x8xf32>
    %cst_91 = arith.constant dense<0xFF800000> : vector<8xf32>
    %229 = vector.multi_reduction <maximumf>, %228, %cst_91 [1] : vector<8x8xf32> to vector<8xf32>
    %230 = vector.shape_cast %229 : vector<8xf32> to vector<8x1xf32>
    %231 = vector.broadcast %230 : vector<8x1xf32> to vector<8x8xf32>
    %232 = arith.subf %228, %231 : vector<8x8xf32>
    %233 = math.exp %232 : vector<8x8xf32>
    %cst_92 = arith.constant dense<0.000000e+00> : vector<8xf32>
    %234 = vector.multi_reduction <add>, %233, %cst_92 [1] : vector<8x8xf32> to vector<8xf32>
    %235 = vector.shape_cast %234 : vector<8xf32> to vector<8x1xf32>
    %236 = tpu.reciprocal %235 {approx = true} : vector<8x1xf32> -> vector<8x1xf32>
    %237 = vector.broadcast %236 : vector<8x1xf32> to vector<8x8xf32>
    %238 = arith.mulf %233, %237 : vector<8x8xf32>
    %239 = arith.truncf %238 : vector<8x8xf32> to vector<8x8xbf16>
    %cst_93 = arith.constant dense<0.000000e+00> : vector<8x32xf32>
    %240 = tpu.matmul %239, %225, %cst_93 {dimension_numbers = #tpu.dot_dimension_numbers<[1], [0], [0], [1], [0, 0, 1, 1], [], []>} : vector<8x8xbf16>, vector<8x32xbf16>, vector<8x32xf32> -> vector<8x32xf32>
    %241 = vector.extract_strided_slice %196 {offsets = [0, 64], sizes = [8, 32], strides = [1, 1]} : vector<8x128xf32> to vector<8x32xf32>
    %242 = arith.truncf %241 : vector<8x32xf32> to vector<8x32xbf16>
    %243 = vector.extract_strided_slice %197 {offsets = [0, 64], sizes = [8, 32], strides = [1, 1]} : vector<8x128xf32> to vector<8x32xf32>
    %244 = arith.truncf %243 : vector<8x32xf32> to vector<8x32xbf16>
    %245 = vector.extract_strided_slice %198 {offsets = [0, 64], sizes = [8, 32], strides = [1, 1]} : vector<8x128xf32> to vector<8x32xf32>
    %246 = arith.truncf %245 : vector<8x32xf32> to vector<8x32xbf16>
    %cst_94 = arith.constant dense<0.000000e+00> : vector<8x8xf32>
    %247 = tpu.matmul %242, %244, %cst_94 {dimension_numbers = #tpu.dot_dimension_numbers<[1], [1], [0], [0], [0, 0, 1, 0], [], []>} : vector<8x32xbf16>, vector<8x32xbf16>, vector<8x8xf32> -> vector<8x8xf32>
    %248 = vector.broadcast %1 : vector<1x8xf32> to vector<8x8xf32>
    %249 = arith.addf %247, %248 : vector<8x8xf32>
    %cst_95 = arith.constant dense<0xFF800000> : vector<8xf32>
    %250 = vector.multi_reduction <maximumf>, %249, %cst_95 [1] : vector<8x8xf32> to vector<8xf32>
    %251 = vector.shape_cast %250 : vector<8xf32> to vector<8x1xf32>
    %252 = vector.broadcast %251 : vector<8x1xf32> to vector<8x8xf32>
    %253 = arith.subf %249, %252 : vector<8x8xf32>
    %254 = math.exp %253 : vector<8x8xf32>
    %cst_96 = arith.constant dense<0.000000e+00> : vector<8xf32>
    %255 = vector.multi_reduction <add>, %254, %cst_96 [1] : vector<8x8xf32> to vector<8xf32>
    %256 = vector.shape_cast %255 : vector<8xf32> to vector<8x1xf32>
    %257 = tpu.reciprocal %256 {approx = true} : vector<8x1xf32> -> vector<8x1xf32>
    %258 = vector.broadcast %257 : vector<8x1xf32> to vector<8x8xf32>
    %259 = arith.mulf %254, %258 : vector<8x8xf32>
    %260 = arith.truncf %259 : vector<8x8xf32> to vector<8x8xbf16>
    %cst_97 = arith.constant dense<0.000000e+00> : vector<8x32xf32>
    %261 = tpu.matmul %260, %246, %cst_97 {dimension_numbers = #tpu.dot_dimension_numbers<[1], [0], [0], [1], [0, 0, 1, 1], [], []>} : vector<8x8xbf16>, vector<8x32xbf16>, vector<8x32xf32> -> vector<8x32xf32>
    %262 = vector.extract_strided_slice %196 {offsets = [0, 96], sizes = [8, 32], strides = [1, 1]} : vector<8x128xf32> to vector<8x32xf32>
    %263 = arith.truncf %262 : vector<8x32xf32> to vector<8x32xbf16>
    %264 = vector.extract_strided_slice %197 {offsets = [0, 96], sizes = [8, 32], strides = [1, 1]} : vector<8x128xf32> to vector<8x32xf32>
    %265 = arith.truncf %264 : vector<8x32xf32> to vector<8x32xbf16>
    %266 = vector.extract_strided_slice %198 {offsets = [0, 96], sizes = [8, 32], strides = [1, 1]} : vector<8x128xf32> to vector<8x32xf32>
    %267 = arith.truncf %266 : vector<8x32xf32> to vector<8x32xbf16>
    %cst_98 = arith.constant dense<0.000000e+00> : vector<8x8xf32>
    %268 = tpu.matmul %263, %265, %cst_98 {dimension_numbers = #tpu.dot_dimension_numbers<[1], [1], [0], [0], [0, 0, 1, 0], [], []>} : vector<8x32xbf16>, vector<8x32xbf16>, vector<8x8xf32> -> vector<8x8xf32>
    %269 = vector.broadcast %1 : vector<1x8xf32> to vector<8x8xf32>
    %270 = arith.addf %268, %269 : vector<8x8xf32>
    %cst_99 = arith.constant dense<0xFF800000> : vector<8xf32>
    %271 = vector.multi_reduction <maximumf>, %270, %cst_99 [1] : vector<8x8xf32> to vector<8xf32>
    %272 = vector.shape_cast %271 : vector<8xf32> to vector<8x1xf32>
    %273 = vector.broadcast %272 : vector<8x1xf32> to vector<8x8xf32>
    %274 = arith.subf %270, %273 : vector<8x8xf32>
    %275 = math.exp %274 : vector<8x8xf32>
    %cst_100 = arith.constant dense<0.000000e+00> : vector<8xf32>
    %276 = vector.multi_reduction <add>, %275, %cst_100 [1] : vector<8x8xf32> to vector<8xf32>
    %277 = vector.shape_cast %276 : vector<8xf32> to vector<8x1xf32>
    %278 = tpu.reciprocal %277 {approx = true} : vector<8x1xf32> -> vector<8x1xf32>
    %279 = vector.broadcast %278 : vector<8x1xf32> to vector<8x8xf32>
    %280 = arith.mulf %275, %279 : vector<8x8xf32>
    %281 = arith.truncf %280 : vector<8x8xf32> to vector<8x8xbf16>
    %cst_101 = arith.constant dense<0.000000e+00> : vector<8x32xf32>
    %282 = tpu.matmul %281, %267, %cst_101 {dimension_numbers = #tpu.dot_dimension_numbers<[1], [0], [0], [1], [0, 0, 1, 1], [], []>} : vector<8x8xbf16>, vector<8x32xbf16>, vector<8x32xf32> -> vector<8x32xf32>
    %283 = tpu.concatenate %219, %240, %261, %282 in 1 : vector<8x32xf32>, vector<8x32xf32>, vector<8x32xf32>, vector<8x32xf32> -> vector<8x128xf32>
    %284 = arith.truncf %283 : vector<8x128xf32> to vector<8x128xbf16>
    %c1_102 = arith.constant 1 : index
    %c0_103 = arith.constant 0 : index
    %c0_104 = arith.constant 0 : index
    %285 = vector.load %arg10[%c1_102, %c0_103, %c0_104] : memref<2x128x128xbf16, #tpu.memory_space<vmem>>, vector<1x128x128xbf16>
    %286 = vector.shape_cast %285 : vector<1x128x128xbf16> to vector<128x128xbf16>
    %cst_105 = arith.constant dense<0.000000e+00> : vector<8x128xf32>
    %287 = tpu.matmul %284, %286, %cst_105 {dimension_numbers = #tpu.dot_dimension_numbers<[1], [0], [0], [1], [0, 0, 1, 1], [], []>} : vector<8x128xbf16>, vector<128x128xbf16>, vector<8x128xf32> -> vector<8x128xf32>
    %c1_106 = arith.constant 1 : index
    %c0_107 = arith.constant 0 : index
    %c0_108 = arith.constant 0 : index
    %288 = vector.load %arg11[%c1_106, %c0_107, %c0_108] : memref<2x1x128xf32, #tpu.memory_space<vmem>>, vector<1x1x128xf32>
    %289 = vector.shape_cast %288 : vector<1x1x128xf32> to vector<1x128xf32>
    %290 = vector.broadcast %289 : vector<1x128xf32> to vector<8x128xf32>
    %291 = arith.addf %287, %290 : vector<8x128xf32>
    %c1_109 = arith.constant 1 : index
    %c0_110 = arith.constant 0 : index
    %c0_111 = arith.constant 0 : index
    %292 = vector.load %arg16[%c1_109, %c0_110, %c0_111] : memref<2x1x128xf32, #tpu.memory_space<vmem>>, vector<1x1x128xf32>
    %293 = vector.shape_cast %292 : vector<1x1x128xf32> to vector<1x128xf32>
    %c1_112 = arith.constant 1 : index
    %c0_113 = arith.constant 0 : index
    %c0_114 = arith.constant 0 : index
    %294 = vector.load %arg17[%c1_112, %c0_113, %c0_114] : memref<2x1x128xf32, #tpu.memory_space<vmem>>, vector<1x1x128xf32>
    %295 = vector.shape_cast %294 : vector<1x1x128xf32> to vector<1x128xf32>
    %296 = arith.addf %291, %187 : vector<8x128xf32>
    %cst_115 = arith.constant dense<0.000000e+00> : vector<8xf32>
    %297 = vector.multi_reduction <add>, %296, %cst_115 [1] : vector<8x128xf32> to vector<8xf32>
    %298 = vector.shape_cast %297 : vector<8xf32> to vector<8x1xf32>
    %cst_116 = arith.constant 1.280000e+02 : f32
    %299 = vector.broadcast %cst_116 : f32 to vector<8x1xf32>
    %300 = arith.divf %298, %299 : vector<8x1xf32>
    %301 = vector.broadcast %300 : vector<8x1xf32> to vector<8x128xf32>
    %302 = arith.subf %296, %301 : vector<8x128xf32>
    %303 = arith.mulf %302, %302 : vector<8x128xf32>
    %cst_117 = arith.constant dense<0.000000e+00> : vector<8xf32>
    %304 = vector.multi_reduction <add>, %303, %cst_117 [1] : vector<8x128xf32> to vector<8xf32>
    %305 = vector.shape_cast %304 : vector<8xf32> to vector<8x1xf32>
    %cst_118 = arith.constant 1.280000e+02 : f32
    %306 = vector.broadcast %cst_118 : f32 to vector<8x1xf32>
    %307 = arith.divf %305, %306 : vector<8x1xf32>
    %308 = vector.broadcast %300 : vector<8x1xf32> to vector<8x128xf32>
    %309 = arith.subf %296, %308 : vector<8x128xf32>
    %cst_119 = arith.constant 9.99999974E-6 : f32
    %310 = vector.broadcast %cst_119 : f32 to vector<8x1xf32>
    %311 = arith.addf %307, %310 : vector<8x1xf32>
    %312 = math.rsqrt %311 : vector<8x1xf32>
    %313 = vector.broadcast %312 : vector<8x1xf32> to vector<8x128xf32>
    %314 = arith.mulf %309, %313 : vector<8x128xf32>
    %315 = vector.broadcast %293 : vector<1x128xf32> to vector<8x128xf32>
    %316 = arith.mulf %314, %315 : vector<8x128xf32>
    %317 = vector.broadcast %295 : vector<1x128xf32> to vector<8x128xf32>
    %318 = arith.addf %316, %317 : vector<8x128xf32>
    %c1_120 = arith.constant 1 : index
    %c0_121 = arith.constant 0 : index
    %c0_122 = arith.constant 0 : index
    %319 = vector.load %arg12[%c1_120, %c0_121, %c0_122] : memref<2x128x128xbf16, #tpu.memory_space<vmem>>, vector<1x128x128xbf16>
    %320 = vector.shape_cast %319 : vector<1x128x128xbf16> to vector<128x128xbf16>
    %c1_123 = arith.constant 1 : index
    %c0_124 = arith.constant 0 : index
    %c0_125 = arith.constant 0 : index
    %321 = vector.load %arg13[%c1_123, %c0_124, %c0_125] : memref<2x1x128xf32, #tpu.memory_space<vmem>>, vector<1x1x128xf32>
    %322 = vector.shape_cast %321 : vector<1x1x128xf32> to vector<1x128xf32>
    %c1_126 = arith.constant 1 : index
    %c0_127 = arith.constant 0 : index
    %c0_128 = arith.constant 0 : index
    %323 = vector.load %arg14[%c1_126, %c0_127, %c0_128] : memref<2x128x128xbf16, #tpu.memory_space<vmem>>, vector<1x128x128xbf16>
    %324 = vector.shape_cast %323 : vector<1x128x128xbf16> to vector<128x128xbf16>
    %c1_129 = arith.constant 1 : index
    %c0_130 = arith.constant 0 : index
    %c0_131 = arith.constant 0 : index
    %325 = vector.load %arg15[%c1_129, %c0_130, %c0_131] : memref<2x1x128xf32, #tpu.memory_space<vmem>>, vector<1x1x128xf32>
    %326 = vector.shape_cast %325 : vector<1x1x128xf32> to vector<1x128xf32>
    %327 = arith.truncf %318 : vector<8x128xf32> to vector<8x128xbf16>
    %cst_132 = arith.constant dense<0.000000e+00> : vector<8x128xf32>
    %328 = tpu.matmul %327, %320, %cst_132 {dimension_numbers = #tpu.dot_dimension_numbers<[1], [0], [0], [1], [0, 0, 1, 1], [], []>} : vector<8x128xbf16>, vector<128x128xbf16>, vector<8x128xf32> -> vector<8x128xf32>
    %329 = vector.broadcast %322 : vector<1x128xf32> to vector<8x128xf32>
    %330 = arith.addf %328, %329 : vector<8x128xf32>
    %cst_133 = arith.constant 0.000000e+00 : f32
    %331 = vector.broadcast %cst_133 : f32 to vector<8x128xf32>
    %332 = arith.maximumf %330, %331 : vector<8x128xf32>
    %333 = arith.truncf %332 : vector<8x128xf32> to vector<8x128xbf16>
    %cst_134 = arith.constant dense<0.000000e+00> : vector<8x128xf32>
    %334 = tpu.matmul %333, %324, %cst_134 {dimension_numbers = #tpu.dot_dimension_numbers<[1], [0], [0], [1], [0, 0, 1, 1], [], []>} : vector<8x128xbf16>, vector<128x128xbf16>, vector<8x128xf32> -> vector<8x128xf32>
    %335 = vector.broadcast %326 : vector<1x128xf32> to vector<8x128xf32>
    %336 = arith.addf %334, %335 : vector<8x128xf32>
    %c1_135 = arith.constant 1 : index
    %c0_136 = arith.constant 0 : index
    %c0_137 = arith.constant 0 : index
    %337 = vector.load %arg18[%c1_135, %c0_136, %c0_137] : memref<2x1x128xf32, #tpu.memory_space<vmem>>, vector<1x1x128xf32>
    %338 = vector.shape_cast %337 : vector<1x1x128xf32> to vector<1x128xf32>
    %c1_138 = arith.constant 1 : index
    %c0_139 = arith.constant 0 : index
    %c0_140 = arith.constant 0 : index
    %339 = vector.load %arg19[%c1_138, %c0_139, %c0_140] : memref<2x1x128xf32, #tpu.memory_space<vmem>>, vector<1x1x128xf32>
    %340 = vector.shape_cast %339 : vector<1x1x128xf32> to vector<1x128xf32>
    %341 = arith.addf %336, %318 : vector<8x128xf32>
    %cst_141 = arith.constant dense<0.000000e+00> : vector<8xf32>
    %342 = vector.multi_reduction <add>, %341, %cst_141 [1] : vector<8x128xf32> to vector<8xf32>
    %343 = vector.shape_cast %342 : vector<8xf32> to vector<8x1xf32>
    %cst_142 = arith.constant 1.280000e+02 : f32
    %344 = vector.broadcast %cst_142 : f32 to vector<8x1xf32>
    %345 = arith.divf %343, %344 : vector<8x1xf32>
    %346 = vector.broadcast %345 : vector<8x1xf32> to vector<8x128xf32>
    %347 = arith.subf %341, %346 : vector<8x128xf32>
    %348 = arith.mulf %347, %347 : vector<8x128xf32>
    %cst_143 = arith.constant dense<0.000000e+00> : vector<8xf32>
    %349 = vector.multi_reduction <add>, %348, %cst_143 [1] : vector<8x128xf32> to vector<8xf32>
    %350 = vector.shape_cast %349 : vector<8xf32> to vector<8x1xf32>
    %cst_144 = arith.constant 1.280000e+02 : f32
    %351 = vector.broadcast %cst_144 : f32 to vector<8x1xf32>
    %352 = arith.divf %350, %351 : vector<8x1xf32>
    %353 = vector.broadcast %345 : vector<8x1xf32> to vector<8x128xf32>
    %354 = arith.subf %341, %353 : vector<8x128xf32>
    %cst_145 = arith.constant 9.99999974E-6 : f32
    %355 = vector.broadcast %cst_145 : f32 to vector<8x1xf32>
    %356 = arith.addf %352, %355 : vector<8x1xf32>
    %357 = math.rsqrt %356 : vector<8x1xf32>
    %358 = vector.broadcast %357 : vector<8x1xf32> to vector<8x128xf32>
    %359 = arith.mulf %354, %358 : vector<8x128xf32>
    %360 = vector.broadcast %338 : vector<1x128xf32> to vector<8x128xf32>
    %361 = arith.mulf %359, %360 : vector<8x128xf32>
    %362 = vector.broadcast %340 : vector<1x128xf32> to vector<8x128xf32>
    %363 = arith.addf %361, %362 : vector<8x128xf32>
    %364 = arith.truncf %363 : vector<8x128xf32> to vector<8x128xbf16>
    %c0_146 = arith.constant 0 : index
    %c0_147 = arith.constant 0 : index
    %c0_148 = arith.constant 0 : index
    %365 = vector.load %arg2[%c0_146, %c0_147, %c0_148] : memref<1x8x32xf32, #tpu.memory_space<vmem>>, vector<1x8x32xf32>
    %366 = vector.shape_cast %365 : vector<1x8x32xf32> to vector<8x32xf32>
    %367 = arith.truncf %366 : vector<8x32xf32> to vector<8x32xbf16>
    %c0_149 = arith.constant 0 : index
    %c0_150 = arith.constant 0 : index
    %368 = vector.load %arg7[%c0_149, %c0_150] : memref<32x128xbf16, #tpu.memory_space<vmem>>, vector<32x128xbf16>
    %cst_151 = arith.constant dense<0.000000e+00> : vector<8x128xf32>
    %369 = tpu.matmul %367, %368, %cst_151 {dimension_numbers = #tpu.dot_dimension_numbers<[1], [0], [0], [1], [0, 0, 1, 1], [], []>} : vector<8x32xbf16>, vector<32x128xbf16>, vector<8x128xf32> -> vector<8x128xf32>
    %370 = arith.truncf %369 : vector<8x128xf32> to vector<8x128xbf16>
    %c0_152 = arith.constant 0 : index
    %c0_153 = arith.constant 0 : index
    %c0_154 = arith.constant 0 : index
    %371 = vector.load %arg20[%c0_152, %c0_153, %c0_154] : memref<2x128x384xbf16, #tpu.memory_space<vmem>>, vector<1x128x384xbf16>
    %372 = vector.shape_cast %371 : vector<1x128x384xbf16> to vector<128x384xbf16>
    %cst_155 = arith.constant dense<0.000000e+00> : vector<8x384xf32>
    %373 = tpu.matmul %370, %372, %cst_155 {dimension_numbers = #tpu.dot_dimension_numbers<[1], [0], [0], [1], [0, 0, 1, 1], [], []>} : vector<8x128xbf16>, vector<128x384xbf16>, vector<8x384xf32> -> vector<8x384xf32>
    %c0_156 = arith.constant 0 : index
    %c0_157 = arith.constant 0 : index
    %c0_158 = arith.constant 0 : index
    %374 = vector.load %arg21[%c0_156, %c0_157, %c0_158] : memref<2x1x384xf32, #tpu.memory_space<vmem>>, vector<1x1x384xf32>
    %375 = vector.shape_cast %374 : vector<1x1x384xf32> to vector<1x384xf32>
    %376 = vector.broadcast %375 : vector<1x384xf32> to vector<8x384xf32>
    %377 = arith.addf %373, %376 : vector<8x384xf32>
    %378 = vector.extract_strided_slice %377 {offsets = [0, 0], sizes = [8, 128], strides = [1, 1]} : vector<8x384xf32> to vector<8x128xf32>
    %379 = vector.extract_strided_slice %377 {offsets = [0, 128], sizes = [8, 128], strides = [1, 1]} : vector<8x384xf32> to vector<8x128xf32>
    %380 = vector.extract_strided_slice %377 {offsets = [0, 256], sizes = [8, 128], strides = [1, 1]} : vector<8x384xf32> to vector<8x128xf32>
    %381 = vector.extract_strided_slice %378 {offsets = [0, 0], sizes = [8, 32], strides = [1, 1]} : vector<8x128xf32> to vector<8x32xf32>
    %382 = arith.truncf %381 : vector<8x32xf32> to vector<8x32xbf16>
    %383 = vector.extract_strided_slice %379 {offsets = [0, 0], sizes = [8, 32], strides = [1, 1]} : vector<8x128xf32> to vector<8x32xf32>
    %384 = arith.truncf %383 : vector<8x32xf32> to vector<8x32xbf16>
    %385 = vector.extract_strided_slice %380 {offsets = [0, 0], sizes = [8, 32], strides = [1, 1]} : vector<8x128xf32> to vector<8x32xf32>
    %386 = arith.truncf %385 : vector<8x32xf32> to vector<8x32xbf16>
    %cst_159 = arith.constant dense<0.000000e+00> : vector<8x8xf32>
    %387 = tpu.matmul %382, %384, %cst_159 {dimension_numbers = #tpu.dot_dimension_numbers<[1], [1], [0], [0], [0, 0, 1, 0], [], []>} : vector<8x32xbf16>, vector<8x32xbf16>, vector<8x8xf32> -> vector<8x8xf32>
    %388 = vector.broadcast %3 : vector<1x8xf32> to vector<8x8xf32>
    %389 = arith.addf %387, %388 : vector<8x8xf32>
    %cst_160 = arith.constant dense<0xFF800000> : vector<8xf32>
    %390 = vector.multi_reduction <maximumf>, %389, %cst_160 [1] : vector<8x8xf32> to vector<8xf32>
    %391 = vector.shape_cast %390 : vector<8xf32> to vector<8x1xf32>
    %392 = vector.broadcast %391 : vector<8x1xf32> to vector<8x8xf32>
    %393 = arith.subf %389, %392 : vector<8x8xf32>
    %394 = math.exp %393 : vector<8x8xf32>
    %cst_161 = arith.constant dense<0.000000e+00> : vector<8xf32>
    %395 = vector.multi_reduction <add>, %394, %cst_161 [1] : vector<8x8xf32> to vector<8xf32>
    %396 = vector.shape_cast %395 : vector<8xf32> to vector<8x1xf32>
    %397 = tpu.reciprocal %396 {approx = true} : vector<8x1xf32> -> vector<8x1xf32>
    %398 = vector.broadcast %397 : vector<8x1xf32> to vector<8x8xf32>
    %399 = arith.mulf %394, %398 : vector<8x8xf32>
    %400 = arith.truncf %399 : vector<8x8xf32> to vector<8x8xbf16>
    %cst_162 = arith.constant dense<0.000000e+00> : vector<8x32xf32>
    %401 = tpu.matmul %400, %386, %cst_162 {dimension_numbers = #tpu.dot_dimension_numbers<[1], [0], [0], [1], [0, 0, 1, 1], [], []>} : vector<8x8xbf16>, vector<8x32xbf16>, vector<8x32xf32> -> vector<8x32xf32>
    %402 = vector.extract_strided_slice %378 {offsets = [0, 32], sizes = [8, 32], strides = [1, 1]} : vector<8x128xf32> to vector<8x32xf32>
    %403 = arith.truncf %402 : vector<8x32xf32> to vector<8x32xbf16>
    %404 = vector.extract_strided_slice %379 {offsets = [0, 32], sizes = [8, 32], strides = [1, 1]} : vector<8x128xf32> to vector<8x32xf32>
    %405 = arith.truncf %404 : vector<8x32xf32> to vector<8x32xbf16>
    %406 = vector.extract_strided_slice %380 {offsets = [0, 32], sizes = [8, 32], strides = [1, 1]} : vector<8x128xf32> to vector<8x32xf32>
    %407 = arith.truncf %406 : vector<8x32xf32> to vector<8x32xbf16>
    %cst_163 = arith.constant dense<0.000000e+00> : vector<8x8xf32>
    %408 = tpu.matmul %403, %405, %cst_163 {dimension_numbers = #tpu.dot_dimension_numbers<[1], [1], [0], [0], [0, 0, 1, 0], [], []>} : vector<8x32xbf16>, vector<8x32xbf16>, vector<8x8xf32> -> vector<8x8xf32>
    %409 = vector.broadcast %3 : vector<1x8xf32> to vector<8x8xf32>
    %410 = arith.addf %408, %409 : vector<8x8xf32>
    %cst_164 = arith.constant dense<0xFF800000> : vector<8xf32>
    %411 = vector.multi_reduction <maximumf>, %410, %cst_164 [1] : vector<8x8xf32> to vector<8xf32>
    %412 = vector.shape_cast %411 : vector<8xf32> to vector<8x1xf32>
    %413 = vector.broadcast %412 : vector<8x1xf32> to vector<8x8xf32>
    %414 = arith.subf %410, %413 : vector<8x8xf32>
    %415 = math.exp %414 : vector<8x8xf32>
    %cst_165 = arith.constant dense<0.000000e+00> : vector<8xf32>
    %416 = vector.multi_reduction <add>, %415, %cst_165 [1] : vector<8x8xf32> to vector<8xf32>
    %417 = vector.shape_cast %416 : vector<8xf32> to vector<8x1xf32>
    %418 = tpu.reciprocal %417 {approx = true} : vector<8x1xf32> -> vector<8x1xf32>
    %419 = vector.broadcast %418 : vector<8x1xf32> to vector<8x8xf32>
    %420 = arith.mulf %415, %419 : vector<8x8xf32>
    %421 = arith.truncf %420 : vector<8x8xf32> to vector<8x8xbf16>
    %cst_166 = arith.constant dense<0.000000e+00> : vector<8x32xf32>
    %422 = tpu.matmul %421, %407, %cst_166 {dimension_numbers = #tpu.dot_dimension_numbers<[1], [0], [0], [1], [0, 0, 1, 1], [], []>} : vector<8x8xbf16>, vector<8x32xbf16>, vector<8x32xf32> -> vector<8x32xf32>
    %423 = vector.extract_strided_slice %378 {offsets = [0, 64], sizes = [8, 32], strides = [1, 1]} : vector<8x128xf32> to vector<8x32xf32>
    %424 = arith.truncf %423 : vector<8x32xf32> to vector<8x32xbf16>
    %425 = vector.extract_strided_slice %379 {offsets = [0, 64], sizes = [8, 32], strides = [1, 1]} : vector<8x128xf32> to vector<8x32xf32>
    %426 = arith.truncf %425 : vector<8x32xf32> to vector<8x32xbf16>
    %427 = vector.extract_strided_slice %380 {offsets = [0, 64], sizes = [8, 32], strides = [1, 1]} : vector<8x128xf32> to vector<8x32xf32>
    %428 = arith.truncf %427 : vector<8x32xf32> to vector<8x32xbf16>
    %cst_167 = arith.constant dense<0.000000e+00> : vector<8x8xf32>
    %429 = tpu.matmul %424, %426, %cst_167 {dimension_numbers = #tpu.dot_dimension_numbers<[1], [1], [0], [0], [0, 0, 1, 0], [], []>} : vector<8x32xbf16>, vector<8x32xbf16>, vector<8x8xf32> -> vector<8x8xf32>
    %430 = vector.broadcast %3 : vector<1x8xf32> to vector<8x8xf32>
    %431 = arith.addf %429, %430 : vector<8x8xf32>
    %cst_168 = arith.constant dense<0xFF800000> : vector<8xf32>
    %432 = vector.multi_reduction <maximumf>, %431, %cst_168 [1] : vector<8x8xf32> to vector<8xf32>
    %433 = vector.shape_cast %432 : vector<8xf32> to vector<8x1xf32>
    %434 = vector.broadcast %433 : vector<8x1xf32> to vector<8x8xf32>
    %435 = arith.subf %431, %434 : vector<8x8xf32>
    %436 = math.exp %435 : vector<8x8xf32>
    %cst_169 = arith.constant dense<0.000000e+00> : vector<8xf32>
    %437 = vector.multi_reduction <add>, %436, %cst_169 [1] : vector<8x8xf32> to vector<8xf32>
    %438 = vector.shape_cast %437 : vector<8xf32> to vector<8x1xf32>
    %439 = tpu.reciprocal %438 {approx = true} : vector<8x1xf32> -> vector<8x1xf32>
    %440 = vector.broadcast %439 : vector<8x1xf32> to vector<8x8xf32>
    %441 = arith.mulf %436, %440 : vector<8x8xf32>
    %442 = arith.truncf %441 : vector<8x8xf32> to vector<8x8xbf16>
    %cst_170 = arith.constant dense<0.000000e+00> : vector<8x32xf32>
    %443 = tpu.matmul %442, %428, %cst_170 {dimension_numbers = #tpu.dot_dimension_numbers<[1], [0], [0], [1], [0, 0, 1, 1], [], []>} : vector<8x8xbf16>, vector<8x32xbf16>, vector<8x32xf32> -> vector<8x32xf32>
    %444 = vector.extract_strided_slice %378 {offsets = [0, 96], sizes = [8, 32], strides = [1, 1]} : vector<8x128xf32> to vector<8x32xf32>
    %445 = arith.truncf %444 : vector<8x32xf32> to vector<8x32xbf16>
    %446 = vector.extract_strided_slice %379 {offsets = [0, 96], sizes = [8, 32], strides = [1, 1]} : vector<8x128xf32> to vector<8x32xf32>
    %447 = arith.truncf %446 : vector<8x32xf32> to vector<8x32xbf16>
    %448 = vector.extract_strided_slice %380 {offsets = [0, 96], sizes = [8, 32], strides = [1, 1]} : vector<8x128xf32> to vector<8x32xf32>
    %449 = arith.truncf %448 : vector<8x32xf32> to vector<8x32xbf16>
    %cst_171 = arith.constant dense<0.000000e+00> : vector<8x8xf32>
    %450 = tpu.matmul %445, %447, %cst_171 {dimension_numbers = #tpu.dot_dimension_numbers<[1], [1], [0], [0], [0, 0, 1, 0], [], []>} : vector<8x32xbf16>, vector<8x32xbf16>, vector<8x8xf32> -> vector<8x8xf32>
    %451 = vector.broadcast %3 : vector<1x8xf32> to vector<8x8xf32>
    %452 = arith.addf %450, %451 : vector<8x8xf32>
    %cst_172 = arith.constant dense<0xFF800000> : vector<8xf32>
    %453 = vector.multi_reduction <maximumf>, %452, %cst_172 [1] : vector<8x8xf32> to vector<8xf32>
    %454 = vector.shape_cast %453 : vector<8xf32> to vector<8x1xf32>
    %455 = vector.broadcast %454 : vector<8x1xf32> to vector<8x8xf32>
    %456 = arith.subf %452, %455 : vector<8x8xf32>
    %457 = math.exp %456 : vector<8x8xf32>
    %cst_173 = arith.constant dense<0.000000e+00> : vector<8xf32>
    %458 = vector.multi_reduction <add>, %457, %cst_173 [1] : vector<8x8xf32> to vector<8xf32>
    %459 = vector.shape_cast %458 : vector<8xf32> to vector<8x1xf32>
    %460 = tpu.reciprocal %459 {approx = true} : vector<8x1xf32> -> vector<8x1xf32>
    %461 = vector.broadcast %460 : vector<8x1xf32> to vector<8x8xf32>
    %462 = arith.mulf %457, %461 : vector<8x8xf32>
    %463 = arith.truncf %462 : vector<8x8xf32> to vector<8x8xbf16>
    %cst_174 = arith.constant dense<0.000000e+00> : vector<8x32xf32>
    %464 = tpu.matmul %463, %449, %cst_174 {dimension_numbers = #tpu.dot_dimension_numbers<[1], [0], [0], [1], [0, 0, 1, 1], [], []>} : vector<8x8xbf16>, vector<8x32xbf16>, vector<8x32xf32> -> vector<8x32xf32>
    %465 = tpu.concatenate %401, %422, %443, %464 in 1 : vector<8x32xf32>, vector<8x32xf32>, vector<8x32xf32>, vector<8x32xf32> -> vector<8x128xf32>
    %466 = arith.truncf %465 : vector<8x128xf32> to vector<8x128xbf16>
    %c0_175 = arith.constant 0 : index
    %c0_176 = arith.constant 0 : index
    %c0_177 = arith.constant 0 : index
    %467 = vector.load %arg22[%c0_175, %c0_176, %c0_177] : memref<2x128x128xbf16, #tpu.memory_space<vmem>>, vector<1x128x128xbf16>
    %468 = vector.shape_cast %467 : vector<1x128x128xbf16> to vector<128x128xbf16>
    %cst_178 = arith.constant dense<0.000000e+00> : vector<8x128xf32>
    %469 = tpu.matmul %466, %468, %cst_178 {dimension_numbers = #tpu.dot_dimension_numbers<[1], [0], [0], [1], [0, 0, 1, 1], [], []>} : vector<8x128xbf16>, vector<128x128xbf16>, vector<8x128xf32> -> vector<8x128xf32>
    %c0_179 = arith.constant 0 : index
    %c0_180 = arith.constant 0 : index
    %c0_181 = arith.constant 0 : index
    %470 = vector.load %arg23[%c0_179, %c0_180, %c0_181] : memref<2x1x128xf32, #tpu.memory_space<vmem>>, vector<1x1x128xf32>
    %471 = vector.shape_cast %470 : vector<1x1x128xf32> to vector<1x128xf32>
    %472 = vector.broadcast %471 : vector<1x128xf32> to vector<8x128xf32>
    %473 = arith.addf %469, %472 : vector<8x128xf32>
    %c0_182 = arith.constant 0 : index
    %c0_183 = arith.constant 0 : index
    %c0_184 = arith.constant 0 : index
    %474 = vector.load %arg34[%c0_182, %c0_183, %c0_184] : memref<2x1x128xf32, #tpu.memory_space<vmem>>, vector<1x1x128xf32>
    %475 = vector.shape_cast %474 : vector<1x1x128xf32> to vector<1x128xf32>
    %c0_185 = arith.constant 0 : index
    %c0_186 = arith.constant 0 : index
    %c0_187 = arith.constant 0 : index
    %476 = vector.load %arg35[%c0_185, %c0_186, %c0_187] : memref<2x1x128xf32, #tpu.memory_space<vmem>>, vector<1x1x128xf32>
    %477 = vector.shape_cast %476 : vector<1x1x128xf32> to vector<1x128xf32>
    %478 = arith.addf %473, %369 : vector<8x128xf32>
    %cst_188 = arith.constant dense<0.000000e+00> : vector<8xf32>
    %479 = vector.multi_reduction <add>, %478, %cst_188 [1] : vector<8x128xf32> to vector<8xf32>
    %480 = vector.shape_cast %479 : vector<8xf32> to vector<8x1xf32>
    %cst_189 = arith.constant 1.280000e+02 : f32
    %481 = vector.broadcast %cst_189 : f32 to vector<8x1xf32>
    %482 = arith.divf %480, %481 : vector<8x1xf32>
    %483 = vector.broadcast %482 : vector<8x1xf32> to vector<8x128xf32>
    %484 = arith.subf %478, %483 : vector<8x128xf32>
    %485 = arith.mulf %484, %484 : vector<8x128xf32>
    %cst_190 = arith.constant dense<0.000000e+00> : vector<8xf32>
    %486 = vector.multi_reduction <add>, %485, %cst_190 [1] : vector<8x128xf32> to vector<8xf32>
    %487 = vector.shape_cast %486 : vector<8xf32> to vector<8x1xf32>
    %cst_191 = arith.constant 1.280000e+02 : f32
    %488 = vector.broadcast %cst_191 : f32 to vector<8x1xf32>
    %489 = arith.divf %487, %488 : vector<8x1xf32>
    %490 = vector.broadcast %482 : vector<8x1xf32> to vector<8x128xf32>
    %491 = arith.subf %478, %490 : vector<8x128xf32>
    %cst_192 = arith.constant 9.99999974E-6 : f32
    %492 = vector.broadcast %cst_192 : f32 to vector<8x1xf32>
    %493 = arith.addf %489, %492 : vector<8x1xf32>
    %494 = math.rsqrt %493 : vector<8x1xf32>
    %495 = vector.broadcast %494 : vector<8x1xf32> to vector<8x128xf32>
    %496 = arith.mulf %491, %495 : vector<8x128xf32>
    %497 = vector.broadcast %475 : vector<1x128xf32> to vector<8x128xf32>
    %498 = arith.mulf %496, %497 : vector<8x128xf32>
    %499 = vector.broadcast %477 : vector<1x128xf32> to vector<8x128xf32>
    %500 = arith.addf %498, %499 : vector<8x128xf32>
    %501 = arith.truncf %500 : vector<8x128xf32> to vector<8x128xbf16>
    %c0_193 = arith.constant 0 : index
    %c0_194 = arith.constant 0 : index
    %c0_195 = arith.constant 0 : index
    %502 = vector.load %arg24[%c0_193, %c0_194, %c0_195] : memref<2x128x128xbf16, #tpu.memory_space<vmem>>, vector<1x128x128xbf16>
    %503 = vector.shape_cast %502 : vector<1x128x128xbf16> to vector<128x128xbf16>
    %cst_196 = arith.constant dense<0.000000e+00> : vector<8x128xf32>
    %504 = tpu.matmul %501, %503, %cst_196 {dimension_numbers = #tpu.dot_dimension_numbers<[1], [0], [0], [1], [0, 0, 1, 1], [], []>} : vector<8x128xbf16>, vector<128x128xbf16>, vector<8x128xf32> -> vector<8x128xf32>
    %c0_197 = arith.constant 0 : index
    %c0_198 = arith.constant 0 : index
    %c0_199 = arith.constant 0 : index
    %505 = vector.load %arg25[%c0_197, %c0_198, %c0_199] : memref<2x1x128xf32, #tpu.memory_space<vmem>>, vector<1x1x128xf32>
    %506 = vector.shape_cast %505 : vector<1x1x128xf32> to vector<1x128xf32>
    %507 = vector.broadcast %506 : vector<1x128xf32> to vector<8x128xf32>
    %508 = arith.addf %504, %507 : vector<8x128xf32>
    %c0_200 = arith.constant 0 : index
    %c0_201 = arith.constant 0 : index
    %c0_202 = arith.constant 0 : index
    %509 = vector.load %arg26[%c0_200, %c0_201, %c0_202] : memref<2x128x256xbf16, #tpu.memory_space<vmem>>, vector<1x128x256xbf16>
    %510 = vector.shape_cast %509 : vector<1x128x256xbf16> to vector<128x256xbf16>
    %cst_203 = arith.constant dense<0.000000e+00> : vector<8x256xf32>
    %511 = tpu.matmul %364, %510, %cst_203 {dimension_numbers = #tpu.dot_dimension_numbers<[1], [0], [0], [1], [0, 0, 1, 1], [], []>} : vector<8x128xbf16>, vector<128x256xbf16>, vector<8x256xf32> -> vector<8x256xf32>
    %c0_204 = arith.constant 0 : index
    %c0_205 = arith.constant 0 : index
    %c0_206 = arith.constant 0 : index
    %512 = vector.load %arg27[%c0_204, %c0_205, %c0_206] : memref<2x1x256xf32, #tpu.memory_space<vmem>>, vector<1x1x256xf32>
    %513 = vector.shape_cast %512 : vector<1x1x256xf32> to vector<1x256xf32>
    %514 = vector.broadcast %513 : vector<1x256xf32> to vector<8x256xf32>
    %515 = arith.addf %511, %514 : vector<8x256xf32>
    %516 = vector.extract_strided_slice %515 {offsets = [0, 0], sizes = [8, 128], strides = [1, 1]} : vector<8x256xf32> to vector<8x128xf32>
    %517 = vector.extract_strided_slice %515 {offsets = [0, 128], sizes = [8, 128], strides = [1, 1]} : vector<8x256xf32> to vector<8x128xf32>
    %518 = vector.extract_strided_slice %508 {offsets = [0, 0], sizes = [8, 32], strides = [1, 1]} : vector<8x128xf32> to vector<8x32xf32>
    %519 = arith.truncf %518 : vector<8x32xf32> to vector<8x32xbf16>
    %520 = vector.extract_strided_slice %516 {offsets = [0, 0], sizes = [8, 32], strides = [1, 1]} : vector<8x128xf32> to vector<8x32xf32>
    %521 = arith.truncf %520 : vector<8x32xf32> to vector<8x32xbf16>
    %522 = vector.extract_strided_slice %517 {offsets = [0, 0], sizes = [8, 32], strides = [1, 1]} : vector<8x128xf32> to vector<8x32xf32>
    %523 = arith.truncf %522 : vector<8x32xf32> to vector<8x32xbf16>
    %cst_207 = arith.constant dense<0.000000e+00> : vector<8x8xf32>
    %524 = tpu.matmul %519, %521, %cst_207 {dimension_numbers = #tpu.dot_dimension_numbers<[1], [1], [0], [0], [0, 0, 1, 0], [], []>} : vector<8x32xbf16>, vector<8x32xbf16>, vector<8x8xf32> -> vector<8x8xf32>
    %525 = vector.broadcast %1 : vector<1x8xf32> to vector<8x8xf32>
    %526 = arith.addf %524, %525 : vector<8x8xf32>
    %cst_208 = arith.constant dense<0xFF800000> : vector<8xf32>
    %527 = vector.multi_reduction <maximumf>, %526, %cst_208 [1] : vector<8x8xf32> to vector<8xf32>
    %528 = vector.shape_cast %527 : vector<8xf32> to vector<8x1xf32>
    %529 = vector.broadcast %528 : vector<8x1xf32> to vector<8x8xf32>
    %530 = arith.subf %526, %529 : vector<8x8xf32>
    %531 = math.exp %530 : vector<8x8xf32>
    %cst_209 = arith.constant dense<0.000000e+00> : vector<8xf32>
    %532 = vector.multi_reduction <add>, %531, %cst_209 [1] : vector<8x8xf32> to vector<8xf32>
    %533 = vector.shape_cast %532 : vector<8xf32> to vector<8x1xf32>
    %534 = tpu.reciprocal %533 {approx = true} : vector<8x1xf32> -> vector<8x1xf32>
    %535 = vector.broadcast %534 : vector<8x1xf32> to vector<8x8xf32>
    %536 = arith.mulf %531, %535 : vector<8x8xf32>
    %537 = arith.truncf %536 : vector<8x8xf32> to vector<8x8xbf16>
    %cst_210 = arith.constant dense<0.000000e+00> : vector<8x32xf32>
    %538 = tpu.matmul %537, %523, %cst_210 {dimension_numbers = #tpu.dot_dimension_numbers<[1], [0], [0], [1], [0, 0, 1, 1], [], []>} : vector<8x8xbf16>, vector<8x32xbf16>, vector<8x32xf32> -> vector<8x32xf32>
    %539 = vector.extract_strided_slice %508 {offsets = [0, 32], sizes = [8, 32], strides = [1, 1]} : vector<8x128xf32> to vector<8x32xf32>
    %540 = arith.truncf %539 : vector<8x32xf32> to vector<8x32xbf16>
    %541 = vector.extract_strided_slice %516 {offsets = [0, 32], sizes = [8, 32], strides = [1, 1]} : vector<8x128xf32> to vector<8x32xf32>
    %542 = arith.truncf %541 : vector<8x32xf32> to vector<8x32xbf16>
    %543 = vector.extract_strided_slice %517 {offsets = [0, 32], sizes = [8, 32], strides = [1, 1]} : vector<8x128xf32> to vector<8x32xf32>
    %544 = arith.truncf %543 : vector<8x32xf32> to vector<8x32xbf16>
    %cst_211 = arith.constant dense<0.000000e+00> : vector<8x8xf32>
    %545 = tpu.matmul %540, %542, %cst_211 {dimension_numbers = #tpu.dot_dimension_numbers<[1], [1], [0], [0], [0, 0, 1, 0], [], []>} : vector<8x32xbf16>, vector<8x32xbf16>, vector<8x8xf32> -> vector<8x8xf32>
    %546 = vector.broadcast %1 : vector<1x8xf32> to vector<8x8xf32>
    %547 = arith.addf %545, %546 : vector<8x8xf32>
    %cst_212 = arith.constant dense<0xFF800000> : vector<8xf32>
    %548 = vector.multi_reduction <maximumf>, %547, %cst_212 [1] : vector<8x8xf32> to vector<8xf32>
    %549 = vector.shape_cast %548 : vector<8xf32> to vector<8x1xf32>
    %550 = vector.broadcast %549 : vector<8x1xf32> to vector<8x8xf32>
    %551 = arith.subf %547, %550 : vector<8x8xf32>
    %552 = math.exp %551 : vector<8x8xf32>
    %cst_213 = arith.constant dense<0.000000e+00> : vector<8xf32>
    %553 = vector.multi_reduction <add>, %552, %cst_213 [1] : vector<8x8xf32> to vector<8xf32>
    %554 = vector.shape_cast %553 : vector<8xf32> to vector<8x1xf32>
    %555 = tpu.reciprocal %554 {approx = true} : vector<8x1xf32> -> vector<8x1xf32>
    %556 = vector.broadcast %555 : vector<8x1xf32> to vector<8x8xf32>
    %557 = arith.mulf %552, %556 : vector<8x8xf32>
    %558 = arith.truncf %557 : vector<8x8xf32> to vector<8x8xbf16>
    %cst_214 = arith.constant dense<0.000000e+00> : vector<8x32xf32>
    %559 = tpu.matmul %558, %544, %cst_214 {dimension_numbers = #tpu.dot_dimension_numbers<[1], [0], [0], [1], [0, 0, 1, 1], [], []>} : vector<8x8xbf16>, vector<8x32xbf16>, vector<8x32xf32> -> vector<8x32xf32>
    %560 = vector.extract_strided_slice %508 {offsets = [0, 64], sizes = [8, 32], strides = [1, 1]} : vector<8x128xf32> to vector<8x32xf32>
    %561 = arith.truncf %560 : vector<8x32xf32> to vector<8x32xbf16>
    %562 = vector.extract_strided_slice %516 {offsets = [0, 64], sizes = [8, 32], strides = [1, 1]} : vector<8x128xf32> to vector<8x32xf32>
    %563 = arith.truncf %562 : vector<8x32xf32> to vector<8x32xbf16>
    %564 = vector.extract_strided_slice %517 {offsets = [0, 64], sizes = [8, 32], strides = [1, 1]} : vector<8x128xf32> to vector<8x32xf32>
    %565 = arith.truncf %564 : vector<8x32xf32> to vector<8x32xbf16>
    %cst_215 = arith.constant dense<0.000000e+00> : vector<8x8xf32>
    %566 = tpu.matmul %561, %563, %cst_215 {dimension_numbers = #tpu.dot_dimension_numbers<[1], [1], [0], [0], [0, 0, 1, 0], [], []>} : vector<8x32xbf16>, vector<8x32xbf16>, vector<8x8xf32> -> vector<8x8xf32>
    %567 = vector.broadcast %1 : vector<1x8xf32> to vector<8x8xf32>
    %568 = arith.addf %566, %567 : vector<8x8xf32>
    %cst_216 = arith.constant dense<0xFF800000> : vector<8xf32>
    %569 = vector.multi_reduction <maximumf>, %568, %cst_216 [1] : vector<8x8xf32> to vector<8xf32>
    %570 = vector.shape_cast %569 : vector<8xf32> to vector<8x1xf32>
    %571 = vector.broadcast %570 : vector<8x1xf32> to vector<8x8xf32>
    %572 = arith.subf %568, %571 : vector<8x8xf32>
    %573 = math.exp %572 : vector<8x8xf32>
    %cst_217 = arith.constant dense<0.000000e+00> : vector<8xf32>
    %574 = vector.multi_reduction <add>, %573, %cst_217 [1] : vector<8x8xf32> to vector<8xf32>
    %575 = vector.shape_cast %574 : vector<8xf32> to vector<8x1xf32>
    %576 = tpu.reciprocal %575 {approx = true} : vector<8x1xf32> -> vector<8x1xf32>
    %577 = vector.broadcast %576 : vector<8x1xf32> to vector<8x8xf32>
    %578 = arith.mulf %573, %577 : vector<8x8xf32>
    %579 = arith.truncf %578 : vector<8x8xf32> to vector<8x8xbf16>
    %cst_218 = arith.constant dense<0.000000e+00> : vector<8x32xf32>
    %580 = tpu.matmul %579, %565, %cst_218 {dimension_numbers = #tpu.dot_dimension_numbers<[1], [0], [0], [1], [0, 0, 1, 1], [], []>} : vector<8x8xbf16>, vector<8x32xbf16>, vector<8x32xf32> -> vector<8x32xf32>
    %581 = vector.extract_strided_slice %508 {offsets = [0, 96], sizes = [8, 32], strides = [1, 1]} : vector<8x128xf32> to vector<8x32xf32>
    %582 = arith.truncf %581 : vector<8x32xf32> to vector<8x32xbf16>
    %583 = vector.extract_strided_slice %516 {offsets = [0, 96], sizes = [8, 32], strides = [1, 1]} : vector<8x128xf32> to vector<8x32xf32>
    %584 = arith.truncf %583 : vector<8x32xf32> to vector<8x32xbf16>
    %585 = vector.extract_strided_slice %517 {offsets = [0, 96], sizes = [8, 32], strides = [1, 1]} : vector<8x128xf32> to vector<8x32xf32>
    %586 = arith.truncf %585 : vector<8x32xf32> to vector<8x32xbf16>
    %cst_219 = arith.constant dense<0.000000e+00> : vector<8x8xf32>
    %587 = tpu.matmul %582, %584, %cst_219 {dimension_numbers = #tpu.dot_dimension_numbers<[1], [1], [0], [0], [0, 0, 1, 0], [], []>} : vector<8x32xbf16>, vector<8x32xbf16>, vector<8x8xf32> -> vector<8x8xf32>
    %588 = vector.broadcast %1 : vector<1x8xf32> to vector<8x8xf32>
    %589 = arith.addf %587, %588 : vector<8x8xf32>
    %cst_220 = arith.constant dense<0xFF800000> : vector<8xf32>
    %590 = vector.multi_reduction <maximumf>, %589, %cst_220 [1] : vector<8x8xf32> to vector<8xf32>
    %591 = vector.shape_cast %590 : vector<8xf32> to vector<8x1xf32>
    %592 = vector.broadcast %591 : vector<8x1xf32> to vector<8x8xf32>
    %593 = arith.subf %589, %592 : vector<8x8xf32>
    %594 = math.exp %593 : vector<8x8xf32>
    %cst_221 = arith.constant dense<0.000000e+00> : vector<8xf32>
    %595 = vector.multi_reduction <add>, %594, %cst_221 [1] : vector<8x8xf32> to vector<8xf32>
    %596 = vector.shape_cast %595 : vector<8xf32> to vector<8x1xf32>
    %597 = tpu.reciprocal %596 {approx = true} : vector<8x1xf32> -> vector<8x1xf32>
    %598 = vector.broadcast %597 : vector<8x1xf32> to vector<8x8xf32>
    %599 = arith.mulf %594, %598 : vector<8x8xf32>
    %600 = arith.truncf %599 : vector<8x8xf32> to vector<8x8xbf16>
    %cst_222 = arith.constant dense<0.000000e+00> : vector<8x32xf32>
    %601 = tpu.matmul %600, %586, %cst_222 {dimension_numbers = #tpu.dot_dimension_numbers<[1], [0], [0], [1], [0, 0, 1, 1], [], []>} : vector<8x8xbf16>, vector<8x32xbf16>, vector<8x32xf32> -> vector<8x32xf32>
    %602 = tpu.concatenate %538, %559, %580, %601 in 1 : vector<8x32xf32>, vector<8x32xf32>, vector<8x32xf32>, vector<8x32xf32> -> vector<8x128xf32>
    %603 = arith.truncf %602 : vector<8x128xf32> to vector<8x128xbf16>
    %c0_223 = arith.constant 0 : index
    %c0_224 = arith.constant 0 : index
    %c0_225 = arith.constant 0 : index
    %604 = vector.load %arg28[%c0_223, %c0_224, %c0_225] : memref<2x128x128xbf16, #tpu.memory_space<vmem>>, vector<1x128x128xbf16>
    %605 = vector.shape_cast %604 : vector<1x128x128xbf16> to vector<128x128xbf16>
    %cst_226 = arith.constant dense<0.000000e+00> : vector<8x128xf32>
    %606 = tpu.matmul %603, %605, %cst_226 {dimension_numbers = #tpu.dot_dimension_numbers<[1], [0], [0], [1], [0, 0, 1, 1], [], []>} : vector<8x128xbf16>, vector<128x128xbf16>, vector<8x128xf32> -> vector<8x128xf32>
    %c0_227 = arith.constant 0 : index
    %c0_228 = arith.constant 0 : index
    %c0_229 = arith.constant 0 : index
    %607 = vector.load %arg29[%c0_227, %c0_228, %c0_229] : memref<2x1x128xf32, #tpu.memory_space<vmem>>, vector<1x1x128xf32>
    %608 = vector.shape_cast %607 : vector<1x1x128xf32> to vector<1x128xf32>
    %609 = vector.broadcast %608 : vector<1x128xf32> to vector<8x128xf32>
    %610 = arith.addf %606, %609 : vector<8x128xf32>
    %c0_230 = arith.constant 0 : index
    %c0_231 = arith.constant 0 : index
    %c0_232 = arith.constant 0 : index
    %611 = vector.load %arg36[%c0_230, %c0_231, %c0_232] : memref<2x1x128xf32, #tpu.memory_space<vmem>>, vector<1x1x128xf32>
    %612 = vector.shape_cast %611 : vector<1x1x128xf32> to vector<1x128xf32>
    %c0_233 = arith.constant 0 : index
    %c0_234 = arith.constant 0 : index
    %c0_235 = arith.constant 0 : index
    %613 = vector.load %arg37[%c0_233, %c0_234, %c0_235] : memref<2x1x128xf32, #tpu.memory_space<vmem>>, vector<1x1x128xf32>
    %614 = vector.shape_cast %613 : vector<1x1x128xf32> to vector<1x128xf32>
    %615 = arith.addf %610, %500 : vector<8x128xf32>
    %cst_236 = arith.constant dense<0.000000e+00> : vector<8xf32>
    %616 = vector.multi_reduction <add>, %615, %cst_236 [1] : vector<8x128xf32> to vector<8xf32>
    %617 = vector.shape_cast %616 : vector<8xf32> to vector<8x1xf32>
    %cst_237 = arith.constant 1.280000e+02 : f32
    %618 = vector.broadcast %cst_237 : f32 to vector<8x1xf32>
    %619 = arith.divf %617, %618 : vector<8x1xf32>
    %620 = vector.broadcast %619 : vector<8x1xf32> to vector<8x128xf32>
    %621 = arith.subf %615, %620 : vector<8x128xf32>
    %622 = arith.mulf %621, %621 : vector<8x128xf32>
    %cst_238 = arith.constant dense<0.000000e+00> : vector<8xf32>
    %623 = vector.multi_reduction <add>, %622, %cst_238 [1] : vector<8x128xf32> to vector<8xf32>
    %624 = vector.shape_cast %623 : vector<8xf32> to vector<8x1xf32>
    %cst_239 = arith.constant 1.280000e+02 : f32
    %625 = vector.broadcast %cst_239 : f32 to vector<8x1xf32>
    %626 = arith.divf %624, %625 : vector<8x1xf32>
    %627 = vector.broadcast %619 : vector<8x1xf32> to vector<8x128xf32>
    %628 = arith.subf %615, %627 : vector<8x128xf32>
    %cst_240 = arith.constant 9.99999974E-6 : f32
    %629 = vector.broadcast %cst_240 : f32 to vector<8x1xf32>
    %630 = arith.addf %626, %629 : vector<8x1xf32>
    %631 = math.rsqrt %630 : vector<8x1xf32>
    %632 = vector.broadcast %631 : vector<8x1xf32> to vector<8x128xf32>
    %633 = arith.mulf %628, %632 : vector<8x128xf32>
    %634 = vector.broadcast %612 : vector<1x128xf32> to vector<8x128xf32>
    %635 = arith.mulf %633, %634 : vector<8x128xf32>
    %636 = vector.broadcast %614 : vector<1x128xf32> to vector<8x128xf32>
    %637 = arith.addf %635, %636 : vector<8x128xf32>
    %c0_241 = arith.constant 0 : index
    %c0_242 = arith.constant 0 : index
    %c0_243 = arith.constant 0 : index
    %638 = vector.load %arg30[%c0_241, %c0_242, %c0_243] : memref<2x128x128xbf16, #tpu.memory_space<vmem>>, vector<1x128x128xbf16>
    %639 = vector.shape_cast %638 : vector<1x128x128xbf16> to vector<128x128xbf16>
    %c0_244 = arith.constant 0 : index
    %c0_245 = arith.constant 0 : index
    %c0_246 = arith.constant 0 : index
    %640 = vector.load %arg31[%c0_244, %c0_245, %c0_246] : memref<2x1x128xf32, #tpu.memory_space<vmem>>, vector<1x1x128xf32>
    %641 = vector.shape_cast %640 : vector<1x1x128xf32> to vector<1x128xf32>
    %c0_247 = arith.constant 0 : index
    %c0_248 = arith.constant 0 : index
    %c0_249 = arith.constant 0 : index
    %642 = vector.load %arg32[%c0_247, %c0_248, %c0_249] : memref<2x128x128xbf16, #tpu.memory_space<vmem>>, vector<1x128x128xbf16>
    %643 = vector.shape_cast %642 : vector<1x128x128xbf16> to vector<128x128xbf16>
    %c0_250 = arith.constant 0 : index
    %c0_251 = arith.constant 0 : index
    %c0_252 = arith.constant 0 : index
    %644 = vector.load %arg33[%c0_250, %c0_251, %c0_252] : memref<2x1x128xf32, #tpu.memory_space<vmem>>, vector<1x1x128xf32>
    %645 = vector.shape_cast %644 : vector<1x1x128xf32> to vector<1x128xf32>
    %646 = arith.truncf %637 : vector<8x128xf32> to vector<8x128xbf16>
    %cst_253 = arith.constant dense<0.000000e+00> : vector<8x128xf32>
    %647 = tpu.matmul %646, %639, %cst_253 {dimension_numbers = #tpu.dot_dimension_numbers<[1], [0], [0], [1], [0, 0, 1, 1], [], []>} : vector<8x128xbf16>, vector<128x128xbf16>, vector<8x128xf32> -> vector<8x128xf32>
    %648 = vector.broadcast %641 : vector<1x128xf32> to vector<8x128xf32>
    %649 = arith.addf %647, %648 : vector<8x128xf32>
    %cst_254 = arith.constant 0.000000e+00 : f32
    %650 = vector.broadcast %cst_254 : f32 to vector<8x128xf32>
    %651 = arith.maximumf %649, %650 : vector<8x128xf32>
    %652 = arith.truncf %651 : vector<8x128xf32> to vector<8x128xbf16>
    %cst_255 = arith.constant dense<0.000000e+00> : vector<8x128xf32>
    %653 = tpu.matmul %652, %643, %cst_255 {dimension_numbers = #tpu.dot_dimension_numbers<[1], [0], [0], [1], [0, 0, 1, 1], [], []>} : vector<8x128xbf16>, vector<128x128xbf16>, vector<8x128xf32> -> vector<8x128xf32>
    %654 = vector.broadcast %645 : vector<1x128xf32> to vector<8x128xf32>
    %655 = arith.addf %653, %654 : vector<8x128xf32>
    %c0_256 = arith.constant 0 : index
    %c0_257 = arith.constant 0 : index
    %c0_258 = arith.constant 0 : index
    %656 = vector.load %arg38[%c0_256, %c0_257, %c0_258] : memref<2x1x128xf32, #tpu.memory_space<vmem>>, vector<1x1x128xf32>
    %657 = vector.shape_cast %656 : vector<1x1x128xf32> to vector<1x128xf32>
    %c0_259 = arith.constant 0 : index
    %c0_260 = arith.constant 0 : index
    %c0_261 = arith.constant 0 : index
    %658 = vector.load %arg39[%c0_259, %c0_260, %c0_261] : memref<2x1x128xf32, #tpu.memory_space<vmem>>, vector<1x1x128xf32>
    %659 = vector.shape_cast %658 : vector<1x1x128xf32> to vector<1x128xf32>
    %660 = arith.addf %655, %637 : vector<8x128xf32>
    %cst_262 = arith.constant dense<0.000000e+00> : vector<8xf32>
    %661 = vector.multi_reduction <add>, %660, %cst_262 [1] : vector<8x128xf32> to vector<8xf32>
    %662 = vector.shape_cast %661 : vector<8xf32> to vector<8x1xf32>
    %cst_263 = arith.constant 1.280000e+02 : f32
    %663 = vector.broadcast %cst_263 : f32 to vector<8x1xf32>
    %664 = arith.divf %662, %663 : vector<8x1xf32>
    %665 = vector.broadcast %664 : vector<8x1xf32> to vector<8x128xf32>
    %666 = arith.subf %660, %665 : vector<8x128xf32>
    %667 = arith.mulf %666, %666 : vector<8x128xf32>
    %cst_264 = arith.constant dense<0.000000e+00> : vector<8xf32>
    %668 = vector.multi_reduction <add>, %667, %cst_264 [1] : vector<8x128xf32> to vector<8xf32>
    %669 = vector.shape_cast %668 : vector<8xf32> to vector<8x1xf32>
    %cst_265 = arith.constant 1.280000e+02 : f32
    %670 = vector.broadcast %cst_265 : f32 to vector<8x1xf32>
    %671 = arith.divf %669, %670 : vector<8x1xf32>
    %672 = vector.broadcast %664 : vector<8x1xf32> to vector<8x128xf32>
    %673 = arith.subf %660, %672 : vector<8x128xf32>
    %cst_266 = arith.constant 9.99999974E-6 : f32
    %674 = vector.broadcast %cst_266 : f32 to vector<8x1xf32>
    %675 = arith.addf %671, %674 : vector<8x1xf32>
    %676 = math.rsqrt %675 : vector<8x1xf32>
    %677 = vector.broadcast %676 : vector<8x1xf32> to vector<8x128xf32>
    %678 = arith.mulf %673, %677 : vector<8x128xf32>
    %679 = vector.broadcast %657 : vector<1x128xf32> to vector<8x128xf32>
    %680 = arith.mulf %678, %679 : vector<8x128xf32>
    %681 = vector.broadcast %659 : vector<1x128xf32> to vector<8x128xf32>
    %682 = arith.addf %680, %681 : vector<8x128xf32>
    %683 = arith.truncf %682 : vector<8x128xf32> to vector<8x128xbf16>
    %c1_267 = arith.constant 1 : index
    %c0_268 = arith.constant 0 : index
    %c0_269 = arith.constant 0 : index
    %684 = vector.load %arg20[%c1_267, %c0_268, %c0_269] : memref<2x128x384xbf16, #tpu.memory_space<vmem>>, vector<1x128x384xbf16>
    %685 = vector.shape_cast %684 : vector<1x128x384xbf16> to vector<128x384xbf16>
    %cst_270 = arith.constant dense<0.000000e+00> : vector<8x384xf32>
    %686 = tpu.matmul %683, %685, %cst_270 {dimension_numbers = #tpu.dot_dimension_numbers<[1], [0], [0], [1], [0, 0, 1, 1], [], []>} : vector<8x128xbf16>, vector<128x384xbf16>, vector<8x384xf32> -> vector<8x384xf32>
    %c1_271 = arith.constant 1 : index
    %c0_272 = arith.constant 0 : index
    %c0_273 = arith.constant 0 : index
    %687 = vector.load %arg21[%c1_271, %c0_272, %c0_273] : memref<2x1x384xf32, #tpu.memory_space<vmem>>, vector<1x1x384xf32>
    %688 = vector.shape_cast %687 : vector<1x1x384xf32> to vector<1x384xf32>
    %689 = vector.broadcast %688 : vector<1x384xf32> to vector<8x384xf32>
    %690 = arith.addf %686, %689 : vector<8x384xf32>
    %691 = vector.extract_strided_slice %690 {offsets = [0, 0], sizes = [8, 128], strides = [1, 1]} : vector<8x384xf32> to vector<8x128xf32>
    %692 = vector.extract_strided_slice %690 {offsets = [0, 128], sizes = [8, 128], strides = [1, 1]} : vector<8x384xf32> to vector<8x128xf32>
    %693 = vector.extract_strided_slice %690 {offsets = [0, 256], sizes = [8, 128], strides = [1, 1]} : vector<8x384xf32> to vector<8x128xf32>
    %694 = vector.extract_strided_slice %691 {offsets = [0, 0], sizes = [8, 32], strides = [1, 1]} : vector<8x128xf32> to vector<8x32xf32>
    %695 = arith.truncf %694 : vector<8x32xf32> to vector<8x32xbf16>
    %696 = vector.extract_strided_slice %692 {offsets = [0, 0], sizes = [8, 32], strides = [1, 1]} : vector<8x128xf32> to vector<8x32xf32>
    %697 = arith.truncf %696 : vector<8x32xf32> to vector<8x32xbf16>
    %698 = vector.extract_strided_slice %693 {offsets = [0, 0], sizes = [8, 32], strides = [1, 1]} : vector<8x128xf32> to vector<8x32xf32>
    %699 = arith.truncf %698 : vector<8x32xf32> to vector<8x32xbf16>
    %cst_274 = arith.constant dense<0.000000e+00> : vector<8x8xf32>
    %700 = tpu.matmul %695, %697, %cst_274 {dimension_numbers = #tpu.dot_dimension_numbers<[1], [1], [0], [0], [0, 0, 1, 0], [], []>} : vector<8x32xbf16>, vector<8x32xbf16>, vector<8x8xf32> -> vector<8x8xf32>
    %701 = vector.broadcast %3 : vector<1x8xf32> to vector<8x8xf32>
    %702 = arith.addf %700, %701 : vector<8x8xf32>
    %cst_275 = arith.constant dense<0xFF800000> : vector<8xf32>
    %703 = vector.multi_reduction <maximumf>, %702, %cst_275 [1] : vector<8x8xf32> to vector<8xf32>
    %704 = vector.shape_cast %703 : vector<8xf32> to vector<8x1xf32>
    %705 = vector.broadcast %704 : vector<8x1xf32> to vector<8x8xf32>
    %706 = arith.subf %702, %705 : vector<8x8xf32>
    %707 = math.exp %706 : vector<8x8xf32>
    %cst_276 = arith.constant dense<0.000000e+00> : vector<8xf32>
    %708 = vector.multi_reduction <add>, %707, %cst_276 [1] : vector<8x8xf32> to vector<8xf32>
    %709 = vector.shape_cast %708 : vector<8xf32> to vector<8x1xf32>
    %710 = tpu.reciprocal %709 {approx = true} : vector<8x1xf32> -> vector<8x1xf32>
    %711 = vector.broadcast %710 : vector<8x1xf32> to vector<8x8xf32>
    %712 = arith.mulf %707, %711 : vector<8x8xf32>
    %713 = arith.truncf %712 : vector<8x8xf32> to vector<8x8xbf16>
    %cst_277 = arith.constant dense<0.000000e+00> : vector<8x32xf32>
    %714 = tpu.matmul %713, %699, %cst_277 {dimension_numbers = #tpu.dot_dimension_numbers<[1], [0], [0], [1], [0, 0, 1, 1], [], []>} : vector<8x8xbf16>, vector<8x32xbf16>, vector<8x32xf32> -> vector<8x32xf32>
    %715 = vector.extract_strided_slice %691 {offsets = [0, 32], sizes = [8, 32], strides = [1, 1]} : vector<8x128xf32> to vector<8x32xf32>
    %716 = arith.truncf %715 : vector<8x32xf32> to vector<8x32xbf16>
    %717 = vector.extract_strided_slice %692 {offsets = [0, 32], sizes = [8, 32], strides = [1, 1]} : vector<8x128xf32> to vector<8x32xf32>
    %718 = arith.truncf %717 : vector<8x32xf32> to vector<8x32xbf16>
    %719 = vector.extract_strided_slice %693 {offsets = [0, 32], sizes = [8, 32], strides = [1, 1]} : vector<8x128xf32> to vector<8x32xf32>
    %720 = arith.truncf %719 : vector<8x32xf32> to vector<8x32xbf16>
    %cst_278 = arith.constant dense<0.000000e+00> : vector<8x8xf32>
    %721 = tpu.matmul %716, %718, %cst_278 {dimension_numbers = #tpu.dot_dimension_numbers<[1], [1], [0], [0], [0, 0, 1, 0], [], []>} : vector<8x32xbf16>, vector<8x32xbf16>, vector<8x8xf32> -> vector<8x8xf32>
    %722 = vector.broadcast %3 : vector<1x8xf32> to vector<8x8xf32>
    %723 = arith.addf %721, %722 : vector<8x8xf32>
    %cst_279 = arith.constant dense<0xFF800000> : vector<8xf32>
    %724 = vector.multi_reduction <maximumf>, %723, %cst_279 [1] : vector<8x8xf32> to vector<8xf32>
    %725 = vector.shape_cast %724 : vector<8xf32> to vector<8x1xf32>
    %726 = vector.broadcast %725 : vector<8x1xf32> to vector<8x8xf32>
    %727 = arith.subf %723, %726 : vector<8x8xf32>
    %728 = math.exp %727 : vector<8x8xf32>
    %cst_280 = arith.constant dense<0.000000e+00> : vector<8xf32>
    %729 = vector.multi_reduction <add>, %728, %cst_280 [1] : vector<8x8xf32> to vector<8xf32>
    %730 = vector.shape_cast %729 : vector<8xf32> to vector<8x1xf32>
    %731 = tpu.reciprocal %730 {approx = true} : vector<8x1xf32> -> vector<8x1xf32>
    %732 = vector.broadcast %731 : vector<8x1xf32> to vector<8x8xf32>
    %733 = arith.mulf %728, %732 : vector<8x8xf32>
    %734 = arith.truncf %733 : vector<8x8xf32> to vector<8x8xbf16>
    %cst_281 = arith.constant dense<0.000000e+00> : vector<8x32xf32>
    %735 = tpu.matmul %734, %720, %cst_281 {dimension_numbers = #tpu.dot_dimension_numbers<[1], [0], [0], [1], [0, 0, 1, 1], [], []>} : vector<8x8xbf16>, vector<8x32xbf16>, vector<8x32xf32> -> vector<8x32xf32>
    %736 = vector.extract_strided_slice %691 {offsets = [0, 64], sizes = [8, 32], strides = [1, 1]} : vector<8x128xf32> to vector<8x32xf32>
    %737 = arith.truncf %736 : vector<8x32xf32> to vector<8x32xbf16>
    %738 = vector.extract_strided_slice %692 {offsets = [0, 64], sizes = [8, 32], strides = [1, 1]} : vector<8x128xf32> to vector<8x32xf32>
    %739 = arith.truncf %738 : vector<8x32xf32> to vector<8x32xbf16>
    %740 = vector.extract_strided_slice %693 {offsets = [0, 64], sizes = [8, 32], strides = [1, 1]} : vector<8x128xf32> to vector<8x32xf32>
    %741 = arith.truncf %740 : vector<8x32xf32> to vector<8x32xbf16>
    %cst_282 = arith.constant dense<0.000000e+00> : vector<8x8xf32>
    %742 = tpu.matmul %737, %739, %cst_282 {dimension_numbers = #tpu.dot_dimension_numbers<[1], [1], [0], [0], [0, 0, 1, 0], [], []>} : vector<8x32xbf16>, vector<8x32xbf16>, vector<8x8xf32> -> vector<8x8xf32>
    %743 = vector.broadcast %3 : vector<1x8xf32> to vector<8x8xf32>
    %744 = arith.addf %742, %743 : vector<8x8xf32>
    %cst_283 = arith.constant dense<0xFF800000> : vector<8xf32>
    %745 = vector.multi_reduction <maximumf>, %744, %cst_283 [1] : vector<8x8xf32> to vector<8xf32>
    %746 = vector.shape_cast %745 : vector<8xf32> to vector<8x1xf32>
    %747 = vector.broadcast %746 : vector<8x1xf32> to vector<8x8xf32>
    %748 = arith.subf %744, %747 : vector<8x8xf32>
    %749 = math.exp %748 : vector<8x8xf32>
    %cst_284 = arith.constant dense<0.000000e+00> : vector<8xf32>
    %750 = vector.multi_reduction <add>, %749, %cst_284 [1] : vector<8x8xf32> to vector<8xf32>
    %751 = vector.shape_cast %750 : vector<8xf32> to vector<8x1xf32>
    %752 = tpu.reciprocal %751 {approx = true} : vector<8x1xf32> -> vector<8x1xf32>
    %753 = vector.broadcast %752 : vector<8x1xf32> to vector<8x8xf32>
    %754 = arith.mulf %749, %753 : vector<8x8xf32>
    %755 = arith.truncf %754 : vector<8x8xf32> to vector<8x8xbf16>
    %cst_285 = arith.constant dense<0.000000e+00> : vector<8x32xf32>
    %756 = tpu.matmul %755, %741, %cst_285 {dimension_numbers = #tpu.dot_dimension_numbers<[1], [0], [0], [1], [0, 0, 1, 1], [], []>} : vector<8x8xbf16>, vector<8x32xbf16>, vector<8x32xf32> -> vector<8x32xf32>
    %757 = vector.extract_strided_slice %691 {offsets = [0, 96], sizes = [8, 32], strides = [1, 1]} : vector<8x128xf32> to vector<8x32xf32>
    %758 = arith.truncf %757 : vector<8x32xf32> to vector<8x32xbf16>
    %759 = vector.extract_strided_slice %692 {offsets = [0, 96], sizes = [8, 32], strides = [1, 1]} : vector<8x128xf32> to vector<8x32xf32>
    %760 = arith.truncf %759 : vector<8x32xf32> to vector<8x32xbf16>
    %761 = vector.extract_strided_slice %693 {offsets = [0, 96], sizes = [8, 32], strides = [1, 1]} : vector<8x128xf32> to vector<8x32xf32>
    %762 = arith.truncf %761 : vector<8x32xf32> to vector<8x32xbf16>
    %cst_286 = arith.constant dense<0.000000e+00> : vector<8x8xf32>
    %763 = tpu.matmul %758, %760, %cst_286 {dimension_numbers = #tpu.dot_dimension_numbers<[1], [1], [0], [0], [0, 0, 1, 0], [], []>} : vector<8x32xbf16>, vector<8x32xbf16>, vector<8x8xf32> -> vector<8x8xf32>
    %764 = vector.broadcast %3 : vector<1x8xf32> to vector<8x8xf32>
    %765 = arith.addf %763, %764 : vector<8x8xf32>
    %cst_287 = arith.constant dense<0xFF800000> : vector<8xf32>
    %766 = vector.multi_reduction <maximumf>, %765, %cst_287 [1] : vector<8x8xf32> to vector<8xf32>
    %767 = vector.shape_cast %766 : vector<8xf32> to vector<8x1xf32>
    %768 = vector.broadcast %767 : vector<8x1xf32> to vector<8x8xf32>
    %769 = arith.subf %765, %768 : vector<8x8xf32>
    %770 = math.exp %769 : vector<8x8xf32>
    %cst_288 = arith.constant dense<0.000000e+00> : vector<8xf32>
    %771 = vector.multi_reduction <add>, %770, %cst_288 [1] : vector<8x8xf32> to vector<8xf32>
    %772 = vector.shape_cast %771 : vector<8xf32> to vector<8x1xf32>
    %773 = tpu.reciprocal %772 {approx = true} : vector<8x1xf32> -> vector<8x1xf32>
    %774 = vector.broadcast %773 : vector<8x1xf32> to vector<8x8xf32>
    %775 = arith.mulf %770, %774 : vector<8x8xf32>
    %776 = arith.truncf %775 : vector<8x8xf32> to vector<8x8xbf16>
    %cst_289 = arith.constant dense<0.000000e+00> : vector<8x32xf32>
    %777 = tpu.matmul %776, %762, %cst_289 {dimension_numbers = #tpu.dot_dimension_numbers<[1], [0], [0], [1], [0, 0, 1, 1], [], []>} : vector<8x8xbf16>, vector<8x32xbf16>, vector<8x32xf32> -> vector<8x32xf32>
    %778 = tpu.concatenate %714, %735, %756, %777 in 1 : vector<8x32xf32>, vector<8x32xf32>, vector<8x32xf32>, vector<8x32xf32> -> vector<8x128xf32>
    %779 = arith.truncf %778 : vector<8x128xf32> to vector<8x128xbf16>
    %c1_290 = arith.constant 1 : index
    %c0_291 = arith.constant 0 : index
    %c0_292 = arith.constant 0 : index
    %780 = vector.load %arg22[%c1_290, %c0_291, %c0_292] : memref<2x128x128xbf16, #tpu.memory_space<vmem>>, vector<1x128x128xbf16>
    %781 = vector.shape_cast %780 : vector<1x128x128xbf16> to vector<128x128xbf16>
    %cst_293 = arith.constant dense<0.000000e+00> : vector<8x128xf32>
    %782 = tpu.matmul %779, %781, %cst_293 {dimension_numbers = #tpu.dot_dimension_numbers<[1], [0], [0], [1], [0, 0, 1, 1], [], []>} : vector<8x128xbf16>, vector<128x128xbf16>, vector<8x128xf32> -> vector<8x128xf32>
    %c1_294 = arith.constant 1 : index
    %c0_295 = arith.constant 0 : index
    %c0_296 = arith.constant 0 : index
    %783 = vector.load %arg23[%c1_294, %c0_295, %c0_296] : memref<2x1x128xf32, #tpu.memory_space<vmem>>, vector<1x1x128xf32>
    %784 = vector.shape_cast %783 : vector<1x1x128xf32> to vector<1x128xf32>
    %785 = vector.broadcast %784 : vector<1x128xf32> to vector<8x128xf32>
    %786 = arith.addf %782, %785 : vector<8x128xf32>
    %c1_297 = arith.constant 1 : index
    %c0_298 = arith.constant 0 : index
    %c0_299 = arith.constant 0 : index
    %787 = vector.load %arg34[%c1_297, %c0_298, %c0_299] : memref<2x1x128xf32, #tpu.memory_space<vmem>>, vector<1x1x128xf32>
    %788 = vector.shape_cast %787 : vector<1x1x128xf32> to vector<1x128xf32>
    %c1_300 = arith.constant 1 : index
    %c0_301 = arith.constant 0 : index
    %c0_302 = arith.constant 0 : index
    %789 = vector.load %arg35[%c1_300, %c0_301, %c0_302] : memref<2x1x128xf32, #tpu.memory_space<vmem>>, vector<1x1x128xf32>
    %790 = vector.shape_cast %789 : vector<1x1x128xf32> to vector<1x128xf32>
    %791 = arith.addf %786, %682 : vector<8x128xf32>
    %cst_303 = arith.constant dense<0.000000e+00> : vector<8xf32>
    %792 = vector.multi_reduction <add>, %791, %cst_303 [1] : vector<8x128xf32> to vector<8xf32>
    %793 = vector.shape_cast %792 : vector<8xf32> to vector<8x1xf32>
    %cst_304 = arith.constant 1.280000e+02 : f32
    %794 = vector.broadcast %cst_304 : f32 to vector<8x1xf32>
    %795 = arith.divf %793, %794 : vector<8x1xf32>
    %796 = vector.broadcast %795 : vector<8x1xf32> to vector<8x128xf32>
    %797 = arith.subf %791, %796 : vector<8x128xf32>
    %798 = arith.mulf %797, %797 : vector<8x128xf32>
    %cst_305 = arith.constant dense<0.000000e+00> : vector<8xf32>
    %799 = vector.multi_reduction <add>, %798, %cst_305 [1] : vector<8x128xf32> to vector<8xf32>
    %800 = vector.shape_cast %799 : vector<8xf32> to vector<8x1xf32>
    %cst_306 = arith.constant 1.280000e+02 : f32
    %801 = vector.broadcast %cst_306 : f32 to vector<8x1xf32>
    %802 = arith.divf %800, %801 : vector<8x1xf32>
    %803 = vector.broadcast %795 : vector<8x1xf32> to vector<8x128xf32>
    %804 = arith.subf %791, %803 : vector<8x128xf32>
    %cst_307 = arith.constant 9.99999974E-6 : f32
    %805 = vector.broadcast %cst_307 : f32 to vector<8x1xf32>
    %806 = arith.addf %802, %805 : vector<8x1xf32>
    %807 = math.rsqrt %806 : vector<8x1xf32>
    %808 = vector.broadcast %807 : vector<8x1xf32> to vector<8x128xf32>
    %809 = arith.mulf %804, %808 : vector<8x128xf32>
    %810 = vector.broadcast %788 : vector<1x128xf32> to vector<8x128xf32>
    %811 = arith.mulf %809, %810 : vector<8x128xf32>
    %812 = vector.broadcast %790 : vector<1x128xf32> to vector<8x128xf32>
    %813 = arith.addf %811, %812 : vector<8x128xf32>
    %814 = arith.truncf %813 : vector<8x128xf32> to vector<8x128xbf16>
    %c1_308 = arith.constant 1 : index
    %c0_309 = arith.constant 0 : index
    %c0_310 = arith.constant 0 : index
    %815 = vector.load %arg24[%c1_308, %c0_309, %c0_310] : memref<2x128x128xbf16, #tpu.memory_space<vmem>>, vector<1x128x128xbf16>
    %816 = vector.shape_cast %815 : vector<1x128x128xbf16> to vector<128x128xbf16>
    %cst_311 = arith.constant dense<0.000000e+00> : vector<8x128xf32>
    %817 = tpu.matmul %814, %816, %cst_311 {dimension_numbers = #tpu.dot_dimension_numbers<[1], [0], [0], [1], [0, 0, 1, 1], [], []>} : vector<8x128xbf16>, vector<128x128xbf16>, vector<8x128xf32> -> vector<8x128xf32>
    %c1_312 = arith.constant 1 : index
    %c0_313 = arith.constant 0 : index
    %c0_314 = arith.constant 0 : index
    %818 = vector.load %arg25[%c1_312, %c0_313, %c0_314] : memref<2x1x128xf32, #tpu.memory_space<vmem>>, vector<1x1x128xf32>
    %819 = vector.shape_cast %818 : vector<1x1x128xf32> to vector<1x128xf32>
    %820 = vector.broadcast %819 : vector<1x128xf32> to vector<8x128xf32>
    %821 = arith.addf %817, %820 : vector<8x128xf32>
    %c1_315 = arith.constant 1 : index
    %c0_316 = arith.constant 0 : index
    %c0_317 = arith.constant 0 : index
    %822 = vector.load %arg26[%c1_315, %c0_316, %c0_317] : memref<2x128x256xbf16, #tpu.memory_space<vmem>>, vector<1x128x256xbf16>
    %823 = vector.shape_cast %822 : vector<1x128x256xbf16> to vector<128x256xbf16>
    %cst_318 = arith.constant dense<0.000000e+00> : vector<8x256xf32>
    %824 = tpu.matmul %364, %823, %cst_318 {dimension_numbers = #tpu.dot_dimension_numbers<[1], [0], [0], [1], [0, 0, 1, 1], [], []>} : vector<8x128xbf16>, vector<128x256xbf16>, vector<8x256xf32> -> vector<8x256xf32>
    %c1_319 = arith.constant 1 : index
    %c0_320 = arith.constant 0 : index
    %c0_321 = arith.constant 0 : index
    %825 = vector.load %arg27[%c1_319, %c0_320, %c0_321] : memref<2x1x256xf32, #tpu.memory_space<vmem>>, vector<1x1x256xf32>
    %826 = vector.shape_cast %825 : vector<1x1x256xf32> to vector<1x256xf32>
    %827 = vector.broadcast %826 : vector<1x256xf32> to vector<8x256xf32>
    %828 = arith.addf %824, %827 : vector<8x256xf32>
    %829 = vector.extract_strided_slice %828 {offsets = [0, 0], sizes = [8, 128], strides = [1, 1]} : vector<8x256xf32> to vector<8x128xf32>
    %830 = vector.extract_strided_slice %828 {offsets = [0, 128], sizes = [8, 128], strides = [1, 1]} : vector<8x256xf32> to vector<8x128xf32>
    %831 = vector.extract_strided_slice %821 {offsets = [0, 0], sizes = [8, 32], strides = [1, 1]} : vector<8x128xf32> to vector<8x32xf32>
    %832 = arith.truncf %831 : vector<8x32xf32> to vector<8x32xbf16>
    %833 = vector.extract_strided_slice %829 {offsets = [0, 0], sizes = [8, 32], strides = [1, 1]} : vector<8x128xf32> to vector<8x32xf32>
    %834 = arith.truncf %833 : vector<8x32xf32> to vector<8x32xbf16>
    %835 = vector.extract_strided_slice %830 {offsets = [0, 0], sizes = [8, 32], strides = [1, 1]} : vector<8x128xf32> to vector<8x32xf32>
    %836 = arith.truncf %835 : vector<8x32xf32> to vector<8x32xbf16>
    %cst_322 = arith.constant dense<0.000000e+00> : vector<8x8xf32>
    %837 = tpu.matmul %832, %834, %cst_322 {dimension_numbers = #tpu.dot_dimension_numbers<[1], [1], [0], [0], [0, 0, 1, 0], [], []>} : vector<8x32xbf16>, vector<8x32xbf16>, vector<8x8xf32> -> vector<8x8xf32>
    %838 = vector.broadcast %1 : vector<1x8xf32> to vector<8x8xf32>
    %839 = arith.addf %837, %838 : vector<8x8xf32>
    %cst_323 = arith.constant dense<0xFF800000> : vector<8xf32>
    %840 = vector.multi_reduction <maximumf>, %839, %cst_323 [1] : vector<8x8xf32> to vector<8xf32>
    %841 = vector.shape_cast %840 : vector<8xf32> to vector<8x1xf32>
    %842 = vector.broadcast %841 : vector<8x1xf32> to vector<8x8xf32>
    %843 = arith.subf %839, %842 : vector<8x8xf32>
    %844 = math.exp %843 : vector<8x8xf32>
    %cst_324 = arith.constant dense<0.000000e+00> : vector<8xf32>
    %845 = vector.multi_reduction <add>, %844, %cst_324 [1] : vector<8x8xf32> to vector<8xf32>
    %846 = vector.shape_cast %845 : vector<8xf32> to vector<8x1xf32>
    %847 = tpu.reciprocal %846 {approx = true} : vector<8x1xf32> -> vector<8x1xf32>
    %848 = vector.broadcast %847 : vector<8x1xf32> to vector<8x8xf32>
    %849 = arith.mulf %844, %848 : vector<8x8xf32>
    %850 = arith.truncf %849 : vector<8x8xf32> to vector<8x8xbf16>
    %cst_325 = arith.constant dense<0.000000e+00> : vector<8x32xf32>
    %851 = tpu.matmul %850, %836, %cst_325 {dimension_numbers = #tpu.dot_dimension_numbers<[1], [0], [0], [1], [0, 0, 1, 1], [], []>} : vector<8x8xbf16>, vector<8x32xbf16>, vector<8x32xf32> -> vector<8x32xf32>
    %852 = vector.extract_strided_slice %821 {offsets = [0, 32], sizes = [8, 32], strides = [1, 1]} : vector<8x128xf32> to vector<8x32xf32>
    %853 = arith.truncf %852 : vector<8x32xf32> to vector<8x32xbf16>
    %854 = vector.extract_strided_slice %829 {offsets = [0, 32], sizes = [8, 32], strides = [1, 1]} : vector<8x128xf32> to vector<8x32xf32>
    %855 = arith.truncf %854 : vector<8x32xf32> to vector<8x32xbf16>
    %856 = vector.extract_strided_slice %830 {offsets = [0, 32], sizes = [8, 32], strides = [1, 1]} : vector<8x128xf32> to vector<8x32xf32>
    %857 = arith.truncf %856 : vector<8x32xf32> to vector<8x32xbf16>
    %cst_326 = arith.constant dense<0.000000e+00> : vector<8x8xf32>
    %858 = tpu.matmul %853, %855, %cst_326 {dimension_numbers = #tpu.dot_dimension_numbers<[1], [1], [0], [0], [0, 0, 1, 0], [], []>} : vector<8x32xbf16>, vector<8x32xbf16>, vector<8x8xf32> -> vector<8x8xf32>
    %859 = vector.broadcast %1 : vector<1x8xf32> to vector<8x8xf32>
    %860 = arith.addf %858, %859 : vector<8x8xf32>
    %cst_327 = arith.constant dense<0xFF800000> : vector<8xf32>
    %861 = vector.multi_reduction <maximumf>, %860, %cst_327 [1] : vector<8x8xf32> to vector<8xf32>
    %862 = vector.shape_cast %861 : vector<8xf32> to vector<8x1xf32>
    %863 = vector.broadcast %862 : vector<8x1xf32> to vector<8x8xf32>
    %864 = arith.subf %860, %863 : vector<8x8xf32>
    %865 = math.exp %864 : vector<8x8xf32>
    %cst_328 = arith.constant dense<0.000000e+00> : vector<8xf32>
    %866 = vector.multi_reduction <add>, %865, %cst_328 [1] : vector<8x8xf32> to vector<8xf32>
    %867 = vector.shape_cast %866 : vector<8xf32> to vector<8x1xf32>
    %868 = tpu.reciprocal %867 {approx = true} : vector<8x1xf32> -> vector<8x1xf32>
    %869 = vector.broadcast %868 : vector<8x1xf32> to vector<8x8xf32>
    %870 = arith.mulf %865, %869 : vector<8x8xf32>
    %871 = arith.truncf %870 : vector<8x8xf32> to vector<8x8xbf16>
    %cst_329 = arith.constant dense<0.000000e+00> : vector<8x32xf32>
    %872 = tpu.matmul %871, %857, %cst_329 {dimension_numbers = #tpu.dot_dimension_numbers<[1], [0], [0], [1], [0, 0, 1, 1], [], []>} : vector<8x8xbf16>, vector<8x32xbf16>, vector<8x32xf32> -> vector<8x32xf32>
    %873 = vector.extract_strided_slice %821 {offsets = [0, 64], sizes = [8, 32], strides = [1, 1]} : vector<8x128xf32> to vector<8x32xf32>
    %874 = arith.truncf %873 : vector<8x32xf32> to vector<8x32xbf16>
    %875 = vector.extract_strided_slice %829 {offsets = [0, 64], sizes = [8, 32], strides = [1, 1]} : vector<8x128xf32> to vector<8x32xf32>
    %876 = arith.truncf %875 : vector<8x32xf32> to vector<8x32xbf16>
    %877 = vector.extract_strided_slice %830 {offsets = [0, 64], sizes = [8, 32], strides = [1, 1]} : vector<8x128xf32> to vector<8x32xf32>
    %878 = arith.truncf %877 : vector<8x32xf32> to vector<8x32xbf16>
    %cst_330 = arith.constant dense<0.000000e+00> : vector<8x8xf32>
    %879 = tpu.matmul %874, %876, %cst_330 {dimension_numbers = #tpu.dot_dimension_numbers<[1], [1], [0], [0], [0, 0, 1, 0], [], []>} : vector<8x32xbf16>, vector<8x32xbf16>, vector<8x8xf32> -> vector<8x8xf32>
    %880 = vector.broadcast %1 : vector<1x8xf32> to vector<8x8xf32>
    %881 = arith.addf %879, %880 : vector<8x8xf32>
    %cst_331 = arith.constant dense<0xFF800000> : vector<8xf32>
    %882 = vector.multi_reduction <maximumf>, %881, %cst_331 [1] : vector<8x8xf32> to vector<8xf32>
    %883 = vector.shape_cast %882 : vector<8xf32> to vector<8x1xf32>
    %884 = vector.broadcast %883 : vector<8x1xf32> to vector<8x8xf32>
    %885 = arith.subf %881, %884 : vector<8x8xf32>
    %886 = math.exp %885 : vector<8x8xf32>
    %cst_332 = arith.constant dense<0.000000e+00> : vector<8xf32>
    %887 = vector.multi_reduction <add>, %886, %cst_332 [1] : vector<8x8xf32> to vector<8xf32>
    %888 = vector.shape_cast %887 : vector<8xf32> to vector<8x1xf32>
    %889 = tpu.reciprocal %888 {approx = true} : vector<8x1xf32> -> vector<8x1xf32>
    %890 = vector.broadcast %889 : vector<8x1xf32> to vector<8x8xf32>
    %891 = arith.mulf %886, %890 : vector<8x8xf32>
    %892 = arith.truncf %891 : vector<8x8xf32> to vector<8x8xbf16>
    %cst_333 = arith.constant dense<0.000000e+00> : vector<8x32xf32>
    %893 = tpu.matmul %892, %878, %cst_333 {dimension_numbers = #tpu.dot_dimension_numbers<[1], [0], [0], [1], [0, 0, 1, 1], [], []>} : vector<8x8xbf16>, vector<8x32xbf16>, vector<8x32xf32> -> vector<8x32xf32>
    %894 = vector.extract_strided_slice %821 {offsets = [0, 96], sizes = [8, 32], strides = [1, 1]} : vector<8x128xf32> to vector<8x32xf32>
    %895 = arith.truncf %894 : vector<8x32xf32> to vector<8x32xbf16>
    %896 = vector.extract_strided_slice %829 {offsets = [0, 96], sizes = [8, 32], strides = [1, 1]} : vector<8x128xf32> to vector<8x32xf32>
    %897 = arith.truncf %896 : vector<8x32xf32> to vector<8x32xbf16>
    %898 = vector.extract_strided_slice %830 {offsets = [0, 96], sizes = [8, 32], strides = [1, 1]} : vector<8x128xf32> to vector<8x32xf32>
    %899 = arith.truncf %898 : vector<8x32xf32> to vector<8x32xbf16>
    %cst_334 = arith.constant dense<0.000000e+00> : vector<8x8xf32>
    %900 = tpu.matmul %895, %897, %cst_334 {dimension_numbers = #tpu.dot_dimension_numbers<[1], [1], [0], [0], [0, 0, 1, 0], [], []>} : vector<8x32xbf16>, vector<8x32xbf16>, vector<8x8xf32> -> vector<8x8xf32>
    %901 = vector.broadcast %1 : vector<1x8xf32> to vector<8x8xf32>
    %902 = arith.addf %900, %901 : vector<8x8xf32>
    %cst_335 = arith.constant dense<0xFF800000> : vector<8xf32>
    %903 = vector.multi_reduction <maximumf>, %902, %cst_335 [1] : vector<8x8xf32> to vector<8xf32>
    %904 = vector.shape_cast %903 : vector<8xf32> to vector<8x1xf32>
    %905 = vector.broadcast %904 : vector<8x1xf32> to vector<8x8xf32>
    %906 = arith.subf %902, %905 : vector<8x8xf32>
    %907 = math.exp %906 : vector<8x8xf32>
    %cst_336 = arith.constant dense<0.000000e+00> : vector<8xf32>
    %908 = vector.multi_reduction <add>, %907, %cst_336 [1] : vector<8x8xf32> to vector<8xf32>
    %909 = vector.shape_cast %908 : vector<8xf32> to vector<8x1xf32>
    %910 = tpu.reciprocal %909 {approx = true} : vector<8x1xf32> -> vector<8x1xf32>
    %911 = vector.broadcast %910 : vector<8x1xf32> to vector<8x8xf32>
    %912 = arith.mulf %907, %911 : vector<8x8xf32>
    %913 = arith.truncf %912 : vector<8x8xf32> to vector<8x8xbf16>
    %cst_337 = arith.constant dense<0.000000e+00> : vector<8x32xf32>
    %914 = tpu.matmul %913, %899, %cst_337 {dimension_numbers = #tpu.dot_dimension_numbers<[1], [0], [0], [1], [0, 0, 1, 1], [], []>} : vector<8x8xbf16>, vector<8x32xbf16>, vector<8x32xf32> -> vector<8x32xf32>
    %915 = tpu.concatenate %851, %872, %893, %914 in 1 : vector<8x32xf32>, vector<8x32xf32>, vector<8x32xf32>, vector<8x32xf32> -> vector<8x128xf32>
    %916 = arith.truncf %915 : vector<8x128xf32> to vector<8x128xbf16>
    %c1_338 = arith.constant 1 : index
    %c0_339 = arith.constant 0 : index
    %c0_340 = arith.constant 0 : index
    %917 = vector.load %arg28[%c1_338, %c0_339, %c0_340] : memref<2x128x128xbf16, #tpu.memory_space<vmem>>, vector<1x128x128xbf16>
    %918 = vector.shape_cast %917 : vector<1x128x128xbf16> to vector<128x128xbf16>
    %cst_341 = arith.constant dense<0.000000e+00> : vector<8x128xf32>
    %919 = tpu.matmul %916, %918, %cst_341 {dimension_numbers = #tpu.dot_dimension_numbers<[1], [0], [0], [1], [0, 0, 1, 1], [], []>} : vector<8x128xbf16>, vector<128x128xbf16>, vector<8x128xf32> -> vector<8x128xf32>
    %c1_342 = arith.constant 1 : index
    %c0_343 = arith.constant 0 : index
    %c0_344 = arith.constant 0 : index
    %920 = vector.load %arg29[%c1_342, %c0_343, %c0_344] : memref<2x1x128xf32, #tpu.memory_space<vmem>>, vector<1x1x128xf32>
    %921 = vector.shape_cast %920 : vector<1x1x128xf32> to vector<1x128xf32>
    %922 = vector.broadcast %921 : vector<1x128xf32> to vector<8x128xf32>
    %923 = arith.addf %919, %922 : vector<8x128xf32>
    %c1_345 = arith.constant 1 : index
    %c0_346 = arith.constant 0 : index
    %c0_347 = arith.constant 0 : index
    %924 = vector.load %arg36[%c1_345, %c0_346, %c0_347] : memref<2x1x128xf32, #tpu.memory_space<vmem>>, vector<1x1x128xf32>
    %925 = vector.shape_cast %924 : vector<1x1x128xf32> to vector<1x128xf32>
    %c1_348 = arith.constant 1 : index
    %c0_349 = arith.constant 0 : index
    %c0_350 = arith.constant 0 : index
    %926 = vector.load %arg37[%c1_348, %c0_349, %c0_350] : memref<2x1x128xf32, #tpu.memory_space<vmem>>, vector<1x1x128xf32>
    %927 = vector.shape_cast %926 : vector<1x1x128xf32> to vector<1x128xf32>
    %928 = arith.addf %923, %813 : vector<8x128xf32>
    %cst_351 = arith.constant dense<0.000000e+00> : vector<8xf32>
    %929 = vector.multi_reduction <add>, %928, %cst_351 [1] : vector<8x128xf32> to vector<8xf32>
    %930 = vector.shape_cast %929 : vector<8xf32> to vector<8x1xf32>
    %cst_352 = arith.constant 1.280000e+02 : f32
    %931 = vector.broadcast %cst_352 : f32 to vector<8x1xf32>
    %932 = arith.divf %930, %931 : vector<8x1xf32>
    %933 = vector.broadcast %932 : vector<8x1xf32> to vector<8x128xf32>
    %934 = arith.subf %928, %933 : vector<8x128xf32>
    %935 = arith.mulf %934, %934 : vector<8x128xf32>
    %cst_353 = arith.constant dense<0.000000e+00> : vector<8xf32>
    %936 = vector.multi_reduction <add>, %935, %cst_353 [1] : vector<8x128xf32> to vector<8xf32>
    %937 = vector.shape_cast %936 : vector<8xf32> to vector<8x1xf32>
    %cst_354 = arith.constant 1.280000e+02 : f32
    %938 = vector.broadcast %cst_354 : f32 to vector<8x1xf32>
    %939 = arith.divf %937, %938 : vector<8x1xf32>
    %940 = vector.broadcast %932 : vector<8x1xf32> to vector<8x128xf32>
    %941 = arith.subf %928, %940 : vector<8x128xf32>
    %cst_355 = arith.constant 9.99999974E-6 : f32
    %942 = vector.broadcast %cst_355 : f32 to vector<8x1xf32>
    %943 = arith.addf %939, %942 : vector<8x1xf32>
    %944 = math.rsqrt %943 : vector<8x1xf32>
    %945 = vector.broadcast %944 : vector<8x1xf32> to vector<8x128xf32>
    %946 = arith.mulf %941, %945 : vector<8x128xf32>
    %947 = vector.broadcast %925 : vector<1x128xf32> to vector<8x128xf32>
    %948 = arith.mulf %946, %947 : vector<8x128xf32>
    %949 = vector.broadcast %927 : vector<1x128xf32> to vector<8x128xf32>
    %950 = arith.addf %948, %949 : vector<8x128xf32>
    %c1_356 = arith.constant 1 : index
    %c0_357 = arith.constant 0 : index
    %c0_358 = arith.constant 0 : index
    %951 = vector.load %arg30[%c1_356, %c0_357, %c0_358] : memref<2x128x128xbf16, #tpu.memory_space<vmem>>, vector<1x128x128xbf16>
    %952 = vector.shape_cast %951 : vector<1x128x128xbf16> to vector<128x128xbf16>
    %c1_359 = arith.constant 1 : index
    %c0_360 = arith.constant 0 : index
    %c0_361 = arith.constant 0 : index
    %953 = vector.load %arg31[%c1_359, %c0_360, %c0_361] : memref<2x1x128xf32, #tpu.memory_space<vmem>>, vector<1x1x128xf32>
    %954 = vector.shape_cast %953 : vector<1x1x128xf32> to vector<1x128xf32>
    %c1_362 = arith.constant 1 : index
    %c0_363 = arith.constant 0 : index
    %c0_364 = arith.constant 0 : index
    %955 = vector.load %arg32[%c1_362, %c0_363, %c0_364] : memref<2x128x128xbf16, #tpu.memory_space<vmem>>, vector<1x128x128xbf16>
    %956 = vector.shape_cast %955 : vector<1x128x128xbf16> to vector<128x128xbf16>
    %c1_365 = arith.constant 1 : index
    %c0_366 = arith.constant 0 : index
    %c0_367 = arith.constant 0 : index
    %957 = vector.load %arg33[%c1_365, %c0_366, %c0_367] : memref<2x1x128xf32, #tpu.memory_space<vmem>>, vector<1x1x128xf32>
    %958 = vector.shape_cast %957 : vector<1x1x128xf32> to vector<1x128xf32>
    %959 = arith.truncf %950 : vector<8x128xf32> to vector<8x128xbf16>
    %cst_368 = arith.constant dense<0.000000e+00> : vector<8x128xf32>
    %960 = tpu.matmul %959, %952, %cst_368 {dimension_numbers = #tpu.dot_dimension_numbers<[1], [0], [0], [1], [0, 0, 1, 1], [], []>} : vector<8x128xbf16>, vector<128x128xbf16>, vector<8x128xf32> -> vector<8x128xf32>
    %961 = vector.broadcast %954 : vector<1x128xf32> to vector<8x128xf32>
    %962 = arith.addf %960, %961 : vector<8x128xf32>
    %cst_369 = arith.constant 0.000000e+00 : f32
    %963 = vector.broadcast %cst_369 : f32 to vector<8x128xf32>
    %964 = arith.maximumf %962, %963 : vector<8x128xf32>
    %965 = arith.truncf %964 : vector<8x128xf32> to vector<8x128xbf16>
    %cst_370 = arith.constant dense<0.000000e+00> : vector<8x128xf32>
    %966 = tpu.matmul %965, %956, %cst_370 {dimension_numbers = #tpu.dot_dimension_numbers<[1], [0], [0], [1], [0, 0, 1, 1], [], []>} : vector<8x128xbf16>, vector<128x128xbf16>, vector<8x128xf32> -> vector<8x128xf32>
    %967 = vector.broadcast %958 : vector<1x128xf32> to vector<8x128xf32>
    %968 = arith.addf %966, %967 : vector<8x128xf32>
    %c1_371 = arith.constant 1 : index
    %c0_372 = arith.constant 0 : index
    %c0_373 = arith.constant 0 : index
    %969 = vector.load %arg38[%c1_371, %c0_372, %c0_373] : memref<2x1x128xf32, #tpu.memory_space<vmem>>, vector<1x1x128xf32>
    %970 = vector.shape_cast %969 : vector<1x1x128xf32> to vector<1x128xf32>
    %c1_374 = arith.constant 1 : index
    %c0_375 = arith.constant 0 : index
    %c0_376 = arith.constant 0 : index
    %971 = vector.load %arg39[%c1_374, %c0_375, %c0_376] : memref<2x1x128xf32, #tpu.memory_space<vmem>>, vector<1x1x128xf32>
    %972 = vector.shape_cast %971 : vector<1x1x128xf32> to vector<1x128xf32>
    %973 = arith.addf %968, %950 : vector<8x128xf32>
    %cst_377 = arith.constant dense<0.000000e+00> : vector<8xf32>
    %974 = vector.multi_reduction <add>, %973, %cst_377 [1] : vector<8x128xf32> to vector<8xf32>
    %975 = vector.shape_cast %974 : vector<8xf32> to vector<8x1xf32>
    %cst_378 = arith.constant 1.280000e+02 : f32
    %976 = vector.broadcast %cst_378 : f32 to vector<8x1xf32>
    %977 = arith.divf %975, %976 : vector<8x1xf32>
    %978 = vector.broadcast %977 : vector<8x1xf32> to vector<8x128xf32>
    %979 = arith.subf %973, %978 : vector<8x128xf32>
    %980 = arith.mulf %979, %979 : vector<8x128xf32>
    %cst_379 = arith.constant dense<0.000000e+00> : vector<8xf32>
    %981 = vector.multi_reduction <add>, %980, %cst_379 [1] : vector<8x128xf32> to vector<8xf32>
    %982 = vector.shape_cast %981 : vector<8xf32> to vector<8x1xf32>
    %cst_380 = arith.constant 1.280000e+02 : f32
    %983 = vector.broadcast %cst_380 : f32 to vector<8x1xf32>
    %984 = arith.divf %982, %983 : vector<8x1xf32>
    %985 = vector.broadcast %977 : vector<8x1xf32> to vector<8x128xf32>
    %986 = arith.subf %973, %985 : vector<8x128xf32>
    %cst_381 = arith.constant 9.99999974E-6 : f32
    %987 = vector.broadcast %cst_381 : f32 to vector<8x1xf32>
    %988 = arith.addf %984, %987 : vector<8x1xf32>
    %989 = math.rsqrt %988 : vector<8x1xf32>
    %990 = vector.broadcast %989 : vector<8x1xf32> to vector<8x128xf32>
    %991 = arith.mulf %986, %990 : vector<8x128xf32>
    %992 = vector.broadcast %970 : vector<1x128xf32> to vector<8x128xf32>
    %993 = arith.mulf %991, %992 : vector<8x128xf32>
    %994 = vector.broadcast %972 : vector<1x128xf32> to vector<8x128xf32>
    %995 = arith.addf %993, %994 : vector<8x128xf32>
    %c0_382 = arith.constant 0 : index
    %c0_383 = arith.constant 0 : index
    %c0_384 = arith.constant 0 : index
    %996 = vector.load %arg40[%c0_382, %c0_383, %c0_384] : memref<1x8x128xf32, #tpu.memory_space<vmem>>, vector<1x8x128xf32>
    %997 = vector.shape_cast %996 : vector<1x8x128xf32> to vector<8x128xf32>
    %998 = vector.shape_cast %995 : vector<8x128xf32> to vector<1x8x128xf32>
    tpu.vector_store %arg40[%c0_382, %c0_383, %c0_384], %998 {strides = array<i32>} : memref<1x8x128xf32, #tpu.memory_space<vmem>>, vector<1x8x128xf32>,
    return
  }
  func.func @transform_0(%arg0: i32) -> (i32, i32, i32) {
    %c0_i32 = arith.constant 0 : i32
    %c0_i32_0 = arith.constant 0 : i32
    %c0_i32_1 = arith.constant 0 : i32
    return %arg0, %c0_i32, %c0_i32_0 : i32, i32, i32
  }
  func.func @transform_1(%arg0: i32) -> (i32, i32, i32) {
    %c0_i32 = arith.constant 0 : i32
    %c0_i32_0 = arith.constant 0 : i32
    %c0_i32_1 = arith.constant 0 : i32
    return %arg0, %c0_i32, %c0_i32_0 : i32, i32, i32
  }
  func.func @transform_2(%arg0: i32) -> (i32, i32, i32) {
    %c0_i32 = arith.constant 0 : i32
    %c0_i32_0 = arith.constant 0 : i32
    %c0_i32_1 = arith.constant 0 : i32
    return %arg0, %c0_i32, %c0_i32_0 : i32, i32, i32
  }
  func.func @transform_3(%arg0: i32) -> (i32, i32, i32) {
    %c0_i32 = arith.constant 0 : i32
    %c0_i32_0 = arith.constant 0 : i32
    %c0_i32_1 = arith.constant 0 : i32
    return %arg0, %c0_i32, %c0_i32_0 : i32, i32, i32
  }
  func.func @transform_4(%arg0: i32) -> (i32, i32, i32) {
    %c0_i32 = arith.constant 0 : i32
    %c0_i32_0 = arith.constant 0 : i32
    %c0_i32_1 = arith.constant 0 : i32
    return %arg0, %c0_i32, %c0_i32_0 : i32, i32, i32
  }
  func.func @transform_5(%arg0: i32) -> (i32, i32) {
    %c0_i32 = arith.constant 0 : i32
    %c0_i32_0 = arith.constant 0 : i32
    %c0_i32_1 = arith.constant 0 : i32
    return %c0_i32, %c0_i32_0 : i32, i32
  }
  func.func @transform_6(%arg0: i32) -> (i32, i32) {
    %c0_i32 = arith.constant 0 : i32
    %c0_i32_0 = arith.constant 0 : i32
    %c0_i32_1 = arith.constant 0 : i32
    return %c0_i32, %c0_i32_0 : i32, i32
  }
  func.func @transform_7(%arg0: i32) -> (i32, i32, i32) {
    %c0_i32 = arith.constant 0 : i32
    %c0_i32_0 = arith.constant 0 : i32
    %c0_i32_1 = arith.constant 0 : i32
    %c0_i32_2 = arith.constant 0 : i32
    return %c0_i32, %c0_i32_0, %c0_i32_1 : i32, i32, i32
  }
  func.func @transform_8(%arg0: i32) -> (i32, i32, i32) {
    %c0_i32 = arith.constant 0 : i32
    %c0_i32_0 = arith.constant 0 : i32
    %c0_i32_1 = arith.constant 0 : i32
    %c0_i32_2 = arith.constant 0 : i32
    return %c0_i32, %c0_i32_0, %c0_i32_1 : i32, i32, i32
  }
  func.func @transform_9(%arg0: i32) -> (i32, i32, i32) {
    %c0_i32 = arith.constant 0 : i32
    %c0_i32_0 = arith.constant 0 : i32
    %c0_i32_1 = arith.constant 0 : i32
    %c0_i32_2 = arith.constant 0 : i32
    return %c0_i32, %c0_i32_0, %c0_i32_1 : i32, i32, i32
  }
  func.func @transform_10(%arg0: i32) -> (i32, i32, i32) {
    %c0_i32 = arith.constant 0 : i32
    %c0_i32_0 = arith.constant 0 : i32
    %c0_i32_1 = arith.constant 0 : i32
    %c0_i32_2 = arith.constant 0 : i32
    return %c0_i32, %c0_i32_0, %c0_i32_1 : i32, i32, i32
  }
  func.func @transform_11(%arg0: i32) -> (i32, i32, i32) {
    %c0_i32 = arith.constant 0 : i32
    %c0_i32_0 = arith.constant 0 : i32
    %c0_i32_1 = arith.constant 0 : i32
    %c0_i32_2 = arith.constant 0 : i32
    return %c0_i32, %c0_i32_0, %c0_i32_1 : i32, i32, i32
  }
  func.func @transform_12(%arg0: i32) -> (i32, i32, i32) {
    %c0_i32 = arith.constant 0 : i32
    %c0_i32_0 = arith.constant 0 : i32
    %c0_i32_1 = arith.constant 0 : i32
    %c0_i32_2 = arith.constant 0 : i32
    return %c0_i32, %c0_i32_0, %c0_i32_1 : i32, i32, i32
  }
  func.func @transform_13(%arg0: i32) -> (i32, i32, i32) {
    %c0_i32 = arith.constant 0 : i32
    %c0_i32_0 = arith.constant 0 : i32
    %c0_i32_1 = arith.constant 0 : i32
    %c0_i32_2 = arith.constant 0 : i32
    return %c0_i32, %c0_i32_0, %c0_i32_1 : i32, i32, i32
  }
  func.func @transform_14(%arg0: i32) -> (i32, i32, i32) {
    %c0_i32 = arith.constant 0 : i32
    %c0_i32_0 = arith.constant 0 : i32
    %c0_i32_1 = arith.constant 0 : i32
    %c0_i32_2 = arith.constant 0 : i32
    return %c0_i32, %c0_i32_0, %c0_i32_1 : i32, i32, i32
  }
  func.func @transform_15(%arg0: i32) -> (i32, i32, i32) {
    %c0_i32 = arith.constant 0 : i32
    %c0_i32_0 = arith.constant 0 : i32
    %c0_i32_1 = arith.constant 0 : i32
    %c0_i32_2 = arith.constant 0 : i32
    return %c0_i32, %c0_i32_0, %c0_i32_1 : i32, i32, i32
  }
  func.func @transform_16(%arg0: i32) -> (i32, i32, i32) {
    %c0_i32 = arith.constant 0 : i32
    %c0_i32_0 = arith.constant 0 : i32
    %c0_i32_1 = arith.constant 0 : i32
    %c0_i32_2 = arith.constant 0 : i32
    return %c0_i32, %c0_i32_0, %c0_i32_1 : i32, i32, i32
  }
  func.func @transform_17(%arg0: i32) -> (i32, i32, i32) {
    %c0_i32 = arith.constant 0 : i32
    %c0_i32_0 = arith.constant 0 : i32
    %c0_i32_1 = arith.constant 0 : i32
    %c0_i32_2 = arith.constant 0 : i32
    return %c0_i32, %c0_i32_0, %c0_i32_1 : i32, i32, i32
  }
  func.func @transform_18(%arg0: i32) -> (i32, i32, i32) {
    %c0_i32 = arith.constant 0 : i32
    %c0_i32_0 = arith.constant 0 : i32
    %c0_i32_1 = arith.constant 0 : i32
    %c0_i32_2 = arith.constant 0 : i32
    return %c0_i32, %c0_i32_0, %c0_i32_1 : i32, i32, i32
  }
  func.func @transform_19(%arg0: i32) -> (i32, i32, i32) {
    %c0_i32 = arith.constant 0 : i32
    %c0_i32_0 = arith.constant 0 : i32
    %c0_i32_1 = arith.constant 0 : i32
    %c0_i32_2 = arith.constant 0 : i32
    return %c0_i32, %c0_i32_0, %c0_i32_1 : i32, i32, i32
  }
  func.func @transform_20(%arg0: i32) -> (i32, i32, i32) {
    %c0_i32 = arith.constant 0 : i32
    %c0_i32_0 = arith.constant 0 : i32
    %c0_i32_1 = arith.constant 0 : i32
    %c0_i32_2 = arith.constant 0 : i32
    return %c0_i32, %c0_i32_0, %c0_i32_1 : i32, i32, i32
  }
  func.func @transform_21(%arg0: i32) -> (i32, i32, i32) {
    %c0_i32 = arith.constant 0 : i32
    %c0_i32_0 = arith.constant 0 : i32
    %c0_i32_1 = arith.constant 0 : i32
    %c0_i32_2 = arith.constant 0 : i32
    return %c0_i32, %c0_i32_0, %c0_i32_1 : i32, i32, i32
  }
  func.func @transform_22(%arg0: i32) -> (i32, i32, i32) {
    %c0_i32 = arith.constant 0 : i32
    %c0_i32_0 = arith.constant 0 : i32
    %c0_i32_1 = arith.constant 0 : i32
    %c0_i32_2 = arith.constant 0 : i32
    return %c0_i32, %c0_i32_0, %c0_i32_1 : i32, i32, i32
  }
  func.func @transform_23(%arg0: i32) -> (i32, i32, i32) {
    %c0_i32 = arith.constant 0 : i32
    %c0_i32_0 = arith.constant 0 : i32
    %c0_i32_1 = arith.constant 0 : i32
    %c0_i32_2 = arith.constant 0 : i32
    return %c0_i32, %c0_i32_0, %c0_i32_1 : i32, i32, i32
  }
  func.func @transform_24(%arg0: i32) -> (i32, i32, i32) {
    %c0_i32 = arith.constant 0 : i32
    %c0_i32_0 = arith.constant 0 : i32
    %c0_i32_1 = arith.constant 0 : i32
    %c0_i32_2 = arith.constant 0 : i32
    return %c0_i32, %c0_i32_0, %c0_i32_1 : i32, i32, i32
  }
  func.func @transform_25(%arg0: i32) -> (i32, i32, i32) {
    %c0_i32 = arith.constant 0 : i32
    %c0_i32_0 = arith.constant 0 : i32
    %c0_i32_1 = arith.constant 0 : i32
    %c0_i32_2 = arith.constant 0 : i32
    return %c0_i32, %c0_i32_0, %c0_i32_1 : i32, i32, i32
  }
  func.func @transform_26(%arg0: i32) -> (i32, i32, i32) {
    %c0_i32 = arith.constant 0 : i32
    %c0_i32_0 = arith.constant 0 : i32
    %c0_i32_1 = arith.constant 0 : i32
    %c0_i32_2 = arith.constant 0 : i32
    return %c0_i32, %c0_i32_0, %c0_i32_1 : i32, i32, i32
  }
  func.func @transform_27(%arg0: i32) -> (i32, i32, i32) {
    %c0_i32 = arith.constant 0 : i32
    %c0_i32_0 = arith.constant 0 : i32
    %c0_i32_1 = arith.constant 0 : i32
    %c0_i32_2 = arith.constant 0 : i32
    return %c0_i32, %c0_i32_0, %c0_i32_1 : i32, i32, i32
  }
  func.func @transform_28(%arg0: i32) -> (i32, i32, i32) {
    %c0_i32 = arith.constant 0 : i32
    %c0_i32_0 = arith.constant 0 : i32
    %c0_i32_1 = arith.constant 0 : i32
    %c0_i32_2 = arith.constant 0 : i32
    return %c0_i32, %c0_i32_0, %c0_i32_1 : i32, i32, i32
  }
  func.func @transform_29(%arg0: i32) -> (i32, i32, i32) {
    %c0_i32 = arith.constant 0 : i32
    %c0_i32_0 = arith.constant 0 : i32
    %c0_i32_1 = arith.constant 0 : i32
    %c0_i32_2 = arith.constant 0 : i32
    return %c0_i32, %c0_i32_0, %c0_i32_1 : i32, i32, i32
  }
  func.func @transform_30(%arg0: i32) -> (i32, i32, i32) {
    %c0_i32 = arith.constant 0 : i32
    %c0_i32_0 = arith.constant 0 : i32
    %c0_i32_1 = arith.constant 0 : i32
    %c0_i32_2 = arith.constant 0 : i32
    return %c0_i32, %c0_i32_0, %c0_i32_1 : i32, i32, i32
  }
  func.func @transform_31(%arg0: i32) -> (i32, i32, i32) {
    %c0_i32 = arith.constant 0 : i32
    %c0_i32_0 = arith.constant 0 : i32
    %c0_i32_1 = arith.constant 0 : i32
    %c0_i32_2 = arith.constant 0 : i32
    return %c0_i32, %c0_i32_0, %c0_i32_1 : i32, i32, i32
  }
  func.func @transform_32(%arg0: i32) -> (i32, i32, i32) {
    %c0_i32 = arith.constant 0 : i32
    %c0_i32_0 = arith.constant 0 : i32
    %c0_i32_1 = arith.constant 0 : i32
    %c0_i32_2 = arith.constant 0 : i32
    return %c0_i32, %c0_i32_0, %c0_i32_1 : i32, i32, i32
  }
  func.func @transform_33(%arg0: i32) -> (i32, i32, i32) {
    %c0_i32 = arith.constant 0 : i32
    %c0_i32_0 = arith.constant 0 : i32
    %c0_i32_1 = arith.constant 0 : i32
    %c0_i32_2 = arith.constant 0 : i32
    return %c0_i32, %c0_i32_0, %c0_i32_1 : i32, i32, i32
  }
  func.func @transform_34(%arg0: i32) -> (i32, i32, i32) {
    %c0_i32 = arith.constant 0 : i32
    %c0_i32_0 = arith.constant 0 : i32
    %c0_i32_1 = arith.constant 0 : i32
    %c0_i32_2 = arith.constant 0 : i32
    return %c0_i32, %c0_i32_0, %c0_i32_1 : i32, i32, i32
  }
  func.func @transform_35(%arg0: i32) -> (i32, i32, i32) {
    %c0_i32 = arith.constant 0 : i32
    %c0_i32_0 = arith.constant 0 : i32
    %c0_i32_1 = arith.constant 0 : i32
    %c0_i32_2 = arith.constant 0 : i32
    return %c0_i32, %c0_i32_0, %c0_i32_1 : i32, i32, i32
  }
  func.func @transform_36(%arg0: i32) -> (i32, i32, i32) {
    %c0_i32 = arith.constant 0 : i32
    %c0_i32_0 = arith.constant 0 : i32
    %c0_i32_1 = arith.constant 0 : i32
    %c0_i32_2 = arith.constant 0 : i32
    return %c0_i32, %c0_i32_0, %c0_i32_1 : i32, i32, i32
  }
  func.func @transform_37(%arg0: i32) -> (i32, i32, i32) {
    %c0_i32 = arith.constant 0 : i32
    %c0_i32_0 = arith.constant 0 : i32
    %c0_i32_1 = arith.constant 0 : i32
    %c0_i32_2 = arith.constant 0 : i32
    return %c0_i32, %c0_i32_0, %c0_i32_1 : i32, i32, i32
  }
  func.func @transform_38(%arg0: i32) -> (i32, i32, i32) {
    %c0_i32 = arith.constant 0 : i32
    %c0_i32_0 = arith.constant 0 : i32
    %c0_i32_1 = arith.constant 0 : i32
    %c0_i32_2 = arith.constant 0 : i32
    return %c0_i32, %c0_i32_0, %c0_i32_1 : i32, i32, i32
  }
  func.func @transform_39(%arg0: i32) -> (i32, i32, i32) {
    %c0_i32 = arith.constant 0 : i32
    %c0_i32_0 = arith.constant 0 : i32
    %c0_i32_1 = arith.constant 0 : i32
    return %arg0, %c0_i32, %c0_i32_0 : i32, i32, i32
  }
}

</mosaic_0001>

<llo_original>
// kernel: transformer_global_graph.1
$region0: #{transformer_global_graph.1}
  #allocation0 [shape = 'u32[]', space=smem, size = 0x4, offset = 0x4, fixed_abs, tag = 'smem constant byte address 0x4 - core index']
  #allocation1 [shape = 'u32[144,128]{1,0:T(1,128)}', space=vmem, size = 0x12000, scoped, tag = 'internal scratch']
  %s0 = inlined_call_operand.smem [shape: u32[40], index: -1, kind: input, shape index: {}]
  %s1 = sld [smem:[%s0]]
  %s2 = scalar_lea.smem %s0, 1
  %s3 = sld [smem:[%s2]]
  %s4 = scalar_lea.smem %s0, 2
  %s5 = sld [smem:[%s4]]
  %s6 = scalar_lea.smem %s0, 3
  %s7 = sld [smem:[%s6]]
  %s8 = scalar_lea.smem %s0, 4
  %s9 = sld [smem:[%s8]]
  %s10 = scalar_lea.smem %s0, 5
  %s11 = sld [smem:[%s10]]
  %s12 = scalar_lea.smem %s0, 6
  %s13 = sld [smem:[%s12]]
  %s14 = scalar_lea.smem %s0, 7
  %s15 = sld [smem:[%s14]]
  %s16 = scalar_lea.smem %s0, 8
  %s17 = sld [smem:[%s16]]
  %s18 = scalar_lea.smem %s0, 9
  %s19 = sld [smem:[%s18]]
  %s20 = scalar_lea.smem %s0, 10
  %s21 = sld [smem:[%s20]]
  %s22 = scalar_lea.smem %s0, 11
  %s23 = sld [smem:[%s22]]
  %s24 = scalar_lea.smem %s0, 12
  %s25 = sld [smem:[%s24]]
  %s26 = scalar_lea.smem %s0, 13
  %s27 = sld [smem:[%s26]]
  %s28 = scalar_lea.smem %s0, 14
  %s29 = sld [smem:[%s28]]
  %s30 = scalar_lea.smem %s0, 15
  %s31 = sld [smem:[%s30]]
  %s32 = scalar_lea.smem %s0, 16
  %s33 = sld [smem:[%s32]]
  %s34 = scalar_lea.smem %s0, 17
  %s35 = sld [smem:[%s34]]
  %s36 = scalar_lea.smem %s0, 18
  %s37 = sld [smem:[%s36]]
  %s38 = scalar_lea.smem %s0, 19
  %s39 = sld [smem:[%s38]]
  %s40 = scalar_lea.smem %s0, 20
  %s41 = sld [smem:[%s40]]
  %s42 = scalar_lea.smem %s0, 21
  %s43 = sld [smem:[%s42]]
  %s44 = scalar_lea.smem %s0, 22
  %s45 = sld [smem:[%s44]]
  %s46 = scalar_lea.smem %s0, 23
  %s47 = sld [smem:[%s46]]
  %s48 = scalar_lea.smem %s0, 24
  %s49 = sld [smem:[%s48]]
  %s50 = scalar_lea.smem %s0, 25
  %s51 = sld [smem:[%s50]]
  %s52 = scalar_lea.smem %s0, 26
  %s53 = sld [smem:[%s52]]
  %s54 = scalar_lea.smem %s0, 27
  %s55 = sld [smem:[%s54]]
  %s56 = scalar_lea.smem %s0, 28
  %s57 = sld [smem:[%s56]]
  %s58 = scalar_lea.smem %s0, 29
  %s59 = sld [smem:[%s58]]
  %s60 = scalar_lea.smem %s0, 30
  %s61 = sld [smem:[%s60]]
  %s62 = scalar_lea.smem %s0, 31
  %s63 = sld [smem:[%s62]]
  %s64 = scalar_lea.smem %s0, 32
  %s65 = sld [smem:[%s64]]
  %s66 = scalar_lea.smem %s0, 33
  %s67 = sld [smem:[%s66]]
  %s68 = scalar_lea.smem %s0, 34
  %s69 = sld [smem:[%s68]]
  %s70 = scalar_lea.smem %s0, 35
  %s71 = sld [smem:[%s70]]
  %s72 = scalar_lea.smem %s0, 36
  %s73 = sld [smem:[%s72]]
  %s74 = scalar_lea.smem %s0, 37
  %s75 = sld [smem:[%s74]]
  %s76 = scalar_lea.smem %s0, 38
  %s77 = sld [smem:[%s76]]
  %s78 = scalar_lea.smem %s0, 39
  %s79 = sld [smem:[%s78]]
  %s80 = sld [smem:[#allocation0]]
  $region345: #{transformer_global_graph.1} parent=0
    _
  %s82 = ssub.s32 1, %s80
  %s83 = scalar_select 0, %s82, %s80
  $region1: #{transformer_global_graph.1} parent=0
    #allocation2 [shape = 'u8[8192]{0}', space=vmem, size = 0x2000, scoped, tag = 'input window, operand 0']
    #allocation3 [shape = 's32[2]{0}', space=sflag, size = 0x8, scoped, tag = 'scoped memory for transformer_global_graph.1']
    #allocation4 [shape = 's32[2]{0}', space=sflag, size = 0x8, scoped, tag = 'scoped memory for transformer_global_graph.1']
    #allocation5 [shape = 'u8[8192]{0}', space=vmem, size = 0x2000, scoped, tag = 'input window, operand 1']
    #allocation6 [shape = 's32[2]{0}', space=sflag, size = 0x8, scoped, tag = 'scoped memory for transformer_global_graph.1']
    #allocation7 [shape = 'u8[8192]{0}', space=vmem, size = 0x2000, scoped, tag = 'input window, operand 2']
    #allocation8 [shape = 'u8[1024]{0}', space=vmem, size = 0x400, scoped, tag = 'input window, operand 3']
    #allocation9 [shape = 's32[2]{0}', space=sflag, size = 0x8, scoped, tag = 'scoped memory for transformer_global_graph.1']
    #allocation10 [shape = 'u8[1024]{0}', space=vmem, size = 0x400, scoped, tag = 'input window, operand 4']
    #allocation11 [shape = 'u8[8192]{0}', space=vmem, size = 0x2000, scoped, tag = 'input window, operand 5, single buffered']
    #allocation12 [shape = 's32[1]{0}', space=sflag, size = 0x4, scoped, tag = 'scoped memory for transformer_global_graph.1']
    #allocation13 [shape = 'u8[8192]{0}', space=vmem, size = 0x2000, scoped, tag = 'input window, operand 6, single buffered']
    #allocation14 [shape = 'u8[196608]{0}', space=vmem, size = 0x30000, scoped, tag = 'input window, operand 7, single buffered']
    #allocation15 [shape = 's32[1]{0}', space=sflag, size = 0x4, scoped, tag = 'scoped memory for transformer_global_graph.1']
    #allocation16 [shape = 'u8[3072]{0}', space=vmem, size = 0xc00, scoped, tag = 'input window, operand 8, single buffered']
    #allocation17 [shape = 'u8[65536]{0}', space=vmem, size = 0x10000, scoped, tag = 'input window, operand 9, single buffered']
    #allocation18 [shape = 's32[1]{0}', space=sflag, size = 0x4, scoped, tag = 'scoped memory for transformer_global_graph.1']
    #allocation19 [shape = 'u8[1024]{0}', space=vmem, size = 0x400, scoped, tag = 'input window, operand 10, single buffered']
    #allocation20 [shape = 'u8[65536]{0}', space=vmem, size = 0x10000, scoped, tag = 'input window, operand 11, single buffered']
    #allocation21 [shape = 's32[1]{0}', space=sflag, size = 0x4, scoped, tag = 'scoped memory for transformer_global_graph.1']
    #allocation22 [shape = 'u8[1024]{0}', space=vmem, size = 0x400, scoped, tag = 'input window, operand 12, single buffered']
    #allocation23 [shape = 'u8[65536]{0}', space=vmem, size = 0x10000, scoped, tag = 'input window, operand 13, single buffered']
    #allocation24 [shape = 's32[1]{0}', space=sflag, size = 0x4, scoped, tag = 'scoped memory for transformer_global_graph.1']
    #allocation25 [shape = 'u8[1024]{0}', space=vmem, size = 0x400, scoped, tag = 'input window, operand 14, single buffered']
    #allocation26 [shape = 'u8[1024]{0}', space=vmem, size = 0x400, scoped, tag = 'input window, operand 15, single buffered']
    #allocation27 [shape = 's32[1]{0}', space=sflag, size = 0x4, scoped, tag = 'scoped memory for transformer_global_graph.1']
    #allocation28 [shape = 'u8[1024]{0}', space=vmem, size = 0x400, scoped, tag = 'input window, operand 16, single buffered']
    #allocation29 [shape = 'u8[1024]{0}', space=vmem, size = 0x400, scoped, tag = 'input window, operand 17, single buffered']
    #allocation30 [shape = 's32[1]{0}', space=sflag, size = 0x4, scoped, tag = 'scoped memory for transformer_global_graph.1']
    #allocation31 [shape = 'u8[1024]{0}', space=vmem, size = 0x400, scoped, tag = 'input window, operand 18, single buffered']
    #allocation32 [shape = 'u8[196608]{0}', space=vmem, size = 0x30000, scoped, tag = 'input window, operand 19, single buffered']
    #allocation33 [shape = 's32[1]{0}', space=sflag, size = 0x4, scoped, tag = 'scoped memory for transformer_global_graph.1']
    #allocation34 [shape = 'u8[3072]{0}', space=vmem, size = 0xc00, scoped, tag = 'input window, operand 20, single buffered']
    #allocation35 [shape = 'u8[65536]{0}', space=vmem, size = 0x10000, scoped, tag = 'input window, operand 21, single buffered']
    #allocation36 [shape = 's32[1]{0}', space=sflag, size = 0x4, scoped, tag = 'scoped memory for transformer_global_graph.1']
    #allocation37 [shape = 'u8[1024]{0}', space=vmem, size = 0x400, scoped, tag = 'input window, operand 22, single buffered']
    #allocation38 [shape = 'u8[65536]{0}', space=vmem, size = 0x10000, scoped, tag = 'input window, operand 23, single buffered']
    #allocation39 [shape = 's32[1]{0}', space=sflag, size = 0x4, scoped, tag = 'scoped memory for transformer_global_graph.1']
    #allocation40 [shape = 'u8[1024]{0}', space=vmem, size = 0x400, scoped, tag = 'input window, operand 24, single buffered']
    #allocation41 [shape = 'u8[131072]{0}', space=vmem, size = 0x20000, scoped, tag = 'input window, operand 25, single buffered']
    #allocation42 [shape = 's32[1]{0}', space=sflag, size = 0x4, scoped, tag = 'scoped memory for transformer_global_graph.1']
    #allocation43 [shape = 'u8[2048]{0}', space=vmem, size = 0x800, scoped, tag = 'input window, operand 26, single buffered']
    #allocation44 [shape = 'u8[65536]{0}', space=vmem, size = 0x10000, scoped, tag = 'input window, operand 27, single buffered']
    #allocation45 [shape = 's32[1]{0}', space=sflag, size = 0x4, scoped, tag = 'scoped memory for transformer_global_graph.1']
    #allocation46 [shape = 'u8[1024]{0}', space=vmem, size = 0x400, scoped, tag = 'input window, operand 28, single buffered']
    #allocation47 [shape = 'u8[65536]{0}', space=vmem, size = 0x10000, scoped, tag = 'input window, operand 29, single buffered']
    #allocation48 [shape = 's32[1]{0}', space=sflag, size = 0x4, scoped, tag = 'scoped memory for transformer_global_graph.1']
    #allocation49 [shape = 'u8[1024]{0}', space=vmem, size = 0x400, scoped, tag = 'input window, operand 30, single buffered']
    #allocation50 [shape = 'u8[65536]{0}', space=vmem, size = 0x10000, scoped, tag = 'input window, operand 31, single buffered']
    #allocation51 [shape = 's32[1]{0}', space=sflag, size = 0x4, scoped, tag = 'scoped memory for transformer_global_graph.1']
    #allocation52 [shape = 'u8[1024]{0}', space=vmem, size = 0x400, scoped, tag = 'input window, operand 32, single buffered']
    #allocation53 [shape = 'u8[1024]{0}', space=vmem, size = 0x400, scoped, tag = 'input window, operand 33, single buffered']
    #allocation54 [shape = 's32[1]{0}', space=sflag, size = 0x4, scoped, tag = 'scoped memory for transformer_global_graph.1']
    #allocation55 [shape = 'u8[1024]{0}', space=vmem, size = 0x400, scoped, tag = 'input window, operand 34, single buffered']
    #allocation56 [shape = 'u8[1024]{0}', space=vmem, size = 0x400, scoped, tag = 'input window, operand 35, single buffered']
    #allocation57 [shape = 's32[1]{0}', space=sflag, size = 0x4, scoped, tag = 'scoped memory for transformer_global_graph.1']
    #allocation58 [shape = 'u8[1024]{0}', space=vmem, size = 0x400, scoped, tag = 'input window, operand 36, single buffered']
    #allocation59 [shape = 'u8[1024]{0}', space=vmem, size = 0x400, scoped, tag = 'input window, operand 37, single buffered']
    #allocation60 [shape = 's32[1]{0}', space=sflag, size = 0x4, scoped, tag = 'scoped memory for transformer_global_graph.1']
    #allocation61 [shape = 'u8[1024]{0}', space=vmem, size = 0x400, scoped, tag = 'input window, operand 38, single buffered']
    #allocation62 [shape = 'u8[8192]{0}', space=vmem, size = 0x2000, scoped, tag = 'output window, operand 0']
    %84 = vsyncpa [#allocation3], 0
    %s85 = scalar_lea.sflag [#allocation3], 1
    %86 = vsyncpa %s85, 0
    %87 = vsyncpa [#allocation6], 0
    %s88 = scalar_lea.sflag [#allocation6], 1
    %89 = vsyncpa %s88, 0
    %90 = vsyncpa [#allocation9], 0
    %s91 = scalar_lea.sflag [#allocation9], 1
    %92 = vsyncpa %s91, 0
    %93 = vsyncpa [#allocation12], 0
    %94 = vsyncpa [#allocation15], 0
    %95 = vsyncpa [#allocation18], 0
    %96 = vsyncpa [#allocation21], 0
    %97 = vsyncpa [#allocation24], 0
    %98 = vsyncpa [#allocation27], 0
    %99 = vsyncpa [#allocation30], 0
    %100 = vsyncpa [#allocation33], 0
    %101 = vsyncpa [#allocation36], 0
    %102 = vsyncpa [#allocation39], 0
    %103 = vsyncpa [#allocation42], 0
    %104 = vsyncpa [#allocation45], 0
    %105 = vsyncpa [#allocation48], 0
    %106 = vsyncpa [#allocation51], 0
    %107 = vsyncpa [#allocation54], 0
    %108 = vsyncpa [#allocation57], 0
    %109 = vsyncpa [#allocation60], 0
    %110 = vsyncpa [#allocation4], 0
    %s111 = scalar_lea.sflag [#allocation4], 1
    %112 = vsyncpa %s111, 0
    loop: start=0, step=1, limit=4
    $region2: #{transformer_global_graph.1} parent=1 // loop_pre_header
      _
    $region3: #{transformer_global_graph.1} parent=1 // loop_header
      %s114 = sphi 0, %s118
      %p115 = scmp.ge.s32.totalorder %s114, 4
      %s124 = sphi 0, %s126
      %s127 = sphi 0, %s124
      %s128 = sphi 0, %s127
      %s144 = sphi 0, %s128
      %s150 = sphi 0, %s152
      %s153 = sphi 0, %s150
      %s154 = sphi 0, %s153
      %s170 = sphi 0, %s154
      %s176 = sphi 0, %s178
      %s179 = sphi 0, %s176
      %s180 = sphi 0, %s179
      %s196 = sphi 0, %s180
      %s202 = sphi 0, %s204
      %s205 = sphi 0, %s202
      %s206 = sphi 0, %s205
      %s222 = sphi 0, %s206
      %s228 = sphi 0, %s230
      %s231 = sphi 0, %s228
      %s232 = sphi 0, %s231
      %s248 = sphi 0, %s232
      %s252 = sphi 0, %s252
      %s254 = sphi 0, %s252
      %s255 = sphi 0, %s254
      %s269 = sphi 0, %s255
      %s273 = sphi 0, %s273
      %s275 = sphi 0, %s273
      %s276 = sphi 0, %s275
      %s290 = sphi 0, %s276
      %s294 = sphi 0, %s294
      %s296 = sphi 0, %s294
      %s297 = sphi 0, %s296
      %s311 = sphi 0, %s297
      %s315 = sphi 0, %s315
      %s317 = sphi 0, %s315
      %s318 = sphi 0, %s317
      %s332 = sphi 0, %s318
      %s336 = sphi 0, %s336
      %s338 = sphi 0, %s336
      %s339 = sphi 0, %s338
      %s353 = sphi 0, %s339
      %s357 = sphi 0, %s357
      %s359 = sphi 0, %s357
      %s360 = sphi 0, %s359
      %s374 = sphi 0, %s360
      %s378 = sphi 0, %s378
      %s380 = sphi 0, %s378
      %s381 = sphi 0, %s380
      %s395 = sphi 0, %s381
      %s399 = sphi 0, %s399
      %s401 = sphi 0, %s399
      %s402 = sphi 0, %s401
      %s416 = sphi 0, %s402
      %s420 = sphi 0, %s420
      %s422 = sphi 0, %s420
      %s423 = sphi 0, %s422
      %s437 = sphi 0, %s423
      %s441 = sphi 0, %s441
      %s443 = sphi 0, %s441
      %s444 = sphi 0, %s443
      %s458 = sphi 0, %s444
      %s462 = sphi 0, %s462
      %s464 = sphi 0, %s462
      %s465 = sphi 0, %s464
      %s479 = sphi 0, %s465
      %s483 = sphi 0, %s483
      %s485 = sphi 0, %s483
      %s486 = sphi 0, %s485
      %s500 = sphi 0, %s486
      %s504 = sphi 0, %s504
      %s506 = sphi 0, %s504
      %s507 = sphi 0, %s506
      %s521 = sphi 0, %s507
      %s525 = sphi 0, %s525
      %s527 = sphi 0, %s525
      %s528 = sphi 0, %s527
      %s542 = sphi 0, %s528
      %s546 = sphi 0, %s546
      %s548 = sphi 0, %s546
      %s549 = sphi 0, %s548
      %s563 = sphi 0, %s549
      %s567 = sphi 0, %s567
      %s569 = sphi 0, %s567
      %s570 = sphi 0, %s569
      %s584 = sphi 0, %s570
      %s588 = sphi 0, %s588
      %s590 = sphi 0, %s588
      %s591 = sphi 0, %s590
      %s605 = sphi 0, %s591
      %s609 = sphi 0, %s609
      %s611 = sphi 0, %s609
      %s612 = sphi 0, %s611
      %s626 = sphi 0, %s612
      %s630 = sphi 0, %s630
      %s632 = sphi 0, %s630
      %s633 = sphi 0, %s632
      %s647 = sphi 0, %s633
      %s651 = sphi 0, %s651
      %s653 = sphi 0, %s651
      %s654 = sphi 0, %s653
      %s668 = sphi 0, %s654
      %s672 = sphi 0, %s672
      %s674 = sphi 0, %s672
      %s675 = sphi 0, %s674
      %s689 = sphi 0, %s675
      %s693 = sphi 0, %s693
      %s695 = sphi 0, %s693
      %s696 = sphi 0, %s695
      %s710 = sphi 0, %s696
      %s714 = sphi 0, %s714
      %s716 = sphi 0, %s714
      %s717 = sphi 0, %s716
      %s731 = sphi 0, %s717
      %s735 = sphi 0, %s735
      %s737 = sphi 0, %s735
      %s738 = sphi 0, %s737
      %s752 = sphi 0, %s738
      %s756 = sphi 0, %s756
      %s758 = sphi 0, %s756
      %s759 = sphi 0, %s758
      %s773 = sphi 0, %s759
      %s777 = sphi 0, %s777
      %s779 = sphi 0, %s777
      %s780 = sphi 0, %s779
      %s794 = sphi 0, %s780
      %s798 = sphi 0, %s798
      %s800 = sphi 0, %s798
      %s801 = sphi 0, %s800
      %s815 = sphi 0, %s801
      %s819 = sphi 0, %s819
      %s821 = sphi 0, %s819
      %s822 = sphi 0, %s821
      %s836 = sphi 0, %s822
      %s840 = sphi 0, %s840
      %s842 = sphi 0, %s840
      %s843 = sphi 0, %s842
      %s857 = sphi 0, %s843
      %s861 = sphi 0, %s861
      %s863 = sphi 0, %s861
      %s864 = sphi 0, %s863
      %s878 = sphi 0, %s864
      %s882 = sphi 0, %s882
      %s884 = sphi 0, %s882
      %s885 = sphi 0, %s884
      %s899 = sphi 0, %s885
      %s903 = sphi 0, %s903
      %s905 = sphi 0, %s903
      %s906 = sphi 0, %s905
      %s920 = sphi 0, %s906
      %s924 = sphi 0, %s924
      %s926 = sphi 0, %s924
      %s927 = sphi 0, %s926
      %s941 = sphi 0, %s927
      %s945 = sphi 0, %s945
      %s947 = sphi 0, %s945
      %s948 = sphi 0, %s947
      %s962 = sphi 0, %s948
      %s968 = sphi 0, %s970
      %s971 = sphi 0, %s968
      %s972 = sphi 0, %s971
      %s988 = sphi 0, %s972
    $region4: #{transformer_global_graph.1} parent=1 // loop_header_branch
      %117 = sbr.rel (%p115) target = $region8
    $region5: #{transformer_global_graph.1} parent=1 // loop_body
      %s119 = ssub.s32 %s114, 1
      %s120 = ssub.s32 %s114, 2
      %s121 = sadd.s32 %s114, 1
      %s122 = ssub.s32 %s114, %s121
      %p123 = scmp.eq.s32.totalorder %s122, 0
      %s125 = sadd.s32 %s124, 1
      %s126 = scalar_select %p123, %s124, %s125
      %p129 = pneg %p123
      %p130 = scmp.eq.s32.totalorder %s114, 1
      %p131 = por %p129, %p130
      %p132 = scmp.ne.s32.totalorder %s124, %s127
      %p133 = scmp.eq.s32.totalorder %s114, 0
      %p134 = por %p132, %p133
      %p135 = scmp.ne.s32.totalorder %s124, %s127
      %p136 = scmp.eq.s32.totalorder %s119, 1
      %p137 = por %p135, %p136
      %p138 = scmp.ne.s32.totalorder %s127, %s128
      %p139 = scmp.eq.s32.totalorder %s119, 0
      %p140 = por %p138, %p139
      %p141 = scmp.ne.s32.totalorder %s127, %s128
      %p142 = scmp.eq.s32.totalorder %s120, 1
      %p143 = por %p141, %p142
      %p145 = scmp.ne.s32.totalorder %s128, %s144
      %p146 = scmp.eq.s32.totalorder %s120, 0
      %p147 = por %p145, %p146
      %s148 = ssub.s32 %s114, %s121
      %p149 = scmp.eq.s32.totalorder %s148, 0
      %s151 = sadd.s32 %s150, 1
      %s152 = scalar_select %p149, %s150, %s151
      %p155 = pneg %p149
      %p156 = scmp.eq.s32.totalorder %s114, 1
      %p157 = por %p155, %p156
      %p158 = scmp.ne.s32.totalorder %s150, %s153
      %p159 = scmp.eq.s32.totalorder %s114, 0
      %p160 = por %p158, %p159
      %p161 = scmp.ne.s32.totalorder %s150, %s153
      %p162 = scmp.eq.s32.totalorder %s119, 1
      %p163 = por %p161, %p162
      %p164 = scmp.ne.s32.totalorder %s153, %s154
      %p165 = scmp.eq.s32.totalorder %s119, 0
      %p166 = por %p164, %p165
      %p167 = scmp.ne.s32.totalorder %s153, %s154
      %p168 = scmp.eq.s32.totalorder %s120, 1
      %p169 = por %p167, %p168
      %p171 = scmp.ne.s32.totalorder %s154, %s170
      %p172 = scmp.eq.s32.totalorder %s120, 0
      %p173 = por %p171, %p172
      %s174 = ssub.s32 %s114, %s121
      %p175 = scmp.eq.s32.totalorder %s174, 0
      %s177 = sadd.s32 %s176, 1
      %s178 = scalar_select %p175, %s176, %s177
      %p181 = pneg %p175
      %p182 = scmp.eq.s32.totalorder %s114, 1
      %p183 = por %p181, %p182
      %p184 = scmp.ne.s32.totalorder %s176, %s179
      %p185 = scmp.eq.s32.totalorder %s114, 0
      %p186 = por %p184, %p185
      %p187 = scmp.ne.s32.totalorder %s176, %s179
      %p188 = scmp.eq.s32.totalorder %s119, 1
      %p189 = por %p187, %p188
      %p190 = scmp.ne.s32.totalorder %s179, %s180
      %p191 = scmp.eq.s32.totalorder %s119, 0
      %p192 = por %p190, %p191
      %p193 = scmp.ne.s32.totalorder %s179, %s180
      %p194 = scmp.eq.s32.totalorder %s120, 1
      %p195 = por %p193, %p194
      %p197 = scmp.ne.s32.totalorder %s180, %s196
      %p198 = scmp.eq.s32.totalorder %s120, 0
      %p199 = por %p197, %p198
      %s200 = ssub.s32 %s114, %s121
      %p201 = scmp.eq.s32.totalorder %s200, 0
      %s203 = sadd.s32 %s202, 1
      %s204 = scalar_select %p201, %s202, %s203
      %p207 = pneg %p201
      %p208 = scmp.eq.s32.totalorder %s114, 1
      %p209 = por %p207, %p208
      %p210 = scmp.ne.s32.totalorder %s202, %s205
      %p211 = scmp.eq.s32.totalorder %s114, 0
      %p212 = por %p210, %p211
      %p213 = scmp.ne.s32.totalorder %s202, %s205
      %p214 = scmp.eq.s32.totalorder %s119, 1
      %p215 = por %p213, %p214
      %p216 = scmp.ne.s32.totalorder %s205, %s206
      %p217 = scmp.eq.s32.totalorder %s119, 0
      %p218 = por %p216, %p217
      %p219 = scmp.ne.s32.totalorder %s205, %s206
      %p220 = scmp.eq.s32.totalorder %s120, 1
      %p221 = por %p219, %p220
      %p223 = scmp.ne.s32.totalorder %s206, %s222
      %p224 = scmp.eq.s32.totalorder %s120, 0
      %p225 = por %p223, %p224
      %s226 = ssub.s32 %s114, %s121
      %p227 = scmp.eq.s32.totalorder %s226, 0
      %s229 = sadd.s32 %s228, 1
      %s230 = scalar_select %p227, %s228, %s229
      %p233 = pneg %p227
      %p234 = scmp.eq.s32.totalorder %s114, 1
      %p235 = por %p233, %p234
      %p236 = scmp.ne.s32.totalorder %s228, %s231
      %p237 = scmp.eq.s32.totalorder %s114, 0
      %p238 = por %p236, %p237
      %p239 = scmp.ne.s32.totalorder %s228, %s231
      %p240 = scmp.eq.s32.totalorder %s119, 1
      %p241 = por %p239, %p240
      %p242 = scmp.ne.s32.totalorder %s231, %s232
      %p243 = scmp.eq.s32.totalorder %s119, 0
      %p244 = por %p242, %p243
      %p245 = scmp.ne.s32.totalorder %s231, %s232
      %p246 = scmp.eq.s32.totalorder %s120, 1
      %p247 = por %p245, %p246
      %p249 = scmp.ne.s32.totalorder %s232, %s248
      %p250 = scmp.eq.s32.totalorder %s120, 0
      %p251 = por %p249, %p250
      %s253 = sadd.s32 %s252, 1
      %p256 = scmp.eq.s32.totalorder %s114, 1
      %p257 = scmp.ne.s32.totalorder %s252, %s254
      %p258 = scmp.eq.s32.totalorder %s114, 0
      %p259 = por %p257, %p258
      %p260 = scmp.ne.s32.totalorder %s252, %s254
      %p261 = scmp.eq.s32.totalorder %s119, 1
      %p262 = por %p260, %p261
      %p263 = scmp.ne.s32.totalorder %s254, %s255
      %p264 = scmp.eq.s32.totalorder %s119, 0
      %p265 = por %p263, %p264
      %p266 = scmp.ne.s32.totalorder %s254, %s255
      %p267 = scmp.eq.s32.totalorder %s120, 1
      %p268 = por %p266, %p267
      %p270 = scmp.ne.s32.totalorder %s255, %s269
      %p271 = scmp.eq.s32.totalorder %s120, 0
      %p272 = por %p270, %p271
      %s274 = sadd.s32 %s273, 1
      %p277 = scmp.eq.s32.totalorder %s114, 1
      %p278 = scmp.ne.s32.totalorder %s273, %s275
      %p279 = scmp.eq.s32.totalorder %s114, 0
      %p280 = por %p278, %p279
      %p281 = scmp.ne.s32.totalorder %s273, %s275
      %p282 = scmp.eq.s32.totalorder %s119, 1
      %p283 = por %p281, %p282
      %p284 = scmp.ne.s32.totalorder %s275, %s276
      %p285 = scmp.eq.s32.totalorder %s119, 0
      %p286 = por %p284, %p285
      %p287 = scmp.ne.s32.totalorder %s275, %s276
      %p288 = scmp.eq.s32.totalorder %s120, 1
      %p289 = por %p287, %p288
      %p291 = scmp.ne.s32.totalorder %s276, %s290
      %p292 = scmp.eq.s32.totalorder %s120, 0
      %p293 = por %p291, %p292
      %s295 = sadd.s32 %s294, 1
      %p298 = scmp.eq.s32.totalorder %s114, 1
      %p299 = scmp.ne.s32.totalorder %s294, %s296
      %p300 = scmp.eq.s32.totalorder %s114, 0
      %p301 = por %p299, %p300
      %p302 = scmp.ne.s32.totalorder %s294, %s296
      %p303 = scmp.eq.s32.totalorder %s119, 1
      %p304 = por %p302, %p303
      %p305 = scmp.ne.s32.totalorder %s296, %s297
      %p306 = scmp.eq.s32.totalorder %s119, 0
      %p307 = por %p305, %p306
      %p308 = scmp.ne.s32.totalorder %s296, %s297
      %p309 = scmp.eq.s32.totalorder %s120, 1
      %p310 = por %p308, %p309
      %p312 = scmp.ne.s32.totalorder %s297, %s311
      %p313 = scmp.eq.s32.totalorder %s120, 0
      %p314 = por %p312, %p313
      %s316 = sadd.s32 %s315, 1
      %p319 = scmp.eq.s32.totalorder %s114, 1
      %p320 = scmp.ne.s32.totalorder %s315, %s317
      %p321 = scmp.eq.s32.totalorder %s114, 0
      %p322 = por %p320, %p321
      %p323 = scmp.ne.s32.totalorder %s315, %s317
      %p324 = scmp.eq.s32.totalorder %s119, 1
      %p325 = por %p323, %p324
      %p326 = scmp.ne.s32.totalorder %s317, %s318
      %p327 = scmp.eq.s32.totalorder %s119, 0
      %p328 = por %p326, %p327
      %p329 = scmp.ne.s32.totalorder %s317, %s318
      %p330 = scmp.eq.s32.totalorder %s120, 1
      %p331 = por %p329, %p330
      %p333 = scmp.ne.s32.totalorder %s318, %s332
      %p334 = scmp.eq.s32.totalorder %s120, 0
      %p335 = por %p333, %p334
      %s337 = sadd.s32 %s336, 1
      %p340 = scmp.eq.s32.totalorder %s114, 1
      %p341 = scmp.ne.s32.totalorder %s336, %s338
      %p342 = scmp.eq.s32.totalorder %s114, 0
      %p343 = por %p341, %p342
      %p344 = scmp.ne.s32.totalorder %s336, %s338
      %p345 = scmp.eq.s32.totalorder %s119, 1
      %p346 = por %p344, %p345
      %p347 = scmp.ne.s32.totalorder %s338, %s339
      %p348 = scmp.eq.s32.totalorder %s119, 0
      %p349 = por %p347, %p348
      %p350 = scmp.ne.s32.totalorder %s338, %s339
      %p351 = scmp.eq.s32.totalorder %s120, 1
      %p352 = por %p350, %p351
      %p354 = scmp.ne.s32.totalorder %s339, %s353
      %p355 = scmp.eq.s32.totalorder %s120, 0
      %p356 = por %p354, %p355
      %s358 = sadd.s32 %s357, 1
      %p361 = scmp.eq.s32.totalorder %s114, 1
      %p362 = scmp.ne.s32.totalorder %s357, %s359
      %p363 = scmp.eq.s32.totalorder %s114, 0
      %p364 = por %p362, %p363
      %p365 = scmp.ne.s32.totalorder %s357, %s359
      %p366 = scmp.eq.s32.totalorder %s119, 1
      %p367 = por %p365, %p366
      %p368 = scmp.ne.s32.totalorder %s359, %s360
      %p369 = scmp.eq.s32.totalorder %s119, 0
      %p370 = por %p368, %p369
      %p371 = scmp.ne.s32.totalorder %s359, %s360
      %p372 = scmp.eq.s32.totalorder %s120, 1
      %p373 = por %p371, %p372
      %p375 = scmp.ne.s32.totalorder %s360, %s374
      %p376 = scmp.eq.s32.totalorder %s120, 0
      %p377 = por %p375, %p376
      %s379 = sadd.s32 %s378, 1
      %p382 = scmp.eq.s32.totalorder %s114, 1
      %p383 = scmp.ne.s32.totalorder %s378, %s380
      %p384 = scmp.eq.s32.totalorder %s114, 0
      %p385 = por %p383, %p384
      %p386 = scmp.ne.s32.totalorder %s378, %s380
      %p387 = scmp.eq.s32.totalorder %s119, 1
      %p388 = por %p386, %p387
      %p389 = scmp.ne.s32.totalorder %s380, %s381
      %p390 = scmp.eq.s32.totalorder %s119, 0
      %p391 = por %p389, %p390
      %p392 = scmp.ne.s32.totalorder %s380, %s381
      %p393 = scmp.eq.s32.totalorder %s120, 1
      %p394 = por %p392, %p393
      %p396 = scmp.ne.s32.totalorder %s381, %s395
      %p397 = scmp.eq.s32.totalorder %s120, 0
      %p398 = por %p396, %p397
      %s400 = sadd.s32 %s399, 1
      %p403 = scmp.eq.s32.totalorder %s114, 1
      %p404 = scmp.ne.s32.totalorder %s399, %s401
      %p405 = scmp.eq.s32.totalorder %s114, 0
      %p406 = por %p404, %p405
      %p407 = scmp.ne.s32.totalorder %s399, %s401
      %p408 = scmp.eq.s32.totalorder %s119, 1
      %p409 = por %p407, %p408
      %p410 = scmp.ne.s32.totalorder %s401, %s402
      %p411 = scmp.eq.s32.totalorder %s119, 0
      %p412 = por %p410, %p411
      %p413 = scmp.ne.s32.totalorder %s401, %s402
      %p414 = scmp.eq.s32.totalorder %s120, 1
      %p415 = por %p413, %p414
      %p417 = scmp.ne.s32.totalorder %s402, %s416
      %p418 = scmp.eq.s32.totalorder %s120, 0
      %p419 = por %p417, %p418
      %s421 = sadd.s32 %s420, 1
      %p424 = scmp.eq.s32.totalorder %s114, 1
      %p425 = scmp.ne.s32.totalorder %s420, %s422
      %p426 = scmp.eq.s32.totalorder %s114, 0
      %p427 = por %p425, %p426
      %p428 = scmp.ne.s32.totalorder %s420, %s422
      %p429 = scmp.eq.s32.totalorder %s119, 1
      %p430 = por %p428, %p429
      %p431 = scmp.ne.s32.totalorder %s422, %s423
      %p432 = scmp.eq.s32.totalorder %s119, 0
      %p433 = por %p431, %p432
      %p434 = scmp.ne.s32.totalorder %s422, %s423
      %p435 = scmp.eq.s32.totalorder %s120, 1
      %p436 = por %p434, %p435
      %p438 = scmp.ne.s32.totalorder %s423, %s437
      %p439 = scmp.eq.s32.totalorder %s120, 0
      %p440 = por %p438, %p439
      %s442 = sadd.s32 %s441, 1
      %p445 = scmp.eq.s32.totalorder %s114, 1
      %p446 = scmp.ne.s32.totalorder %s441, %s443
      %p447 = scmp.eq.s32.totalorder %s114, 0
      %p448 = por %p446, %p447
      %p449 = scmp.ne.s32.totalorder %s441, %s443
      %p450 = scmp.eq.s32.totalorder %s119, 1
      %p451 = por %p449, %p450
      %p452 = scmp.ne.s32.totalorder %s443, %s444
      %p453 = scmp.eq.s32.totalorder %s119, 0
      %p454 = por %p452, %p453
      %p455 = scmp.ne.s32.totalorder %s443, %s444
      %p456 = scmp.eq.s32.totalorder %s120, 1
      %p457 = por %p455, %p456
      %p459 = scmp.ne.s32.totalorder %s444, %s458
      %p460 = scmp.eq.s32.totalorder %s120, 0
      %p461 = por %p459, %p460
      %s463 = sadd.s32 %s462, 1
      %p466 = scmp.eq.s32.totalorder %s114, 1
      %p467 = scmp.ne.s32.totalorder %s462, %s464
      %p468 = scmp.eq.s32.totalorder %s114, 0
      %p469 = por %p467, %p468
      %p470 = scmp.ne.s32.totalorder %s462, %s464
      %p471 = scmp.eq.s32.totalorder %s119, 1
      %p472 = por %p470, %p471
      %p473 = scmp.ne.s32.totalorder %s464, %s465
      %p474 = scmp.eq.s32.totalorder %s119, 0
      %p475 = por %p473, %p474
      %p476 = scmp.ne.s32.totalorder %s464, %s465
      %p477 = scmp.eq.s32.totalorder %s120, 1
      %p478 = por %p476, %p477
      %p480 = scmp.ne.s32.totalorder %s465, %s479
      %p481 = scmp.eq.s32.totalorder %s120, 0
      %p482 = por %p480, %p481
      %s484 = sadd.s32 %s483, 1
      %p487 = scmp.eq.s32.totalorder %s114, 1
      %p488 = scmp.ne.s32.totalorder %s483, %s485
      %p489 = scmp.eq.s32.totalorder %s114, 0
      %p490 = por %p488, %p489
      %p491 = scmp.ne.s32.totalorder %s483, %s485
      %p492 = scmp.eq.s32.totalorder %s119, 1
      %p493 = por %p491, %p492
      %p494 = scmp.ne.s32.totalorder %s485, %s486
      %p495 = scmp.eq.s32.totalorder %s119, 0
      %p496 = por %p494, %p495
      %p497 = scmp.ne.s32.totalorder %s485, %s486
      %p498 = scmp.eq.s32.totalorder %s120, 1
      %p499 = por %p497, %p498
      %p501 = scmp.ne.s32.totalorder %s486, %s500
      %p502 = scmp.eq.s32.totalorder %s120, 0
      %p503 = por %p501, %p502
      %s505 = sadd.s32 %s504, 1
      %p508 = scmp.eq.s32.totalorder %s114, 1
      %p509 = scmp.ne.s32.totalorder %s504, %s506
      %p510 = scmp.eq.s32.totalorder %s114, 0
      %p511 = por %p509, %p510
      %p512 = scmp.ne.s32.totalorder %s504, %s506
      %p513 = scmp.eq.s32.totalorder %s119, 1
      %p514 = por %p512, %p513
      %p515 = scmp.ne.s32.totalorder %s506, %s507
      %p516 = scmp.eq.s32.totalorder %s119, 0
      %p517 = por %p515, %p516
      %p518 = scmp.ne.s32.totalorder %s506, %s507
      %p519 = scmp.eq.s32.totalorder %s120, 1
      %p520 = por %p518, %p519
      %p522 = scmp.ne.s32.totalorder %s507, %s521
      %p523 = scmp.eq.s32.totalorder %s120, 0
      %p524 = por %p522, %p523
      %s526 = sadd.s32 %s525, 1
      %p529 = scmp.eq.s32.totalorder %s114, 1
      %p530 = scmp.ne.s32.totalorder %s525, %s527
      %p531 = scmp.eq.s32.totalorder %s114, 0
      %p532 = por %p530, %p531
      %p533 = scmp.ne.s32.totalorder %s525, %s527
      %p534 = scmp.eq.s32.totalorder %s119, 1
      %p535 = por %p533, %p534
      %p536 = scmp.ne.s32.totalorder %s527, %s528
      %p537 = scmp.eq.s32.totalorder %s119, 0
      %p538 = por %p536, %p537
      %p539 = scmp.ne.s32.totalorder %s527, %s528
      %p540 = scmp.eq.s32.totalorder %s120, 1
      %p541 = por %p539, %p540
      %p543 = scmp.ne.s32.totalorder %s528, %s542
      %p544 = scmp.eq.s32.totalorder %s120, 0
      %p545 = por %p543, %p544
      %s547 = sadd.s32 %s546, 1
      %p550 = scmp.eq.s32.totalorder %s114, 1
      %p551 = scmp.ne.s32.totalorder %s546, %s548
      %p552 = scmp.eq.s32.totalorder %s114, 0
      %p553 = por %p551, %p552
      %p554 = scmp.ne.s32.totalorder %s546, %s548
      %p555 = scmp.eq.s32.totalorder %s119, 1
      %p556 = por %p554, %p555
      %p557 = scmp.ne.s32.totalorder %s548, %s549
      %p558 = scmp.eq.s32.totalorder %s119, 0
      %p559 = por %p557, %p558
      %p560 = scmp.ne.s32.totalorder %s548, %s549
      %p561 = scmp.eq.s32.totalorder %s120, 1
      %p562 = por %p560, %p561
      %p564 = scmp.ne.s32.totalorder %s549, %s563
      %p565 = scmp.eq.s32.totalorder %s120, 0
      %p566 = por %p564, %p565
      %s568 = sadd.s32 %s567, 1
      %p571 = scmp.eq.s32.totalorder %s114, 1
      %p572 = scmp.ne.s32.totalorder %s567, %s569
      %p573 = scmp.eq.s32.totalorder %s114, 0
      %p574 = por %p572, %p573
      %p575 = scmp.ne.s32.totalorder %s567, %s569
      %p576 = scmp.eq.s32.totalorder %s119, 1
      %p577 = por %p575, %p576
      %p578 = scmp.ne.s32.totalorder %s569, %s570
      %p579 = scmp.eq.s32.totalorder %s119, 0
      %p580 = por %p578, %p579
      %p581 = scmp.ne.s32.totalorder %s569, %s570
      %p582 = scmp.eq.s32.totalorder %s120, 1
      %p583 = por %p581, %p582
      %p585 = scmp.ne.s32.totalorder %s570, %s584
      %p586 = scmp.eq.s32.totalorder %s120, 0
      %p587 = por %p585, %p586
      %s589 = sadd.s32 %s588, 1
      %p592 = scmp.eq.s32.totalorder %s114, 1
      %p593 = scmp.ne.s32.totalorder %s588, %s590
      %p594 = scmp.eq.s32.totalorder %s114, 0
      %p595 = por %p593, %p594
      %p596 = scmp.ne.s32.totalorder %s588, %s590
      %p597 = scmp.eq.s32.totalorder %s119, 1
      %p598 = por %p596, %p597
      %p599 = scmp.ne.s32.totalorder %s590, %s591
      %p600 = scmp.eq.s32.totalorder %s119, 0
      %p601 = por %p599, %p600
      %p602 = scmp.ne.s32.totalorder %s590, %s591
      %p603 = scmp.eq.s32.totalorder %s120, 1
      %p604 = por %p602, %p603
      %p606 = scmp.ne.s32.totalorder %s591, %s605
      %p607 = scmp.eq.s32.totalorder %s120, 0
      %p608 = por %p606, %p607
      %s610 = sadd.s32 %s609, 1
      %p613 = scmp.eq.s32.totalorder %s114, 1
      %p614 = scmp.ne.s32.totalorder %s609, %s611
      %p615 = scmp.eq.s32.totalorder %s114, 0
      %p616 = por %p614, %p615
      %p617 = scmp.ne.s32.totalorder %s609, %s611
      %p618 = scmp.eq.s32.totalorder %s119, 1
      %p619 = por %p617, %p618
      %p620 = scmp.ne.s32.totalorder %s611, %s612
      %p621 = scmp.eq.s32.totalorder %s119, 0
      %p622 = por %p620, %p621
      %p623 = scmp.ne.s32.totalorder %s611, %s612
      %p624 = scmp.eq.s32.totalorder %s120, 1
      %p625 = por %p623, %p624
      %p627 = scmp.ne.s32.totalorder %s612, %s626
      %p628 = scmp.eq.s32.totalorder %s120, 0
      %p629 = por %p627, %p628
      %s631 = sadd.s32 %s630, 1
      %p634 = scmp.eq.s32.totalorder %s114, 1
      %p635 = scmp.ne.s32.totalorder %s630, %s632
      %p636 = scmp.eq.s32.totalorder %s114, 0
      %p637 = por %p635, %p636
      %p638 = scmp.ne.s32.totalorder %s630, %s632
      %p639 = scmp.eq.s32.totalorder %s119, 1
      %p640 = por %p638, %p639
      %p641 = scmp.ne.s32.totalorder %s632, %s633
      %p642 = scmp.eq.s32.totalorder %s119, 0
      %p643 = por %p641, %p642
      %p644 = scmp.ne.s32.totalorder %s632, %s633
      %p645 = scmp.eq.s32.totalorder %s120, 1
      %p646 = por %p644, %p645
      %p648 = scmp.ne.s32.totalorder %s633, %s647
      %p649 = scmp.eq.s32.totalorder %s120, 0
      %p650 = por %p648, %p649
      %s652 = sadd.s32 %s651, 1
      %p655 = scmp.eq.s32.totalorder %s114, 1
      %p656 = scmp.ne.s32.totalorder %s651, %s653
      %p657 = scmp.eq.s32.totalorder %s114, 0
      %p658 = por %p656, %p657
      %p659 = scmp.ne.s32.totalorder %s651, %s653
      %p660 = scmp.eq.s32.totalorder %s119, 1
      %p661 = por %p659, %p660
      %p662 = scmp.ne.s32.totalorder %s653, %s654
      %p663 = scmp.eq.s32.totalorder %s119, 0
      %p664 = por %p662, %p663
      %p665 = scmp.ne.s32.totalorder %s653, %s654
      %p666 = scmp.eq.s32.totalorder %s120, 1
      %p667 = por %p665, %p666
      %p669 = scmp.ne.s32.totalorder %s654, %s668
      %p670 = scmp.eq.s32.totalorder %s120, 0
      %p671 = por %p669, %p670
      %s673 = sadd.s32 %s672, 1
      %p676 = scmp.eq.s32.totalorder %s114, 1
      %p677 = scmp.ne.s32.totalorder %s672, %s674
      %p678 = scmp.eq.s32.totalorder %s114, 0
      %p679 = por %p677, %p678
      %p680 = scmp.ne.s32.totalorder %s672, %s674
      %p681 = scmp.eq.s32.totalorder %s119, 1
      %p682 = por %p680, %p681
      %p683 = scmp.ne.s32.totalorder %s674, %s675
      %p684 = scmp.eq.s32.totalorder %s119, 0
      %p685 = por %p683, %p684
      %p686 = scmp.ne.s32.totalorder %s674, %s675
      %p687 = scmp.eq.s32.totalorder %s120, 1
      %p688 = por %p686, %p687
      %p690 = scmp.ne.s32.totalorder %s675, %s689
      %p691 = scmp.eq.s32.totalorder %s120, 0
      %p692 = por %p690, %p691
      %s694 = sadd.s32 %s693, 1
      %p697 = scmp.eq.s32.totalorder %s114, 1
      %p698 = scmp.ne.s32.totalorder %s693, %s695
      %p699 = scmp.eq.s32.totalorder %s114, 0
      %p700 = por %p698, %p699
      %p701 = scmp.ne.s32.totalorder %s693, %s695
      %p702 = scmp.eq.s32.totalorder %s119, 1
      %p703 = por %p701, %p702
      %p704 = scmp.ne.s32.totalorder %s695, %s696
      %p705 = scmp.eq.s32.totalorder %s119, 0
      %p706 = por %p704, %p705
      %p707 = scmp.ne.s32.totalorder %s695, %s696
      %p708 = scmp.eq.s32.totalorder %s120, 1
      %p709 = por %p707, %p708
      %p711 = scmp.ne.s32.totalorder %s696, %s710
      %p712 = scmp.eq.s32.totalorder %s120, 0
      %p713 = por %p711, %p712
      %s715 = sadd.s32 %s714, 1
      %p718 = scmp.eq.s32.totalorder %s114, 1
      %p719 = scmp.ne.s32.totalorder %s714, %s716
      %p720 = scmp.eq.s32.totalorder %s114, 0
      %p721 = por %p719, %p720
      %p722 = scmp.ne.s32.totalorder %s714, %s716
      %p723 = scmp.eq.s32.totalorder %s119, 1
      %p724 = por %p722, %p723
      %p725 = scmp.ne.s32.totalorder %s716, %s717
      %p726 = scmp.eq.s32.totalorder %s119, 0
      %p727 = por %p725, %p726
      %p728 = scmp.ne.s32.totalorder %s716, %s717
      %p729 = scmp.eq.s32.totalorder %s120, 1
      %p730 = por %p728, %p729
      %p732 = scmp.ne.s32.totalorder %s717, %s731
      %p733 = scmp.eq.s32.totalorder %s120, 0
      %p734 = por %p732, %p733
      %s736 = sadd.s32 %s735, 1
      %p739 = scmp.eq.s32.totalorder %s114, 1
      %p740 = scmp.ne.s32.totalorder %s735, %s737
      %p741 = scmp.eq.s32.totalorder %s114, 0
      %p742 = por %p740, %p741
      %p743 = scmp.ne.s32.totalorder %s735, %s737
      %p744 = scmp.eq.s32.totalorder %s119, 1
      %p745 = por %p743, %p744
      %p746 = scmp.ne.s32.totalorder %s737, %s738
      %p747 = scmp.eq.s32.totalorder %s119, 0
      %p748 = por %p746, %p747
      %p749 = scmp.ne.s32.totalorder %s737, %s738
      %p750 = scmp.eq.s32.totalorder %s120, 1
      %p751 = por %p749, %p750
      %p753 = scmp.ne.s32.totalorder %s738, %s752
      %p754 = scmp.eq.s32.totalorder %s120, 0
      %p755 = por %p753, %p754
      %s757 = sadd.s32 %s756, 1
      %p760 = scmp.eq.s32.totalorder %s114, 1
      %p761 = scmp.ne.s32.totalorder %s756, %s758
      %p762 = scmp.eq.s32.totalorder %s114, 0
      %p763 = por %p761, %p762
      %p764 = scmp.ne.s32.totalorder %s756, %s758
      %p765 = scmp.eq.s32.totalorder %s119, 1
      %p766 = por %p764, %p765
      %p767 = scmp.ne.s32.totalorder %s758, %s759
      %p768 = scmp.eq.s32.totalorder %s119, 0
      %p769 = por %p767, %p768
      %p770 = scmp.ne.s32.totalorder %s758, %s759
      %p771 = scmp.eq.s32.totalorder %s120, 1
      %p772 = por %p770, %p771
      %p774 = scmp.ne.s32.totalorder %s759, %s773
      %p775 = scmp.eq.s32.totalorder %s120, 0
      %p776 = por %p774, %p775
      %s778 = sadd.s32 %s777, 1
      %p781 = scmp.eq.s32.totalorder %s114, 1
      %p782 = scmp.ne.s32.totalorder %s777, %s779
      %p783 = scmp.eq.s32.totalorder %s114, 0
      %p784 = por %p782, %p783
      %p785 = scmp.ne.s32.totalorder %s777, %s779
      %p786 = scmp.eq.s32.totalorder %s119, 1
      %p787 = por %p785, %p786
      %p788 = scmp.ne.s32.totalorder %s779, %s780
      %p789 = scmp.eq.s32.totalorder %s119, 0
      %p790 = por %p788, %p789
      %p791 = scmp.ne.s32.totalorder %s779, %s780
      %p792 = scmp.eq.s32.totalorder %s120, 1
      %p793 = por %p791, %p792
      %p795 = scmp.ne.s32.totalorder %s780, %s794
      %p796 = scmp.eq.s32.totalorder %s120, 0
      %p797 = por %p795, %p796
      %s799 = sadd.s32 %s798, 1
      %p802 = scmp.eq.s32.totalorder %s114, 1
      %p803 = scmp.ne.s32.totalorder %s798, %s800
      %p804 = scmp.eq.s32.totalorder %s114, 0
      %p805 = por %p803, %p804
      %p806 = scmp.ne.s32.totalorder %s798, %s800
      %p807 = scmp.eq.s32.totalorder %s119, 1
      %p808 = por %p806, %p807
      %p809 = scmp.ne.s32.totalorder %s800, %s801
      %p810 = scmp.eq.s32.totalorder %s119, 0
      %p811 = por %p809, %p810
      %p812 = scmp.ne.s32.totalorder %s800, %s801
      %p813 = scmp.eq.s32.totalorder %s120, 1
      %p814 = por %p812, %p813
      %p816 = scmp.ne.s32.totalorder %s801, %s815
      %p817 = scmp.eq.s32.totalorder %s120, 0
      %p818 = por %p816, %p817
      %s820 = sadd.s32 %s819, 1
      %p823 = scmp.eq.s32.totalorder %s114, 1
      %p824 = scmp.ne.s32.totalorder %s819, %s821
      %p825 = scmp.eq.s32.totalorder %s114, 0
      %p826 = por %p824, %p825
      %p827 = scmp.ne.s32.totalorder %s819, %s821
      %p828 = scmp.eq.s32.totalorder %s119, 1
      %p829 = por %p827, %p828
      %p830 = scmp.ne.s32.totalorder %s821, %s822
      %p831 = scmp.eq.s32.totalorder %s119, 0
      %p832 = por %p830, %p831
      %p833 = scmp.ne.s32.totalorder %s821, %s822
      %p834 = scmp.eq.s32.totalorder %s120, 1
      %p835 = por %p833, %p834
      %p837 = scmp.ne.s32.totalorder %s822, %s836
      %p838 = scmp.eq.s32.totalorder %s120, 0
      %p839 = por %p837, %p838
      %s841 = sadd.s32 %s840, 1
      %p844 = scmp.eq.s32.totalorder %s114, 1
      %p845 = scmp.ne.s32.totalorder %s840, %s842
      %p846 = scmp.eq.s32.totalorder %s114, 0
      %p847 = por %p845, %p846
      %p848 = scmp.ne.s32.totalorder %s840, %s842
      %p849 = scmp.eq.s32.totalorder %s119, 1
      %p850 = por %p848, %p849
      %p851 = scmp.ne.s32.totalorder %s842, %s843
      %p852 = scmp.eq.s32.totalorder %s119, 0
      %p853 = por %p851, %p852
      %p854 = scmp.ne.s32.totalorder %s842, %s843
      %p855 = scmp.eq.s32.totalorder %s120, 1
      %p856 = por %p854, %p855
      %p858 = scmp.ne.s32.totalorder %s843, %s857
      %p859 = scmp.eq.s32.totalorder %s120, 0
      %p860 = por %p858, %p859
      %s862 = sadd.s32 %s861, 1
      %p865 = scmp.eq.s32.totalorder %s114, 1
      %p866 = scmp.ne.s32.totalorder %s861, %s863
      %p867 = scmp.eq.s32.totalorder %s114, 0
      %p868 = por %p866, %p867
      %p869 = scmp.ne.s32.totalorder %s861, %s863
      %p870 = scmp.eq.s32.totalorder %s119, 1
      %p871 = por %p869, %p870
      %p872 = scmp.ne.s32.totalorder %s863, %s864
      %p873 = scmp.eq.s32.totalorder %s119, 0
      %p874 = por %p872, %p873
      %p875 = scmp.ne.s32.totalorder %s863, %s864
      %p876 = scmp.eq.s32.totalorder %s120, 1
      %p877 = por %p875, %p876
      %p879 = scmp.ne.s32.totalorder %s864, %s878
      %p880 = scmp.eq.s32.totalorder %s120, 0
      %p881 = por %p879, %p880
      %s883 = sadd.s32 %s882, 1
      %p886 = scmp.eq.s32.totalorder %s114, 1
      %p887 = scmp.ne.s32.totalorder %s882, %s884
      %p888 = scmp.eq.s32.totalorder %s114, 0
      %p889 = por %p887, %p888
      %p890 = scmp.ne.s32.totalorder %s882, %s884
      %p891 = scmp.eq.s32.totalorder %s119, 1
      %p892 = por %p890, %p891
      %p893 = scmp.ne.s32.totalorder %s884, %s885
      %p894 = scmp.eq.s32.totalorder %s119, 0
      %p895 = por %p893, %p894
      %p896 = scmp.ne.s32.totalorder %s884, %s885
      %p897 = scmp.eq.s32.totalorder %s120, 1
      %p898 = por %p896, %p897
      %p900 = scmp.ne.s32.totalorder %s885, %s899
      %p901 = scmp.eq.s32.totalorder %s120, 0
      %p902 = por %p900, %p901
      %s904 = sadd.s32 %s903, 1
      %p907 = scmp.eq.s32.totalorder %s114, 1
      %p908 = scmp.ne.s32.totalorder %s903, %s905
      %p909 = scmp.eq.s32.totalorder %s114, 0
      %p910 = por %p908, %p909
      %p911 = scmp.ne.s32.totalorder %s903, %s905
      %p912 = scmp.eq.s32.totalorder %s119, 1
      %p913 = por %p911, %p912
      %p914 = scmp.ne.s32.totalorder %s905, %s906
      %p915 = scmp.eq.s32.totalorder %s119, 0
      %p916 = por %p914, %p915
      %p917 = scmp.ne.s32.totalorder %s905, %s906
      %p918 = scmp.eq.s32.totalorder %s120, 1
      %p919 = por %p917, %p918
      %p921 = scmp.ne.s32.totalorder %s906, %s920
      %p922 = scmp.eq.s32.totalorder %s120, 0
      %p923 = por %p921, %p922
      %s925 = sadd.s32 %s924, 1
      %p928 = scmp.eq.s32.totalorder %s114, 1
      %p929 = scmp.ne.s32.totalorder %s924, %s926
      %p930 = scmp.eq.s32.totalorder %s114, 0
      %p931 = por %p929, %p930
      %p932 = scmp.ne.s32.totalorder %s924, %s926
      %p933 = scmp.eq.s32.totalorder %s119, 1
      %p934 = por %p932, %p933
      %p935 = scmp.ne.s32.totalorder %s926, %s927
      %p936 = scmp.eq.s32.totalorder %s119, 0
      %p937 = por %p935, %p936
      %p938 = scmp.ne.s32.totalorder %s926, %s927
      %p939 = scmp.eq.s32.totalorder %s120, 1
      %p940 = por %p938, %p939
      %p942 = scmp.ne.s32.totalorder %s927, %s941
      %p943 = scmp.eq.s32.totalorder %s120, 0
      %p944 = por %p942, %p943
      %s946 = sadd.s32 %s945, 1
      %p949 = scmp.eq.s32.totalorder %s114, 1
      %p950 = scmp.ne.s32.totalorder %s945, %s947
      %p951 = scmp.eq.s32.totalorder %s114, 0
      %p952 = por %p950, %p951
      %p953 = scmp.ne.s32.totalorder %s945, %s947
      %p954 = scmp.eq.s32.totalorder %s119, 1
      %p955 = por %p953, %p954
      %p956 = scmp.ne.s32.totalorder %s947, %s948
      %p957 = scmp.eq.s32.totalorder %s119, 0
      %p958 = por %p956, %p957
      %p959 = scmp.ne.s32.totalorder %s947, %s948
      %p960 = scmp.eq.s32.totalorder %s120, 1
      %p961 = por %p959, %p960
      %p963 = scmp.ne.s32.totalorder %s948, %s962
      %p964 = scmp.eq.s32.totalorder %s120, 0
      %p965 = por %p963, %p964
      %s966 = ssub.s32 %s114, %s121
      %p967 = scmp.eq.s32.totalorder %s966, 0
      %s969 = sadd.s32 %s968, 1
      %s970 = scalar_select %p967, %s968, %s969
      %p973 = pneg %p967
      %p974 = scmp.eq.s32.totalorder %s114, 1
      %p975 = por %p973, %p974
      %p976 = scmp.ne.s32.totalorder %s968, %s971
      %p977 = scmp.eq.s32.totalorder %s114, 0
      %p978 = por %p976, %p977
      %p979 = scmp.ne.s32.totalorder %s968, %s971
      %p980 = scmp.eq.s32.totalorder %s119, 1
      %p981 = por %p979, %p980
      %p982 = scmp.ne.s32.totalorder %s971, %s972
      %p983 = scmp.eq.s32.totalorder %s119, 0
      %p984 = por %p982, %p983
      %p985 = scmp.ne.s32.totalorder %s971, %s972
      %p986 = scmp.eq.s32.totalorder %s120, 1
      %p987 = por %p985, %p986
      %p989 = scmp.ne.s32.totalorder %s972, %s988
      %p990 = scmp.eq.s32.totalorder %s120, 0
      %p991 = por %p989, %p990
      %p992 = scmp.le.s32.totalorder 1, %s114
      %p993 = scmp.lt.s32.totalorder %s114, 3
      %p994 = pnand %p992, %p993
      %p995 = pneg %p994
      // Predicated region
      $region9: #{transformer_global_graph.1} parent=5 // pred_check
        _
      $region10: #{transformer_global_graph.1} parent=5 // pred_check_branch
        %997 = sbr.rel (%p994) target = $region12
      $region11: #{transformer_global_graph.1} parent=5 // pred_region
        %s998 = ssub.s32 %s114, 1
        // Predicated region
        $region13: #{transformer_global_graph.1} parent=11 // pred_check
          %p999 = pneg %p265
        $region14: #{transformer_global_graph.1} parent=11 // pred_check_branch
          %1001 = sbr.rel (%p999) target = $region16
        $region15: #{transformer_global_graph.1} parent=11 // pred_region
          %s1003 = ssub.s32 256, 256
          %1004 = vsyncadd [#allocation12], %s1003
          %s1005 = sshll.u32 [#allocation11], 4
          %s1006 = int_to_ptr.vmem [resolvable:$true] %s1005
          %1011 = dma.hbm_to_vmem [thread:$0]  %s11, 256, %s1006, [#allocation12], 64, 64, 4
        $region16: #{transformer_global_graph.1} parent=11 // pred_fallthru
          _
        // Predicated region
        $region17: #{transformer_global_graph.1} parent=11 // pred_check
          %p1012 = pneg %p286
        $region18: #{transformer_global_graph.1} parent=11 // pred_check_branch
          %1014 = sbr.rel (%p1012) target = $region20
        $region19: #{transformer_global_graph.1} parent=11 // pred_region
          %s1016 = ssub.s32 256, 256
          %1017 = vsyncadd [#allocation12], %s1016
          %s1018 = sshll.u32 [#allocation13], 4
          %s1019 = int_to_ptr.vmem [resolvable:$true] %s1018
          %1024 = dma.hbm_to_vmem [thread:$0]  %s13, 256, %s1019, [#allocation12], 64, 64, 4
        $region20: #{transformer_global_graph.1} parent=11 // pred_fallthru
          _
        // Predicated region
        $region21: #{transformer_global_graph.1} parent=11 // pred_check
          %p1025 = pneg %p307
        $region22: #{transformer_global_graph.1} parent=11 // pred_check_branch
          %1027 = sbr.rel (%p1025) target = $region24
        $region23: #{transformer_global_graph.1} parent=11 // pred_region
          %s1029 = ssub.s32 6144, 6144
          %1030 = vsyncadd [#allocation15], %s1029
          %s1031 = sshll.u32 [#allocation14], 4
          %s1032 = int_to_ptr.vmem [resolvable:$true] %s1031
          %1037 = dma.hbm_to_vmem [thread:$0]  %s15, 6144, %s1032, [#allocation15], 192, 192, 12
        $region24: #{transformer_global_graph.1} parent=11 // pred_fallthru
          _
        // Predicated region
        $region25: #{transformer_global_graph.1} parent=11 // pred_check
          %p1038 = pneg %p328
        $region26: #{transformer_global_graph.1} parent=11 // pred_check_branch
          %1040 = sbr.rel (%p1038) target = $region28
        $region27: #{transformer_global_graph.1} parent=11 // pred_region
          %s1042 = ssub.s32 96, 96
          %1043 = vsyncadd [#allocation15], %s1042
          %s1044 = sshll.u32 [#allocation16], 4
          %s1045 = int_to_ptr.vmem [resolvable:$true] %s1044
          %1050 = dma.hbm_to_vmem [thread:$0]  %s17, 96, %s1045, [#allocation15], 48, 48, 3
        $region28: #{transformer_global_graph.1} parent=11 // pred_fallthru
          _
        // Predicated region
        $region29: #{transformer_global_graph.1} parent=11 // pred_check
          %p1051 = pneg %p349
        $region30: #{transformer_global_graph.1} parent=11 // pred_check_branch
          %1053 = sbr.rel (%p1051) target = $region32
        $region31: #{transformer_global_graph.1} parent=11 // pred_region
          %s1055 = ssub.s32 2048, 2048
          %1056 = vsyncadd [#allocation18], %s1055
          %s1057 = sshll.u32 [#allocation17], 4
          %s1058 = int_to_ptr.vmem [resolvable:$true] %s1057
          %1063 = dma.hbm_to_vmem [thread:$0]  %s19, 2048, %s1058, [#allocation18], 64, 64, 4
        $region32: #{transformer_global_graph.1} parent=11 // pred_fallthru
          _
        // Predicated region
        $region33: #{transformer_global_graph.1} parent=11 // pred_check
          %p1064 = pneg %p370
        $region34: #{transformer_global_graph.1} parent=11 // pred_check_branch
          %1066 = sbr.rel (%p1064) target = $region36
        $region35: #{transformer_global_graph.1} parent=11 // pred_region
          %s1068 = ssub.s32 32, 32
          %1069 = vsyncadd [#allocation18], %s1068
          %s1070 = sshll.u32 [#allocation19], 4
          %s1071 = int_to_ptr.vmem [resolvable:$true] %s1070
          %1076 = dma.hbm_to_vmem [thread:$0]  %s21, 32, %s1071, [#allocation18], 16, 16, 1
        $region36: #{transformer_global_graph.1} parent=11 // pred_fallthru
          _
        // Predicated region
        $region37: #{transformer_global_graph.1} parent=11 // pred_check
          %p1077 = pneg %p391
        $region38: #{transformer_global_graph.1} parent=11 // pred_check_branch
          %1079 = sbr.rel (%p1077) target = $region40
        $region39: #{transformer_global_graph.1} parent=11 // pred_region
          %s1081 = ssub.s32 2048, 2048
          %1082 = vsyncadd [#allocation21], %s1081
          %s1083 = sshll.u32 [#allocation20], 4
          %s1084 = int_to_ptr.vmem [resolvable:$true] %s1083
          %1089 = dma.hbm_to_vmem [thread:$0]  %s23, 2048, %s1084, [#allocation21], 64, 64, 4
        $region40: #{transformer_global_graph.1} parent=11 // pred_fallthru
          _
        // Predicated region
        $region41: #{transformer_global_graph.1} parent=11 // pred_check
          %p1090 = pneg %p412
        $region42: #{transformer_global_graph.1} parent=11 // pred_check_branch
          %1092 = sbr.rel (%p1090) target = $region44
        $region43: #{transformer_global_graph.1} parent=11 // pred_region
          %s1094 = ssub.s32 32, 32
          %1095 = vsyncadd [#allocation21], %s1094
          %s1096 = sshll.u32 [#allocation22], 4
          %s1097 = int_to_ptr.vmem [resolvable:$true] %s1096
          %1102 = dma.hbm_to_vmem [thread:$0]  %s25, 32, %s1097, [#allocation21], 16, 16, 1
        $region44: #{transformer_global_graph.1} parent=11 // pred_fallthru
          _
        // Predicated region
        $region45: #{transformer_global_graph.1} parent=11 // pred_check
          %p1103 = pneg %p433
        $region46: #{transformer_global_graph.1} parent=11 // pred_check_branch
          %1105 = sbr.rel (%p1103) target = $region48
        $region47: #{transformer_global_graph.1} parent=11 // pred_region
          %s1107 = ssub.s32 2048, 2048
          %1108 = vsyncadd [#allocation24], %s1107
          %s1109 = sshll.u32 [#allocation23], 4
          %s1110 = int_to_ptr.vmem [resolvable:$true] %s1109
          %1115 = dma.hbm_to_vmem [thread:$0]  %s27, 2048, %s1110, [#allocation24], 64, 64, 4
        $region48: #{transformer_global_graph.1} parent=11 // pred_fallthru
          _
        // Predicated region
        $region49: #{transformer_global_graph.1} parent=11 // pred_check
          %p1116 = pneg %p454
        $region50: #{transformer_global_graph.1} parent=11 // pred_check_branch
          %1118 = sbr.rel (%p1116) target = $region52
        $region51: #{transformer_global_graph.1} parent=11 // pred_region
          %s1120 = ssub.s32 32, 32
          %1121 = vsyncadd [#allocation24], %s1120
          %s1122 = sshll.u32 [#allocation25], 4
          %s1123 = int_to_ptr.vmem [resolvable:$true] %s1122
          %1128 = dma.hbm_to_vmem [thread:$0]  %s29, 32, %s1123, [#allocation24], 16, 16, 1
        $region52: #{transformer_global_graph.1} parent=11 // pred_fallthru
          _
        // Predicated region
        $region53: #{transformer_global_graph.1} parent=11 // pred_check
          %p1129 = pneg %p475
        $region54: #{transformer_global_graph.1} parent=11 // pred_check_branch
          %1131 = sbr.rel (%p1129) target = $region56
        $region55: #{transformer_global_graph.1} parent=11 // pred_region
          %s1133 = ssub.s32 32, 32
          %1134 = vsyncadd [#allocation27], %s1133
          %s1135 = sshll.u32 [#allocation26], 4
          %s1136 = int_to_ptr.vmem [resolvable:$true] %s1135
          %1141 = dma.hbm_to_vmem [thread:$0]  %s31, 32, %s1136, [#allocation27], 16, 16, 1
        $region56: #{transformer_global_graph.1} parent=11 // pred_fallthru
          _
        // Predicated region
        $region57: #{transformer_global_graph.1} parent=11 // pred_check
          %p1142 = pneg %p496
        $region58: #{transformer_global_graph.1} parent=11 // pred_check_branch
          %1144 = sbr.rel (%p1142) target = $region60
        $region59: #{transformer_global_graph.1} parent=11 // pred_region
          %s1146 = ssub.s32 32, 32
          %1147 = vsyncadd [#allocation27], %s1146
          %s1148 = sshll.u32 [#allocation28], 4
          %s1149 = int_to_ptr.vmem [resolvable:$true] %s1148
          %1154 = dma.hbm_to_vmem [thread:$0]  %s33, 32, %s1149, [#allocation27], 16, 16, 1
        $region60: #{transformer_global_graph.1} parent=11 // pred_fallthru
          _
        // Predicated region
        $region61: #{transformer_global_graph.1} parent=11 // pred_check
          %p1155 = pneg %p517
        $region62: #{transformer_global_graph.1} parent=11 // pred_check_branch
          %1157 = sbr.rel (%p1155) target = $region64
        $region63: #{transformer_global_graph.1} parent=11 // pred_region
          %s1159 = ssub.s32 32, 32
          %1160 = vsyncadd [#allocation30], %s1159
          %s1161 = sshll.u32 [#allocation29], 4
          %s1162 = int_to_ptr.vmem [resolvable:$true] %s1161
          %1167 = dma.hbm_to_vmem [thread:$0]  %s35, 32, %s1162, [#allocation30], 16, 16, 1
        $region64: #{transformer_global_graph.1} parent=11 // pred_fallthru
          _
        // Predicated region
        $region65: #{transformer_global_graph.1} parent=11 // pred_check
          %p1168 = pneg %p538
        $region66: #{transformer_global_graph.1} parent=11 // pred_check_branch
          %1170 = sbr.rel (%p1168) target = $region68
        $region67: #{transformer_global_graph.1} parent=11 // pred_region
          %s1172 = ssub.s32 32, 32
          %1173 = vsyncadd [#allocation30], %s1172
          %s1174 = sshll.u32 [#allocation31], 4
          %s1175 = int_to_ptr.vmem [resolvable:$true] %s1174
          %1180 = dma.hbm_to_vmem [thread:$0]  %s37, 32, %s1175, [#allocation30], 16, 16, 1
        $region68: #{transformer_global_graph.1} parent=11 // pred_fallthru
          _
        // Predicated region
        $region69: #{transformer_global_graph.1} parent=11 // pred_check
          %p1181 = pneg %p559
        $region70: #{transformer_global_graph.1} parent=11 // pred_check_branch
          %1183 = sbr.rel (%p1181) target = $region72
        $region71: #{transformer_global_graph.1} parent=11 // pred_region
          %s1185 = ssub.s32 6144, 6144
          %1186 = vsyncadd [#allocation33], %s1185
          %s1187 = sshll.u32 [#allocation32], 4
          %s1188 = int_to_ptr.vmem [resolvable:$true] %s1187
          %1193 = dma.hbm_to_vmem [thread:$0]  %s39, 6144, %s1188, [#allocation33], 192, 192, 12
        $region72: #{transformer_global_graph.1} parent=11 // pred_fallthru
          _
        // Predicated region
        $region73: #{transformer_global_graph.1} parent=11 // pred_check
          %p1194 = pneg %p580
        $region74: #{transformer_global_graph.1} parent=11 // pred_check_branch
          %1196 = sbr.rel (%p1194) target = $region76
        $region75: #{transformer_global_graph.1} parent=11 // pred_region
          %s1198 = ssub.s32 96, 96
          %1199 = vsyncadd [#allocation33], %s1198
          %s1200 = sshll.u32 [#allocation34], 4
          %s1201 = int_to_ptr.vmem [resolvable:$true] %s1200
          %1206 = dma.hbm_to_vmem [thread:$0]  %s41, 96, %s1201, [#allocation33], 48, 48, 3
        $region76: #{transformer_global_graph.1} parent=11 // pred_fallthru
          _
        // Predicated region
        $region77: #{transformer_global_graph.1} parent=11 // pred_check
          %p1207 = pneg %p601
        $region78: #{transformer_global_graph.1} parent=11 // pred_check_branch
          %1209 = sbr.rel (%p1207) target = $region80
        $region79: #{transformer_global_graph.1} parent=11 // pred_region
          %s1211 = ssub.s32 2048, 2048
          %1212 = vsyncadd [#allocation36], %s1211
          %s1213 = sshll.u32 [#allocation35], 4
          %s1214 = int_to_ptr.vmem [resolvable:$true] %s1213
          %1219 = dma.hbm_to_vmem [thread:$0]  %s43, 2048, %s1214, [#allocation36], 64, 64, 4
        $region80: #{transformer_global_graph.1} parent=11 // pred_fallthru
          _
        // Predicated region
        $region81: #{transformer_global_graph.1} parent=11 // pred_check
          %p1220 = pneg %p622
        $region82: #{transformer_global_graph.1} parent=11 // pred_check_branch
          %1222 = sbr.rel (%p1220) target = $region84
        $region83: #{transformer_global_graph.1} parent=11 // pred_region
          %s1224 = ssub.s32 32, 32
          %1225 = vsyncadd [#allocation36], %s1224
          %s1226 = sshll.u32 [#allocation37], 4
          %s1227 = int_to_ptr.vmem [resolvable:$true] %s1226
          %1232 = dma.hbm_to_vmem [thread:$0]  %s45, 32, %s1227, [#allocation36], 16, 16, 1
        $region84: #{transformer_global_graph.1} parent=11 // pred_fallthru
          _
        // Predicated region
        $region85: #{transformer_global_graph.1} parent=11 // pred_check
          %p1233 = pneg %p643
        $region86: #{transformer_global_graph.1} parent=11 // pred_check_branch
          %1235 = sbr.rel (%p1233) target = $region88
        $region87: #{transformer_global_graph.1} parent=11 // pred_region
          %s1237 = ssub.s32 2048, 2048
          %1238 = vsyncadd [#allocation39], %s1237
          %s1239 = sshll.u32 [#allocation38], 4
          %s1240 = int_to_ptr.vmem [resolvable:$true] %s1239
          %1245 = dma.hbm_to_vmem [thread:$0]  %s47, 2048, %s1240, [#allocation39], 64, 64, 4
        $region88: #{transformer_global_graph.1} parent=11 // pred_fallthru
          _
        // Predicated region
        $region89: #{transformer_global_graph.1} parent=11 // pred_check
          %p1246 = pneg %p664
        $region90: #{transformer_global_graph.1} parent=11 // pred_check_branch
          %1248 = sbr.rel (%p1246) target = $region92
        $region91: #{transformer_global_graph.1} parent=11 // pred_region
          %s1250 = ssub.s32 32, 32
          %1251 = vsyncadd [#allocation39], %s1250
          %s1252 = sshll.u32 [#allocation40], 4
          %s1253 = int_to_ptr.vmem [resolvable:$true] %s1252
          %1258 = dma.hbm_to_vmem [thread:$0]  %s49, 32, %s1253, [#allocation39], 16, 16, 1
        $region92: #{transformer_global_graph.1} parent=11 // pred_fallthru
          _
        // Predicated region
        $region93: #{transformer_global_graph.1} parent=11 // pred_check
          %p1259 = pneg %p685
        $region94: #{transformer_global_graph.1} parent=11 // pred_check_branch
          %1261 = sbr.rel (%p1259) target = $region96
        $region95: #{transformer_global_graph.1} parent=11 // pred_region
          %s1263 = ssub.s32 4096, 4096
          %1264 = vsyncadd [#allocation42], %s1263
          %s1265 = sshll.u32 [#allocation41], 4
          %s1266 = int_to_ptr.vmem [resolvable:$true] %s1265
          %1271 = dma.hbm_to_vmem [thread:$0]  %s51, 4096, %s1266, [#allocation42], 128, 128, 8
        $region96: #{transformer_global_graph.1} parent=11 // pred_fallthru
          _
        // Predicated region
        $region97: #{transformer_global_graph.1} parent=11 // pred_check
          %p1272 = pneg %p706
        $region98: #{transformer_global_graph.1} parent=11 // pred_check_branch
          %1274 = sbr.rel (%p1272) target = $region100
        $region99: #{transformer_global_graph.1} parent=11 // pred_region
          %s1276 = ssub.s32 64, 64
          %1277 = vsyncadd [#allocation42], %s1276
          %s1278 = sshll.u32 [#allocation43], 4
          %s1279 = int_to_ptr.vmem [resolvable:$true] %s1278
          %1284 = dma.hbm_to_vmem [thread:$0]  %s53, 64, %s1279, [#allocation42], 32, 32, 2
        $region100: #{transformer_global_graph.1} parent=11 // pred_fallthru
          _
        // Predicated region
        $region101: #{transformer_global_graph.1} parent=11 // pred_check
          %p1285 = pneg %p727
        $region102: #{transformer_global_graph.1} parent=11 // pred_check_branch
          %1287 = sbr.rel (%p1285) target = $region104
        $region103: #{transformer_global_graph.1} parent=11 // pred_region
          %s1289 = ssub.s32 2048, 2048
          %1290 = vsyncadd [#allocation45], %s1289
          %s1291 = sshll.u32 [#allocation44], 4
          %s1292 = int_to_ptr.vmem [resolvable:$true] %s1291
          %1297 = dma.hbm_to_vmem [thread:$0]  %s55, 2048, %s1292, [#allocation45], 64, 64, 4
        $region104: #{transformer_global_graph.1} parent=11 // pred_fallthru
          _
        // Predicated region
        $region105: #{transformer_global_graph.1} parent=11 // pred_check
          %p1298 = pneg %p748
        $region106: #{transformer_global_graph.1} parent=11 // pred_check_branch
          %1300 = sbr.rel (%p1298) target = $region108
        $region107: #{transformer_global_graph.1} parent=11 // pred_region
          %s1302 = ssub.s32 32, 32
          %1303 = vsyncadd [#allocation45], %s1302
          %s1304 = sshll.u32 [#allocation46], 4
          %s1305 = int_to_ptr.vmem [resolvable:$true] %s1304
          %1310 = dma.hbm_to_vmem [thread:$0]  %s57, 32, %s1305, [#allocation45], 16, 16, 1
        $region108: #{transformer_global_graph.1} parent=11 // pred_fallthru
          _
        // Predicated region
        $region109: #{transformer_global_graph.1} parent=11 // pred_check
          %p1311 = pneg %p769
        $region110: #{transformer_global_graph.1} parent=11 // pred_check_branch
          %1313 = sbr.rel (%p1311) target = $region112
        $region111: #{transformer_global_graph.1} parent=11 // pred_region
          %s1315 = ssub.s32 2048, 2048
          %1316 = vsyncadd [#allocation48], %s1315
          %s1317 = sshll.u32 [#allocation47], 4
          %s1318 = int_to_ptr.vmem [resolvable:$true] %s1317
          %1323 = dma.hbm_to_vmem [thread:$0]  %s59, 2048, %s1318, [#allocation48], 64, 64, 4
        $region112: #{transformer_global_graph.1} parent=11 // pred_fallthru
          _
        // Predicated region
        $region113: #{transformer_global_graph.1} parent=11 // pred_check
          %p1324 = pneg %p790
        $region114: #{transformer_global_graph.1} parent=11 // pred_check_branch
          %1326 = sbr.rel (%p1324) target = $region116
        $region115: #{transformer_global_graph.1} parent=11 // pred_region
          %s1328 = ssub.s32 32, 32
          %1329 = vsyncadd [#allocation48], %s1328
          %s1330 = sshll.u32 [#allocation49], 4
          %s1331 = int_to_ptr.vmem [resolvable:$true] %s1330
          %1336 = dma.hbm_to_vmem [thread:$0]  %s61, 32, %s1331, [#allocation48], 16, 16, 1
        $region116: #{transformer_global_graph.1} parent=11 // pred_fallthru
          _
        // Predicated region
        $region117: #{transformer_global_graph.1} parent=11 // pred_check
          %p1337 = pneg %p811
        $region118: #{transformer_global_graph.1} parent=11 // pred_check_branch
          %1339 = sbr.rel (%p1337) target = $region120
        $region119: #{transformer_global_graph.1} parent=11 // pred_region
          %s1341 = ssub.s32 2048, 2048
          %1342 = vsyncadd [#allocation51], %s1341
          %s1343 = sshll.u32 [#allocation50], 4
          %s1344 = int_to_ptr.vmem [resolvable:$true] %s1343
          %1349 = dma.hbm_to_vmem [thread:$0]  %s63, 2048, %s1344, [#allocation51], 64, 64, 4
        $region120: #{transformer_global_graph.1} parent=11 // pred_fallthru
          _
        // Predicated region
        $region121: #{transformer_global_graph.1} parent=11 // pred_check
          %p1350 = pneg %p832
        $region122: #{transformer_global_graph.1} parent=11 // pred_check_branch
          %1352 = sbr.rel (%p1350) target = $region124
        $region123: #{transformer_global_graph.1} parent=11 // pred_region
          %s1354 = ssub.s32 32, 32
          %1355 = vsyncadd [#allocation51], %s1354
          %s1356 = sshll.u32 [#allocation52], 4
          %s1357 = int_to_ptr.vmem [resolvable:$true] %s1356
          %1362 = dma.hbm_to_vmem [thread:$0]  %s65, 32, %s1357, [#allocation51], 16, 16, 1
        $region124: #{transformer_global_graph.1} parent=11 // pred_fallthru
          _
        // Predicated region
        $region125: #{transformer_global_graph.1} parent=11 // pred_check
          %p1363 = pneg %p853
        $region126: #{transformer_global_graph.1} parent=11 // pred_check_branch
          %1365 = sbr.rel (%p1363) target = $region128
        $region127: #{transformer_global_graph.1} parent=11 // pred_region
          %s1367 = ssub.s32 32, 32
          %1368 = vsyncadd [#allocation54], %s1367
          %s1369 = sshll.u32 [#allocation53], 4
          %s1370 = int_to_ptr.vmem [resolvable:$true] %s1369
          %1375 = dma.hbm_to_vmem [thread:$0]  %s67, 32, %s1370, [#allocation54], 16, 16, 1
        $region128: #{transformer_global_graph.1} parent=11 // pred_fallthru
          _
        // Predicated region
        $region129: #{transformer_global_graph.1} parent=11 // pred_check
          %p1376 = pneg %p874
        $region130: #{transformer_global_graph.1} parent=11 // pred_check_branch
          %1378 = sbr.rel (%p1376) target = $region132
        $region131: #{transformer_global_graph.1} parent=11 // pred_region
          %s1380 = ssub.s32 32, 32
          %1381 = vsyncadd [#allocation54], %s1380
          %s1382 = sshll.u32 [#allocation55], 4
          %s1383 = int_to_ptr.vmem [resolvable:$true] %s1382
          %1388 = dma.hbm_to_vmem [thread:$0]  %s69, 32, %s1383, [#allocation54], 16, 16, 1
        $region132: #{transformer_global_graph.1} parent=11 // pred_fallthru
          _
        // Predicated region
        $region133: #{transformer_global_graph.1} parent=11 // pred_check
          %p1389 = pneg %p895
        $region134: #{transformer_global_graph.1} parent=11 // pred_check_branch
          %1391 = sbr.rel (%p1389) target = $region136
        $region135: #{transformer_global_graph.1} parent=11 // pred_region
          %s1393 = ssub.s32 32, 32
          %1394 = vsyncadd [#allocation57], %s1393
          %s1395 = sshll.u32 [#allocation56], 4
          %s1396 = int_to_ptr.vmem [resolvable:$true] %s1395
          %1401 = dma.hbm_to_vmem [thread:$0]  %s71, 32, %s1396, [#allocation57], 16, 16, 1
        $region136: #{transformer_global_graph.1} parent=11 // pred_fallthru
          _
        // Predicated region
        $region137: #{transformer_global_graph.1} parent=11 // pred_check
          %p1402 = pneg %p916
        $region138: #{transformer_global_graph.1} parent=11 // pred_check_branch
          %1404 = sbr.rel (%p1402) target = $region140
        $region139: #{transformer_global_graph.1} parent=11 // pred_region
          %s1406 = ssub.s32 32, 32
          %1407 = vsyncadd [#allocation57], %s1406
          %s1408 = sshll.u32 [#allocation58], 4
          %s1409 = int_to_ptr.vmem [resolvable:$true] %s1408
          %1414 = dma.hbm_to_vmem [thread:$0]  %s73, 32, %s1409, [#allocation57], 16, 16, 1
        $region140: #{transformer_global_graph.1} parent=11 // pred_fallthru
          _
        // Predicated region
        $region141: #{transformer_global_graph.1} parent=11 // pred_check
          %p1415 = pneg %p937
        $region142: #{transformer_global_graph.1} parent=11 // pred_check_branch
          %1417 = sbr.rel (%p1415) target = $region144
        $region143: #{transformer_global_graph.1} parent=11 // pred_region
          %s1419 = ssub.s32 32, 32
          %1420 = vsyncadd [#allocation60], %s1419
          %s1421 = sshll.u32 [#allocation59], 4
          %s1422 = int_to_ptr.vmem [resolvable:$true] %s1421
          %1427 = dma.hbm_to_vmem [thread:$0]  %s75, 32, %s1422, [#allocation60], 16, 16, 1
        $region144: #{transformer_global_graph.1} parent=11 // pred_fallthru
          _
        // Predicated region
        $region145: #{transformer_global_graph.1} parent=11 // pred_check
          %p1428 = pneg %p958
        $region146: #{transformer_global_graph.1} parent=11 // pred_check_branch
          %1430 = sbr.rel (%p1428) target = $region148
        $region147: #{transformer_global_graph.1} parent=11 // pred_region
          %s1432 = ssub.s32 32, 32
          %1433 = vsyncadd [#allocation60], %s1432
          %s1434 = sshll.u32 [#allocation61], 4
          %s1435 = int_to_ptr.vmem [resolvable:$true] %s1434
          %1440 = dma.hbm_to_vmem [thread:$0]  %s77, 32, %s1435, [#allocation60], 16, 16, 1
        $region148: #{transformer_global_graph.1} parent=11 // pred_fallthru
          _
      $region12: #{transformer_global_graph.1} parent=5 // pred_fallthru
        _
      %p1441 = scmp.lt.s32.totalorder %s114, 2
      // Predicated region
      $region149: #{transformer_global_graph.1} parent=5 // pred_check
        %p1442 = pneg %p1441
      $region150: #{transformer_global_graph.1} parent=5 // pred_check_branch
        %1444 = sbr.rel (%p1442) target = $region152
      $region151: #{transformer_global_graph.1} parent=5 // pred_region
        // Predicated region
        $region153: #{transformer_global_graph.1} parent=151 // pred_check
          %p1445 = pneg %p134
        $region154: #{transformer_global_graph.1} parent=151 // pred_check_branch
          %1447 = sbr.rel (%p1445) target = $region156
        $region155: #{transformer_global_graph.1} parent=151 // pred_region
          %s1448 = sand.u32 %s124, 1
          %s1449 = scalar_lea.sflag [#allocation3], %s1448
          %s1450 = sand.u32 %s124, 1
          %s1451 = smul.addr %s1450, 8
          %s1452 = scalar_lea.vmem [#allocation2], %s1451
          %s1454 = ssub.s32 128, 128
          %1455 = vsyncadd %s1449, %s1454
          %s1456 = smul.addr %s114, 128
          %s1457 = scalar_lea.hbm %s1, %s1456
          %s1459 = sshll.u32 %s1452, 4
          %s1460 = int_to_ptr.vmem [resolvable:$true] %s1459
          %1462 = dma.hbm_to_vmem [thread:$0]  %s1457, 128, %s1460, %s1449
        $region156: #{transformer_global_graph.1} parent=151 // pred_fallthru
          _
        // Predicated region
        $region157: #{transformer_global_graph.1} parent=151 // pred_check
          %p1463 = pneg %p160
        $region158: #{transformer_global_graph.1} parent=151 // pred_check_branch
          %1465 = sbr.rel (%p1463) target = $region160
        $region159: #{transformer_global_graph.1} parent=151 // pred_region
          %s1466 = sand.u32 %s114, 1
          %s1467 = scalar_lea.sflag [#allocation6], %s1466
          %s1468 = sand.u32 %s150, 1
          %s1469 = smul.addr %s1468, 8
          %s1470 = scalar_lea.vmem [#allocation5], %s1469
          %s1472 = ssub.s32 128, 128
          %1473 = vsyncadd %s1467, %s1472
          %s1474 = smul.addr %s114, 128
          %s1475 = scalar_lea.hbm %s3, %s1474
          %s1477 = sshll.u32 %s1470, 4
          %s1478 = int_to_ptr.vmem [resolvable:$true] %s1477
          %1480 = dma.hbm_to_vmem [thread:$0]  %s1475, 128, %s1478, %s1467
        $region160: #{transformer_global_graph.1} parent=151 // pred_fallthru
          _
        // Predicated region
        $region161: #{transformer_global_graph.1} parent=151 // pred_check
          %p1481 = pneg %p186
        $region162: #{transformer_global_graph.1} parent=151 // pred_check_branch
          %1483 = sbr.rel (%p1481) target = $region164
        $region163: #{transformer_global_graph.1} parent=151 // pred_region
          %s1484 = sand.u32 %s114, 1
          %s1485 = scalar_lea.sflag [#allocation6], %s1484
          %s1486 = sand.u32 %s176, 1
          %s1487 = smul.addr %s1486, 8
          %s1488 = scalar_lea.vmem [#allocation7], %s1487
          %s1490 = ssub.s32 128, 128
          %1491 = vsyncadd %s1485, %s1490
          %s1492 = smul.addr %s114, 128
          %s1493 = scalar_lea.hbm %s5, %s1492
          %s1495 = sshll.u32 %s1488, 4
          %s1496 = int_to_ptr.vmem [resolvable:$true] %s1495
          %1498 = dma.hbm_to_vmem [thread:$0]  %s1493, 128, %s1496, %s1485
        $region164: #{transformer_global_graph.1} parent=151 // pred_fallthru
          _
        // Predicated region
        $region165: #{transformer_global_graph.1} parent=151 // pred_check
          %p1499 = pneg %p212
        $region166: #{transformer_global_graph.1} parent=151 // pred_check_branch
          %1501 = sbr.rel (%p1499) target = $region168
        $region167: #{transformer_global_graph.1} parent=151 // pred_region
          %s1502 = sand.u32 %s114, 1
          %s1503 = scalar_lea.sflag [#allocation9], %s1502
          %s1504 = sand.u32 %s202, 1
          %s1505 = scalar_lea.vmem [#allocation8], %s1504
          %s1507 = ssub.s32 16, 16
          %1508 = vsyncadd %s1503, %s1507
          %s1509 = smul.addr %s114, 16
          %s1510 = scalar_lea.hbm %s7, %s1509
          %s1512 = sshll.u32 %s1505, 4
          %s1513 = int_to_ptr.vmem [resolvable:$true] %s1512
          %1515 = dma.hbm_to_vmem [thread:$0]  %s1510, 16, %s1513, %s1503
        $region168: #{transformer_global_graph.1} parent=151 // pred_fallthru
          _
        // Predicated region
        $region169: #{transformer_global_graph.1} parent=151 // pred_check
          %p1516 = pneg %p238
        $region170: #{transformer_global_graph.1} parent=151 // pred_check_branch
          %1518 = sbr.rel (%p1516) target = $region172
        $region171: #{transformer_global_graph.1} parent=151 // pred_region
          %s1519 = sand.u32 %s114, 1
          %s1520 = scalar_lea.sflag [#allocation9], %s1519
          %s1521 = sand.u32 %s228, 1
          %s1522 = scalar_lea.vmem [#allocation10], %s1521
          %s1524 = ssub.s32 16, 16
          %1525 = vsyncadd %s1520, %s1524
          %s1526 = smul.addr %s114, 16
          %s1527 = scalar_lea.hbm %s9, %s1526
          %s1529 = sshll.u32 %s1522, 4
          %s1530 = int_to_ptr.vmem [resolvable:$true] %s1529
          %1532 = dma.hbm_to_vmem [thread:$0]  %s1527, 16, %s1530, %s1520
        $region172: #{transformer_global_graph.1} parent=151 // pred_fallthru
          _
      $region152: #{transformer_global_graph.1} parent=5 // pred_fallthru
        _
      %p1533 = scmp.le.s32.totalorder 1, %s114
      %p1534 = scmp.lt.s32.totalorder %s114, 3
      %p1535 = pnand %p1533, %p1534
      %p1536 = pneg %p1535
      // Predicated region
      $region173: #{transformer_global_graph.1} parent=5 // pred_check
        _
      $region174: #{transformer_global_graph.1} parent=5 // pred_check_branch
        %1538 = sbr.rel (%p1535) target = $region176
      $region175: #{transformer_global_graph.1} parent=5 // pred_region
        %s1539 = ssub.s32 %s114, 1
        %s1540 = sand.u32 %s127, 1
        %s1541 = scalar_lea.sflag [#allocation3], %s1540
        %s1542 = sand.u32 %s127, 1
        %s1543 = smul.addr %s1542, 8
        %s1544 = scalar_lea.vmem [#allocation2], %s1543
        // Predicated region
        $region177: #{transformer_global_graph.1} parent=175 // pred_check
          %p1545 = pneg %p140
        $region178: #{transformer_global_graph.1} parent=175 // pred_check_branch
          %1547 = sbr.rel (%p1545) target = $region180
        $region179: #{transformer_global_graph.1} parent=175 // pred_region
          %1548 = dma.done %s1541, 128
        $region180: #{transformer_global_graph.1} parent=175 // pred_fallthru
          _
        %s1549 = sand.u32 %s119, 1
        %s1550 = scalar_lea.sflag [#allocation6], %s1549
        %s1551 = sand.u32 %s153, 1
        %s1552 = smul.addr %s1551, 8
        %s1553 = scalar_lea.vmem [#allocation5], %s1552
        // Predicated region
        $region181: #{transformer_global_graph.1} parent=175 // pred_check
          %p1554 = pneg %p166
        $region182: #{transformer_global_graph.1} parent=175 // pred_check_branch
          %1556 = sbr.rel (%p1554) target = $region184
        $region183: #{transformer_global_graph.1} parent=175 // pred_region
          %1557 = dma.done %s1550, 128
        $region184: #{transformer_global_graph.1} parent=175 // pred_fallthru
          _
        %s1558 = sand.u32 %s119, 1
        %s1559 = scalar_lea.sflag [#allocation6], %s1558
        %s1560 = sand.u32 %s179, 1
        %s1561 = smul.addr %s1560, 8
        %s1562 = scalar_lea.vmem [#allocation7], %s1561
        // Predicated region
        $region185: #{transformer_global_graph.1} parent=175 // pred_check
          %p1563 = pneg %p192
        $region186: #{transformer_global_graph.1} parent=175 // pred_check_branch
          %1565 = sbr.rel (%p1563) target = $region188
        $region187: #{transformer_global_graph.1} parent=175 // pred_region
          %1566 = dma.done %s1559, 128
        $region188: #{transformer_global_graph.1} parent=175 // pred_fallthru
          _
        %s1567 = sand.u32 %s119, 1
        %s1568 = scalar_lea.sflag [#allocation9], %s1567
        %s1569 = sand.u32 %s205, 1
        %s1570 = scalar_lea.vmem [#allocation8], %s1569
        // Predicated region
        $region189: #{transformer_global_graph.1} parent=175 // pred_check
          %p1571 = pneg %p218
        $region190: #{transformer_global_graph.1} parent=175 // pred_check_branch
          %1573 = sbr.rel (%p1571) target = $region192
        $region191: #{transformer_global_graph.1} parent=175 // pred_region
          %1574 = dma.done %s1568, 16
        $region192: #{transformer_global_graph.1} parent=175 // pred_fallthru
          _
        %s1575 = sand.u32 %s119, 1
        %s1576 = scalar_lea.sflag [#allocation9], %s1575
        %s1577 = sand.u32 %s231, 1
        %s1578 = scalar_lea.vmem [#allocation10], %s1577
        // Predicated region
        $region193: #{transformer_global_graph.1} parent=175 // pred_check
          %p1579 = pneg %p244
        $region194: #{transformer_global_graph.1} parent=175 // pred_check_branch
          %1581 = sbr.rel (%p1579) target = $region196
        $region195: #{transformer_global_graph.1} parent=175 // pred_region
          %1582 = dma.done %s1576, 16
        $region196: #{transformer_global_graph.1} parent=175 // pred_fallthru
          _
        // Predicated region
        $region197: #{transformer_global_graph.1} parent=175 // pred_check
          %p1583 = pneg %p265
        $region198: #{transformer_global_graph.1} parent=175 // pred_check_branch
          %1585 = sbr.rel (%p1583) target = $region200
        $region199: #{transformer_global_graph.1} parent=175 // pred_region
          %1586 = dma.done [#allocation12], 256
        $region200: #{transformer_global_graph.1} parent=175 // pred_fallthru
          _
        // Predicated region
        $region201: #{transformer_global_graph.1} parent=175 // pred_check
          %p1587 = pneg %p286
        $region202: #{transformer_global_graph.1} parent=175 // pred_check_branch
          %1589 = sbr.rel (%p1587) target = $region204
        $region203: #{transformer_global_graph.1} parent=175 // pred_region
          %1590 = dma.done [#allocation12], 256
        $region204: #{transformer_global_graph.1} parent=175 // pred_fallthru
          _
        // Predicated region
        $region205: #{transformer_global_graph.1} parent=175 // pred_check
          %p1591 = pneg %p307
        $region206: #{transformer_global_graph.1} parent=175 // pred_check_branch
          %1593 = sbr.rel (%p1591) target = $region208
        $region207: #{transformer_global_graph.1} parent=175 // pred_region
          %1594 = dma.done [#allocation15], 6144
        $region208: #{transformer_global_graph.1} parent=175 // pred_fallthru
          _
        // Predicated region
        $region209: #{transformer_global_graph.1} parent=175 // pred_check
          %p1595 = pneg %p328
        $region210: #{transformer_global_graph.1} parent=175 // pred_check_branch
          %1597 = sbr.rel (%p1595) target = $region212
        $region211: #{transformer_global_graph.1} parent=175 // pred_region
          %1598 = dma.done [#allocation15], 96
        $region212: #{transformer_global_graph.1} parent=175 // pred_fallthru
          _
        // Predicated region
        $region213: #{transformer_global_graph.1} parent=175 // pred_check
          %p1599 = pneg %p349
        $region214: #{transformer_global_graph.1} parent=175 // pred_check_branch
          %1601 = sbr.rel (%p1599) target = $region216
        $region215: #{transformer_global_graph.1} parent=175 // pred_region
          %1602 = dma.done [#allocation18], 2048
        $region216: #{transformer_global_graph.1} parent=175 // pred_fallthru
          _
        // Predicated region
        $region217: #{transformer_global_graph.1} parent=175 // pred_check
          %p1603 = pneg %p370
        $region218: #{transformer_global_graph.1} parent=175 // pred_check_branch
          %1605 = sbr.rel (%p1603) target = $region220
        $region219: #{transformer_global_graph.1} parent=175 // pred_region
          %1606 = dma.done [#allocation18], 32
        $region220: #{transformer_global_graph.1} parent=175 // pred_fallthru
          _
        // Predicated region
        $region221: #{transformer_global_graph.1} parent=175 // pred_check
          %p1607 = pneg %p391
        $region222: #{transformer_global_graph.1} parent=175 // pred_check_branch
          %1609 = sbr.rel (%p1607) target = $region224
        $region223: #{transformer_global_graph.1} parent=175 // pred_region
          %1610 = dma.done [#allocation21], 2048
        $region224: #{transformer_global_graph.1} parent=175 // pred_fallthru
          _
        // Predicated region
        $region225: #{transformer_global_graph.1} parent=175 // pred_check
          %p1611 = pneg %p412
        $region226: #{transformer_global_graph.1} parent=175 // pred_check_branch
          %1613 = sbr.rel (%p1611) target = $region228
        $region227: #{transformer_global_graph.1} parent=175 // pred_region
          %1614 = dma.done [#allocation21], 32
        $region228: #{transformer_global_graph.1} parent=175 // pred_fallthru
          _
        // Predicated region
        $region229: #{transformer_global_graph.1} parent=175 // pred_check
          %p1615 = pneg %p433
        $region230: #{transformer_global_graph.1} parent=175 // pred_check_branch
          %1617 = sbr.rel (%p1615) target = $region232
        $region231: #{transformer_global_graph.1} parent=175 // pred_region
          %1618 = dma.done [#allocation24], 2048
        $region232: #{transformer_global_graph.1} parent=175 // pred_fallthru
          _
        // Predicated region
        $region233: #{transformer_global_graph.1} parent=175 // pred_check
          %p1619 = pneg %p454
        $region234: #{transformer_global_graph.1} parent=175 // pred_check_branch
          %1621 = sbr.rel (%p1619) target = $region236
        $region235: #{transformer_global_graph.1} parent=175 // pred_region
          %1622 = dma.done [#allocation24], 32
        $region236: #{transformer_global_graph.1} parent=175 // pred_fallthru
          _
        // Predicated region
        $region237: #{transformer_global_graph.1} parent=175 // pred_check
          %p1623 = pneg %p475
        $region238: #{transformer_global_graph.1} parent=175 // pred_check_branch
          %1625 = sbr.rel (%p1623) target = $region240
        $region239: #{transformer_global_graph.1} parent=175 // pred_region
          %1626 = dma.done [#allocation27], 32
        $region240: #{transformer_global_graph.1} parent=175 // pred_fallthru
          _
        // Predicated region
        $region241: #{transformer_global_graph.1} parent=175 // pred_check
          %p1627 = pneg %p496
        $region242: #{transformer_global_graph.1} parent=175 // pred_check_branch
          %1629 = sbr.rel (%p1627) target = $region244
        $region243: #{transformer_global_graph.1} parent=175 // pred_region
          %1630 = dma.done [#allocation27], 32
        $region244: #{transformer_global_graph.1} parent=175 // pred_fallthru
          _
        // Predicated region
        $region245: #{transformer_global_graph.1} parent=175 // pred_check
          %p1631 = pneg %p517
        $region246: #{transformer_global_graph.1} parent=175 // pred_check_branch
          %1633 = sbr.rel (%p1631) target = $region248
        $region247: #{transformer_global_graph.1} parent=175 // pred_region
          %1634 = dma.done [#allocation30], 32
        $region248: #{transformer_global_graph.1} parent=175 // pred_fallthru
          _
        // Predicated region
        $region249: #{transformer_global_graph.1} parent=175 // pred_check
          %p1635 = pneg %p538
        $region250: #{transformer_global_graph.1} parent=175 // pred_check_branch
          %1637 = sbr.rel (%p1635) target = $region252
        $region251: #{transformer_global_graph.1} parent=175 // pred_region
          %1638 = dma.done [#allocation30], 32
        $region252: #{transformer_global_graph.1} parent=175 // pred_fallthru
          _
        // Predicated region
        $region253: #{transformer_global_graph.1} parent=175 // pred_check
          %p1639 = pneg %p559
        $region254: #{transformer_global_graph.1} parent=175 // pred_check_branch
          %1641 = sbr.rel (%p1639) target = $region256
        $region255: #{transformer_global_graph.1} parent=175 // pred_region
          %1642 = dma.done [#allocation33], 6144
        $region256: #{transformer_global_graph.1} parent=175 // pred_fallthru
          _
        // Predicated region
        $region257: #{transformer_global_graph.1} parent=175 // pred_check
          %p1643 = pneg %p580
        $region258: #{transformer_global_graph.1} parent=175 // pred_check_branch
          %1645 = sbr.rel (%p1643) target = $region260
        $region259: #{transformer_global_graph.1} parent=175 // pred_region
          %1646 = dma.done [#allocation33], 96
        $region260: #{transformer_global_graph.1} parent=175 // pred_fallthru
          _
        // Predicated region
        $region261: #{transformer_global_graph.1} parent=175 // pred_check
          %p1647 = pneg %p601
        $region262: #{transformer_global_graph.1} parent=175 // pred_check_branch
          %1649 = sbr.rel (%p1647) target = $region264
        $region263: #{transformer_global_graph.1} parent=175 // pred_region
          %1650 = dma.done [#allocation36], 2048
        $region264: #{transformer_global_graph.1} parent=175 // pred_fallthru
          _
        // Predicated region
        $region265: #{transformer_global_graph.1} parent=175 // pred_check
          %p1651 = pneg %p622
        $region266: #{transformer_global_graph.1} parent=175 // pred_check_branch
          %1653 = sbr.rel (%p1651) target = $region268
        $region267: #{transformer_global_graph.1} parent=175 // pred_region
          %1654 = dma.done [#allocation36], 32
        $region268: #{transformer_global_graph.1} parent=175 // pred_fallthru
          _
        // Predicated region
        $region269: #{transformer_global_graph.1} parent=175 // pred_check
          %p1655 = pneg %p643
        $region270: #{transformer_global_graph.1} parent=175 // pred_check_branch
          %1657 = sbr.rel (%p1655) target = $region272
        $region271: #{transformer_global_graph.1} parent=175 // pred_region
          %1658 = dma.done [#allocation39], 2048
        $region272: #{transformer_global_graph.1} parent=175 // pred_fallthru
          _
        // Predicated region
        $region273: #{transformer_global_graph.1} parent=175 // pred_check
          %p1659 = pneg %p664
        $region274: #{transformer_global_graph.1} parent=175 // pred_check_branch
          %1661 = sbr.rel (%p1659) target = $region276
        $region275: #{transformer_global_graph.1} parent=175 // pred_region
          %1662 = dma.done [#allocation39], 32
        $region276: #{transformer_global_graph.1} parent=175 // pred_fallthru
          _
        // Predicated region
        $region277: #{transformer_global_graph.1} parent=175 // pred_check
          %p1663 = pneg %p685
        $region278: #{transformer_global_graph.1} parent=175 // pred_check_branch
          %1665 = sbr.rel (%p1663) target = $region280
        $region279: #{transformer_global_graph.1} parent=175 // pred_region
          %1666 = dma.done [#allocation42], 4096
        $region280: #{transformer_global_graph.1} parent=175 // pred_fallthru
          _
        // Predicated region
        $region281: #{transformer_global_graph.1} parent=175 // pred_check
          %p1667 = pneg %p706
        $region282: #{transformer_global_graph.1} parent=175 // pred_check_branch
          %1669 = sbr.rel (%p1667) target = $region284
        $region283: #{transformer_global_graph.1} parent=175 // pred_region
          %1670 = dma.done [#allocation42], 64
        $region284: #{transformer_global_graph.1} parent=175 // pred_fallthru
          _
        // Predicated region
        $region285: #{transformer_global_graph.1} parent=175 // pred_check
          %p1671 = pneg %p727
        $region286: #{transformer_global_graph.1} parent=175 // pred_check_branch
          %1673 = sbr.rel (%p1671) target = $region288
        $region287: #{transformer_global_graph.1} parent=175 // pred_region
          %1674 = dma.done [#allocation45], 2048
        $region288: #{transformer_global_graph.1} parent=175 // pred_fallthru
          _
        // Predicated region
        $region289: #{transformer_global_graph.1} parent=175 // pred_check
          %p1675 = pneg %p748
        $region290: #{transformer_global_graph.1} parent=175 // pred_check_branch
          %1677 = sbr.rel (%p1675) target = $region292
        $region291: #{transformer_global_graph.1} parent=175 // pred_region
          %1678 = dma.done [#allocation45], 32
        $region292: #{transformer_global_graph.1} parent=175 // pred_fallthru
          _
        // Predicated region
        $region293: #{transformer_global_graph.1} parent=175 // pred_check
          %p1679 = pneg %p769
        $region294: #{transformer_global_graph.1} parent=175 // pred_check_branch
          %1681 = sbr.rel (%p1679) target = $region296
        $region295: #{transformer_global_graph.1} parent=175 // pred_region
          %1682 = dma.done [#allocation48], 2048
        $region296: #{transformer_global_graph.1} parent=175 // pred_fallthru
          _
        // Predicated region
        $region297: #{transformer_global_graph.1} parent=175 // pred_check
          %p1683 = pneg %p790
        $region298: #{transformer_global_graph.1} parent=175 // pred_check_branch
          %1685 = sbr.rel (%p1683) target = $region300
        $region299: #{transformer_global_graph.1} parent=175 // pred_region
          %1686 = dma.done [#allocation48], 32
        $region300: #{transformer_global_graph.1} parent=175 // pred_fallthru
          _
        // Predicated region
        $region301: #{transformer_global_graph.1} parent=175 // pred_check
          %p1687 = pneg %p811
        $region302: #{transformer_global_graph.1} parent=175 // pred_check_branch
          %1689 = sbr.rel (%p1687) target = $region304
        $region303: #{transformer_global_graph.1} parent=175 // pred_region
          %1690 = dma.done [#allocation51], 2048
        $region304: #{transformer_global_graph.1} parent=175 // pred_fallthru
          _
        // Predicated region
        $region305: #{transformer_global_graph.1} parent=175 // pred_check
          %p1691 = pneg %p832
        $region306: #{transformer_global_graph.1} parent=175 // pred_check_branch
          %1693 = sbr.rel (%p1691) target = $region308
        $region307: #{transformer_global_graph.1} parent=175 // pred_region
          %1694 = dma.done [#allocation51], 32
        $region308: #{transformer_global_graph.1} parent=175 // pred_fallthru
          _
        // Predicated region
        $region309: #{transformer_global_graph.1} parent=175 // pred_check
          %p1695 = pneg %p853
        $region310: #{transformer_global_graph.1} parent=175 // pred_check_branch
          %1697 = sbr.rel (%p1695) target = $region312
        $region311: #{transformer_global_graph.1} parent=175 // pred_region
          %1698 = dma.done [#allocation54], 32
        $region312: #{transformer_global_graph.1} parent=175 // pred_fallthru
          _
        // Predicated region
        $region313: #{transformer_global_graph.1} parent=175 // pred_check
          %p1699 = pneg %p874
        $region314: #{transformer_global_graph.1} parent=175 // pred_check_branch
          %1701 = sbr.rel (%p1699) target = $region316
        $region315: #{transformer_global_graph.1} parent=175 // pred_region
          %1702 = dma.done [#allocation54], 32
        $region316: #{transformer_global_graph.1} parent=175 // pred_fallthru
          _
        // Predicated region
        $region317: #{transformer_global_graph.1} parent=175 // pred_check
          %p1703 = pneg %p895
        $region318: #{transformer_global_graph.1} parent=175 // pred_check_branch
          %1705 = sbr.rel (%p1703) target = $region320
        $region319: #{transformer_global_graph.1} parent=175 // pred_region
          %1706 = dma.done [#allocation57], 32
        $region320: #{transformer_global_graph.1} parent=175 // pred_fallthru
          _
        // Predicated region
        $region321: #{transformer_global_graph.1} parent=175 // pred_check
          %p1707 = pneg %p916
        $region322: #{transformer_global_graph.1} parent=175 // pred_check_branch
          %1709 = sbr.rel (%p1707) target = $region324
        $region323: #{transformer_global_graph.1} parent=175 // pred_region
          %1710 = dma.done [#allocation57], 32
        $region324: #{transformer_global_graph.1} parent=175 // pred_fallthru
          _
        // Predicated region
        $region325: #{transformer_global_graph.1} parent=175 // pred_check
          %p1711 = pneg %p937
        $region326: #{transformer_global_graph.1} parent=175 // pred_check_branch
          %1713 = sbr.rel (%p1711) target = $region328
        $region327: #{transformer_global_graph.1} parent=175 // pred_region
          %1714 = dma.done [#allocation60], 32
        $region328: #{transformer_global_graph.1} parent=175 // pred_fallthru
          _
        // Predicated region
        $region329: #{transformer_global_graph.1} parent=175 // pred_check
          %p1715 = pneg %p958
        $region330: #{transformer_global_graph.1} parent=175 // pred_check_branch
          %1717 = sbr.rel (%p1715) target = $region332
        $region331: #{transformer_global_graph.1} parent=175 // pred_region
          %1718 = dma.done [#allocation60], 32
        $region332: #{transformer_global_graph.1} parent=175 // pred_fallthru
          _
        %s1719 = sand.u32 %s127, 1
        %s1720 = scalar_lea.sflag [#allocation3], %s1719
        %s1721 = sand.u32 %s127, 1
        %s1722 = smul.addr %s1721, 8
        %s1723 = scalar_lea.vmem [#allocation2], %s1722
        %p1724 = pneg %p140
        %p1725 = pneg %p137
        %s1726 = sand.u32 %s119, 1
        %s1727 = scalar_lea.sflag [#allocation6], %s1726
        %s1728 = sand.u32 %s153, 1
        %s1729 = smul.addr %s1728, 8
        %s1730 = scalar_lea.vmem [#allocation5], %s1729
        %p1731 = pneg %p166
        %p1732 = pneg %p163
        %s1733 = sand.u32 %s119, 1
        %s1734 = scalar_lea.sflag [#allocation6], %s1733
        %s1735 = sand.u32 %s179, 1
        %s1736 = smul.addr %s1735, 8
        %s1737 = scalar_lea.vmem [#allocation7], %s1736
        %p1738 = pneg %p192
        %p1739 = pneg %p189
        %s1740 = sand.u32 %s119, 1
        %s1741 = scalar_lea.sflag [#allocation9], %s1740
        %s1742 = sand.u32 %s205, 1
        %s1743 = scalar_lea.vmem [#allocation8], %s1742
        %p1744 = pneg %p218
        %p1745 = pneg %p215
        %s1746 = sand.u32 %s119, 1
        %s1747 = scalar_lea.sflag [#allocation9], %s1746
        %s1748 = sand.u32 %s231, 1
        %s1749 = scalar_lea.vmem [#allocation10], %s1748
        %p1750 = pneg %p244
        %p1751 = pneg %p241
        %p1752 = pneg %p265
        %p1753 = pneg %p262
        %p1754 = pneg %p286
        %p1755 = pneg %p283
        %p1756 = pneg %p307
        %p1757 = pneg %p304
        %p1758 = pneg %p328
        %p1759 = pneg %p325
        %p1760 = pneg %p349
        %p1761 = pneg %p346
        %p1762 = pneg %p370
        %p1763 = pneg %p367
        %p1764 = pneg %p391
        %p1765 = pneg %p388
        %p1766 = pneg %p412
        %p1767 = pneg %p409
        %p1768 = pneg %p433
        %p1769 = pneg %p430
        %p1770 = pneg %p454
        %p1771 = pneg %p451
        %p1772 = pneg %p475
        %p1773 = pneg %p472
        %p1774 = pneg %p496
        %p1775 = pneg %p493
        %p1776 = pneg %p517
        %p1777 = pneg %p514
        %p1778 = pneg %p538
        %p1779 = pneg %p535
        %p1780 = pneg %p559
        %p1781 = pneg %p556
        %p1782 = pneg %p580
        %p1783 = pneg %p577
        %p1784 = pneg %p601
        %p1785 = pneg %p598
        %p1786 = pneg %p622
        %p1787 = pneg %p619
        %p1788 = pneg %p643
        %p1789 = pneg %p640
        %p1790 = pneg %p664
        %p1791 = pneg %p661
        %p1792 = pneg %p685
        %p1793 = pneg %p682
        %p1794 = pneg %p706
        %p1795 = pneg %p703
        %p1796 = pneg %p727
        %p1797 = pneg %p724
        %p1798 = pneg %p748
        %p1799 = pneg %p745
        %p1800 = pneg %p769
        %p1801 = pneg %p766
        %p1802 = pneg %p790
        %p1803 = pneg %p787
        %p1804 = pneg %p811
        %p1805 = pneg %p808
        %p1806 = pneg %p832
        %p1807 = pneg %p829
        %p1808 = pneg %p853
        %p1809 = pneg %p850
        %p1810 = pneg %p874
        %p1811 = pneg %p871
        %p1812 = pneg %p895
        %p1813 = pneg %p892
        %p1814 = pneg %p916
        %p1815 = pneg %p913
        %p1816 = pneg %p937
        %p1817 = pneg %p934
        %p1818 = pneg %p958
        %p1819 = pneg %p955
        %p1820 = pneg %p984
        %p1821 = pneg %p981
        %s1822 = sand.u32 %s971, 1
        %s1823 = scalar_lea.sflag [#allocation4], %s1822
        %s1824 = sand.u32 %s971, 1
        %s1825 = smul.addr %s1824, 8
        %s1826 = scalar_lea.vmem [#allocation62], %s1825
        %v1828 = vld [vmem:[%s1570] sm:$0x1]
        %v1829 = vld [vmem:[%s1578] sm:$0x1]
        %v1830 = vld [vmem:[%s1544] sm:$0xff]
        %v1831 = vpack.c.bf16 %v1830, %v1830
        %v1832 = vld [vmem:[#allocation11] sm:$0xf]
        %v1833 = vld [vmem:[#allocation11 + $0x4] sm:$0xf]
        %v1834 = vld [vmem:[#allocation11 + $0x8] sm:$0xf]
        %v1835 = vld [vmem:[#allocation11 + $0xc] sm:$0xf]
        %v1836 = vld [vmem:[%s1562] sm:$0xff]
        %v1841 = vunpack.c.l.b16 %v1832
        %v1842 = vunpack.c.l.b16 %v1833
        %v1843 = vunpack.c.l.b16 %v1834
        %v1844 = vunpack.c.l.b16 %v1835
        %v1845 = vpack.c.b16 %v1842, %v1841
        %v1846 = vpack.c.b16 %v1844, %v1843
        %vm1849 = vcmask 261120
        %v1851 = vsel %vm1849, %v1831, 0
        %1853 = vmatprep.subr.bf16.mxu0 0
        %1854 = vmatpush1.bf16.msra.mxu0 %v1845
        %1855 = vmatprep.subr.bf16.mxu0 0
        %1856 = vmatpush1.bf16.msra.mxu0 %v1846
        %1857 = vmatprep.subr.bf16.mxu0 0
        %1858 = vmatpush1.bf16.msra.mxu0 0
        %1859 = vmatprep.subr.bf16.mxu0 0
        %1860 = vmatpush1.bf16.msra.mxu0 0
        %1861 = vmatprep.subr.bf16.mxu0 0
        %1862 = vmatpush1.bf16.msra.mxu0 0
        %1863 = vmatprep.subr.bf16.mxu0 0
        %1864 = vmatpush1.bf16.msra.mxu0 0
        %1865 = vmatprep.subr.bf16.mxu0 0
        %1866 = vmatpush1.bf16.msra.mxu0 0
        %1867 = vmatprep.subr.bf16.mxu0 0
        %1868 = vmatpush1.bf16.msra.mxu0 0
        %1869 = vmatprep.subr.bf16.mxu0 0
        %1870 = vmatpush1.bf16.msra.mxu0 0
        %1871 = vmatprep.subr.bf16.mxu0 0
        %1872 = vmatpush1.bf16.msra.mxu0 0
        %1873 = vmatprep.subr.bf16.mxu0 0
        %1874 = vmatpush1.bf16.msra.mxu0 0
        %1875 = vmatprep.subr.bf16.mxu0 0
        %1876 = vmatpush1.bf16.msra.mxu0 0
        %1877 = vmatprep.subr.bf16.mxu0 0
        %1878 = vmatpush1.bf16.msra.mxu0 0
        %1879 = vmatprep.subr.bf16.mxu0 0
        %1880 = vmatpush1.bf16.msra.mxu0 0
        %1881 = vmatprep.subr.bf16.mxu0 0
        %1882 = vmatpush1.bf16.msra.mxu0 0
        %1883 = vmatprep.subr.bf16.mxu0 0
        %1884 = vmatpush1.bf16.msra.mxu0 0
        %1885 = vmatprep.mubr.bf16.mxu0 0
        %1886 = vmatmul.mubr.bf16.gmra.mrb[0].mxu0 %v1851
        %v1887 = vpop.f32.mrb[0].mxu0
        %v1888 = vadd.f32 %v1836, %v1887
        %v1889 = vpop.f32.mrb[0].mxu0
        %v1890 = vpop.f32.mrb[0].mxu0
        %v1891 = vpop.f32.mrb[0].mxu0
        %1892 = vdwg.mxu0
        %v1893 = vpack.c.bf16 %v1888, %v1888
        %v1894 = vld [vmem:[#allocation14] sm:$0xff]
        %v1895 = vld [vmem:[#allocation14 + $0x8] sm:$0xf]
        %v1896 = vld [vmem:[#allocation14 + $0xc] sm:$0xff]
        %v1897 = vld [vmem:[#allocation14 + $0x14] sm:$0xf]
        %v1898 = vld [vmem:[#allocation14 + $0x18] sm:$0xff]
        %v1899 = vld [vmem:[#allocation14 + $0x20] sm:$0xf]
        %v1900 = vld [vmem:[#allocation14 + $0x24] sm:$0xff]
        %v1901 = vld [vmem:[#allocation14 + $0x2c] sm:$0xf]
        %v1902 = vld [vmem:[#allocation14 + $0x30] sm:$0xff]
        %v1903 = vld [vmem:[#allocation14 + $0x38] sm:$0xf]
        %v1904 = vld [vmem:[#allocation14 + $0x3c] sm:$0xff]
        %v1905 = vld [vmem:[#allocation14 + $0x44] sm:$0xf]
        %v1906 = vld [vmem:[#allocation14 + $0x48] sm:$0xff]
        %v1907 = vld [vmem:[#allocation14 + $0x50] sm:$0xf]
        %v1908 = vld [vmem:[#allocation14 + $0x54] sm:$0xff]
        %v1909 = vld [vmem:[#allocation14 + $0x5c] sm:$0xf]
        %v1910 = vld [vmem:[#allocation14 + $0x60] sm:$0xff]
        %v1911 = vld [vmem:[#allocation14 + $0x68] sm:$0xf]
        %v1912 = vld [vmem:[#allocation14 + $0x6c] sm:$0xff]
        %v1913 = vld [vmem:[#allocation14 + $0x74] sm:$0xf]
        %v1914 = vld [vmem:[#allocation14 + $0x78] sm:$0xff]
        %v1915 = vld [vmem:[#allocation14 + $0x80] sm:$0xf]
        %v1916 = vld [vmem:[#allocation14 + $0x84] sm:$0xff]
        %v1917 = vld [vmem:[#allocation14 + $0x8c] sm:$0xf]
        %v1918 = vld [vmem:[#allocation14 + $0x90] sm:$0xff]
        %v1919 = vld [vmem:[#allocation14 + $0x98] sm:$0xf]
        %v1920 = vld [vmem:[#allocation14 + $0x9c] sm:$0xff]
        %v1921 = vld [vmem:[#allocation14 + $0xa4] sm:$0xf]
        %v1922 = vld [vmem:[#allocation14 + $0xa8] sm:$0xff]
        %v1923 = vld [vmem:[#allocation14 + $0xb0] sm:$0xf]
        %v1924 = vld [vmem:[#allocation14 + $0xb4] sm:$0xff]
        %v1925 = vld [vmem:[#allocation14 + $0xbc] sm:$0xf]
        %v1926 = vld [vmem:[#allocation16] sm:$0x7]
        %v1928 = vlaneseq
        %v1929 = vshrl.u32 %v1928, 7
        %v1930 = vsub.s32 0, %v1929
        %v1931 = vrot.slane %v1926, %v1930
        %v1932 = vlaneseq
        %v1933 = vshrl.u32 %v1932, 7
        %v1934 = vsub.s32 1, %v1933
        %v1935 = vrot.slane %v1926, %v1934
        %v1936 = vlaneseq
        %v1937 = vshrl.u32 %v1936, 7
        %v1938 = vsub.s32 2, %v1937
        %v1939 = vrot.slane %v1926, %v1938
        %v1975 = vunpack.c.l.b16 %v1894
        %v1976 = vunpack.c.h.b16 %v1894
        %v1977 = vunpack.c.l.b16 %v1895
        %v1978 = vunpack.c.l.b16 %v1896
        %v1979 = vunpack.c.h.b16 %v1896
        %v1980 = vunpack.c.l.b16 %v1897
        %v1981 = vunpack.c.l.b16 %v1898
        %v1982 = vunpack.c.h.b16 %v1898
        %v1983 = vunpack.c.l.b16 %v1899
        %v1984 = vunpack.c.l.b16 %v1900
        %v1985 = vunpack.c.h.b16 %v1900
        %v1986 = vunpack.c.l.b16 %v1901
        %v1987 = vunpack.c.l.b16 %v1902
        %v1988 = vunpack.c.h.b16 %v1902
        %v1989 = vunpack.c.l.b16 %v1903
        %v1990 = vunpack.c.l.b16 %v1904
        %v1991 = vunpack.c.h.b16 %v1904
        %v1992 = vunpack.c.l.b16 %v1905
        %v1993 = vunpack.c.l.b16 %v1906
        %v1994 = vunpack.c.h.b16 %v1906
        %v1995 = vunpack.c.l.b16 %v1907
        %v1996 = vunpack.c.l.b16 %v1908
        %v1997 = vunpack.c.h.b16 %v1908
        %v1998 = vunpack.c.l.b16 %v1909
        %v1999 = vunpack.c.l.b16 %v1910
        %v2000 = vunpack.c.h.b16 %v1910
        %v2001 = vunpack.c.l.b16 %v1911
        %v2002 = vunpack.c.l.b16 %v1912
        %v2003 = vunpack.c.h.b16 %v1912
        %v2004 = vunpack.c.l.b16 %v1913
        %v2005 = vunpack.c.l.b16 %v1914
        %v2006 = vunpack.c.h.b16 %v1914
        %v2007 = vunpack.c.l.b16 %v1915
        %v2008 = vunpack.c.l.b16 %v1916
        %v2009 = vunpack.c.h.b16 %v1916
        %v2010 = vunpack.c.l.b16 %v1917
        %v2011 = vunpack.c.l.b16 %v1918
        %v2012 = vunpack.c.h.b16 %v1918
        %v2013 = vunpack.c.l.b16 %v1919
        %v2014 = vunpack.c.l.b16 %v1920
        %v2015 = vunpack.c.h.b16 %v1920
        %v2016 = vunpack.c.l.b16 %v1921
        %v2017 = vunpack.c.l.b16 %v1922
        %v2018 = vunpack.c.h.b16 %v1922
        %v2019 = vunpack.c.l.b16 %v1923
        %v2020 = vunpack.c.l.b16 %v1924
        %v2021 = vunpack.c.h.b16 %v1924
        %v2022 = vunpack.c.l.b16 %v1925
        %v2023 = vpack.c.b16 %v1978, %v1975
        %v2024 = vpack.c.b16 %v1979, %v1976
        %v2025 = vpack.c.b16 %v1980, %v1977
        %v2026 = vpack.c.b16 %v1984, %v1981
        %v2027 = vpack.c.b16 %v1985, %v1982
        %v2028 = vpack.c.b16 %v1986, %v1983
        %v2029 = vpack.c.b16 %v1990, %v1987
        %v2030 = vpack.c.b16 %v1991, %v1988
        %v2031 = vpack.c.b16 %v1992, %v1989
        %v2032 = vpack.c.b16 %v1996, %v1993
        %v2033 = vpack.c.b16 %v1997, %v1994
        %v2034 = vpack.c.b16 %v1998, %v1995
        %v2035 = vpack.c.b16 %v2002, %v1999
        %v2036 = vpack.c.b16 %v2003, %v2000
        %v2037 = vpack.c.b16 %v2004, %v2001
        %v2038 = vpack.c.b16 %v2008, %v2005
        %v2039 = vpack.c.b16 %v2009, %v2006
        %v2040 = vpack.c.b16 %v2010, %v2007
        %v2041 = vpack.c.b16 %v2014, %v2011
        %v2042 = vpack.c.b16 %v2015, %v2012
        %v2043 = vpack.c.b16 %v2016, %v2013
        %v2044 = vpack.c.b16 %v2020, %v2017
        %v2045 = vpack.c.b16 %v2021, %v2018
        %v2046 = vpack.c.b16 %v2022, %v2019
        %2071 = vmatprep.subr.bf16.mxu0 %v2024
        %2072 = vmatpush1.bf16.msra.mxu0 %v2023
        %2073 = vmatprep.subr.bf16.mxu0 %v2027
        %2074 = vmatpush1.bf16.msra.mxu0 %v2026
        %2075 = vmatprep.subr.bf16.mxu0 %v2030
        %2076 = vmatpush1.bf16.msra.mxu0 %v2029
        %2077 = vmatprep.subr.bf16.mxu0 %v2033
        %2078 = vmatpush1.bf16.msra.mxu0 %v2032
        %2079 = vmatprep.subr.bf16.mxu0 %v2036
        %2080 = vmatpush1.bf16.msra.mxu0 %v2035
        %2081 = vmatprep.subr.bf16.mxu0 %v2039
        %2082 = vmatpush1.bf16.msra.mxu0 %v2038
        %2083 = vmatprep.subr.bf16.mxu0 %v2042
        %2084 = vmatpush1.bf16.msra.mxu0 %v2041
        %2085 = vmatprep.subr.bf16.mxu0 %v2045
        %2086 = vmatpush1.bf16.msra.mxu0 %v2044
        %2087 = vmatprep.subr.bf16.mxu0 0
        %2088 = vmatpush1.bf16.msra.mxu0 0
        %2089 = vmatprep.subr.bf16.mxu0 0
        %2090 = vmatpush1.bf16.msra.mxu0 0
        %2091 = vmatprep.subr.bf16.mxu0 0
        %2092 = vmatpush1.bf16.msra.mxu0 0
        %2093 = vmatprep.subr.bf16.mxu0 0
        %2094 = vmatpush1.bf16.msra.mxu0 0
        %2095 = vmatprep.subr.bf16.mxu0 0
        %2096 = vmatpush1.bf16.msra.mxu0 0
        %2097 = vmatprep.subr.bf16.mxu0 0
        %2098 = vmatpush1.bf16.msra.mxu0 0
        %2099 = vmatprep.subr.bf16.mxu0 0
        %2100 = vmatpush1.bf16.msra.mxu0 0
        %2101 = vmatprep.subr.bf16.mxu0 0
        %2102 = vmatpush1.bf16.msra.mxu0 0
        %2103 = vmatprep.mubr.bf16.mxu0 0
        %2104 = vmatmul.mubr.bf16.gmra.mrb[0].mxu0 %v1893
        %v2105 = vpop.f32.mrb[0].mxu0
        %v2106 = vadd.f32 %v1931, %v2105
        %v2107 = vpop.f32.mrb[0].mxu0
        %v2108 = vadd.f32 %v1935, %v2107
        %v2109 = vpop.f32.mrb[0].mxu0
        %v2110 = vpop.f32.mrb[0].mxu0
        %2111 = vdwg.mxu0
        %2112 = vmatprep.subr.bf16.mxu0 0
        %2113 = vmatpush1.bf16.msra.mxu0 %v2025
        %2114 = vmatprep.subr.bf16.mxu0 0
        %2115 = vmatpush1.bf16.msra.mxu0 %v2028
        %2116 = vmatprep.subr.bf16.mxu0 0
        %2117 = vmatpush1.bf16.msra.mxu0 %v2031
        %2118 = vmatprep.subr.bf16.mxu0 0
        %2119 = vmatpush1.bf16.msra.mxu0 %v2034
        %2120 = vmatprep.subr.bf16.mxu0 0
        %2121 = vmatpush1.bf16.msra.mxu0 %v2037
        %2122 = vmatprep.subr.bf16.mxu0 0
        %2123 = vmatpush1.bf16.msra.mxu0 %v2040
        %2124 = vmatprep.subr.bf16.mxu0 0
        %2125 = vmatpush1.bf16.msra.mxu0 %v2043
        %2126 = vmatprep.subr.bf16.mxu0 0
        %2127 = vmatpush1.bf16.msra.mxu0 %v2046
        %2128 = vmatprep.subr.bf16.mxu0 0
        %2129 = vmatpush1.bf16.msra.mxu0 0
        %2130 = vmatprep.subr.bf16.mxu0 0
        %2131 = vmatpush1.bf16.msra.mxu0 0
        %2132 = vmatprep.subr.bf16.mxu0 0
        %2133 = vmatpush1.bf16.msra.mxu0 0
        %2134 = vmatprep.subr.bf16.mxu0 0
        %2135 = vmatpush1.bf16.msra.mxu0 0
        %2136 = vmatprep.subr.bf16.mxu0 0
        %2137 = vmatpush1.bf16.msra.mxu0 0
        %2138 = vmatprep.subr.bf16.mxu0 0
        %2139 = vmatpush1.bf16.msra.mxu0 0
        %2140 = vmatprep.subr.bf16.mxu0 0
        %2141 = vmatpush1.bf16.msra.mxu0 0
        %2142 = vmatprep.subr.bf16.mxu0 0
        %2143 = vmatpush1.bf16.msra.mxu0 0
        %2144 = vmatprep.mubr.bf16.mxu0 0
        %2145 = vmatmul.mubr.bf16.gmra.mrb[0].mxu0 %v1893
        %v2146 = vpop.f32.mrb[0].mxu0
        %v2147 = vadd.f32 %v1939, %v2146
        %v2148 = vpop.f32.mrb[0].mxu0
        %v2149 = vpop.f32.mrb[0].mxu0
        %v2150 = vpop.f32.mrb[0].mxu0
        %2151 = vdwg.mxu0
        %v2152 = vpack.c.bf16 %v2106, %v2106
        %v2153 = vpack.c.bf16 %v2108, %v2108
        %v2154 = vpack.c.bf16 %v2147, %v2147
        %v2156 = vlaneseq
        %v2157 = vshrl.u32 %v2156, 7
        %v2158 = vsub.s32 0, %v2157
        %v2159 = vrot.slane %v1828, %v2158
        %v2162 = vsel %vm1849, %v2152, 0
        %v2165 = vsel %vm1849, %v2153, 0
        %2167 = vmatprep.subr.bf16.mxu0 0
        %2168 = vmatpush1.bf16.xpose.msra.mxu0 %v2165
        %2169 = vmatprep.subr.bf16.mxu0 0
        %2170 = vmatpush1.bf16.xpose.msra.mxu0 0
        %2171 = vmatprep.subr.bf16.mxu0 0
        %2172 = vmatpush1.bf16.xpose.msra.mxu0 0
        %2173 = vmatprep.subr.bf16.mxu0 0
        %2174 = vmatpush1.bf16.xpose.msra.mxu0 0
        %2175 = vmatprep.subr.bf16.mxu0 0
        %2176 = vmatpush1.bf16.xpose.msra.mxu0 0
        %2177 = vmatprep.subr.bf16.mxu0 0
        %2178 = vmatpush1.bf16.xpose.msra.mxu0 0
        %2179 = vmatprep.subr.bf16.mxu0 0
        %2180 = vmatpush1.bf16.xpose.msra.mxu0 0
        %2181 = vmatprep.subr.bf16.mxu0 0
        %2182 = vmatpush1.bf16.xpose.msra.mxu0 0
        %2183 = vmatprep.subr.bf16.mxu0 0
        %2184 = vmatpush1.bf16.xpose.msra.mxu0 0
        %2185 = vmatprep.subr.bf16.mxu0 0
        %2186 = vmatpush1.bf16.xpose.msra.mxu0 0
        %2187 = vmatprep.subr.bf16.mxu0 0
        %2188 = vmatpush1.bf16.xpose.msra.mxu0 0
        %2189 = vmatprep.subr.bf16.mxu0 0
        %2190 = vmatpush1.bf16.xpose.msra.mxu0 0
        %2191 = vmatprep.subr.bf16.mxu0 0
        %2192 = vmatpush1.bf16.xpose.msra.mxu0 0
        %2193 = vmatprep.subr.bf16.mxu0 0
        %2194 = vmatpush1.bf16.xpose.msra.mxu0 0
        %2195 = vmatprep.subr.bf16.mxu0 0
        %2196 = vmatpush1.bf16.xpose.msra.mxu0 0
        %2197 = vmatprep.subr.bf16.mxu0 0
        %2198 = vmatpush1.bf16.xpose.msra.mxu0 0
        %2199 = vmatprep.mubr.bf16.mxu0 0
        %2200 = vmatmul.mubr.bf16.gmra.mrb[0].mxu0 %v2162
        %v2201 = vpop.f32.mrb[0].mxu0
        %v2202 = vadd.f32 %v2159, %v2201
        %v2203 = vpop.f32.mrb[0].mxu0
        %v2204 = vpop.f32.mrb[0].mxu0
        %v2205 = vpop.f32.mrb[0].mxu0
        %2206 = vdwg.mxu0
        %vm2207 = vcmask 64512
        %v2208 = vsel %vm2207, %v2202, -inf
        %2209 = vmax.xlane.f32.xlu0 %v2208
        %v2210 = vpop.xlane.xlu0 %2209
        %v2211 = vsub.f32 %v2202, %v2210
        %v2212 = vmul.f32 %v2211, 1.442695
        %v2213 = vpow.pop %v2212
        %v2214 = vsel %vm2207, %v2213, 0.0
        %2215 = vadd.xlane.f32.xlu0 %v2214
        %v2216 = vpop.xlane.xlu0 %2215
        %v2217 = vrcp.pop %v2216
        %v2218 = vmul.f32 %v2213, %v2217
        %v2219 = vpack.c.bf16 %v2218, %v2218
        %v2221 = vsel %vm2207, %v2219, 0
        %vm2223 = vcmask 1043456
        %v2225 = vsel %vm2223, %v2154, 0
        %2227 = vmatprep.subr.bf16.mxu0 0
        %2228 = vmatpush1.bf16.msra.mxu0 %v2225
        %2229 = vmatprep.subr.bf16.mxu0 0
        %2230 = vmatpush1.bf16.msra.mxu0 0
        %2231 = vmatprep.subr.bf16.mxu0 0
        %2232 = vmatpush1.bf16.msra.mxu0 0
        %2233 = vmatprep.subr.bf16.mxu0 0
        %2234 = vmatpush1.bf16.msra.mxu0 0
        %2235 = vmatprep.subr.bf16.mxu0 0
        %2236 = vmatpush1.bf16.msra.mxu0 0
        %2237 = vmatprep.subr.bf16.mxu0 0
        %2238 = vmatpush1.bf16.msra.mxu0 0
        %2239 = vmatprep.subr.bf16.mxu0 0
        %2240 = vmatpush1.bf16.msra.mxu0 0
        %2241 = vmatprep.subr.bf16.mxu0 0
        %2242 = vmatpush1.bf16.msra.mxu0 0
        %2243 = vmatprep.subr.bf16.mxu0 0
        %2244 = vmatpush1.bf16.msra.mxu0 0
        %2245 = vmatprep.subr.bf16.mxu0 0
        %2246 = vmatpush1.bf16.msra.mxu0 0
        %2247 = vmatprep.subr.bf16.mxu0 0
        %2248 = vmatpush1.bf16.msra.mxu0 0
        %2249 = vmatprep.subr.bf16.mxu0 0
        %2250 = vmatpush1.bf16.msra.mxu0 0
        %2251 = vmatprep.subr.bf16.mxu0 0
        %2252 = vmatpush1.bf16.msra.mxu0 0
        %2253 = vmatprep.subr.bf16.mxu0 0
        %2254 = vmatpush1.bf16.msra.mxu0 0
        %2255 = vmatprep.subr.bf16.mxu0 0
        %2256 = vmatpush1.bf16.msra.mxu0 0
        %2257 = vmatprep.subr.bf16.mxu0 0
        %2258 = vmatpush1.bf16.msra.mxu0 0
        %2259 = vmatprep.mubr.bf16.mxu0 0
        %2260 = vmatmul.mubr.bf16.gmra.mrb[0].mxu0 %v2221
        %v2261 = vpop.f32.mrb[0].mxu0
        %v2262 = vadd.f32 0.0, %v2261
        %v2263 = vpop.f32.mrb[0].mxu0
        %v2264 = vpop.f32.mrb[0].mxu0
        %v2265 = vpop.f32.mrb[0].mxu0
        %2266 = vdwg.mxu0
        %2268 = vrot.lane.b32.xlu0 %v2152, 96
        %v2269 = vpop.permute.xlu0 %2268
        %2271 = vrot.lane.b32.xlu0 %v2153, 96
        %v2272 = vpop.permute.xlu0 %2271
        %v2274 = vsel %vm1849, %v2269, 0
        %v2277 = vsel %vm1849, %v2272, 0
        %2279 = vmatprep.subr.bf16.mxu0 0
        %2280 = vmatpush1.bf16.xpose.msra.mxu0 %v2277
        %2281 = vmatprep.subr.bf16.mxu0 0
        %2282 = vmatpush1.bf16.xpose.msra.mxu0 0
        %2283 = vmatprep.subr.bf16.mxu0 0
        %2284 = vmatpush1.bf16.xpose.msra.mxu0 0
        %2285 = vmatprep.subr.bf16.mxu0 0
        %2286 = vmatpush1.bf16.xpose.msra.mxu0 0
        %2287 = vmatprep.subr.bf16.mxu0 0
        %2288 = vmatpush1.bf16.xpose.msra.mxu0 0
        %2289 = vmatprep.subr.bf16.mxu0 0
        %2290 = vmatpush1.bf16.xpose.msra.mxu0 0
        %2291 = vmatprep.subr.bf16.mxu0 0
        %2292 = vmatpush1.bf16.xpose.msra.mxu0 0
        %2293 = vmatprep.subr.bf16.mxu0 0
        %2294 = vmatpush1.bf16.xpose.msra.mxu0 0
        %2295 = vmatprep.subr.bf16.mxu0 0
        %2296 = vmatpush1.bf16.xpose.msra.mxu0 0
        %2297 = vmatprep.subr.bf16.mxu0 0
        %2298 = vmatpush1.bf16.xpose.msra.mxu0 0
        %2299 = vmatprep.subr.bf16.mxu0 0
        %2300 = vmatpush1.bf16.xpose.msra.mxu0 0
        %2301 = vmatprep.subr.bf16.mxu0 0
        %2302 = vmatpush1.bf16.xpose.msra.mxu0 0
        %2303 = vmatprep.subr.bf16.mxu0 0
        %2304 = vmatpush1.bf16.xpose.msra.mxu0 0
        %2305 = vmatprep.subr.bf16.mxu0 0
        %2306 = vmatpush1.bf16.xpose.msra.mxu0 0
        %2307 = vmatprep.subr.bf16.mxu0 0
        %2308 = vmatpush1.bf16.xpose.msra.mxu0 0
        %2309 = vmatprep.subr.bf16.mxu0 0
        %2310 = vmatpush1.bf16.xpose.msra.mxu0 0
        %2311 = vmatprep.mubr.bf16.mxu0 0
        %2312 = vmatmul.mubr.bf16.gmra.mrb[0].mxu0 %v2274
        %v2313 = vpop.f32.mrb[0].mxu0
        %v2314 = vadd.f32 %v2159, %v2313
        %v2315 = vpop.f32.mrb[0].mxu0
        %v2316 = vpop.f32.mrb[0].mxu0
        %v2317 = vpop.f32.mrb[0].mxu0
        %2318 = vdwg.mxu0
        %v2319 = vsel %vm2207, %v2314, -inf
        %2320 = vmax.xlane.f32.xlu0 %v2319
        %v2321 = vpop.xlane.xlu0 %2320
        %v2322 = vsub.f32 %v2314, %v2321
        %v2323 = vmul.f32 %v2322, 1.442695
        %v2324 = vpow.pop %v2323
        %v2325 = vsel %vm2207, %v2324, 0.0
        %2326 = vadd.xlane.f32.xlu0 %v2325
        %v2327 = vpop.xlane.xlu0 %2326
        %v2328 = vrcp.pop %v2327
        %v2329 = vmul.f32 %v2324, %v2328
        %v2330 = vpack.c.bf16 %v2329, %v2329
        %2332 = vrot.lane.b32.xlu0 %v2154, 96
        %v2333 = vpop.permute.xlu0 %2332
        %v2335 = vsel %vm2207, %v2330, 0
        %v2338 = vsel %vm2223, %v2333, 0
        %2340 = vmatprep.subr.bf16.mxu0 0
        %2341 = vmatpush1.bf16.msra.mxu0 %v2338
        %2342 = vmatprep.subr.bf16.mxu0 0
        %2343 = vmatpush1.bf16.msra.mxu0 0
        %2344 = vmatprep.subr.bf16.mxu0 0
        %2345 = vmatpush1.bf16.msra.mxu0 0
        %2346 = vmatprep.subr.bf16.mxu0 0
        %2347 = vmatpush1.bf16.msra.mxu0 0
        %2348 = vmatprep.subr.bf16.mxu0 0
        %2349 = vmatpush1.bf16.msra.mxu0 0
        %2350 = vmatprep.subr.bf16.mxu0 0
        %2351 = vmatpush1.bf16.msra.mxu0 0
        %2352 = vmatprep.subr.bf16.mxu0 0
        %2353 = vmatpush1.bf16.msra.mxu0 0
        %2354 = vmatprep.subr.bf16.mxu0 0
        %2355 = vmatpush1.bf16.msra.mxu0 0
        %2356 = vmatprep.subr.bf16.mxu0 0
        %2357 = vmatpush1.bf16.msra.mxu0 0
        %2358 = vmatprep.subr.bf16.mxu0 0
        %2359 = vmatpush1.bf16.msra.mxu0 0
        %2360 = vmatprep.subr.bf16.mxu0 0
        %2361 = vmatpush1.bf16.msra.mxu0 0
        %2362 = vmatprep.subr.bf16.mxu0 0
        %2363 = vmatpush1.bf16.msra.mxu0 0
        %2364 = vmatprep.subr.bf16.mxu0 0
        %2365 = vmatpush1.bf16.msra.mxu0 0
        %2366 = vmatprep.subr.bf16.mxu0 0
        %2367 = vmatpush1.bf16.msra.mxu0 0
        %2368 = vmatprep.subr.bf16.mxu0 0
        %2369 = vmatpush1.bf16.msra.mxu0 0
        %2370 = vmatprep.subr.bf16.mxu0 0
        %2371 = vmatpush1.bf16.msra.mxu0 0
        %2372 = vmatprep.mubr.bf16.mxu0 0
        %2373 = vmatmul.mubr.bf16.gmra.mrb[0].mxu0 %v2335
        %v2374 = vpop.f32.mrb[0].mxu0
        %v2375 = vadd.f32 0.0, %v2374
        %v2376 = vpop.f32.mrb[0].mxu0
        %v2377 = vpop.f32.mrb[0].mxu0
        %v2378 = vpop.f32.mrb[0].mxu0
        %2379 = vdwg.mxu0
        %2380 = vrot.lane.b32.xlu0 %v2152, 64
        %v2381 = vpop.permute.xlu0 %2380
        %2382 = vrot.lane.b32.xlu0 %v2153, 64
        %v2383 = vpop.permute.xlu0 %2382
        %v2385 = vsel %vm1849, %v2381, 0
        %v2388 = vsel %vm1849, %v2383, 0
        %2390 = vmatprep.subr.bf16.mxu0 0
        %2391 = vmatpush1.bf16.xpose.msra.mxu0 %v2388
        %2392 = vmatprep.subr.bf16.mxu0 0
        %2393 = vmatpush1.bf16.xpose.msra.mxu0 0
        %2394 = vmatprep.subr.bf16.mxu0 0
        %2395 = vmatpush1.bf16.xpose.msra.mxu0 0
        %2396 = vmatprep.subr.bf16.mxu0 0
        %2397 = vmatpush1.bf16.xpose.msra.mxu0 0
        %2398 = vmatprep.subr.bf16.mxu0 0
        %2399 = vmatpush1.bf16.xpose.msra.mxu0 0
        %2400 = vmatprep.subr.bf16.mxu0 0
        %2401 = vmatpush1.bf16.xpose.msra.mxu0 0
        %2402 = vmatprep.subr.bf16.mxu0 0
        %2403 = vmatpush1.bf16.xpose.msra.mxu0 0
        %2404 = vmatprep.subr.bf16.mxu0 0
        %2405 = vmatpush1.bf16.xpose.msra.mxu0 0
        %2406 = vmatprep.subr.bf16.mxu0 0
        %2407 = vmatpush1.bf16.xpose.msra.mxu0 0
        %2408 = vmatprep.subr.bf16.mxu0 0
        %2409 = vmatpush1.bf16.xpose.msra.mxu0 0
        %2410 = vmatprep.subr.bf16.mxu0 0
        %2411 = vmatpush1.bf16.xpose.msra.mxu0 0
        %2412 = vmatprep.subr.bf16.mxu0 0
        %2413 = vmatpush1.bf16.xpose.msra.mxu0 0
        %2414 = vmatprep.subr.bf16.mxu0 0
        %2415 = vmatpush1.bf16.xpose.msra.mxu0 0
        %2416 = vmatprep.subr.bf16.mxu0 0
        %2417 = vmatpush1.bf16.xpose.msra.mxu0 0
        %2418 = vmatprep.subr.bf16.mxu0 0
        %2419 = vmatpush1.bf16.xpose.msra.mxu0 0
        %2420 = vmatprep.subr.bf16.mxu0 0
        %2421 = vmatpush1.bf16.xpose.msra.mxu0 0
        %2422 = vmatprep.mubr.bf16.mxu0 0
        %2423 = vmatmul.mubr.bf16.gmra.mrb[0].mxu0 %v2385
        %v2424 = vpop.f32.mrb[0].mxu0
        %v2425 = vadd.f32 %v2159, %v2424
        %v2426 = vpop.f32.mrb[0].mxu0
        %v2427 = vpop.f32.mrb[0].mxu0
        %v2428 = vpop.f32.mrb[0].mxu0
        %2429 = vdwg.mxu0
        %v2430 = vsel %vm2207, %v2425, -inf
        %2431 = vmax.xlane.f32.xlu0 %v2430
        %v2432 = vpop.xlane.xlu0 %2431
        %v2433 = vsub.f32 %v2425, %v2432
        %v2434 = vmul.f32 %v2433, 1.442695
        %v2435 = vpow.pop %v2434
        %v2436 = vsel %vm2207, %v2435, 0.0
        %2437 = vadd.xlane.f32.xlu0 %v2436
        %v2438 = vpop.xlane.xlu0 %2437
        %v2439 = vrcp.pop %v2438
        %v2440 = vmul.f32 %v2435, %v2439
        %v2441 = vpack.c.bf16 %v2440, %v2440
        %2442 = vrot.lane.b32.xlu0 %v2154, 64
        %v2443 = vpop.permute.xlu0 %2442
        %v2445 = vsel %vm2207, %v2441, 0
        %v2448 = vsel %vm2223, %v2443, 0
        %2450 = vmatprep.subr.bf16.mxu0 0
        %2451 = vmatpush1.bf16.msra.mxu0 %v2448
        %2452 = vmatprep.subr.bf16.mxu0 0
        %2453 = vmatpush1.bf16.msra.mxu0 0
        %2454 = vmatprep.subr.bf16.mxu0 0
        %2455 = vmatpush1.bf16.msra.mxu0 0
        %2456 = vmatprep.subr.bf16.mxu0 0
        %2457 = vmatpush1.bf16.msra.mxu0 0
        %2458 = vmatprep.subr.bf16.mxu0 0
        %2459 = vmatpush1.bf16.msra.mxu0 0
        %2460 = vmatprep.subr.bf16.mxu0 0
        %2461 = vmatpush1.bf16.msra.mxu0 0
        %2462 = vmatprep.subr.bf16.mxu0 0
        %2463 = vmatpush1.bf16.msra.mxu0 0
        %2464 = vmatprep.subr.bf16.mxu0 0
        %2465 = vmatpush1.bf16.msra.mxu0 0
        %2466 = vmatprep.subr.bf16.mxu0 0
        %2467 = vmatpush1.bf16.msra.mxu0 0
        %2468 = vmatprep.subr.bf16.mxu0 0
        %2469 = vmatpush1.bf16.msra.mxu0 0
        %2470 = vmatprep.subr.bf16.mxu0 0
        %2471 = vmatpush1.bf16.msra.mxu0 0
        %2472 = vmatprep.subr.bf16.mxu0 0
        %2473 = vmatpush1.bf16.msra.mxu0 0
        %2474 = vmatprep.subr.bf16.mxu0 0
        %2475 = vmatpush1.bf16.msra.mxu0 0
        %2476 = vmatprep.subr.bf16.mxu0 0
        %2477 = vmatpush1.bf16.msra.mxu0 0
        %2478 = vmatprep.subr.bf16.mxu0 0
        %2479 = vmatpush1.bf16.msra.mxu0 0
        %2480 = vmatprep.subr.bf16.mxu0 0
        %2481 = vmatpush1.bf16.msra.mxu0 0
        %2482 = vmatprep.mubr.bf16.mxu0 0
        %2483 = vmatmul.mubr.bf16.gmra.mrb[0].mxu0 %v2445
        %v2484 = vpop.f32.mrb[0].mxu0
        %v2485 = vadd.f32 0.0, %v2484
        %v2486 = vpop.f32.mrb[0].mxu0
        %v2487 = vpop.f32.mrb[0].mxu0
        %v2488 = vpop.f32.mrb[0].mxu0
        %2489 = vdwg.mxu0
        %2490 = vrot.lane.b32.xlu0 %v2152, 32
        %v2491 = vpop.permute.xlu0 %2490
        %2492 = vrot.lane.b32.xlu0 %v2153, 32
        %v2493 = vpop.permute.xlu0 %2492
        %v2495 = vsel %vm1849, %v2491, 0
        %v2498 = vsel %vm1849, %v2493, 0
        %2500 = vmatprep.subr.bf16.mxu0 0
        %2501 = vmatpush1.bf16.xpose.msra.mxu0 %v2498
        %2502 = vmatprep.subr.bf16.mxu0 0
        %2503 = vmatpush1.bf16.xpose.msra.mxu0 0
        %2504 = vmatprep.subr.bf16.mxu0 0
        %2505 = vmatpush1.bf16.xpose.msra.mxu0 0
        %2506 = vmatprep.subr.bf16.mxu0 0
        %2507 = vmatpush1.bf16.xpose.msra.mxu0 0
        %2508 = vmatprep.subr.bf16.mxu0 0
        %2509 = vmatpush1.bf16.xpose.msra.mxu0 0
        %2510 = vmatprep.subr.bf16.mxu0 0
        %2511 = vmatpush1.bf16.xpose.msra.mxu0 0
        %2512 = vmatprep.subr.bf16.mxu0 0
        %2513 = vmatpush1.bf16.xpose.msra.mxu0 0
        %2514 = vmatprep.subr.bf16.mxu0 0
        %2515 = vmatpush1.bf16.xpose.msra.mxu0 0
        %2516 = vmatprep.subr.bf16.mxu0 0
        %2517 = vmatpush1.bf16.xpose.msra.mxu0 0
        %2518 = vmatprep.subr.bf16.mxu0 0
        %2519 = vmatpush1.bf16.xpose.msra.mxu0 0
        %2520 = vmatprep.subr.bf16.mxu0 0
        %2521 = vmatpush1.bf16.xpose.msra.mxu0 0
        %2522 = vmatprep.subr.bf16.mxu0 0
        %2523 = vmatpush1.bf16.xpose.msra.mxu0 0
        %2524 = vmatprep.subr.bf16.mxu0 0
        %2525 = vmatpush1.bf16.xpose.msra.mxu0 0
        %2526 = vmatprep.subr.bf16.mxu0 0
        %2527 = vmatpush1.bf16.xpose.msra.mxu0 0
        %2528 = vmatprep.subr.bf16.mxu0 0
        %2529 = vmatpush1.bf16.xpose.msra.mxu0 0
        %2530 = vmatprep.subr.bf16.mxu0 0
        %2531 = vmatpush1.bf16.xpose.msra.mxu0 0
        %2532 = vmatprep.mubr.bf16.mxu0 0
        %2533 = vmatmul.mubr.bf16.gmra.mrb[0].mxu0 %v2495
        %v2534 = vpop.f32.mrb[0].mxu0
        %v2535 = vadd.f32 %v2159, %v2534
        %v2536 = vpop.f32.mrb[0].mxu0
        %v2537 = vpop.f32.mrb[0].mxu0
        %v2538 = vpop.f32.mrb[0].mxu0
        %2539 = vdwg.mxu0
        %v2540 = vsel %vm2207, %v2535, -inf
        %2541 = vmax.xlane.f32.xlu0 %v2540
        %v2542 = vpop.xlane.xlu0 %2541
        %v2543 = vsub.f32 %v2535, %v2542
        %v2544 = vmul.f32 %v2543, 1.442695
        %v2545 = vpow.pop %v2544
        %v2546 = vsel %vm2207, %v2545, 0.0
        %2547 = vadd.xlane.f32.xlu0 %v2546
        %v2548 = vpop.xlane.xlu0 %2547
        %v2549 = vrcp.pop %v2548
        %v2550 = vmul.f32 %v2545, %v2549
        %v2551 = vpack.c.bf16 %v2550, %v2550
        %2552 = vrot.lane.b32.xlu0 %v2154, 32
        %v2553 = vpop.permute.xlu0 %2552
        %v2555 = vsel %vm2207, %v2551, 0
        %v2558 = vsel %vm2223, %v2553, 0
        %2560 = vmatprep.subr.bf16.mxu0 0
        %2561 = vmatpush1.bf16.msra.mxu0 %v2558
        %2562 = vmatprep.subr.bf16.mxu0 0
        %2563 = vmatpush1.bf16.msra.mxu0 0
        %2564 = vmatprep.subr.bf16.mxu0 0
        %2565 = vmatpush1.bf16.msra.mxu0 0
        %2566 = vmatprep.subr.bf16.mxu0 0
        %2567 = vmatpush1.bf16.msra.mxu0 0
        %2568 = vmatprep.subr.bf16.mxu0 0
        %2569 = vmatpush1.bf16.msra.mxu0 0
        %2570 = vmatprep.subr.bf16.mxu0 0
        %2571 = vmatpush1.bf16.msra.mxu0 0
        %2572 = vmatprep.subr.bf16.mxu0 0
        %2573 = vmatpush1.bf16.msra.mxu0 0
        %2574 = vmatprep.subr.bf16.mxu0 0
        %2575 = vmatpush1.bf16.msra.mxu0 0
        %2576 = vmatprep.subr.bf16.mxu0 0
        %2577 = vmatpush1.bf16.msra.mxu0 0
        %2578 = vmatprep.subr.bf16.mxu0 0
        %2579 = vmatpush1.bf16.msra.mxu0 0
        %2580 = vmatprep.subr.bf16.mxu0 0
        %2581 = vmatpush1.bf16.msra.mxu0 0
        %2582 = vmatprep.subr.bf16.mxu0 0
        %2583 = vmatpush1.bf16.msra.mxu0 0
        %2584 = vmatprep.subr.bf16.mxu0 0
        %2585 = vmatpush1.bf16.msra.mxu0 0
        %2586 = vmatprep.subr.bf16.mxu0 0
        %2587 = vmatpush1.bf16.msra.mxu0 0
        %2588 = vmatprep.subr.bf16.mxu0 0
        %2589 = vmatpush1.bf16.msra.mxu0 0
        %2590 = vmatprep.subr.bf16.mxu0 0
        %2591 = vmatpush1.bf16.msra.mxu0 0
        %2592 = vmatprep.mubr.bf16.mxu0 0
        %2593 = vmatmul.mubr.bf16.gmra.mrb[0].mxu0 %v2555
        %v2594 = vpop.f32.mrb[0].mxu0
        %v2595 = vadd.f32 0.0, %v2594
        %v2596 = vpop.f32.mrb[0].mxu0
        %v2597 = vpop.f32.mrb[0].mxu0
        %v2598 = vpop.f32.mrb[0].mxu0
        %2599 = vdwg.mxu0
        %2601 = vrot.lane.b32.xlu0 %v2375, 32
        %v2602 = vpop.permute.xlu0 %2601
        %2605 = vrot.lane.b32.xlu0 %v2485, 64
        %v2606 = vpop.permute.xlu0 %2605
        %2609 = vrot.lane.b32.xlu0 %v2595, 96
        %v2610 = vpop.permute.xlu0 %2609
        %v2612 = vsel %vm1849, %v2262, %v2602
        %vm2613 = vcmask 523264
        %v2614 = vsel %vm2613, %v2612, %v2606
        %vm2615 = vcmask 785408
        %v2616 = vsel %vm2615, %v2614, %v2610
        %v2617 = vpack.c.bf16 %v2616, %v2616
        %v2618 = vld [vmem:[#allocation17] sm:$0xf]
        %v2619 = vld [vmem:[#allocation17 + $0x4] sm:$0xf]
        %v2620 = vld [vmem:[#allocation17 + $0x8] sm:$0xf]
        %v2621 = vld [vmem:[#allocation17 + $0xc] sm:$0xf]
        %v2622 = vld [vmem:[#allocation17 + $0x10] sm:$0xf]
        %v2623 = vld [vmem:[#allocation17 + $0x14] sm:$0xf]
        %v2624 = vld [vmem:[#allocation17 + $0x18] sm:$0xf]
        %v2625 = vld [vmem:[#allocation17 + $0x1c] sm:$0xf]
        %v2626 = vld [vmem:[#allocation17 + $0x20] sm:$0xf]
        %v2627 = vld [vmem:[#allocation17 + $0x24] sm:$0xf]
        %v2628 = vld [vmem:[#allocation17 + $0x28] sm:$0xf]
        %v2629 = vld [vmem:[#allocation17 + $0x2c] sm:$0xf]
        %v2630 = vld [vmem:[#allocation17 + $0x30] sm:$0xf]
        %v2631 = vld [vmem:[#allocation17 + $0x34] sm:$0xf]
        %v2632 = vld [vmem:[#allocation17 + $0x38] sm:$0xf]
        %v2633 = vld [vmem:[#allocation17 + $0x3c] sm:$0xf]
        %v2634 = vld [vmem:[#allocation19] sm:$0x1]
        %v2636 = vlaneseq
        %v2637 = vshrl.u32 %v2636, 7
        %v2638 = vsub.s32 0, %v2637
        %v2639 = vrot.slane %v2634, %v2638
        %v2657 = vunpack.c.l.b16 %v2618
        %v2658 = vunpack.c.l.b16 %v2619
        %v2659 = vunpack.c.l.b16 %v2620
        %v2660 = vunpack.c.l.b16 %v2621
        %v2661 = vunpack.c.l.b16 %v2622
        %v2662 = vunpack.c.l.b16 %v2623
        %v2663 = vunpack.c.l.b16 %v2624
        %v2664 = vunpack.c.l.b16 %v2625
        %v2665 = vunpack.c.l.b16 %v2626
        %v2666 = vunpack.c.l.b16 %v2627
        %v2667 = vunpack.c.l.b16 %v2628
        %v2668 = vunpack.c.l.b16 %v2629
        %v2669 = vunpack.c.l.b16 %v2630
        %v2670 = vunpack.c.l.b16 %v2631
        %v2671 = vunpack.c.l.b16 %v2632
        %v2672 = vunpack.c.l.b16 %v2633
        %v2673 = vpack.c.b16 %v2658, %v2657
        %v2674 = vpack.c.b16 %v2660, %v2659
        %v2675 = vpack.c.b16 %v2662, %v2661
        %v2676 = vpack.c.b16 %v2664, %v2663
        %v2677 = vpack.c.b16 %v2666, %v2665
        %v2678 = vpack.c.b16 %v2668, %v2667
        %v2679 = vpack.c.b16 %v2670, %v2669
        %v2680 = vpack.c.b16 %v2672, %v2671
        %2689 = vmatprep.subr.bf16.mxu0 0
        %2690 = vmatpush1.bf16.msra.mxu0 %v2673
        %2691 = vmatprep.subr.bf16.mxu0 0
        %2692 = vmatpush1.bf16.msra.mxu0 %v2674
        %2693 = vmatprep.subr.bf16.mxu0 0
        %2694 = vmatpush1.bf16.msra.mxu0 %v2675
        %2695 = vmatprep.subr.bf16.mxu0 0
        %2696 = vmatpush1.bf16.msra.mxu0 %v2676
        %2697 = vmatprep.subr.bf16.mxu0 0
        %2698 = vmatpush1.bf16.msra.mxu0 %v2677
        %2699 = vmatprep.subr.bf16.mxu0 0
        %2700 = vmatpush1.bf16.msra.mxu0 %v2678
        %2701 = vmatprep.subr.bf16.mxu0 0
        %2702 = vmatpush1.bf16.msra.mxu0 %v2679
        %2703 = vmatprep.subr.bf16.mxu0 0
        %2704 = vmatpush1.bf16.msra.mxu0 %v2680
        %2705 = vmatprep.subr.bf16.mxu0 0
        %2706 = vmatpush1.bf16.msra.mxu0 0
        %2707 = vmatprep.subr.bf16.mxu0 0
        %2708 = vmatpush1.bf16.msra.mxu0 0
        %2709 = vmatprep.subr.bf16.mxu0 0
        %2710 = vmatpush1.bf16.msra.mxu0 0
        %2711 = vmatprep.subr.bf16.mxu0 0
        %2712 = vmatpush1.bf16.msra.mxu0 0
        %2713 = vmatprep.subr.bf16.mxu0 0
        %2714 = vmatpush1.bf16.msra.mxu0 0
        %2715 = vmatprep.subr.bf16.mxu0 0
        %2716 = vmatpush1.bf16.msra.mxu0 0
        %2717 = vmatprep.subr.bf16.mxu0 0
        %2718 = vmatpush1.bf16.msra.mxu0 0
        %2719 = vmatprep.subr.bf16.mxu0 0
        %2720 = vmatpush1.bf16.msra.mxu0 0
        %2721 = vmatprep.mubr.bf16.mxu0 0
        %2722 = vmatmul.mubr.bf16.gmra.mrb[0].mxu0 %v2617
        %v2723 = vpop.f32.mrb[0].mxu0
        %v2724 = vadd.f32 %v2639, %v2723
        %v2725 = vpop.f32.mrb[0].mxu0
        %v2726 = vpop.f32.mrb[0].mxu0
        %v2727 = vpop.f32.mrb[0].mxu0
        %2728 = vdwg.mxu0
        %v2729 = vld [vmem:[#allocation26] sm:$0x1]
        %v2730 = vld [vmem:[#allocation28] sm:$0x1]
        %v2731 = vadd.f32 %v2724, %v1888
        %2732 = vadd.xlane.f32.xlu0 %v2731
        %v2733 = vpop.xlane.xlu0 %2732
        %v2734 = vrcp.pop 128.0
        %v2735 = vmul.f32 %v2733, %v2734
        %v2736 = vsub.f32 %v2731, %v2735
        %v2737 = vmul.f32 %v2736, %v2736
        %2738 = vadd.xlane.f32.xlu0 %v2737
        %v2739 = vpop.xlane.xlu0 %2738
        %v2740 = vmul.f32 %v2739, %v2734
        %v2741 = vadd.f32 %v2740, 1e-05
        %v2742 = vrsqrt.pop %v2741
        %v2743 = vmul.f32 %v2736, %v2742
        %v2745 = vlaneseq
        %v2746 = vshrl.u32 %v2745, 7
        %v2747 = vsub.s32 0, %v2746
        %v2748 = vrot.slane %v2729, %v2747
        %v2750 = vmul.f32 %v2743, %v2748
        %v2752 = vlaneseq
        %v2753 = vshrl.u32 %v2752, 7
        %v2754 = vsub.s32 0, %v2753
        %v2755 = vrot.slane %v2730, %v2754
        %v2757 = vadd.f32 %v2750, %v2755
        %v2758 = vld [vmem:[#allocation20] sm:$0xf]
        %v2759 = vld [vmem:[#allocation20 + $0x4] sm:$0xf]
        %v2760 = vld [vmem:[#allocation20 + $0x8] sm:$0xf]
        %v2761 = vld [vmem:[#allocation20 + $0xc] sm:$0xf]
        %v2762 = vld [vmem:[#allocation20 + $0x10] sm:$0xf]
        %v2763 = vld [vmem:[#allocation20 + $0x14] sm:$0xf]
        %v2764 = vld [vmem:[#allocation20 + $0x18] sm:$0xf]
        %v2765 = vld [vmem:[#allocation20 + $0x1c] sm:$0xf]
        %v2766 = vld [vmem:[#allocation20 + $0x20] sm:$0xf]
        %v2767 = vld [vmem:[#allocation20 + $0x24] sm:$0xf]
        %v2768 = vld [vmem:[#allocation20 + $0x28] sm:$0xf]
        %v2769 = vld [vmem:[#allocation20 + $0x2c] sm:$0xf]
        %v2770 = vld [vmem:[#allocation20 + $0x30] sm:$0xf]
        %v2771 = vld [vmem:[#allocation20 + $0x34] sm:$0xf]
        %v2772 = vld [vmem:[#allocation20 + $0x38] sm:$0xf]
        %v2773 = vld [vmem:[#allocation20 + $0x3c] sm:$0xf]
        %v2774 = vld [vmem:[#allocation22] sm:$0x1]
        %v2775 = vld [vmem:[#allocation23] sm:$0xf]
        %v2776 = vld [vmem:[#allocation23 + $0x4] sm:$0xf]
        %v2777 = vld [vmem:[#allocation23 + $0x8] sm:$0xf]
        %v2778 = vld [vmem:[#allocation23 + $0xc] sm:$0xf]
        %v2779 = vld [vmem:[#allocation23 + $0x10] sm:$0xf]
        %v2780 = vld [vmem:[#allocation23 + $0x14] sm:$0xf]
        %v2781 = vld [vmem:[#allocation23 + $0x18] sm:$0xf]
        %v2782 = vld [vmem:[#allocation23 + $0x1c] sm:$0xf]
        %v2783 = vld [vmem:[#allocation23 + $0x20] sm:$0xf]
        %v2784 = vld [vmem:[#allocation23 + $0x24] sm:$0xf]
        %v2785 = vld [vmem:[#allocation23 + $0x28] sm:$0xf]
        %v2786 = vld [vmem:[#allocation23 + $0x2c] sm:$0xf]
        %v2787 = vld [vmem:[#allocation23 + $0x30] sm:$0xf]
        %v2788 = vld [vmem:[#allocation23 + $0x34] sm:$0xf]
        %v2789 = vld [vmem:[#allocation23 + $0x38] sm:$0xf]
        %v2790 = vld [vmem:[#allocation23 + $0x3c] sm:$0xf]
        %v2791 = vld [vmem:[#allocation25] sm:$0x1]
        %v2792 = vpack.c.bf16 %v2757, %v2757
        %v2794 = vlaneseq
        %v2795 = vshrl.u32 %v2794, 7
        %v2796 = vsub.s32 0, %v2795
        %v2797 = vrot.slane %v2774, %v2796
        %v2815 = vunpack.c.l.b16 %v2758
        %v2816 = vunpack.c.l.b16 %v2759
        %v2817 = vunpack.c.l.b16 %v2760
        %v2818 = vunpack.c.l.b16 %v2761
        %v2819 = vunpack.c.l.b16 %v2762
        %v2820 = vunpack.c.l.b16 %v2763
        %v2821 = vunpack.c.l.b16 %v2764
        %v2822 = vunpack.c.l.b16 %v2765
        %v2823 = vunpack.c.l.b16 %v2766
        %v2824 = vunpack.c.l.b16 %v2767
        %v2825 = vunpack.c.l.b16 %v2768
        %v2826 = vunpack.c.l.b16 %v2769
        %v2827 = vunpack.c.l.b16 %v2770
        %v2828 = vunpack.c.l.b16 %v2771
        %v2829 = vunpack.c.l.b16 %v2772
        %v2830 = vunpack.c.l.b16 %v2773
        %v2831 = vpack.c.b16 %v2816, %v2815
        %v2832 = vpack.c.b16 %v2818, %v2817
        %v2833 = vpack.c.b16 %v2820, %v2819
        %v2834 = vpack.c.b16 %v2822, %v2821
        %v2835 = vpack.c.b16 %v2824, %v2823
        %v2836 = vpack.c.b16 %v2826, %v2825
        %v2837 = vpack.c.b16 %v2828, %v2827
        %v2838 = vpack.c.b16 %v2830, %v2829
        %2847 = vmatprep.subr.bf16.mxu0 0
        %2848 = vmatpush1.bf16.msra.mxu0 %v2831
        %2849 = vmatprep.subr.bf16.mxu0 0
        %2850 = vmatpush1.bf16.msra.mxu0 %v2832
        %2851 = vmatprep.subr.bf16.mxu0 0
        %2852 = vmatpush1.bf16.msra.mxu0 %v2833
        %2853 = vmatprep.subr.bf16.mxu0 0
        %2854 = vmatpush1.bf16.msra.mxu0 %v2834
        %2855 = vmatprep.subr.bf16.mxu0 0
        %2856 = vmatpush1.bf16.msra.mxu0 %v2835
        %2857 = vmatprep.subr.bf16.mxu0 0
        %2858 = vmatpush1.bf16.msra.mxu0 %v2836
        %2859 = vmatprep.subr.bf16.mxu0 0
        %2860 = vmatpush1.bf16.msra.mxu0 %v2837
        %2861 = vmatprep.subr.bf16.mxu0 0
        %2862 = vmatpush1.bf16.msra.mxu0 %v2838
        %2863 = vmatprep.subr.bf16.mxu0 0
        %2864 = vmatpush1.bf16.msra.mxu0 0
        %2865 = vmatprep.subr.bf16.mxu0 0
        %2866 = vmatpush1.bf16.msra.mxu0 0
        %2867 = vmatprep.subr.bf16.mxu0 0
        %2868 = vmatpush1.bf16.msra.mxu0 0
        %2869 = vmatprep.subr.bf16.mxu0 0
        %2870 = vmatpush1.bf16.msra.mxu0 0
        %2871 = vmatprep.subr.bf16.mxu0 0
        %2872 = vmatpush1.bf16.msra.mxu0 0
        %2873 = vmatprep.subr.bf16.mxu0 0
        %2874 = vmatpush1.bf16.msra.mxu0 0
        %2875 = vmatprep.subr.bf16.mxu0 0
        %2876 = vmatpush1.bf16.msra.mxu0 0
        %2877 = vmatprep.subr.bf16.mxu0 0
        %2878 = vmatpush1.bf16.msra.mxu0 0
        %2879 = vmatprep.mubr.bf16.mxu0 0
        %2880 = vmatmul.mubr.bf16.gmra.mrb[0].mxu0 %v2792
        %v2881 = vpop.f32.mrb[0].mxu0
        %v2882 = vadd.f32 %v2797, %v2881
        %v2883 = vpop.f32.mrb[0].mxu0
        %v2884 = vpop.f32.mrb[0].mxu0
        %v2885 = vpop.f32.mrb[0].mxu0
        %2886 = vdwg.mxu0
        %v2887 = vmax.f32 %v2882, 0.0
        %v2888 = vpack.c.bf16 %v2887, %v2887
        %v2890 = vlaneseq
        %v2891 = vshrl.u32 %v2890, 7
        %v2892 = vsub.s32 0, %v2891
        %v2893 = vrot.slane %v2791, %v2892
        %v2911 = vunpack.c.l.b16 %v2775
        %v2912 = vunpack.c.l.b16 %v2776
        %v2913 = vunpack.c.l.b16 %v2777
        %v2914 = vunpack.c.l.b16 %v2778
        %v2915 = vunpack.c.l.b16 %v2779
        %v2916 = vunpack.c.l.b16 %v2780
        %v2917 = vunpack.c.l.b16 %v2781
        %v2918 = vunpack.c.l.b16 %v2782
        %v2919 = vunpack.c.l.b16 %v2783
        %v2920 = vunpack.c.l.b16 %v2784
        %v2921 = vunpack.c.l.b16 %v2785
        %v2922 = vunpack.c.l.b16 %v2786
        %v2923 = vunpack.c.l.b16 %v2787
        %v2924 = vunpack.c.l.b16 %v2788
        %v2925 = vunpack.c.l.b16 %v2789
        %v2926 = vunpack.c.l.b16 %v2790
        %v2927 = vpack.c.b16 %v2912, %v2911
        %v2928 = vpack.c.b16 %v2914, %v2913
        %v2929 = vpack.c.b16 %v2916, %v2915
        %v2930 = vpack.c.b16 %v2918, %v2917
        %v2931 = vpack.c.b16 %v2920, %v2919
        %v2932 = vpack.c.b16 %v2922, %v2921
        %v2933 = vpack.c.b16 %v2924, %v2923
        %v2934 = vpack.c.b16 %v2926, %v2925
        %2943 = vmatprep.subr.bf16.mxu0 0
        %2944 = vmatpush1.bf16.msra.mxu0 %v2927
        %2945 = vmatprep.subr.bf16.mxu0 0
        %2946 = vmatpush1.bf16.msra.mxu0 %v2928
        %2947 = vmatprep.subr.bf16.mxu0 0
        %2948 = vmatpush1.bf16.msra.mxu0 %v2929
        %2949 = vmatprep.subr.bf16.mxu0 0
        %2950 = vmatpush1.bf16.msra.mxu0 %v2930
        %2951 = vmatprep.subr.bf16.mxu0 0
        %2952 = vmatpush1.bf16.msra.mxu0 %v2931
        %2953 = vmatprep.subr.bf16.mxu0 0
        %2954 = vmatpush1.bf16.msra.mxu0 %v2932
        %2955 = vmatprep.subr.bf16.mxu0 0
        %2956 = vmatpush1.bf16.msra.mxu0 %v2933
        %2957 = vmatprep.subr.bf16.mxu0 0
        %2958 = vmatpush1.bf16.msra.mxu0 %v2934
        %2959 = vmatprep.subr.bf16.mxu0 0
        %2960 = vmatpush1.bf16.msra.mxu0 0
        %2961 = vmatprep.subr.bf16.mxu0 0
        %2962 = vmatpush1.bf16.msra.mxu0 0
        %2963 = vmatprep.subr.bf16.mxu0 0
        %2964 = vmatpush1.bf16.msra.mxu0 0
        %2965 = vmatprep.subr.bf16.mxu0 0
        %2966 = vmatpush1.bf16.msra.mxu0 0
        %2967 = vmatprep.subr.bf16.mxu0 0
        %2968 = vmatpush1.bf16.msra.mxu0 0
        %2969 = vmatprep.subr.bf16.mxu0 0
        %2970 = vmatpush1.bf16.msra.mxu0 0
        %2971 = vmatprep.subr.bf16.mxu0 0
        %2972 = vmatpush1.bf16.msra.mxu0 0
        %2973 = vmatprep.subr.bf16.mxu0 0
        %2974 = vmatpush1.bf16.msra.mxu0 0
        %2975 = vmatprep.mubr.bf16.mxu0 0
        %2976 = vmatmul.mubr.bf16.gmra.mrb[0].mxu0 %v2888
        %v2977 = vpop.f32.mrb[0].mxu0
        %v2978 = vadd.f32 %v2893, %v2977
        %v2979 = vpop.f32.mrb[0].mxu0
        %v2980 = vpop.f32.mrb[0].mxu0
        %v2981 = vpop.f32.mrb[0].mxu0
        %2982 = vdwg.mxu0
        %v2983 = vld [vmem:[#allocation29] sm:$0x1]
        %v2984 = vld [vmem:[#allocation31] sm:$0x1]
        %v2985 = vadd.f32 %v2978, %v2757
        %2986 = vadd.xlane.f32.xlu0 %v2985
        %v2987 = vpop.xlane.xlu0 %2986
        %v2988 = vmul.f32 %v2987, %v2734
        %v2989 = vsub.f32 %v2985, %v2988
        %v2990 = vmul.f32 %v2989, %v2989
        %2991 = vadd.xlane.f32.xlu0 %v2990
        %v2992 = vpop.xlane.xlu0 %2991
        %v2993 = vmul.f32 %v2992, %v2734
        %v2994 = vadd.f32 %v2993, 1e-05
        %v2995 = vrsqrt.pop %v2994
        %v2996 = vmul.f32 %v2989, %v2995
        %v2998 = vlaneseq
        %v2999 = vshrl.u32 %v2998, 7
        %v3000 = vsub.s32 0, %v2999
        %v3001 = vrot.slane %v2983, %v3000
        %v3003 = vmul.f32 %v2996, %v3001
        %v3005 = vlaneseq
        %v3006 = vshrl.u32 %v3005, 7
        %v3007 = vsub.s32 0, %v3006
        %v3008 = vrot.slane %v2984, %v3007
        %v3010 = vadd.f32 %v3003, %v3008
        %v3011 = vpack.c.bf16 %v3010, %v3010
        %s3012 = scalar_lea.vmem [#allocation14], 192
        %v3013 = vld [vmem:[%s3012] sm:$0xff]
        %v3014 = vld [vmem:[%s3012 + $0x8] sm:$0xf]
        %v3015 = vld [vmem:[%s3012 + $0xc] sm:$0xff]
        %v3016 = vld [vmem:[%s3012 + $0x14] sm:$0xf]
        %v3017 = vld [vmem:[%s3012 + $0x18] sm:$0xff]
        %v3018 = vld [vmem:[%s3012 + $0x20] sm:$0xf]
        %v3019 = vld [vmem:[%s3012 + $0x24] sm:$0xff]
        %v3020 = vld [vmem:[%s3012 + $0x2c] sm:$0xf]
        %v3021 = vld [vmem:[%s3012 + $0x30] sm:$0xff]
        %v3022 = vld [vmem:[%s3012 + $0x38] sm:$0xf]
        %v3023 = vld [vmem:[%s3012 + $0x3c] sm:$0xff]
        %v3024 = vld [vmem:[%s3012 + $0x44] sm:$0xf]
        %v3025 = vld [vmem:[%s3012 + $0x48] sm:$0xff]
        %v3026 = vld [vmem:[%s3012 + $0x50] sm:$0xf]
        %v3027 = vld [vmem:[%s3012 + $0x54] sm:$0xff]
        %v3028 = vld [vmem:[%s3012 + $0x5c] sm:$0xf]
        %v3029 = vld [vmem:[%s3012 + $0x60] sm:$0xff]
        %v3030 = vld [vmem:[%s3012 + $0x68] sm:$0xf]
        %v3031 = vld [vmem:[%s3012 + $0x6c] sm:$0xff]
        %v3032 = vld [vmem:[%s3012 + $0x74] sm:$0xf]
        %v3033 = vld [vmem:[%s3012 + $0x78] sm:$0xff]
        %v3034 = vld [vmem:[%s3012 + $0x80] sm:$0xf]
        %v3035 = vld [vmem:[%s3012 + $0x84] sm:$0xff]
        %v3036 = vld [vmem:[%s3012 + $0x8c] sm:$0xf]
        %v3037 = vld [vmem:[%s3012 + $0x90] sm:$0xff]
        %v3038 = vld [vmem:[%s3012 + $0x98] sm:$0xf]
        %v3039 = vld [vmem:[%s3012 + $0x9c] sm:$0xff]
        %v3040 = vld [vmem:[%s3012 + $0xa4] sm:$0xf]
        %v3041 = vld [vmem:[%s3012 + $0xa8] sm:$0xff]
        %v3042 = vld [vmem:[%s3012 + $0xb0] sm:$0xf]
        %v3043 = vld [vmem:[%s3012 + $0xb4] sm:$0xff]
        %v3044 = vld [vmem:[%s3012 + $0xbc] sm:$0xf]
        %s3045 = scalar_lea.vmem [#allocation16], 3
        %v3046 = vld [vmem:[%s3045] sm:$0x7]
        %v3048 = vlaneseq
        %v3049 = vshrl.u32 %v3048, 7
        %v3050 = vsub.s32 0, %v3049
        %v3051 = vrot.slane %v3046, %v3050
        %v3052 = vlaneseq
        %v3053 = vshrl.u32 %v3052, 7
        %v3054 = vsub.s32 1, %v3053
        %v3055 = vrot.slane %v3046, %v3054
        %v3056 = vlaneseq
        %v3057 = vshrl.u32 %v3056, 7
        %v3058 = vsub.s32 2, %v3057
        %v3059 = vrot.slane %v3046, %v3058
        %v3095 = vunpack.c.l.b16 %v3013
        %v3096 = vunpack.c.h.b16 %v3013
        %v3097 = vunpack.c.l.b16 %v3014
        %v3098 = vunpack.c.l.b16 %v3015
        %v3099 = vunpack.c.h.b16 %v3015
        %v3100 = vunpack.c.l.b16 %v3016
        %v3101 = vunpack.c.l.b16 %v3017
        %v3102 = vunpack.c.h.b16 %v3017
        %v3103 = vunpack.c.l.b16 %v3018
        %v3104 = vunpack.c.l.b16 %v3019
        %v3105 = vunpack.c.h.b16 %v3019
        %v3106 = vunpack.c.l.b16 %v3020
        %v3107 = vunpack.c.l.b16 %v3021
        %v3108 = vunpack.c.h.b16 %v3021
        %v3109 = vunpack.c.l.b16 %v3022
        %v3110 = vunpack.c.l.b16 %v3023
        %v3111 = vunpack.c.h.b16 %v3023
        %v3112 = vunpack.c.l.b16 %v3024
        %v3113 = vunpack.c.l.b16 %v3025
        %v3114 = vunpack.c.h.b16 %v3025
        %v3115 = vunpack.c.l.b16 %v3026
        %v3116 = vunpack.c.l.b16 %v3027
        %v3117 = vunpack.c.h.b16 %v3027
        %v3118 = vunpack.c.l.b16 %v3028
        %v3119 = vunpack.c.l.b16 %v3029
        %v3120 = vunpack.c.h.b16 %v3029
        %v3121 = vunpack.c.l.b16 %v3030
        %v3122 = vunpack.c.l.b16 %v3031
        %v3123 = vunpack.c.h.b16 %v3031
        %v3124 = vunpack.c.l.b16 %v3032
        %v3125 = vunpack.c.l.b16 %v3033
        %v3126 = vunpack.c.h.b16 %v3033
        %v3127 = vunpack.c.l.b16 %v3034
        %v3128 = vunpack.c.l.b16 %v3035
        %v3129 = vunpack.c.h.b16 %v3035
        %v3130 = vunpack.c.l.b16 %v3036
        %v3131 = vunpack.c.l.b16 %v3037
        %v3132 = vunpack.c.h.b16 %v3037
        %v3133 = vunpack.c.l.b16 %v3038
        %v3134 = vunpack.c.l.b16 %v3039
        %v3135 = vunpack.c.h.b16 %v3039
        %v3136 = vunpack.c.l.b16 %v3040
        %v3137 = vunpack.c.l.b16 %v3041
        %v3138 = vunpack.c.h.b16 %v3041
        %v3139 = vunpack.c.l.b16 %v3042
        %v3140 = vunpack.c.l.b16 %v3043
        %v3141 = vunpack.c.h.b16 %v3043
        %v3142 = vunpack.c.l.b16 %v3044
        %v3143 = vpack.c.b16 %v3098, %v3095
        %v3144 = vpack.c.b16 %v3099, %v3096
        %v3145 = vpack.c.b16 %v3100, %v3097
        %v3146 = vpack.c.b16 %v3104, %v3101
        %v3147 = vpack.c.b16 %v3105, %v3102
        %v3148 = vpack.c.b16 %v3106, %v3103
        %v3149 = vpack.c.b16 %v3110, %v3107
        %v3150 = vpack.c.b16 %v3111, %v3108
        %v3151 = vpack.c.b16 %v3112, %v3109
        %v3152 = vpack.c.b16 %v3116, %v3113
        %v3153 = vpack.c.b16 %v3117, %v3114
        %v3154 = vpack.c.b16 %v3118, %v3115
        %v3155 = vpack.c.b16 %v3122, %v3119
        %v3156 = vpack.c.b16 %v3123, %v3120
        %v3157 = vpack.c.b16 %v3124, %v3121
        %v3158 = vpack.c.b16 %v3128, %v3125
        %v3159 = vpack.c.b16 %v3129, %v3126
        %v3160 = vpack.c.b16 %v3130, %v3127
        %v3161 = vpack.c.b16 %v3134, %v3131
        %v3162 = vpack.c.b16 %v3135, %v3132
        %v3163 = vpack.c.b16 %v3136, %v3133
        %v3164 = vpack.c.b16 %v3140, %v3137
        %v3165 = vpack.c.b16 %v3141, %v3138
        %v3166 = vpack.c.b16 %v3142, %v3139
        %3191 = vmatprep.subr.bf16.mxu0 %v3144
        %3192 = vmatpush1.bf16.msra.mxu0 %v3143
        %3193 = vmatprep.subr.bf16.mxu0 %v3147
        %3194 = vmatpush1.bf16.msra.mxu0 %v3146
        %3195 = vmatprep.subr.bf16.mxu0 %v3150
        %3196 = vmatpush1.bf16.msra.mxu0 %v3149
        %3197 = vmatprep.subr.bf16.mxu0 %v3153
        %3198 = vmatpush1.bf16.msra.mxu0 %v3152
        %3199 = vmatprep.subr.bf16.mxu0 %v3156
        %3200 = vmatpush1.bf16.msra.mxu0 %v3155
        %3201 = vmatprep.subr.bf16.mxu0 %v3159
        %3202 = vmatpush1.bf16.msra.mxu0 %v3158
        %3203 = vmatprep.subr.bf16.mxu0 %v3162
        %3204 = vmatpush1.bf16.msra.mxu0 %v3161
        %3205 = vmatprep.subr.bf16.mxu0 %v3165
        %3206 = vmatpush1.bf16.msra.mxu0 %v3164
        %3207 = vmatprep.subr.bf16.mxu0 0
        %3208 = vmatpush1.bf16.msra.mxu0 0
        %3209 = vmatprep.subr.bf16.mxu0 0
        %3210 = vmatpush1.bf16.msra.mxu0 0
        %3211 = vmatprep.subr.bf16.mxu0 0
        %3212 = vmatpush1.bf16.msra.mxu0 0
        %3213 = vmatprep.subr.bf16.mxu0 0
        %3214 = vmatpush1.bf16.msra.mxu0 0
        %3215 = vmatprep.subr.bf16.mxu0 0
        %3216 = vmatpush1.bf16.msra.mxu0 0
        %3217 = vmatprep.subr.bf16.mxu0 0
        %3218 = vmatpush1.bf16.msra.mxu0 0
        %3219 = vmatprep.subr.bf16.mxu0 0
        %3220 = vmatpush1.bf16.msra.mxu0 0
        %3221 = vmatprep.subr.bf16.mxu0 0
        %3222 = vmatpush1.bf16.msra.mxu0 0
        %3223 = vmatprep.mubr.bf16.mxu0 0
        %3224 = vmatmul.mubr.bf16.gmra.mrb[0].mxu0 %v3011
        %v3225 = vpop.f32.mrb[0].mxu0
        %v3226 = vadd.f32 %v3051, %v3225
        %v3227 = vpop.f32.mrb[0].mxu0
        %v3228 = vadd.f32 %v3055, %v3227
        %v3229 = vpop.f32.mrb[0].mxu0
        %v3230 = vpop.f32.mrb[0].mxu0
        %3231 = vdwg.mxu0
        %3232 = vmatprep.subr.bf16.mxu0 0
        %3233 = vmatpush1.bf16.msra.mxu0 %v3145
        %3234 = vmatprep.subr.bf16.mxu0 0
        %3235 = vmatpush1.bf16.msra.mxu0 %v3148
        %3236 = vmatprep.subr.bf16.mxu0 0
        %3237 = vmatpush1.bf16.msra.mxu0 %v3151
        %3238 = vmatprep.subr.bf16.mxu0 0
        %3239 = vmatpush1.bf16.msra.mxu0 %v3154
        %3240 = vmatprep.subr.bf16.mxu0 0
        %3241 = vmatpush1.bf16.msra.mxu0 %v3157
        %3242 = vmatprep.subr.bf16.mxu0 0
        %3243 = vmatpush1.bf16.msra.mxu0 %v3160
        %3244 = vmatprep.subr.bf16.mxu0 0
        %3245 = vmatpush1.bf16.msra.mxu0 %v3163
        %3246 = vmatprep.subr.bf16.mxu0 0
        %3247 = vmatpush1.bf16.msra.mxu0 %v3166
        %3248 = vmatprep.subr.bf16.mxu0 0
        %3249 = vmatpush1.bf16.msra.mxu0 0
        %3250 = vmatprep.subr.bf16.mxu0 0
        %3251 = vmatpush1.bf16.msra.mxu0 0
        %3252 = vmatprep.subr.bf16.mxu0 0
        %3253 = vmatpush1.bf16.msra.mxu0 0
        %3254 = vmatprep.subr.bf16.mxu0 0
        %3255 = vmatpush1.bf16.msra.mxu0 0
        %3256 = vmatprep.subr.bf16.mxu0 0
        %3257 = vmatpush1.bf16.msra.mxu0 0
        %3258 = vmatprep.subr.bf16.mxu0 0
        %3259 = vmatpush1.bf16.msra.mxu0 0
        %3260 = vmatprep.subr.bf16.mxu0 0
        %3261 = vmatpush1.bf16.msra.mxu0 0
        %3262 = vmatprep.subr.bf16.mxu0 0
        %3263 = vmatpush1.bf16.msra.mxu0 0
        %3264 = vmatprep.mubr.bf16.mxu0 0
        %3265 = vmatmul.mubr.bf16.gmra.mrb[0].mxu0 %v3011
        %v3266 = vpop.f32.mrb[0].mxu0
        %v3267 = vadd.f32 %v3059, %v3266
        %v3268 = vpop.f32.mrb[0].mxu0
        %v3269 = vpop.f32.mrb[0].mxu0
        %v3270 = vpop.f32.mrb[0].mxu0
        %3271 = vdwg.mxu0
        %v3272 = vpack.c.bf16 %v3226, %v3226
        %v3273 = vpack.c.bf16 %v3228, %v3228
        %v3274 = vpack.c.bf16 %v3267, %v3267
        %v3276 = vsel %vm1849, %v3272, 0
        %v3279 = vsel %vm1849, %v3273, 0
        %3281 = vmatprep.subr.bf16.mxu0 0
        %3282 = vmatpush1.bf16.xpose.msra.mxu0 %v3279
        %3283 = vmatprep.subr.bf16.mxu0 0
        %3284 = vmatpush1.bf16.xpose.msra.mxu0 0
        %3285 = vmatprep.subr.bf16.mxu0 0
        %3286 = vmatpush1.bf16.xpose.msra.mxu0 0
        %3287 = vmatprep.subr.bf16.mxu0 0
        %3288 = vmatpush1.bf16.xpose.msra.mxu0 0
        %3289 = vmatprep.subr.bf16.mxu0 0
        %3290 = vmatpush1.bf16.xpose.msra.mxu0 0
        %3291 = vmatprep.subr.bf16.mxu0 0
        %3292 = vmatpush1.bf16.xpose.msra.mxu0 0
        %3293 = vmatprep.subr.bf16.mxu0 0
        %3294 = vmatpush1.bf16.xpose.msra.mxu0 0
        %3295 = vmatprep.subr.bf16.mxu0 0
        %3296 = vmatpush1.bf16.xpose.msra.mxu0 0
        %3297 = vmatprep.subr.bf16.mxu0 0
        %3298 = vmatpush1.bf16.xpose.msra.mxu0 0
        %3299 = vmatprep.subr.bf16.mxu0 0
        %3300 = vmatpush1.bf16.xpose.msra.mxu0 0
        %3301 = vmatprep.subr.bf16.mxu0 0
        %3302 = vmatpush1.bf16.xpose.msra.mxu0 0
        %3303 = vmatprep.subr.bf16.mxu0 0
        %3304 = vmatpush1.bf16.xpose.msra.mxu0 0
        %3305 = vmatprep.subr.bf16.mxu0 0
        %3306 = vmatpush1.bf16.xpose.msra.mxu0 0
        %3307 = vmatprep.subr.bf16.mxu0 0
        %3308 = vmatpush1.bf16.xpose.msra.mxu0 0
        %3309 = vmatprep.subr.bf16.mxu0 0
        %3310 = vmatpush1.bf16.xpose.msra.mxu0 0
        %3311 = vmatprep.subr.bf16.mxu0 0
        %3312 = vmatpush1.bf16.xpose.msra.mxu0 0
        %3313 = vmatprep.mubr.bf16.mxu0 0
        %3314 = vmatmul.mubr.bf16.gmra.mrb[0].mxu0 %v3276
        %v3315 = vpop.f32.mrb[0].mxu0
        %v3316 = vadd.f32 %v2159, %v3315
        %v3317 = vpop.f32.mrb[0].mxu0
        %v3318 = vpop.f32.mrb[0].mxu0
        %v3319 = vpop.f32.mrb[0].mxu0
        %3320 = vdwg.mxu0
        %v3321 = vsel %vm2207, %v3316, -inf
        %3322 = vmax.xlane.f32.xlu0 %v3321
        %v3323 = vpop.xlane.xlu0 %3322
        %v3324 = vsub.f32 %v3316, %v3323
        %v3325 = vmul.f32 %v3324, 1.442695
        %v3326 = vpow.pop %v3325
        %v3327 = vsel %vm2207, %v3326, 0.0
        %3328 = vadd.xlane.f32.xlu0 %v3327
        %v3329 = vpop.xlane.xlu0 %3328
        %v3330 = vrcp.pop %v3329
        %v3331 = vmul.f32 %v3326, %v3330
        %v3332 = vpack.c.bf16 %v3331, %v3331
        %v3334 = vsel %vm2207, %v3332, 0
        %v3337 = vsel %vm2223, %v3274, 0
        %3339 = vmatprep.subr.bf16.mxu0 0
        %3340 = vmatpush1.bf16.msra.mxu0 %v3337
        %3341 = vmatprep.subr.bf16.mxu0 0
        %3342 = vmatpush1.bf16.msra.mxu0 0
        %3343 = vmatprep.subr.bf16.mxu0 0
        %3344 = vmatpush1.bf16.msra.mxu0 0
        %3345 = vmatprep.subr.bf16.mxu0 0
        %3346 = vmatpush1.bf16.msra.mxu0 0
        %3347 = vmatprep.subr.bf16.mxu0 0
        %3348 = vmatpush1.bf16.msra.mxu0 0
        %3349 = vmatprep.subr.bf16.mxu0 0
        %3350 = vmatpush1.bf16.msra.mxu0 0
        %3351 = vmatprep.subr.bf16.mxu0 0
        %3352 = vmatpush1.bf16.msra.mxu0 0
        %3353 = vmatprep.subr.bf16.mxu0 0
        %3354 = vmatpush1.bf16.msra.mxu0 0
        %3355 = vmatprep.subr.bf16.mxu0 0
        %3356 = vmatpush1.bf16.msra.mxu0 0
        %3357 = vmatprep.subr.bf16.mxu0 0
        %3358 = vmatpush1.bf16.msra.mxu0 0
        %3359 = vmatprep.subr.bf16.mxu0 0
        %3360 = vmatpush1.bf16.msra.mxu0 0
        %3361 = vmatprep.subr.bf16.mxu0 0
        %3362 = vmatpush1.bf16.msra.mxu0 0
        %3363 = vmatprep.subr.bf16.mxu0 0
        %3364 = vmatpush1.bf16.msra.mxu0 0
        %3365 = vmatprep.subr.bf16.mxu0 0
        %3366 = vmatpush1.bf16.msra.mxu0 0
        %3367 = vmatprep.subr.bf16.mxu0 0
        %3368 = vmatpush1.bf16.msra.mxu0 0
        %3369 = vmatprep.subr.bf16.mxu0 0
        %3370 = vmatpush1.bf16.msra.mxu0 0
        %3371 = vmatprep.mubr.bf16.mxu0 0
        %3372 = vmatmul.mubr.bf16.gmra.mrb[0].mxu0 %v3334
        %v3373 = vpop.f32.mrb[0].mxu0
        %v3374 = vadd.f32 0.0, %v3373
        %v3375 = vpop.f32.mrb[0].mxu0
        %v3376 = vpop.f32.mrb[0].mxu0
        %v3377 = vpop.f32.mrb[0].mxu0
        %3378 = vdwg.mxu0
        %3380 = vrot.lane.b32.xlu0 %v3272, 96
        %v3381 = vpop.permute.xlu0 %3380
        %3383 = vrot.lane.b32.xlu0 %v3273, 96
        %v3384 = vpop.permute.xlu0 %3383
        %v3386 = vsel %vm1849, %v3381, 0
        %v3389 = vsel %vm1849, %v3384, 0
        %3391 = vmatprep.subr.bf16.mxu0 0
        %3392 = vmatpush1.bf16.xpose.msra.mxu0 %v3389
        %3393 = vmatprep.subr.bf16.mxu0 0
        %3394 = vmatpush1.bf16.xpose.msra.mxu0 0
        %3395 = vmatprep.subr.bf16.mxu0 0
        %3396 = vmatpush1.bf16.xpose.msra.mxu0 0
        %3397 = vmatprep.subr.bf16.mxu0 0
        %3398 = vmatpush1.bf16.xpose.msra.mxu0 0
        %3399 = vmatprep.subr.bf16.mxu0 0
        %3400 = vmatpush1.bf16.xpose.msra.mxu0 0
        %3401 = vmatprep.subr.bf16.mxu0 0
        %3402 = vmatpush1.bf16.xpose.msra.mxu0 0
        %3403 = vmatprep.subr.bf16.mxu0 0
        %3404 = vmatpush1.bf16.xpose.msra.mxu0 0
        %3405 = vmatprep.subr.bf16.mxu0 0
        %3406 = vmatpush1.bf16.xpose.msra.mxu0 0
        %3407 = vmatprep.subr.bf16.mxu0 0
        %3408 = vmatpush1.bf16.xpose.msra.mxu0 0
        %3409 = vmatprep.subr.bf16.mxu0 0
        %3410 = vmatpush1.bf16.xpose.msra.mxu0 0
        %3411 = vmatprep.subr.bf16.mxu0 0
        %3412 = vmatpush1.bf16.xpose.msra.mxu0 0
        %3413 = vmatprep.subr.bf16.mxu0 0
        %3414 = vmatpush1.bf16.xpose.msra.mxu0 0
        %3415 = vmatprep.subr.bf16.mxu0 0
        %3416 = vmatpush1.bf16.xpose.msra.mxu0 0
        %3417 = vmatprep.subr.bf16.mxu0 0
        %3418 = vmatpush1.bf16.xpose.msra.mxu0 0
        %3419 = vmatprep.subr.bf16.mxu0 0
        %3420 = vmatpush1.bf16.xpose.msra.mxu0 0
        %3421 = vmatprep.subr.bf16.mxu0 0
        %3422 = vmatpush1.bf16.xpose.msra.mxu0 0
        %3423 = vmatprep.mubr.bf16.mxu0 0
        %3424 = vmatmul.mubr.bf16.gmra.mrb[0].mxu0 %v3386
        %v3425 = vpop.f32.mrb[0].mxu0
        %v3426 = vadd.f32 %v2159, %v3425
        %v3427 = vpop.f32.mrb[0].mxu0
        %v3428 = vpop.f32.mrb[0].mxu0
        %v3429 = vpop.f32.mrb[0].mxu0
        %3430 = vdwg.mxu0
        %v3431 = vsel %vm2207, %v3426, -inf
        %3432 = vmax.xlane.f32.xlu0 %v3431
        %v3433 = vpop.xlane.xlu0 %3432
        %v3434 = vsub.f32 %v3426, %v3433
        %v3435 = vmul.f32 %v3434, 1.442695
        %v3436 = vpow.pop %v3435
        %v3437 = vsel %vm2207, %v3436, 0.0
        %3438 = vadd.xlane.f32.xlu0 %v3437
        %v3439 = vpop.xlane.xlu0 %3438
        %v3440 = vrcp.pop %v3439
        %v3441 = vmul.f32 %v3436, %v3440
        %v3442 = vpack.c.bf16 %v3441, %v3441
        %3444 = vrot.lane.b32.xlu0 %v3274, 96
        %v3445 = vpop.permute.xlu0 %3444
        %v3447 = vsel %vm2207, %v3442, 0
        %v3450 = vsel %vm2223, %v3445, 0
        %3452 = vmatprep.subr.bf16.mxu0 0
        %3453 = vmatpush1.bf16.msra.mxu0 %v3450
        %3454 = vmatprep.subr.bf16.mxu0 0
        %3455 = vmatpush1.bf16.msra.mxu0 0
        %3456 = vmatprep.subr.bf16.mxu0 0
        %3457 = vmatpush1.bf16.msra.mxu0 0
        %3458 = vmatprep.subr.bf16.mxu0 0
        %3459 = vmatpush1.bf16.msra.mxu0 0
        %3460 = vmatprep.subr.bf16.mxu0 0
        %3461 = vmatpush1.bf16.msra.mxu0 0
        %3462 = vmatprep.subr.bf16.mxu0 0
        %3463 = vmatpush1.bf16.msra.mxu0 0
        %3464 = vmatprep.subr.bf16.mxu0 0
        %3465 = vmatpush1.bf16.msra.mxu0 0
        %3466 = vmatprep.subr.bf16.mxu0 0
        %3467 = vmatpush1.bf16.msra.mxu0 0
        %3468 = vmatprep.subr.bf16.mxu0 0
        %3469 = vmatpush1.bf16.msra.mxu0 0
        %3470 = vmatprep.subr.bf16.mxu0 0
        %3471 = vmatpush1.bf16.msra.mxu0 0
        %3472 = vmatprep.subr.bf16.mxu0 0
        %3473 = vmatpush1.bf16.msra.mxu0 0
        %3474 = vmatprep.subr.bf16.mxu0 0
        %3475 = vmatpush1.bf16.msra.mxu0 0
        %3476 = vmatprep.subr.bf16.mxu0 0
        %3477 = vmatpush1.bf16.msra.mxu0 0
        %3478 = vmatprep.subr.bf16.mxu0 0
        %3479 = vmatpush1.bf16.msra.mxu0 0
        %3480 = vmatprep.subr.bf16.mxu0 0
        %3481 = vmatpush1.bf16.msra.mxu0 0
        %3482 = vmatprep.subr.bf16.mxu0 0
        %3483 = vmatpush1.bf16.msra.mxu0 0
        %3484 = vmatprep.mubr.bf16.mxu0 0
        %3485 = vmatmul.mubr.bf16.gmra.mrb[0].mxu0 %v3447
        %v3486 = vpop.f32.mrb[0].mxu0
        %v3487 = vadd.f32 0.0, %v3486
        %v3488 = vpop.f32.mrb[0].mxu0
        %v3489 = vpop.f32.mrb[0].mxu0
        %v3490 = vpop.f32.mrb[0].mxu0
        %3491 = vdwg.mxu0
        %3492 = vrot.lane.b32.xlu0 %v3272, 64
        %v3493 = vpop.permute.xlu0 %3492
        %3494 = vrot.lane.b32.xlu0 %v3273, 64
        %v3495 = vpop.permute.xlu0 %3494
        %v3497 = vsel %vm1849, %v3493, 0
        %v3500 = vsel %vm1849, %v3495, 0
        %3502 = vmatprep.subr.bf16.mxu0 0
        %3503 = vmatpush1.bf16.xpose.msra.mxu0 %v3500
        %3504 = vmatprep.subr.bf16.mxu0 0
        %3505 = vmatpush1.bf16.xpose.msra.mxu0 0
        %3506 = vmatprep.subr.bf16.mxu0 0
        %3507 = vmatpush1.bf16.xpose.msra.mxu0 0
        %3508 = vmatprep.subr.bf16.mxu0 0
        %3509 = vmatpush1.bf16.xpose.msra.mxu0 0
        %3510 = vmatprep.subr.bf16.mxu0 0
        %3511 = vmatpush1.bf16.xpose.msra.mxu0 0
        %3512 = vmatprep.subr.bf16.mxu0 0
        %3513 = vmatpush1.bf16.xpose.msra.mxu0 0
        %3514 = vmatprep.subr.bf16.mxu0 0
        %3515 = vmatpush1.bf16.xpose.msra.mxu0 0
        %3516 = vmatprep.subr.bf16.mxu0 0
        %3517 = vmatpush1.bf16.xpose.msra.mxu0 0
        %3518 = vmatprep.subr.bf16.mxu0 0
        %3519 = vmatpush1.bf16.xpose.msra.mxu0 0
        %3520 = vmatprep.subr.bf16.mxu0 0
        %3521 = vmatpush1.bf16.xpose.msra.mxu0 0
        %3522 = vmatprep.subr.bf16.mxu0 0
        %3523 = vmatpush1.bf16.xpose.msra.mxu0 0
        %3524 = vmatprep.subr.bf16.mxu0 0
        %3525 = vmatpush1.bf16.xpose.msra.mxu0 0
        %3526 = vmatprep.subr.bf16.mxu0 0
        %3527 = vmatpush1.bf16.xpose.msra.mxu0 0
        %3528 = vmatprep.subr.bf16.mxu0 0
        %3529 = vmatpush1.bf16.xpose.msra.mxu0 0
        %3530 = vmatprep.subr.bf16.mxu0 0
        %3531 = vmatpush1.bf16.xpose.msra.mxu0 0
        %3532 = vmatprep.subr.bf16.mxu0 0
        %3533 = vmatpush1.bf16.xpose.msra.mxu0 0
        %3534 = vmatprep.mubr.bf16.mxu0 0
        %3535 = vmatmul.mubr.bf16.gmra.mrb[0].mxu0 %v3497
        %v3536 = vpop.f32.mrb[0].mxu0
        %v3537 = vadd.f32 %v2159, %v3536
        %v3538 = vpop.f32.mrb[0].mxu0
        %v3539 = vpop.f32.mrb[0].mxu0
        %v3540 = vpop.f32.mrb[0].mxu0
        %3541 = vdwg.mxu0
        %v3542 = vsel %vm2207, %v3537, -inf
        %3543 = vmax.xlane.f32.xlu0 %v3542
        %v3544 = vpop.xlane.xlu0 %3543
        %v3545 = vsub.f32 %v3537, %v3544
        %v3546 = vmul.f32 %v3545, 1.442695
        %v3547 = vpow.pop %v3546
        %v3548 = vsel %vm2207, %v3547, 0.0
        %3549 = vadd.xlane.f32.xlu0 %v3548
        %v3550 = vpop.xlane.xlu0 %3549
        %v3551 = vrcp.pop %v3550
        %v3552 = vmul.f32 %v3547, %v3551
        %v3553 = vpack.c.bf16 %v3552, %v3552
        %3554 = vrot.lane.b32.xlu0 %v3274, 64
        %v3555 = vpop.permute.xlu0 %3554
        %v3557 = vsel %vm2207, %v3553, 0
        %v3560 = vsel %vm2223, %v3555, 0
        %3562 = vmatprep.subr.bf16.mxu0 0
        %3563 = vmatpush1.bf16.msra.mxu0 %v3560
        %3564 = vmatprep.subr.bf16.mxu0 0
        %3565 = vmatpush1.bf16.msra.mxu0 0
        %3566 = vmatprep.subr.bf16.mxu0 0
        %3567 = vmatpush1.bf16.msra.mxu0 0
        %3568 = vmatprep.subr.bf16.mxu0 0
        %3569 = vmatpush1.bf16.msra.mxu0 0
        %3570 = vmatprep.subr.bf16.mxu0 0
        %3571 = vmatpush1.bf16.msra.mxu0 0
        %3572 = vmatprep.subr.bf16.mxu0 0
        %3573 = vmatpush1.bf16.msra.mxu0 0
        %3574 = vmatprep.subr.bf16.mxu0 0
        %3575 = vmatpush1.bf16.msra.mxu0 0
        %3576 = vmatprep.subr.bf16.mxu0 0
        %3577 = vmatpush1.bf16.msra.mxu0 0
        %3578 = vmatprep.subr.bf16.mxu0 0
        %3579 = vmatpush1.bf16.msra.mxu0 0
        %3580 = vmatprep.subr.bf16.mxu0 0
        %3581 = vmatpush1.bf16.msra.mxu0 0
        %3582 = vmatprep.subr.bf16.mxu0 0
        %3583 = vmatpush1.bf16.msra.mxu0 0
        %3584 = vmatprep.subr.bf16.mxu0 0
        %3585 = vmatpush1.bf16.msra.mxu0 0
        %3586 = vmatprep.subr.bf16.mxu0 0
        %3587 = vmatpush1.bf16.msra.mxu0 0
        %3588 = vmatprep.subr.bf16.mxu0 0
        %3589 = vmatpush1.bf16.msra.mxu0 0
        %3590 = vmatprep.subr.bf16.mxu0 0
        %3591 = vmatpush1.bf16.msra.mxu0 0
        %3592 = vmatprep.subr.bf16.mxu0 0
        %3593 = vmatpush1.bf16.msra.mxu0 0
        %3594 = vmatprep.mubr.bf16.mxu0 0
        %3595 = vmatmul.mubr.bf16.gmra.mrb[0].mxu0 %v3557
        %v3596 = vpop.f32.mrb[0].mxu0
        %v3597 = vadd.f32 0.0, %v3596
        %v3598 = vpop.f32.mrb[0].mxu0
        %v3599 = vpop.f32.mrb[0].mxu0
        %v3600 = vpop.f32.mrb[0].mxu0
        %3601 = vdwg.mxu0
        %3602 = vrot.lane.b32.xlu0 %v3272, 32
        %v3603 = vpop.permute.xlu0 %3602
        %3604 = vrot.lane.b32.xlu0 %v3273, 32
        %v3605 = vpop.permute.xlu0 %3604
        %v3607 = vsel %vm1849, %v3603, 0
        %v3610 = vsel %vm1849, %v3605, 0
        %3612 = vmatprep.subr.bf16.mxu0 0
        %3613 = vmatpush1.bf16.xpose.msra.mxu0 %v3610
        %3614 = vmatprep.subr.bf16.mxu0 0
        %3615 = vmatpush1.bf16.xpose.msra.mxu0 0
        %3616 = vmatprep.subr.bf16.mxu0 0
        %3617 = vmatpush1.bf16.xpose.msra.mxu0 0
        %3618 = vmatprep.subr.bf16.mxu0 0
        %3619 = vmatpush1.bf16.xpose.msra.mxu0 0
        %3620 = vmatprep.subr.bf16.mxu0 0
        %3621 = vmatpush1.bf16.xpose.msra.mxu0 0
        %3622 = vmatprep.subr.bf16.mxu0 0
        %3623 = vmatpush1.bf16.xpose.msra.mxu0 0
        %3624 = vmatprep.subr.bf16.mxu0 0
        %3625 = vmatpush1.bf16.xpose.msra.mxu0 0
        %3626 = vmatprep.subr.bf16.mxu0 0
        %3627 = vmatpush1.bf16.xpose.msra.mxu0 0
        %3628 = vmatprep.subr.bf16.mxu0 0
        %3629 = vmatpush1.bf16.xpose.msra.mxu0 0
        %3630 = vmatprep.subr.bf16.mxu0 0
        %3631 = vmatpush1.bf16.xpose.msra.mxu0 0
        %3632 = vmatprep.subr.bf16.mxu0 0
        %3633 = vmatpush1.bf16.xpose.msra.mxu0 0
        %3634 = vmatprep.subr.bf16.mxu0 0
        %3635 = vmatpush1.bf16.xpose.msra.mxu0 0
        %3636 = vmatprep.subr.bf16.mxu0 0
        %3637 = vmatpush1.bf16.xpose.msra.mxu0 0
        %3638 = vmatprep.subr.bf16.mxu0 0
        %3639 = vmatpush1.bf16.xpose.msra.mxu0 0
        %3640 = vmatprep.subr.bf16.mxu0 0
        %3641 = vmatpush1.bf16.xpose.msra.mxu0 0
        %3642 = vmatprep.subr.bf16.mxu0 0
        %3643 = vmatpush1.bf16.xpose.msra.mxu0 0
        %3644 = vmatprep.mubr.bf16.mxu0 0
        %3645 = vmatmul.mubr.bf16.gmra.mrb[0].mxu0 %v3607
        %v3646 = vpop.f32.mrb[0].mxu0
        %v3647 = vadd.f32 %v2159, %v3646
        %v3648 = vpop.f32.mrb[0].mxu0
        %v3649 = vpop.f32.mrb[0].mxu0
        %v3650 = vpop.f32.mrb[0].mxu0
        %3651 = vdwg.mxu0
        %v3652 = vsel %vm2207, %v3647, -inf
        %3653 = vmax.xlane.f32.xlu0 %v3652
        %v3654 = vpop.xlane.xlu0 %3653
        %v3655 = vsub.f32 %v3647, %v3654
        %v3656 = vmul.f32 %v3655, 1.442695
        %v3657 = vpow.pop %v3656
        %v3658 = vsel %vm2207, %v3657, 0.0
        %3659 = vadd.xlane.f32.xlu0 %v3658
        %v3660 = vpop.xlane.xlu0 %3659
        %v3661 = vrcp.pop %v3660
        %v3662 = vmul.f32 %v3657, %v3661
        %v3663 = vpack.c.bf16 %v3662, %v3662
        %3664 = vrot.lane.b32.xlu0 %v3274, 32
        %v3665 = vpop.permute.xlu0 %3664
        %v3667 = vsel %vm2207, %v3663, 0
        %v3670 = vsel %vm2223, %v3665, 0
        %3672 = vmatprep.subr.bf16.mxu0 0
        %3673 = vmatpush1.bf16.msra.mxu0 %v3670
        %3674 = vmatprep.subr.bf16.mxu0 0
        %3675 = vmatpush1.bf16.msra.mxu0 0
        %3676 = vmatprep.subr.bf16.mxu0 0
        %3677 = vmatpush1.bf16.msra.mxu0 0
        %3678 = vmatprep.subr.bf16.mxu0 0
        %3679 = vmatpush1.bf16.msra.mxu0 0
        %3680 = vmatprep.subr.bf16.mxu0 0
        %3681 = vmatpush1.bf16.msra.mxu0 0
        %3682 = vmatprep.subr.bf16.mxu0 0
        %3683 = vmatpush1.bf16.msra.mxu0 0
        %3684 = vmatprep.subr.bf16.mxu0 0
        %3685 = vmatpush1.bf16.msra.mxu0 0
        %3686 = vmatprep.subr.bf16.mxu0 0
        %3687 = vmatpush1.bf16.msra.mxu0 0
        %3688 = vmatprep.subr.bf16.mxu0 0
        %3689 = vmatpush1.bf16.msra.mxu0 0
        %3690 = vmatprep.subr.bf16.mxu0 0
        %3691 = vmatpush1.bf16.msra.mxu0 0
        %3692 = vmatprep.subr.bf16.mxu0 0
        %3693 = vmatpush1.bf16.msra.mxu0 0
        %3694 = vmatprep.subr.bf16.mxu0 0
        %3695 = vmatpush1.bf16.msra.mxu0 0
        %3696 = vmatprep.subr.bf16.mxu0 0
        %3697 = vmatpush1.bf16.msra.mxu0 0
        %3698 = vmatprep.subr.bf16.mxu0 0
        %3699 = vmatpush1.bf16.msra.mxu0 0
        %3700 = vmatprep.subr.bf16.mxu0 0
        %3701 = vmatpush1.bf16.msra.mxu0 0
        %3702 = vmatprep.subr.bf16.mxu0 0
        %3703 = vmatpush1.bf16.msra.mxu0 0
        %3704 = vmatprep.mubr.bf16.mxu0 0
        %3705 = vmatmul.mubr.bf16.gmra.mrb[0].mxu0 %v3667
        %v3706 = vpop.f32.mrb[0].mxu0
        %v3707 = vadd.f32 0.0, %v3706
        %v3708 = vpop.f32.mrb[0].mxu0
        %v3709 = vpop.f32.mrb[0].mxu0
        %v3710 = vpop.f32.mrb[0].mxu0
        %3711 = vdwg.mxu0
        %3713 = vrot.lane.b32.xlu0 %v3487, 32
        %v3714 = vpop.permute.xlu0 %3713
        %3717 = vrot.lane.b32.xlu0 %v3597, 64
        %v3718 = vpop.permute.xlu0 %3717
        %3721 = vrot.lane.b32.xlu0 %v3707, 96
        %v3722 = vpop.permute.xlu0 %3721
        %v3724 = vsel %vm1849, %v3374, %v3714
        %v3725 = vsel %vm2613, %v3724, %v3718
        %v3726 = vsel %vm2615, %v3725, %v3722
        %v3727 = vpack.c.bf16 %v3726, %v3726
        %s3728 = scalar_lea.vmem [#allocation17], 64
        %v3729 = vld [vmem:[%s3728] sm:$0xf]
        %v3730 = vld [vmem:[%s3728 + $0x4] sm:$0xf]
        %v3731 = vld [vmem:[%s3728 + $0x8] sm:$0xf]
        %v3732 = vld [vmem:[%s3728 + $0xc] sm:$0xf]
        %v3733 = vld [vmem:[%s3728 + $0x10] sm:$0xf]
        %v3734 = vld [vmem:[%s3728 + $0x14] sm:$0xf]
        %v3735 = vld [vmem:[%s3728 + $0x18] sm:$0xf]
        %v3736 = vld [vmem:[%s3728 + $0x1c] sm:$0xf]
        %v3737 = vld [vmem:[%s3728 + $0x20] sm:$0xf]
        %v3738 = vld [vmem:[%s3728 + $0x24] sm:$0xf]
        %v3739 = vld [vmem:[%s3728 + $0x28] sm:$0xf]
        %v3740 = vld [vmem:[%s3728 + $0x2c] sm:$0xf]
        %v3741 = vld [vmem:[%s3728 + $0x30] sm:$0xf]
        %v3742 = vld [vmem:[%s3728 + $0x34] sm:$0xf]
        %v3743 = vld [vmem:[%s3728 + $0x38] sm:$0xf]
        %v3744 = vld [vmem:[%s3728 + $0x3c] sm:$0xf]
        %s3745 = scalar_lea.vmem [#allocation19], 1
        %v3746 = vld [vmem:[%s3745] sm:$0x1]
        %v3748 = vlaneseq
        %v3749 = vshrl.u32 %v3748, 7
        %v3750 = vsub.s32 0, %v3749
        %v3751 = vrot.slane %v3746, %v3750
        %v3769 = vunpack.c.l.b16 %v3729
        %v3770 = vunpack.c.l.b16 %v3730
        %v3771 = vunpack.c.l.b16 %v3731
        %v3772 = vunpack.c.l.b16 %v3732
        %v3773 = vunpack.c.l.b16 %v3733
        %v3774 = vunpack.c.l.b16 %v3734
        %v3775 = vunpack.c.l.b16 %v3735
        %v3776 = vunpack.c.l.b16 %v3736
        %v3777 = vunpack.c.l.b16 %v3737
        %v3778 = vunpack.c.l.b16 %v3738
        %v3779 = vunpack.c.l.b16 %v3739
        %v3780 = vunpack.c.l.b16 %v3740
        %v3781 = vunpack.c.l.b16 %v3741
        %v3782 = vunpack.c.l.b16 %v3742
        %v3783 = vunpack.c.l.b16 %v3743
        %v3784 = vunpack.c.l.b16 %v3744
        %v3785 = vpack.c.b16 %v3770, %v3769
        %v3786 = vpack.c.b16 %v3772, %v3771
        %v3787 = vpack.c.b16 %v3774, %v3773
        %v3788 = vpack.c.b16 %v3776, %v3775
        %v3789 = vpack.c.b16 %v3778, %v3777
        %v3790 = vpack.c.b16 %v3780, %v3779
        %v3791 = vpack.c.b16 %v3782, %v3781
        %v3792 = vpack.c.b16 %v3784, %v3783
        %3801 = vmatprep.subr.bf16.mxu0 0
        %3802 = vmatpush1.bf16.msra.mxu0 %v3785
        %3803 = vmatprep.subr.bf16.mxu0 0
        %3804 = vmatpush1.bf16.msra.mxu0 %v3786
        %3805 = vmatprep.subr.bf16.mxu0 0
        %3806 = vmatpush1.bf16.msra.mxu0 %v3787
        %3807 = vmatprep.subr.bf16.mxu0 0
        %3808 = vmatpush1.bf16.msra.mxu0 %v3788
        %3809 = vmatprep.subr.bf16.mxu0 0
        %3810 = vmatpush1.bf16.msra.mxu0 %v3789
        %3811 = vmatprep.subr.bf16.mxu0 0
        %3812 = vmatpush1.bf16.msra.mxu0 %v3790
        %3813 = vmatprep.subr.bf16.mxu0 0
        %3814 = vmatpush1.bf16.msra.mxu0 %v3791
        %3815 = vmatprep.subr.bf16.mxu0 0
        %3816 = vmatpush1.bf16.msra.mxu0 %v3792
        %3817 = vmatprep.subr.bf16.mxu0 0
        %3818 = vmatpush1.bf16.msra.mxu0 0
        %3819 = vmatprep.subr.bf16.mxu0 0
        %3820 = vmatpush1.bf16.msra.mxu0 0
        %3821 = vmatprep.subr.bf16.mxu0 0
        %3822 = vmatpush1.bf16.msra.mxu0 0
        %3823 = vmatprep.subr.bf16.mxu0 0
        %3824 = vmatpush1.bf16.msra.mxu0 0
        %3825 = vmatprep.subr.bf16.mxu0 0
        %3826 = vmatpush1.bf16.msra.mxu0 0
        %3827 = vmatprep.subr.bf16.mxu0 0
        %3828 = vmatpush1.bf16.msra.mxu0 0
        %3829 = vmatprep.subr.bf16.mxu0 0
        %3830 = vmatpush1.bf16.msra.mxu0 0
        %3831 = vmatprep.subr.bf16.mxu0 0
        %3832 = vmatpush1.bf16.msra.mxu0 0
        %3833 = vmatprep.mubr.bf16.mxu0 0
        %3834 = vmatmul.mubr.bf16.gmra.mrb[0].mxu0 %v3727
        %v3835 = vpop.f32.mrb[0].mxu0
        %v3836 = vadd.f32 %v3751, %v3835
        %v3837 = vpop.f32.mrb[0].mxu0
        %v3838 = vpop.f32.mrb[0].mxu0
        %v3839 = vpop.f32.mrb[0].mxu0
        %3840 = vdwg.mxu0
        %s3841 = scalar_lea.vmem [#allocation26], 1
        %v3842 = vld [vmem:[%s3841] sm:$0x1]
        %s3843 = scalar_lea.vmem [#allocation28], 1
        %v3844 = vld [vmem:[%s3843] sm:$0x1]
        %v3845 = vadd.f32 %v3836, %v3010
        %3846 = vadd.xlane.f32.xlu0 %v3845
        %v3847 = vpop.xlane.xlu0 %3846
        %v3848 = vmul.f32 %v3847, %v2734
        %v3849 = vsub.f32 %v3845, %v3848
        %v3850 = vmul.f32 %v3849, %v3849
        %3851 = vadd.xlane.f32.xlu0 %v3850
        %v3852 = vpop.xlane.xlu0 %3851
        %v3853 = vmul.f32 %v3852, %v2734
        %v3854 = vadd.f32 %v3853, 1e-05
        %v3855 = vrsqrt.pop %v3854
        %v3856 = vmul.f32 %v3849, %v3855
        %v3858 = vlaneseq
        %v3859 = vshrl.u32 %v3858, 7
        %v3860 = vsub.s32 0, %v3859
        %v3861 = vrot.slane %v3842, %v3860
        %v3863 = vmul.f32 %v3856, %v3861
        %v3865 = vlaneseq
        %v3866 = vshrl.u32 %v3865, 7
        %v3867 = vsub.s32 0, %v3866
        %v3868 = vrot.slane %v3844, %v3867
        %v3870 = vadd.f32 %v3863, %v3868
        %s3871 = scalar_lea.vmem [#allocation20], 64
        %v3872 = vld [vmem:[%s3871] sm:$0xf]
        %v3873 = vld [vmem:[%s3871 + $0x4] sm:$0xf]
        %v3874 = vld [vmem:[%s3871 + $0x8] sm:$0xf]
        %v3875 = vld [vmem:[%s3871 + $0xc] sm:$0xf]
        %v3876 = vld [vmem:[%s3871 + $0x10] sm:$0xf]
        %v3877 = vld [vmem:[%s3871 + $0x14] sm:$0xf]
        %v3878 = vld [vmem:[%s3871 + $0x18] sm:$0xf]
        %v3879 = vld [vmem:[%s3871 + $0x1c] sm:$0xf]
        %v3880 = vld [vmem:[%s3871 + $0x20] sm:$0xf]
        %v3881 = vld [vmem:[%s3871 + $0x24] sm:$0xf]
        %v3882 = vld [vmem:[%s3871 + $0x28] sm:$0xf]
        %v3883 = vld [vmem:[%s3871 + $0x2c] sm:$0xf]
        %v3884 = vld [vmem:[%s3871 + $0x30] sm:$0xf]
        %v3885 = vld [vmem:[%s3871 + $0x34] sm:$0xf]
        %v3886 = vld [vmem:[%s3871 + $0x38] sm:$0xf]
        %v3887 = vld [vmem:[%s3871 + $0x3c] sm:$0xf]
        %s3888 = scalar_lea.vmem [#allocation22], 1
        %v3889 = vld [vmem:[%s3888] sm:$0x1]
        %s3890 = scalar_lea.vmem [#allocation23], 64
        %v3891 = vld [vmem:[%s3890] sm:$0xf]
        %v3892 = vld [vmem:[%s3890 + $0x4] sm:$0xf]
        %v3893 = vld [vmem:[%s3890 + $0x8] sm:$0xf]
        %v3894 = vld [vmem:[%s3890 + $0xc] sm:$0xf]
        %v3895 = vld [vmem:[%s3890 + $0x10] sm:$0xf]
        %v3896 = vld [vmem:[%s3890 + $0x14] sm:$0xf]
        %v3897 = vld [vmem:[%s3890 + $0x18] sm:$0xf]
        %v3898 = vld [vmem:[%s3890 + $0x1c] sm:$0xf]
        %v3899 = vld [vmem:[%s3890 + $0x20] sm:$0xf]
        %v3900 = vld [vmem:[%s3890 + $0x24] sm:$0xf]
        %v3901 = vld [vmem:[%s3890 + $0x28] sm:$0xf]
        %v3902 = vld [vmem:[%s3890 + $0x2c] sm:$0xf]
        %v3903 = vld [vmem:[%s3890 + $0x30] sm:$0xf]
        %v3904 = vld [vmem:[%s3890 + $0x34] sm:$0xf]
        %v3905 = vld [vmem:[%s3890 + $0x38] sm:$0xf]
        %v3906 = vld [vmem:[%s3890 + $0x3c] sm:$0xf]
        %s3907 = scalar_lea.vmem [#allocation25], 1
        %v3908 = vld [vmem:[%s3907] sm:$0x1]
        %v3909 = vpack.c.bf16 %v3870, %v3870
        %v3911 = vlaneseq
        %v3912 = vshrl.u32 %v3911, 7
        %v3913 = vsub.s32 0, %v3912
        %v3914 = vrot.slane %v3889, %v3913
        %v3932 = vunpack.c.l.b16 %v3872
        %v3933 = vunpack.c.l.b16 %v3873
        %v3934 = vunpack.c.l.b16 %v3874
        %v3935 = vunpack.c.l.b16 %v3875
        %v3936 = vunpack.c.l.b16 %v3876
        %v3937 = vunpack.c.l.b16 %v3877
        %v3938 = vunpack.c.l.b16 %v3878
        %v3939 = vunpack.c.l.b16 %v3879
        %v3940 = vunpack.c.l.b16 %v3880
        %v3941 = vunpack.c.l.b16 %v3881
        %v3942 = vunpack.c.l.b16 %v3882
        %v3943 = vunpack.c.l.b16 %v3883
        %v3944 = vunpack.c.l.b16 %v3884
        %v3945 = vunpack.c.l.b16 %v3885
        %v3946 = vunpack.c.l.b16 %v3886
        %v3947 = vunpack.c.l.b16 %v3887
        %v3948 = vpack.c.b16 %v3933, %v3932
        %v3949 = vpack.c.b16 %v3935, %v3934
        %v3950 = vpack.c.b16 %v3937, %v3936
        %v3951 = vpack.c.b16 %v3939, %v3938
        %v3952 = vpack.c.b16 %v3941, %v3940
        %v3953 = vpack.c.b16 %v3943, %v3942
        %v3954 = vpack.c.b16 %v3945, %v3944
        %v3955 = vpack.c.b16 %v3947, %v3946
        %3964 = vmatprep.subr.bf16.mxu0 0
        %3965 = vmatpush1.bf16.msra.mxu0 %v3948
        %3966 = vmatprep.subr.bf16.mxu0 0
        %3967 = vmatpush1.bf16.msra.mxu0 %v3949
        %3968 = vmatprep.subr.bf16.mxu0 0
        %3969 = vmatpush1.bf16.msra.mxu0 %v3950
        %3970 = vmatprep.subr.bf16.mxu0 0
        %3971 = vmatpush1.bf16.msra.mxu0 %v3951
        %3972 = vmatprep.subr.bf16.mxu0 0
        %3973 = vmatpush1.bf16.msra.mxu0 %v3952
        %3974 = vmatprep.subr.bf16.mxu0 0
        %3975 = vmatpush1.bf16.msra.mxu0 %v3953
        %3976 = vmatprep.subr.bf16.mxu0 0
        %3977 = vmatpush1.bf16.msra.mxu0 %v3954
        %3978 = vmatprep.subr.bf16.mxu0 0
        %3979 = vmatpush1.bf16.msra.mxu0 %v3955
        %3980 = vmatprep.subr.bf16.mxu0 0
        %3981 = vmatpush1.bf16.msra.mxu0 0
        %3982 = vmatprep.subr.bf16.mxu0 0
        %3983 = vmatpush1.bf16.msra.mxu0 0
        %3984 = vmatprep.subr.bf16.mxu0 0
        %3985 = vmatpush1.bf16.msra.mxu0 0
        %3986 = vmatprep.subr.bf16.mxu0 0
        %3987 = vmatpush1.bf16.msra.mxu0 0
        %3988 = vmatprep.subr.bf16.mxu0 0
        %3989 = vmatpush1.bf16.msra.mxu0 0
        %3990 = vmatprep.subr.bf16.mxu0 0
        %3991 = vmatpush1.bf16.msra.mxu0 0
        %3992 = vmatprep.subr.bf16.mxu0 0
        %3993 = vmatpush1.bf16.msra.mxu0 0
        %3994 = vmatprep.subr.bf16.mxu0 0
        %3995 = vmatpush1.bf16.msra.mxu0 0
        %3996 = vmatprep.mubr.bf16.mxu0 0
        %3997 = vmatmul.mubr.bf16.gmra.mrb[0].mxu0 %v3909
        %v3998 = vpop.f32.mrb[0].mxu0
        %v3999 = vadd.f32 %v3914, %v3998
        %v4000 = vpop.f32.mrb[0].mxu0
        %v4001 = vpop.f32.mrb[0].mxu0
        %v4002 = vpop.f32.mrb[0].mxu0
        %4003 = vdwg.mxu0
        %v4004 = vmax.f32 %v3999, 0.0
        %v4005 = vpack.c.bf16 %v4004, %v4004
        %v4007 = vlaneseq
        %v4008 = vshrl.u32 %v4007, 7
        %v4009 = vsub.s32 0, %v4008
        %v4010 = vrot.slane %v3908, %v4009
        %v4028 = vunpack.c.l.b16 %v3891
        %v4029 = vunpack.c.l.b16 %v3892
        %v4030 = vunpack.c.l.b16 %v3893
        %v4031 = vunpack.c.l.b16 %v3894
        %v4032 = vunpack.c.l.b16 %v3895
        %v4033 = vunpack.c.l.b16 %v3896
        %v4034 = vunpack.c.l.b16 %v3897
        %v4035 = vunpack.c.l.b16 %v3898
        %v4036 = vunpack.c.l.b16 %v3899
        %v4037 = vunpack.c.l.b16 %v3900
        %v4038 = vunpack.c.l.b16 %v3901
        %v4039 = vunpack.c.l.b16 %v3902
        %v4040 = vunpack.c.l.b16 %v3903
        %v4041 = vunpack.c.l.b16 %v3904
        %v4042 = vunpack.c.l.b16 %v3905
        %v4043 = vunpack.c.l.b16 %v3906
        %v4044 = vpack.c.b16 %v4029, %v4028
        %v4045 = vpack.c.b16 %v4031, %v4030
        %v4046 = vpack.c.b16 %v4033, %v4032
        %v4047 = vpack.c.b16 %v4035, %v4034
        %v4048 = vpack.c.b16 %v4037, %v4036
        %v4049 = vpack.c.b16 %v4039, %v4038
        %v4050 = vpack.c.b16 %v4041, %v4040
        %v4051 = vpack.c.b16 %v4043, %v4042
        %4060 = vmatprep.subr.bf16.mxu0 0
        %4061 = vmatpush1.bf16.msra.mxu0 %v4044
        %4062 = vmatprep.subr.bf16.mxu0 0
        %4063 = vmatpush1.bf16.msra.mxu0 %v4045
        %4064 = vmatprep.subr.bf16.mxu0 0
        %4065 = vmatpush1.bf16.msra.mxu0 %v4046
        %4066 = vmatprep.subr.bf16.mxu0 0
        %4067 = vmatpush1.bf16.msra.mxu0 %v4047
        %4068 = vmatprep.subr.bf16.mxu0 0
        %4069 = vmatpush1.bf16.msra.mxu0 %v4048
        %4070 = vmatprep.subr.bf16.mxu0 0
        %4071 = vmatpush1.bf16.msra.mxu0 %v4049
        %4072 = vmatprep.subr.bf16.mxu0 0
        %4073 = vmatpush1.bf16.msra.mxu0 %v4050
        %4074 = vmatprep.subr.bf16.mxu0 0
        %4075 = vmatpush1.bf16.msra.mxu0 %v4051
        %4076 = vmatprep.subr.bf16.mxu0 0
        %4077 = vmatpush1.bf16.msra.mxu0 0
        %4078 = vmatprep.subr.bf16.mxu0 0
        %4079 = vmatpush1.bf16.msra.mxu0 0
        %4080 = vmatprep.subr.bf16.mxu0 0
        %4081 = vmatpush1.bf16.msra.mxu0 0
        %4082 = vmatprep.subr.bf16.mxu0 0
        %4083 = vmatpush1.bf16.msra.mxu0 0
        %4084 = vmatprep.subr.bf16.mxu0 0
        %4085 = vmatpush1.bf16.msra.mxu0 0
        %4086 = vmatprep.subr.bf16.mxu0 0
        %4087 = vmatpush1.bf16.msra.mxu0 0
        %4088 = vmatprep.subr.bf16.mxu0 0
        %4089 = vmatpush1.bf16.msra.mxu0 0
        %4090 = vmatprep.subr.bf16.mxu0 0
        %4091 = vmatpush1.bf16.msra.mxu0 0
        %4092 = vmatprep.mubr.bf16.mxu0 0
        %4093 = vmatmul.mubr.bf16.gmra.mrb[0].mxu0 %v4005
        %v4094 = vpop.f32.mrb[0].mxu0
        %v4095 = vadd.f32 %v4010, %v4094
        %v4096 = vpop.f32.mrb[0].mxu0
        %v4097 = vpop.f32.mrb[0].mxu0
        %v4098 = vpop.f32.mrb[0].mxu0
        %4099 = vdwg.mxu0
        %s4100 = scalar_lea.vmem [#allocation29], 1
        %v4101 = vld [vmem:[%s4100] sm:$0x1]
        %s4102 = scalar_lea.vmem [#allocation31], 1
        %v4103 = vld [vmem:[%s4102] sm:$0x1]
        %v4104 = vadd.f32 %v4095, %v3870
        %4105 = vadd.xlane.f32.xlu0 %v4104
        %v4106 = vpop.xlane.xlu0 %4105
        %v4107 = vmul.f32 %v4106, %v2734
        %v4108 = vsub.f32 %v4104, %v4107
        %v4109 = vmul.f32 %v4108, %v4108
        %4110 = vadd.xlane.f32.xlu0 %v4109
        %v4111 = vpop.xlane.xlu0 %4110
        %v4112 = vmul.f32 %v4111, %v2734
        %v4113 = vadd.f32 %v4112, 1e-05
        %v4114 = vrsqrt.pop %v4113
        %v4115 = vmul.f32 %v4108, %v4114
        %v4117 = vlaneseq
        %v4118 = vshrl.u32 %v4117, 7
        %v4119 = vsub.s32 0, %v4118
        %v4120 = vrot.slane %v4101, %v4119
        %v4122 = vmul.f32 %v4115, %v4120
        %v4124 = vlaneseq
        %v4125 = vshrl.u32 %v4124, 7
        %v4126 = vsub.s32 0, %v4125
        %v4127 = vrot.slane %v4103, %v4126
        %v4129 = vadd.f32 %v4122, %v4127
        %v4130 = vpack.c.bf16 %v4129, %v4129
        %v4131 = vld [vmem:[%s1553] sm:$0xff]
        %v4132 = vpack.c.bf16 %v4131, %v4131
        %v4133 = vld [vmem:[#allocation13] sm:$0xf]
        %v4134 = vld [vmem:[#allocation13 + $0x4] sm:$0xf]
        %v4135 = vld [vmem:[#allocation13 + $0x8] sm:$0xf]
        %v4136 = vld [vmem:[#allocation13 + $0xc] sm:$0xf]
        %v4141 = vunpack.c.l.b16 %v4133
        %v4142 = vunpack.c.l.b16 %v4134
        %v4143 = vunpack.c.l.b16 %v4135
        %v4144 = vunpack.c.l.b16 %v4136
        %v4145 = vpack.c.b16 %v4142, %v4141
        %v4146 = vpack.c.b16 %v4144, %v4143
        %v4150 = vsel %vm1849, %v4132, 0
        %4152 = vmatprep.subr.bf16.mxu0 0
        %4153 = vmatpush1.bf16.msra.mxu0 %v4145
        %4154 = vmatprep.subr.bf16.mxu0 0
        %4155 = vmatpush1.bf16.msra.mxu0 %v4146
        %4156 = vmatprep.subr.bf16.mxu0 0
        %4157 = vmatpush1.bf16.msra.mxu0 0
        %4158 = vmatprep.subr.bf16.mxu0 0
        %4159 = vmatpush1.bf16.msra.mxu0 0
        %4160 = vmatprep.subr.bf16.mxu0 0
        %4161 = vmatpush1.bf16.msra.mxu0 0
        %4162 = vmatprep.subr.bf16.mxu0 0
        %4163 = vmatpush1.bf16.msra.mxu0 0
        %4164 = vmatprep.subr.bf16.mxu0 0
        %4165 = vmatpush1.bf16.msra.mxu0 0
        %4166 = vmatprep.subr.bf16.mxu0 0
        %4167 = vmatpush1.bf16.msra.mxu0 0
        %4168 = vmatprep.subr.bf16.mxu0 0
        %4169 = vmatpush1.bf16.msra.mxu0 0
        %4170 = vmatprep.subr.bf16.mxu0 0
        %4171 = vmatpush1.bf16.msra.mxu0 0
        %4172 = vmatprep.subr.bf16.mxu0 0
        %4173 = vmatpush1.bf16.msra.mxu0 0
        %4174 = vmatprep.subr.bf16.mxu0 0
        %4175 = vmatpush1.bf16.msra.mxu0 0
        %4176 = vmatprep.subr.bf16.mxu0 0
        %4177 = vmatpush1.bf16.msra.mxu0 0
        %4178 = vmatprep.subr.bf16.mxu0 0
        %4179 = vmatpush1.bf16.msra.mxu0 0
        %4180 = vmatprep.subr.bf16.mxu0 0
        %4181 = vmatpush1.bf16.msra.mxu0 0
        %4182 = vmatprep.subr.bf16.mxu0 0
        %4183 = vmatpush1.bf16.msra.mxu0 0
        %4184 = vmatprep.mubr.bf16.mxu0 0
        %4185 = vmatmul.mubr.bf16.gmra.mrb[0].mxu0 %v4150
        %v4186 = vpop.f32.mrb[0].mxu0
        %v4187 = vadd.f32 0.0, %v4186
        %v4188 = vpop.f32.mrb[0].mxu0
        %v4189 = vpop.f32.mrb[0].mxu0
        %v4190 = vpop.f32.mrb[0].mxu0
        %4191 = vdwg.mxu0
        %v4192 = vpack.c.bf16 %v4187, %v4187
        %v4193 = vld [vmem:[#allocation32] sm:$0xff]
        %v4194 = vld [vmem:[#allocation32 + $0x8] sm:$0xf]
        %v4195 = vld [vmem:[#allocation32 + $0xc] sm:$0xff]
        %v4196 = vld [vmem:[#allocation32 + $0x14] sm:$0xf]
        %v4197 = vld [vmem:[#allocation32 + $0x18] sm:$0xff]
        %v4198 = vld [vmem:[#allocation32 + $0x20] sm:$0xf]
        %v4199 = vld [vmem:[#allocation32 + $0x24] sm:$0xff]
        %v4200 = vld [vmem:[#allocation32 + $0x2c] sm:$0xf]
        %v4201 = vld [vmem:[#allocation32 + $0x30] sm:$0xff]
        %v4202 = vld [vmem:[#allocation32 + $0x38] sm:$0xf]
        %v4203 = vld [vmem:[#allocation32 + $0x3c] sm:$0xff]
        %v4204 = vld [vmem:[#allocation32 + $0x44] sm:$0xf]
        %v4205 = vld [vmem:[#allocation32 + $0x48] sm:$0xff]
        %v4206 = vld [vmem:[#allocation32 + $0x50] sm:$0xf]
        %v4207 = vld [vmem:[#allocation32 + $0x54] sm:$0xff]
        %v4208 = vld [vmem:[#allocation32 + $0x5c] sm:$0xf]
        %v4209 = vld [vmem:[#allocation32 + $0x60] sm:$0xff]
        %v4210 = vld [vmem:[#allocation32 + $0x68] sm:$0xf]
        %v4211 = vld [vmem:[#allocation32 + $0x6c] sm:$0xff]
        %v4212 = vld [vmem:[#allocation32 + $0x74] sm:$0xf]
        %v4213 = vld [vmem:[#allocation32 + $0x78] sm:$0xff]
        %v4214 = vld [vmem:[#allocation32 + $0x80] sm:$0xf]
        %v4215 = vld [vmem:[#allocation32 + $0x84] sm:$0xff]
        %v4216 = vld [vmem:[#allocation32 + $0x8c] sm:$0xf]
        %v4217 = vld [vmem:[#allocation32 + $0x90] sm:$0xff]
        %v4218 = vld [vmem:[#allocation32 + $0x98] sm:$0xf]
        %v4219 = vld [vmem:[#allocation32 + $0x9c] sm:$0xff]
        %v4220 = vld [vmem:[#allocation32 + $0xa4] sm:$0xf]
        %v4221 = vld [vmem:[#allocation32 + $0xa8] sm:$0xff]
        %v4222 = vld [vmem:[#allocation32 + $0xb0] sm:$0xf]
        %v4223 = vld [vmem:[#allocation32 + $0xb4] sm:$0xff]
        %v4224 = vld [vmem:[#allocation32 + $0xbc] sm:$0xf]
        %v4225 = vld [vmem:[#allocation34] sm:$0x7]
        %v4227 = vlaneseq
        %v4228 = vshrl.u32 %v4227, 7
        %v4229 = vsub.s32 0, %v4228
        %v4230 = vrot.slane %v4225, %v4229
        %v4231 = vlaneseq
        %v4232 = vshrl.u32 %v4231, 7
        %v4233 = vsub.s32 1, %v4232
        %v4234 = vrot.slane %v4225, %v4233
        %v4235 = vlaneseq
        %v4236 = vshrl.u32 %v4235, 7
        %v4237 = vsub.s32 2, %v4236
        %v4238 = vrot.slane %v4225, %v4237
        %v4274 = vunpack.c.l.b16 %v4193
        %v4275 = vunpack.c.h.b16 %v4193
        %v4276 = vunpack.c.l.b16 %v4194
        %v4277 = vunpack.c.l.b16 %v4195
        %v4278 = vunpack.c.h.b16 %v4195
        %v4279 = vunpack.c.l.b16 %v4196
        %v4280 = vunpack.c.l.b16 %v4197
        %v4281 = vunpack.c.h.b16 %v4197
        %v4282 = vunpack.c.l.b16 %v4198
        %v4283 = vunpack.c.l.b16 %v4199
        %v4284 = vunpack.c.h.b16 %v4199
        %v4285 = vunpack.c.l.b16 %v4200
        %v4286 = vunpack.c.l.b16 %v4201
        %v4287 = vunpack.c.h.b16 %v4201
        %v4288 = vunpack.c.l.b16 %v4202
        %v4289 = vunpack.c.l.b16 %v4203
        %v4290 = vunpack.c.h.b16 %v4203
        %v4291 = vunpack.c.l.b16 %v4204
        %v4292 = vunpack.c.l.b16 %v4205
        %v4293 = vunpack.c.h.b16 %v4205
        %v4294 = vunpack.c.l.b16 %v4206
        %v4295 = vunpack.c.l.b16 %v4207
        %v4296 = vunpack.c.h.b16 %v4207
        %v4297 = vunpack.c.l.b16 %v4208
        %v4298 = vunpack.c.l.b16 %v4209
        %v4299 = vunpack.c.h.b16 %v4209
        %v4300 = vunpack.c.l.b16 %v4210
        %v4301 = vunpack.c.l.b16 %v4211
        %v4302 = vunpack.c.h.b16 %v4211
        %v4303 = vunpack.c.l.b16 %v4212
        %v4304 = vunpack.c.l.b16 %v4213
        %v4305 = vunpack.c.h.b16 %v4213
        %v4306 = vunpack.c.l.b16 %v4214
        %v4307 = vunpack.c.l.b16 %v4215
        %v4308 = vunpack.c.h.b16 %v4215
        %v4309 = vunpack.c.l.b16 %v4216
        %v4310 = vunpack.c.l.b16 %v4217
        %v4311 = vunpack.c.h.b16 %v4217
        %v4312 = vunpack.c.l.b16 %v4218
        %v4313 = vunpack.c.l.b16 %v4219
        %v4314 = vunpack.c.h.b16 %v4219
        %v4315 = vunpack.c.l.b16 %v4220
        %v4316 = vunpack.c.l.b16 %v4221
        %v4317 = vunpack.c.h.b16 %v4221
        %v4318 = vunpack.c.l.b16 %v4222
        %v4319 = vunpack.c.l.b16 %v4223
        %v4320 = vunpack.c.h.b16 %v4223
        %v4321 = vunpack.c.l.b16 %v4224
        %v4322 = vpack.c.b16 %v4277, %v4274
        %v4323 = vpack.c.b16 %v4278, %v4275
        %v4324 = vpack.c.b16 %v4279, %v4276
        %v4325 = vpack.c.b16 %v4283, %v4280
        %v4326 = vpack.c.b16 %v4284, %v4281
        %v4327 = vpack.c.b16 %v4285, %v4282
        %v4328 = vpack.c.b16 %v4289, %v4286
        %v4329 = vpack.c.b16 %v4290, %v4287
        %v4330 = vpack.c.b16 %v4291, %v4288
        %v4331 = vpack.c.b16 %v4295, %v4292
        %v4332 = vpack.c.b16 %v4296, %v4293
        %v4333 = vpack.c.b16 %v4297, %v4294
        %v4334 = vpack.c.b16 %v4301, %v4298
        %v4335 = vpack.c.b16 %v4302, %v4299
        %v4336 = vpack.c.b16 %v4303, %v4300
        %v4337 = vpack.c.b16 %v4307, %v4304
        %v4338 = vpack.c.b16 %v4308, %v4305
        %v4339 = vpack.c.b16 %v4309, %v4306
        %v4340 = vpack.c.b16 %v4313, %v4310
        %v4341 = vpack.c.b16 %v4314, %v4311
        %v4342 = vpack.c.b16 %v4315, %v4312
        %v4343 = vpack.c.b16 %v4319, %v4316
        %v4344 = vpack.c.b16 %v4320, %v4317
        %v4345 = vpack.c.b16 %v4321, %v4318
        %4370 = vmatprep.subr.bf16.mxu0 %v4323
        %4371 = vmatpush1.bf16.msra.mxu0 %v4322
        %4372 = vmatprep.subr.bf16.mxu0 %v4326
        %4373 = vmatpush1.bf16.msra.mxu0 %v4325
        %4374 = vmatprep.subr.bf16.mxu0 %v4329
        %4375 = vmatpush1.bf16.msra.mxu0 %v4328
        %4376 = vmatprep.subr.bf16.mxu0 %v4332
        %4377 = vmatpush1.bf16.msra.mxu0 %v4331
        %4378 = vmatprep.subr.bf16.mxu0 %v4335
        %4379 = vmatpush1.bf16.msra.mxu0 %v4334
        %4380 = vmatprep.subr.bf16.mxu0 %v4338
        %4381 = vmatpush1.bf16.msra.mxu0 %v4337
        %4382 = vmatprep.subr.bf16.mxu0 %v4341
        %4383 = vmatpush1.bf16.msra.mxu0 %v4340
        %4384 = vmatprep.subr.bf16.mxu0 %v4344
        %4385 = vmatpush1.bf16.msra.mxu0 %v4343
        %4386 = vmatprep.subr.bf16.mxu0 0
        %4387 = vmatpush1.bf16.msra.mxu0 0
        %4388 = vmatprep.subr.bf16.mxu0 0
        %4389 = vmatpush1.bf16.msra.mxu0 0
        %4390 = vmatprep.subr.bf16.mxu0 0
        %4391 = vmatpush1.bf16.msra.mxu0 0
        %4392 = vmatprep.subr.bf16.mxu0 0
        %4393 = vmatpush1.bf16.msra.mxu0 0
        %4394 = vmatprep.subr.bf16.mxu0 0
        %4395 = vmatpush1.bf16.msra.mxu0 0
        %4396 = vmatprep.subr.bf16.mxu0 0
        %4397 = vmatpush1.bf16.msra.mxu0 0
        %4398 = vmatprep.subr.bf16.mxu0 0
        %4399 = vmatpush1.bf16.msra.mxu0 0
        %4400 = vmatprep.subr.bf16.mxu0 0
        %4401 = vmatpush1.bf16.msra.mxu0 0
        %4402 = vmatprep.mubr.bf16.mxu0 0
        %4403 = vmatmul.mubr.bf16.gmra.mrb[0].mxu0 %v4192
        %v4404 = vpop.f32.mrb[0].mxu0
        %v4405 = vadd.f32 %v4230, %v4404
        %v4406 = vpop.f32.mrb[0].mxu0
        %v4407 = vadd.f32 %v4234, %v4406
        %v4408 = vpop.f32.mrb[0].mxu0
        %v4409 = vpop.f32.mrb[0].mxu0
        %4410 = vdwg.mxu0
        %4411 = vmatprep.subr.bf16.mxu0 0
        %4412 = vmatpush1.bf16.msra.mxu0 %v4324
        %4413 = vmatprep.subr.bf16.mxu0 0
        %4414 = vmatpush1.bf16.msra.mxu0 %v4327
        %4415 = vmatprep.subr.bf16.mxu0 0
        %4416 = vmatpush1.bf16.msra.mxu0 %v4330
        %4417 = vmatprep.subr.bf16.mxu0 0
        %4418 = vmatpush1.bf16.msra.mxu0 %v4333
        %4419 = vmatprep.subr.bf16.mxu0 0
        %4420 = vmatpush1.bf16.msra.mxu0 %v4336
        %4421 = vmatprep.subr.bf16.mxu0 0
        %4422 = vmatpush1.bf16.msra.mxu0 %v4339
        %4423 = vmatprep.subr.bf16.mxu0 0
        %4424 = vmatpush1.bf16.msra.mxu0 %v4342
        %4425 = vmatprep.subr.bf16.mxu0 0
        %4426 = vmatpush1.bf16.msra.mxu0 %v4345
        %4427 = vmatprep.subr.bf16.mxu0 0
        %4428 = vmatpush1.bf16.msra.mxu0 0
        %4429 = vmatprep.subr.bf16.mxu0 0
        %4430 = vmatpush1.bf16.msra.mxu0 0
        %4431 = vmatprep.subr.bf16.mxu0 0
        %4432 = vmatpush1.bf16.msra.mxu0 0
        %4433 = vmatprep.subr.bf16.mxu0 0
        %4434 = vmatpush1.bf16.msra.mxu0 0
        %4435 = vmatprep.subr.bf16.mxu0 0
        %4436 = vmatpush1.bf16.msra.mxu0 0
        %4437 = vmatprep.subr.bf16.mxu0 0
        %4438 = vmatpush1.bf16.msra.mxu0 0
        %4439 = vmatprep.subr.bf16.mxu0 0
        %4440 = vmatpush1.bf16.msra.mxu0 0
        %4441 = vmatprep.subr.bf16.mxu0 0
        %4442 = vmatpush1.bf16.msra.mxu0 0
        %4443 = vmatprep.mubr.bf16.mxu0 0
        %4444 = vmatmul.mubr.bf16.gmra.mrb[0].mxu0 %v4192
        %v4445 = vpop.f32.mrb[0].mxu0
        %v4446 = vadd.f32 %v4238, %v4445
        %v4447 = vpop.f32.mrb[0].mxu0
        %v4448 = vpop.f32.mrb[0].mxu0
        %v4449 = vpop.f32.mrb[0].mxu0
        %4450 = vdwg.mxu0
        %v4451 = vpack.c.bf16 %v4405, %v4405
        %v4452 = vpack.c.bf16 %v4407, %v4407
        %v4453 = vpack.c.bf16 %v4446, %v4446
        %v4455 = vlaneseq
        %v4456 = vshrl.u32 %v4455, 7
        %v4457 = vsub.s32 0, %v4456
        %v4458 = vrot.slane %v1829, %v4457
        %v4461 = vsel %vm1849, %v4451, 0
        %v4464 = vsel %vm1849, %v4452, 0
        %4466 = vmatprep.subr.bf16.mxu0 0
        %4467 = vmatpush1.bf16.xpose.msra.mxu0 %v4464
        %4468 = vmatprep.subr.bf16.mxu0 0
        %4469 = vmatpush1.bf16.xpose.msra.mxu0 0
        %4470 = vmatprep.subr.bf16.mxu0 0
        %4471 = vmatpush1.bf16.xpose.msra.mxu0 0
        %4472 = vmatprep.subr.bf16.mxu0 0
        %4473 = vmatpush1.bf16.xpose.msra.mxu0 0
        %4474 = vmatprep.subr.bf16.mxu0 0
        %4475 = vmatpush1.bf16.xpose.msra.mxu0 0
        %4476 = vmatprep.subr.bf16.mxu0 0
        %4477 = vmatpush1.bf16.xpose.msra.mxu0 0
        %4478 = vmatprep.subr.bf16.mxu0 0
        %4479 = vmatpush1.bf16.xpose.msra.mxu0 0
        %4480 = vmatprep.subr.bf16.mxu0 0
        %4481 = vmatpush1.bf16.xpose.msra.mxu0 0
        %4482 = vmatprep.subr.bf16.mxu0 0
        %4483 = vmatpush1.bf16.xpose.msra.mxu0 0
        %4484 = vmatprep.subr.bf16.mxu0 0
        %4485 = vmatpush1.bf16.xpose.msra.mxu0 0
        %4486 = vmatprep.subr.bf16.mxu0 0
        %4487 = vmatpush1.bf16.xpose.msra.mxu0 0
        %4488 = vmatprep.subr.bf16.mxu0 0
        %4489 = vmatpush1.bf16.xpose.msra.mxu0 0
        %4490 = vmatprep.subr.bf16.mxu0 0
        %4491 = vmatpush1.bf16.xpose.msra.mxu0 0
        %4492 = vmatprep.subr.bf16.mxu0 0
        %4493 = vmatpush1.bf16.xpose.msra.mxu0 0
        %4494 = vmatprep.subr.bf16.mxu0 0
        %4495 = vmatpush1.bf16.xpose.msra.mxu0 0
        %4496 = vmatprep.subr.bf16.mxu0 0
        %4497 = vmatpush1.bf16.xpose.msra.mxu0 0
        %4498 = vmatprep.mubr.bf16.mxu0 0
        %4499 = vmatmul.mubr.bf16.gmra.mrb[0].mxu0 %v4461
        %v4500 = vpop.f32.mrb[0].mxu0
        %v4501 = vadd.f32 %v4458, %v4500
        %v4502 = vpop.f32.mrb[0].mxu0
        %v4503 = vpop.f32.mrb[0].mxu0
        %v4504 = vpop.f32.mrb[0].mxu0
        %4505 = vdwg.mxu0
        %v4506 = vsel %vm2207, %v4501, -inf
        %4507 = vmax.xlane.f32.xlu0 %v4506
        %v4508 = vpop.xlane.xlu0 %4507
        %v4509 = vsub.f32 %v4501, %v4508
        %v4510 = vmul.f32 %v4509, 1.442695
        %v4511 = vpow.pop %v4510
        %v4512 = vsel %vm2207, %v4511, 0.0
        %4513 = vadd.xlane.f32.xlu0 %v4512
        %v4514 = vpop.xlane.xlu0 %4513
        %v4515 = vrcp.pop %v4514
        %v4516 = vmul.f32 %v4511, %v4515
        %v4517 = vpack.c.bf16 %v4516, %v4516
        %v4519 = vsel %vm2207, %v4517, 0
        %v4522 = vsel %vm2223, %v4453, 0
        %4524 = vmatprep.subr.bf16.mxu0 0
        %4525 = vmatpush1.bf16.msra.mxu0 %v4522
        %4526 = vmatprep.subr.bf16.mxu0 0
        %4527 = vmatpush1.bf16.msra.mxu0 0
        %4528 = vmatprep.subr.bf16.mxu0 0
        %4529 = vmatpush1.bf16.msra.mxu0 0
        %4530 = vmatprep.subr.bf16.mxu0 0
        %4531 = vmatpush1.bf16.msra.mxu0 0
        %4532 = vmatprep.subr.bf16.mxu0 0
        %4533 = vmatpush1.bf16.msra.mxu0 0
        %4534 = vmatprep.subr.bf16.mxu0 0
        %4535 = vmatpush1.bf16.msra.mxu0 0
        %4536 = vmatprep.subr.bf16.mxu0 0
        %4537 = vmatpush1.bf16.msra.mxu0 0
        %4538 = vmatprep.subr.bf16.mxu0 0
        %4539 = vmatpush1.bf16.msra.mxu0 0
        %4540 = vmatprep.subr.bf16.mxu0 0
        %4541 = vmatpush1.bf16.msra.mxu0 0
        %4542 = vmatprep.subr.bf16.mxu0 0
        %4543 = vmatpush1.bf16.msra.mxu0 0
        %4544 = vmatprep.subr.bf16.mxu0 0
        %4545 = vmatpush1.bf16.msra.mxu0 0
        %4546 = vmatprep.subr.bf16.mxu0 0
        %4547 = vmatpush1.bf16.msra.mxu0 0
        %4548 = vmatprep.subr.bf16.mxu0 0
        %4549 = vmatpush1.bf16.msra.mxu0 0
        %4550 = vmatprep.subr.bf16.mxu0 0
        %4551 = vmatpush1.bf16.msra.mxu0 0
        %4552 = vmatprep.subr.bf16.mxu0 0
        %4553 = vmatpush1.bf16.msra.mxu0 0
        %4554 = vmatprep.subr.bf16.mxu0 0
        %4555 = vmatpush1.bf16.msra.mxu0 0
        %4556 = vmatprep.mubr.bf16.mxu0 0
        %4557 = vmatmul.mubr.bf16.gmra.mrb[0].mxu0 %v4519
        %v4558 = vpop.f32.mrb[0].mxu0
        %v4559 = vadd.f32 0.0, %v4558
        %v4560 = vpop.f32.mrb[0].mxu0
        %v4561 = vpop.f32.mrb[0].mxu0
        %v4562 = vpop.f32.mrb[0].mxu0
        %4563 = vdwg.mxu0
        %4565 = vrot.lane.b32.xlu0 %v4451, 96
        %v4566 = vpop.permute.xlu0 %4565
        %4568 = vrot.lane.b32.xlu0 %v4452, 96
        %v4569 = vpop.permute.xlu0 %4568
        %v4571 = vsel %vm1849, %v4566, 0
        %v4574 = vsel %vm1849, %v4569, 0
        %4576 = vmatprep.subr.bf16.mxu0 0
        %4577 = vmatpush1.bf16.xpose.msra.mxu0 %v4574
        %4578 = vmatprep.subr.bf16.mxu0 0
        %4579 = vmatpush1.bf16.xpose.msra.mxu0 0
        %4580 = vmatprep.subr.bf16.mxu0 0
        %4581 = vmatpush1.bf16.xpose.msra.mxu0 0
        %4582 = vmatprep.subr.bf16.mxu0 0
        %4583 = vmatpush1.bf16.xpose.msra.mxu0 0
        %4584 = vmatprep.subr.bf16.mxu0 0
        %4585 = vmatpush1.bf16.xpose.msra.mxu0 0
        %4586 = vmatprep.subr.bf16.mxu0 0
        %4587 = vmatpush1.bf16.xpose.msra.mxu0 0
        %4588 = vmatprep.subr.bf16.mxu0 0
        %4589 = vmatpush1.bf16.xpose.msra.mxu0 0
        %4590 = vmatprep.subr.bf16.mxu0 0
        %4591 = vmatpush1.bf16.xpose.msra.mxu0 0
        %4592 = vmatprep.subr.bf16.mxu0 0
        %4593 = vmatpush1.bf16.xpose.msra.mxu0 0
        %4594 = vmatprep.subr.bf16.mxu0 0
        %4595 = vmatpush1.bf16.xpose.msra.mxu0 0
        %4596 = vmatprep.subr.bf16.mxu0 0
        %4597 = vmatpush1.bf16.xpose.msra.mxu0 0
        %4598 = vmatprep.subr.bf16.mxu0 0
        %4599 = vmatpush1.bf16.xpose.msra.mxu0 0
        %4600 = vmatprep.subr.bf16.mxu0 0
        %4601 = vmatpush1.bf16.xpose.msra.mxu0 0
        %4602 = vmatprep.subr.bf16.mxu0 0
        %4603 = vmatpush1.bf16.xpose.msra.mxu0 0
        %4604 = vmatprep.subr.bf16.mxu0 0
        %4605 = vmatpush1.bf16.xpose.msra.mxu0 0
        %4606 = vmatprep.subr.bf16.mxu0 0
        %4607 = vmatpush1.bf16.xpose.msra.mxu0 0
        %4608 = vmatprep.mubr.bf16.mxu0 0
        %4609 = vmatmul.mubr.bf16.gmra.mrb[0].mxu0 %v4571
        %v4610 = vpop.f32.mrb[0].mxu0
        %v4611 = vadd.f32 %v4458, %v4610
        %v4612 = vpop.f32.mrb[0].mxu0
        %v4613 = vpop.f32.mrb[0].mxu0
        %v4614 = vpop.f32.mrb[0].mxu0
        %4615 = vdwg.mxu0
        %v4616 = vsel %vm2207, %v4611, -inf
        %4617 = vmax.xlane.f32.xlu0 %v4616
        %v4618 = vpop.xlane.xlu0 %4617
        %v4619 = vsub.f32 %v4611, %v4618
        %v4620 = vmul.f32 %v4619, 1.442695
        %v4621 = vpow.pop %v4620
        %v4622 = vsel %vm2207, %v4621, 0.0
        %4623 = vadd.xlane.f32.xlu0 %v4622
        %v4624 = vpop.xlane.xlu0 %4623
        %v4625 = vrcp.pop %v4624
        %v4626 = vmul.f32 %v4621, %v4625
        %v4627 = vpack.c.bf16 %v4626, %v4626
        %4629 = vrot.lane.b32.xlu0 %v4453, 96
        %v4630 = vpop.permute.xlu0 %4629
        %v4632 = vsel %vm2207, %v4627, 0
        %v4635 = vsel %vm2223, %v4630, 0
        %4637 = vmatprep.subr.bf16.mxu0 0
        %4638 = vmatpush1.bf16.msra.mxu0 %v4635
        %4639 = vmatprep.subr.bf16.mxu0 0
        %4640 = vmatpush1.bf16.msra.mxu0 0
        %4641 = vmatprep.subr.bf16.mxu0 0
        %4642 = vmatpush1.bf16.msra.mxu0 0
        %4643 = vmatprep.subr.bf16.mxu0 0
        %4644 = vmatpush1.bf16.msra.mxu0 0
        %4645 = vmatprep.subr.bf16.mxu0 0
        %4646 = vmatpush1.bf16.msra.mxu0 0
        %4647 = vmatprep.subr.bf16.mxu0 0
        %4648 = vmatpush1.bf16.msra.mxu0 0
        %4649 = vmatprep.subr.bf16.mxu0 0
        %4650 = vmatpush1.bf16.msra.mxu0 0
        %4651 = vmatprep.subr.bf16.mxu0 0
        %4652 = vmatpush1.bf16.msra.mxu0 0
        %4653 = vmatprep.subr.bf16.mxu0 0
        %4654 = vmatpush1.bf16.msra.mxu0 0
        %4655 = vmatprep.subr.bf16.mxu0 0
        %4656 = vmatpush1.bf16.msra.mxu0 0
        %4657 = vmatprep.subr.bf16.mxu0 0
        %4658 = vmatpush1.bf16.msra.mxu0 0
        %4659 = vmatprep.subr.bf16.mxu0 0
        %4660 = vmatpush1.bf16.msra.mxu0 0
        %4661 = vmatprep.subr.bf16.mxu0 0
        %4662 = vmatpush1.bf16.msra.mxu0 0
        %4663 = vmatprep.subr.bf16.mxu0 0
        %4664 = vmatpush1.bf16.msra.mxu0 0
        %4665 = vmatprep.subr.bf16.mxu0 0
        %4666 = vmatpush1.bf16.msra.mxu0 0
        %4667 = vmatprep.subr.bf16.mxu0 0
        %4668 = vmatpush1.bf16.msra.mxu0 0
        %4669 = vmatprep.mubr.bf16.mxu0 0
        %4670 = vmatmul.mubr.bf16.gmra.mrb[0].mxu0 %v4632
        %v4671 = vpop.f32.mrb[0].mxu0
        %v4672 = vadd.f32 0.0, %v4671
        %v4673 = vpop.f32.mrb[0].mxu0
        %v4674 = vpop.f32.mrb[0].mxu0
        %v4675 = vpop.f32.mrb[0].mxu0
        %4676 = vdwg.mxu0
        %4677 = vrot.lane.b32.xlu0 %v4451, 64
        %v4678 = vpop.permute.xlu0 %4677
        %4679 = vrot.lane.b32.xlu0 %v4452, 64
        %v4680 = vpop.permute.xlu0 %4679
        %v4682 = vsel %vm1849, %v4678, 0
        %v4685 = vsel %vm1849, %v4680, 0
        %4687 = vmatprep.subr.bf16.mxu0 0
        %4688 = vmatpush1.bf16.xpose.msra.mxu0 %v4685
        %4689 = vmatprep.subr.bf16.mxu0 0
        %4690 = vmatpush1.bf16.xpose.msra.mxu0 0
        %4691 = vmatprep.subr.bf16.mxu0 0
        %4692 = vmatpush1.bf16.xpose.msra.mxu0 0
        %4693 = vmatprep.subr.bf16.mxu0 0
        %4694 = vmatpush1.bf16.xpose.msra.mxu0 0
        %4695 = vmatprep.subr.bf16.mxu0 0
        %4696 = vmatpush1.bf16.xpose.msra.mxu0 0
        %4697 = vmatprep.subr.bf16.mxu0 0
        %4698 = vmatpush1.bf16.xpose.msra.mxu0 0
        %4699 = vmatprep.subr.bf16.mxu0 0
        %4700 = vmatpush1.bf16.xpose.msra.mxu0 0
        %4701 = vmatprep.subr.bf16.mxu0 0
        %4702 = vmatpush1.bf16.xpose.msra.mxu0 0
        %4703 = vmatprep.subr.bf16.mxu0 0
        %4704 = vmatpush1.bf16.xpose.msra.mxu0 0
        %4705 = vmatprep.subr.bf16.mxu0 0
        %4706 = vmatpush1.bf16.xpose.msra.mxu0 0
        %4707 = vmatprep.subr.bf16.mxu0 0
        %4708 = vmatpush1.bf16.xpose.msra.mxu0 0
        %4709 = vmatprep.subr.bf16.mxu0 0
        %4710 = vmatpush1.bf16.xpose.msra.mxu0 0
        %4711 = vmatprep.subr.bf16.mxu0 0
        %4712 = vmatpush1.bf16.xpose.msra.mxu0 0
        %4713 = vmatprep.subr.bf16.mxu0 0
        %4714 = vmatpush1.bf16.xpose.msra.mxu0 0
        %4715 = vmatprep.subr.bf16.mxu0 0
        %4716 = vmatpush1.bf16.xpose.msra.mxu0 0
        %4717 = vmatprep.subr.bf16.mxu0 0
        %4718 = vmatpush1.bf16.xpose.msra.mxu0 0
        %4719 = vmatprep.mubr.bf16.mxu0 0
        %4720 = vmatmul.mubr.bf16.gmra.mrb[0].mxu0 %v4682
        %v4721 = vpop.f32.mrb[0].mxu0
        %v4722 = vadd.f32 %v4458, %v4721
        %v4723 = vpop.f32.mrb[0].mxu0
        %v4724 = vpop.f32.mrb[0].mxu0
        %v4725 = vpop.f32.mrb[0].mxu0
        %4726 = vdwg.mxu0
        %v4727 = vsel %vm2207, %v4722, -inf
        %4728 = vmax.xlane.f32.xlu0 %v4727
        %v4729 = vpop.xlane.xlu0 %4728
        %v4730 = vsub.f32 %v4722, %v4729
        %v4731 = vmul.f32 %v4730, 1.442695
        %v4732 = vpow.pop %v4731
        %v4733 = vsel %vm2207, %v4732, 0.0
        %4734 = vadd.xlane.f32.xlu0 %v4733
        %v4735 = vpop.xlane.xlu0 %4734
        %v4736 = vrcp.pop %v4735
        %v4737 = vmul.f32 %v4732, %v4736
        %v4738 = vpack.c.bf16 %v4737, %v4737
        %4739 = vrot.lane.b32.xlu0 %v4453, 64
        %v4740 = vpop.permute.xlu0 %4739
        %v4742 = vsel %vm2207, %v4738, 0
        %v4745 = vsel %vm2223, %v4740, 0
        %4747 = vmatprep.subr.bf16.mxu0 0
        %4748 = vmatpush1.bf16.msra.mxu0 %v4745
        %4749 = vmatprep.subr.bf16.mxu0 0
        %4750 = vmatpush1.bf16.msra.mxu0 0
        %4751 = vmatprep.subr.bf16.mxu0 0
        %4752 = vmatpush1.bf16.msra.mxu0 0
        %4753 = vmatprep.subr.bf16.mxu0 0
        %4754 = vmatpush1.bf16.msra.mxu0 0
        %4755 = vmatprep.subr.bf16.mxu0 0
        %4756 = vmatpush1.bf16.msra.mxu0 0
        %4757 = vmatprep.subr.bf16.mxu0 0
        %4758 = vmatpush1.bf16.msra.mxu0 0
        %4759 = vmatprep.subr.bf16.mxu0 0
        %4760 = vmatpush1.bf16.msra.mxu0 0
        %4761 = vmatprep.subr.bf16.mxu0 0
        %4762 = vmatpush1.bf16.msra.mxu0 0
        %4763 = vmatprep.subr.bf16.mxu0 0
        %4764 = vmatpush1.bf16.msra.mxu0 0
        %4765 = vmatprep.subr.bf16.mxu0 0
        %4766 = vmatpush1.bf16.msra.mxu0 0
        %4767 = vmatprep.subr.bf16.mxu0 0
        %4768 = vmatpush1.bf16.msra.mxu0 0
        %4769 = vmatprep.subr.bf16.mxu0 0
        %4770 = vmatpush1.bf16.msra.mxu0 0
        %4771 = vmatprep.subr.bf16.mxu0 0
        %4772 = vmatpush1.bf16.msra.mxu0 0
        %4773 = vmatprep.subr.bf16.mxu0 0
        %4774 = vmatpush1.bf16.msra.mxu0 0
        %4775 = vmatprep.subr.bf16.mxu0 0
        %4776 = vmatpush1.bf16.msra.mxu0 0
        %4777 = vmatprep.subr.bf16.mxu0 0
        %4778 = vmatpush1.bf16.msra.mxu0 0
        %4779 = vmatprep.mubr.bf16.mxu0 0
        %4780 = vmatmul.mubr.bf16.gmra.mrb[0].mxu0 %v4742
        %v4781 = vpop.f32.mrb[0].mxu0
        %v4782 = vadd.f32 0.0, %v4781
        %v4783 = vpop.f32.mrb[0].mxu0
        %v4784 = vpop.f32.mrb[0].mxu0
        %v4785 = vpop.f32.mrb[0].mxu0
        %4786 = vdwg.mxu0
        %4787 = vrot.lane.b32.xlu0 %v4451, 32
        %v4788 = vpop.permute.xlu0 %4787
        %4789 = vrot.lane.b32.xlu0 %v4452, 32
        %v4790 = vpop.permute.xlu0 %4789
        %v4792 = vsel %vm1849, %v4788, 0
        %v4795 = vsel %vm1849, %v4790, 0
        %4797 = vmatprep.subr.bf16.mxu0 0
        %4798 = vmatpush1.bf16.xpose.msra.mxu0 %v4795
        %4799 = vmatprep.subr.bf16.mxu0 0
        %4800 = vmatpush1.bf16.xpose.msra.mxu0 0
        %4801 = vmatprep.subr.bf16.mxu0 0
        %4802 = vmatpush1.bf16.xpose.msra.mxu0 0
        %4803 = vmatprep.subr.bf16.mxu0 0
        %4804 = vmatpush1.bf16.xpose.msra.mxu0 0
        %4805 = vmatprep.subr.bf16.mxu0 0
        %4806 = vmatpush1.bf16.xpose.msra.mxu0 0
        %4807 = vmatprep.subr.bf16.mxu0 0
        %4808 = vmatpush1.bf16.xpose.msra.mxu0 0
        %4809 = vmatprep.subr.bf16.mxu0 0
        %4810 = vmatpush1.bf16.xpose.msra.mxu0 0
        %4811 = vmatprep.subr.bf16.mxu0 0
        %4812 = vmatpush1.bf16.xpose.msra.mxu0 0
        %4813 = vmatprep.subr.bf16.mxu0 0
        %4814 = vmatpush1.bf16.xpose.msra.mxu0 0
        %4815 = vmatprep.subr.bf16.mxu0 0
        %4816 = vmatpush1.bf16.xpose.msra.mxu0 0
        %4817 = vmatprep.subr.bf16.mxu0 0
        %4818 = vmatpush1.bf16.xpose.msra.mxu0 0
        %4819 = vmatprep.subr.bf16.mxu0 0
        %4820 = vmatpush1.bf16.xpose.msra.mxu0 0
        %4821 = vmatprep.subr.bf16.mxu0 0
        %4822 = vmatpush1.bf16.xpose.msra.mxu0 0
        %4823 = vmatprep.subr.bf16.mxu0 0
        %4824 = vmatpush1.bf16.xpose.msra.mxu0 0
        %4825 = vmatprep.subr.bf16.mxu0 0
        %4826 = vmatpush1.bf16.xpose.msra.mxu0 0
        %4827 = vmatprep.subr.bf16.mxu0 0
        %4828 = vmatpush1.bf16.xpose.msra.mxu0 0
        %4829 = vmatprep.mubr.bf16.mxu0 0
        %4830 = vmatmul.mubr.bf16.gmra.mrb[0].mxu0 %v4792
        %v4831 = vpop.f32.mrb[0].mxu0
        %v4832 = vadd.f32 %v4458, %v4831
        %v4833 = vpop.f32.mrb[0].mxu0
        %v4834 = vpop.f32.mrb[0].mxu0
        %v4835 = vpop.f32.mrb[0].mxu0
        %4836 = vdwg.mxu0
        %v4837 = vsel %vm2207, %v4832, -inf
        %4838 = vmax.xlane.f32.xlu0 %v4837
        %v4839 = vpop.xlane.xlu0 %4838
        %v4840 = vsub.f32 %v4832, %v4839
        %v4841 = vmul.f32 %v4840, 1.442695
        %v4842 = vpow.pop %v4841
        %v4843 = vsel %vm2207, %v4842, 0.0
        %4844 = vadd.xlane.f32.xlu0 %v4843
        %v4845 = vpop.xlane.xlu0 %4844
        %v4846 = vrcp.pop %v4845
        %v4847 = vmul.f32 %v4842, %v4846
        %v4848 = vpack.c.bf16 %v4847, %v4847
        %4849 = vrot.lane.b32.xlu0 %v4453, 32
        %v4850 = vpop.permute.xlu0 %4849
        %v4852 = vsel %vm2207, %v4848, 0
        %v4855 = vsel %vm2223, %v4850, 0
        %4857 = vmatprep.subr.bf16.mxu0 0
        %4858 = vmatpush1.bf16.msra.mxu0 %v4855
        %4859 = vmatprep.subr.bf16.mxu0 0
        %4860 = vmatpush1.bf16.msra.mxu0 0
        %4861 = vmatprep.subr.bf16.mxu0 0
        %4862 = vmatpush1.bf16.msra.mxu0 0
        %4863 = vmatprep.subr.bf16.mxu0 0
        %4864 = vmatpush1.bf16.msra.mxu0 0
        %4865 = vmatprep.subr.bf16.mxu0 0
        %4866 = vmatpush1.bf16.msra.mxu0 0
        %4867 = vmatprep.subr.bf16.mxu0 0
        %4868 = vmatpush1.bf16.msra.mxu0 0
        %4869 = vmatprep.subr.bf16.mxu0 0
        %4870 = vmatpush1.bf16.msra.mxu0 0
        %4871 = vmatprep.subr.bf16.mxu0 0
        %4872 = vmatpush1.bf16.msra.mxu0 0
        %4873 = vmatprep.subr.bf16.mxu0 0
        %4874 = vmatpush1.bf16.msra.mxu0 0
        %4875 = vmatprep.subr.bf16.mxu0 0
        %4876 = vmatpush1.bf16.msra.mxu0 0
        %4877 = vmatprep.subr.bf16.mxu0 0
        %4878 = vmatpush1.bf16.msra.mxu0 0
        %4879 = vmatprep.subr.bf16.mxu0 0
        %4880 = vmatpush1.bf16.msra.mxu0 0
        %4881 = vmatprep.subr.bf16.mxu0 0
        %4882 = vmatpush1.bf16.msra.mxu0 0
        %4883 = vmatprep.subr.bf16.mxu0 0
        %4884 = vmatpush1.bf16.msra.mxu0 0
        %4885 = vmatprep.subr.bf16.mxu0 0
        %4886 = vmatpush1.bf16.msra.mxu0 0
        %4887 = vmatprep.subr.bf16.mxu0 0
        %4888 = vmatpush1.bf16.msra.mxu0 0
        %4889 = vmatprep.mubr.bf16.mxu0 0
        %4890 = vmatmul.mubr.bf16.gmra.mrb[0].mxu0 %v4852
        %v4891 = vpop.f32.mrb[0].mxu0
        %v4892 = vadd.f32 0.0, %v4891
        %v4893 = vpop.f32.mrb[0].mxu0
        %v4894 = vpop.f32.mrb[0].mxu0
        %v4895 = vpop.f32.mrb[0].mxu0
        %4896 = vdwg.mxu0
        %4898 = vrot.lane.b32.xlu0 %v4672, 32
        %v4899 = vpop.permute.xlu0 %4898
        %4902 = vrot.lane.b32.xlu0 %v4782, 64
        %v4903 = vpop.permute.xlu0 %4902
        %4906 = vrot.lane.b32.xlu0 %v4892, 96
        %v4907 = vpop.permute.xlu0 %4906
        %v4909 = vsel %vm1849, %v4559, %v4899
        %v4910 = vsel %vm2613, %v4909, %v4903
        %v4911 = vsel %vm2615, %v4910, %v4907
        %v4912 = vpack.c.bf16 %v4911, %v4911
        %v4913 = vld [vmem:[#allocation35] sm:$0xf]
        %v4914 = vld [vmem:[#allocation35 + $0x4] sm:$0xf]
        %v4915 = vld [vmem:[#allocation35 + $0x8] sm:$0xf]
        %v4916 = vld [vmem:[#allocation35 + $0xc] sm:$0xf]
        %v4917 = vld [vmem:[#allocation35 + $0x10] sm:$0xf]
        %v4918 = vld [vmem:[#allocation35 + $0x14] sm:$0xf]
        %v4919 = vld [vmem:[#allocation35 + $0x18] sm:$0xf]
        %v4920 = vld [vmem:[#allocation35 + $0x1c] sm:$0xf]
        %v4921 = vld [vmem:[#allocation35 + $0x20] sm:$0xf]
        %v4922 = vld [vmem:[#allocation35 + $0x24] sm:$0xf]
        %v4923 = vld [vmem:[#allocation35 + $0x28] sm:$0xf]
        %v4924 = vld [vmem:[#allocation35 + $0x2c] sm:$0xf]
        %v4925 = vld [vmem:[#allocation35 + $0x30] sm:$0xf]
        %v4926 = vld [vmem:[#allocation35 + $0x34] sm:$0xf]
        %v4927 = vld [vmem:[#allocation35 + $0x38] sm:$0xf]
        %v4928 = vld [vmem:[#allocation35 + $0x3c] sm:$0xf]
        %v4929 = vld [vmem:[#allocation37] sm:$0x1]
        %v4931 = vlaneseq
        %v4932 = vshrl.u32 %v4931, 7
        %v4933 = vsub.s32 0, %v4932
        %v4934 = vrot.slane %v4929, %v4933
        %v4952 = vunpack.c.l.b16 %v4913
        %v4953 = vunpack.c.l.b16 %v4914
        %v4954 = vunpack.c.l.b16 %v4915
        %v4955 = vunpack.c.l.b16 %v4916
        %v4956 = vunpack.c.l.b16 %v4917
        %v4957 = vunpack.c.l.b16 %v4918
        %v4958 = vunpack.c.l.b16 %v4919
        %v4959 = vunpack.c.l.b16 %v4920
        %v4960 = vunpack.c.l.b16 %v4921
        %v4961 = vunpack.c.l.b16 %v4922
        %v4962 = vunpack.c.l.b16 %v4923
        %v4963 = vunpack.c.l.b16 %v4924
        %v4964 = vunpack.c.l.b16 %v4925
        %v4965 = vunpack.c.l.b16 %v4926
        %v4966 = vunpack.c.l.b16 %v4927
        %v4967 = vunpack.c.l.b16 %v4928
        %v4968 = vpack.c.b16 %v4953, %v4952
        %v4969 = vpack.c.b16 %v4955, %v4954
        %v4970 = vpack.c.b16 %v4957, %v4956
        %v4971 = vpack.c.b16 %v4959, %v4958
        %v4972 = vpack.c.b16 %v4961, %v4960
        %v4973 = vpack.c.b16 %v4963, %v4962
        %v4974 = vpack.c.b16 %v4965, %v4964
        %v4975 = vpack.c.b16 %v4967, %v4966
        %4984 = vmatprep.subr.bf16.mxu0 0
        %4985 = vmatpush1.bf16.msra.mxu0 %v4968
        %4986 = vmatprep.subr.bf16.mxu0 0
        %4987 = vmatpush1.bf16.msra.mxu0 %v4969
        %4988 = vmatprep.subr.bf16.mxu0 0
        %4989 = vmatpush1.bf16.msra.mxu0 %v4970
        %4990 = vmatprep.subr.bf16.mxu0 0
        %4991 = vmatpush1.bf16.msra.mxu0 %v4971
        %4992 = vmatprep.subr.bf16.mxu0 0
        %4993 = vmatpush1.bf16.msra.mxu0 %v4972
        %4994 = vmatprep.subr.bf16.mxu0 0
        %4995 = vmatpush1.bf16.msra.mxu0 %v4973
        %4996 = vmatprep.subr.bf16.mxu0 0
        %4997 = vmatpush1.bf16.msra.mxu0 %v4974
        %4998 = vmatprep.subr.bf16.mxu0 0
        %4999 = vmatpush1.bf16.msra.mxu0 %v4975
        %5000 = vmatprep.subr.bf16.mxu0 0
        %5001 = vmatpush1.bf16.msra.mxu0 0
        %5002 = vmatprep.subr.bf16.mxu0 0
        %5003 = vmatpush1.bf16.msra.mxu0 0
        %5004 = vmatprep.subr.bf16.mxu0 0
        %5005 = vmatpush1.bf16.msra.mxu0 0
        %5006 = vmatprep.subr.bf16.mxu0 0
        %5007 = vmatpush1.bf16.msra.mxu0 0
        %5008 = vmatprep.subr.bf16.mxu0 0
        %5009 = vmatpush1.bf16.msra.mxu0 0
        %5010 = vmatprep.subr.bf16.mxu0 0
        %5011 = vmatpush1.bf16.msra.mxu0 0
        %5012 = vmatprep.subr.bf16.mxu0 0
        %5013 = vmatpush1.bf16.msra.mxu0 0
        %5014 = vmatprep.subr.bf16.mxu0 0
        %5015 = vmatpush1.bf16.msra.mxu0 0
        %5016 = vmatprep.mubr.bf16.mxu0 0
        %5017 = vmatmul.mubr.bf16.gmra.mrb[0].mxu0 %v4912
        %v5018 = vpop.f32.mrb[0].mxu0
        %v5019 = vadd.f32 %v4934, %v5018
        %v5020 = vpop.f32.mrb[0].mxu0
        %v5021 = vpop.f32.mrb[0].mxu0
        %v5022 = vpop.f32.mrb[0].mxu0
        %5023 = vdwg.mxu0
        %v5024 = vld [vmem:[#allocation53] sm:$0x1]
        %v5025 = vld [vmem:[#allocation55] sm:$0x1]
        %v5026 = vadd.f32 %v5019, %v4187
        %5027 = vadd.xlane.f32.xlu0 %v5026
        %v5028 = vpop.xlane.xlu0 %5027
        %v5029 = vmul.f32 %v5028, %v2734
        %v5030 = vsub.f32 %v5026, %v5029
        %v5031 = vmul.f32 %v5030, %v5030
        %5032 = vadd.xlane.f32.xlu0 %v5031
        %v5033 = vpop.xlane.xlu0 %5032
        %v5034 = vmul.f32 %v5033, %v2734
        %v5035 = vadd.f32 %v5034, 1e-05
        %v5036 = vrsqrt.pop %v5035
        %v5037 = vmul.f32 %v5030, %v5036
        %v5039 = vlaneseq
        %v5040 = vshrl.u32 %v5039, 7
        %v5041 = vsub.s32 0, %v5040
        %v5042 = vrot.slane %v5024, %v5041
        %v5044 = vmul.f32 %v5037, %v5042
        %v5046 = vlaneseq
        %v5047 = vshrl.u32 %v5046, 7
        %v5048 = vsub.s32 0, %v5047
        %v5049 = vrot.slane %v5025, %v5048
        %v5051 = vadd.f32 %v5044, %v5049
        %v5052 = vpack.c.bf16 %v5051, %v5051
        %v5053 = vld [vmem:[#allocation38] sm:$0xf]
        %v5054 = vld [vmem:[#allocation38 + $0x4] sm:$0xf]
        %v5055 = vld [vmem:[#allocation38 + $0x8] sm:$0xf]
        %v5056 = vld [vmem:[#allocation38 + $0xc] sm:$0xf]
        %v5057 = vld [vmem:[#allocation38 + $0x10] sm:$0xf]
        %v5058 = vld [vmem:[#allocation38 + $0x14] sm:$0xf]
        %v5059 = vld [vmem:[#allocation38 + $0x18] sm:$0xf]
        %v5060 = vld [vmem:[#allocation38 + $0x1c] sm:$0xf]
        %v5061 = vld [vmem:[#allocation38 + $0x20] sm:$0xf]
        %v5062 = vld [vmem:[#allocation38 + $0x24] sm:$0xf]
        %v5063 = vld [vmem:[#allocation38 + $0x28] sm:$0xf]
        %v5064 = vld [vmem:[#allocation38 + $0x2c] sm:$0xf]
        %v5065 = vld [vmem:[#allocation38 + $0x30] sm:$0xf]
        %v5066 = vld [vmem:[#allocation38 + $0x34] sm:$0xf]
        %v5067 = vld [vmem:[#allocation38 + $0x38] sm:$0xf]
        %v5068 = vld [vmem:[#allocation38 + $0x3c] sm:$0xf]
        %v5069 = vld [vmem:[#allocation40] sm:$0x1]
        %v5071 = vlaneseq
        %v5072 = vshrl.u32 %v5071, 7
        %v5073 = vsub.s32 0, %v5072
        %v5074 = vrot.slane %v5069, %v5073
        %v5092 = vunpack.c.l.b16 %v5053
        %v5093 = vunpack.c.l.b16 %v5054
        %v5094 = vunpack.c.l.b16 %v5055
        %v5095 = vunpack.c.l.b16 %v5056
        %v5096 = vunpack.c.l.b16 %v5057
        %v5097 = vunpack.c.l.b16 %v5058
        %v5098 = vunpack.c.l.b16 %v5059
        %v5099 = vunpack.c.l.b16 %v5060
        %v5100 = vunpack.c.l.b16 %v5061
        %v5101 = vunpack.c.l.b16 %v5062
        %v5102 = vunpack.c.l.b16 %v5063
        %v5103 = vunpack.c.l.b16 %v5064
        %v5104 = vunpack.c.l.b16 %v5065
        %v5105 = vunpack.c.l.b16 %v5066
        %v5106 = vunpack.c.l.b16 %v5067
        %v5107 = vunpack.c.l.b16 %v5068
        %v5108 = vpack.c.b16 %v5093, %v5092
        %v5109 = vpack.c.b16 %v5095, %v5094
        %v5110 = vpack.c.b16 %v5097, %v5096
        %v5111 = vpack.c.b16 %v5099, %v5098
        %v5112 = vpack.c.b16 %v5101, %v5100
        %v5113 = vpack.c.b16 %v5103, %v5102
        %v5114 = vpack.c.b16 %v5105, %v5104
        %v5115 = vpack.c.b16 %v5107, %v5106
        %5124 = vmatprep.subr.bf16.mxu0 0
        %5125 = vmatpush1.bf16.msra.mxu0 %v5108
        %5126 = vmatprep.subr.bf16.mxu0 0
        %5127 = vmatpush1.bf16.msra.mxu0 %v5109
        %5128 = vmatprep.subr.bf16.mxu0 0
        %5129 = vmatpush1.bf16.msra.mxu0 %v5110
        %5130 = vmatprep.subr.bf16.mxu0 0
        %5131 = vmatpush1.bf16.msra.mxu0 %v5111
        %5132 = vmatprep.subr.bf16.mxu0 0
        %5133 = vmatpush1.bf16.msra.mxu0 %v5112
        %5134 = vmatprep.subr.bf16.mxu0 0
        %5135 = vmatpush1.bf16.msra.mxu0 %v5113
        %5136 = vmatprep.subr.bf16.mxu0 0
        %5137 = vmatpush1.bf16.msra.mxu0 %v5114
        %5138 = vmatprep.subr.bf16.mxu0 0
        %5139 = vmatpush1.bf16.msra.mxu0 %v5115
        %5140 = vmatprep.subr.bf16.mxu0 0
        %5141 = vmatpush1.bf16.msra.mxu0 0
        %5142 = vmatprep.subr.bf16.mxu0 0
        %5143 = vmatpush1.bf16.msra.mxu0 0
        %5144 = vmatprep.subr.bf16.mxu0 0
        %5145 = vmatpush1.bf16.msra.mxu0 0
        %5146 = vmatprep.subr.bf16.mxu0 0
        %5147 = vmatpush1.bf16.msra.mxu0 0
        %5148 = vmatprep.subr.bf16.mxu0 0
        %5149 = vmatpush1.bf16.msra.mxu0 0
        %5150 = vmatprep.subr.bf16.mxu0 0
        %5151 = vmatpush1.bf16.msra.mxu0 0
        %5152 = vmatprep.subr.bf16.mxu0 0
        %5153 = vmatpush1.bf16.msra.mxu0 0
        %5154 = vmatprep.subr.bf16.mxu0 0
        %5155 = vmatpush1.bf16.msra.mxu0 0
        %5156 = vmatprep.mubr.bf16.mxu0 0
        %5157 = vmatmul.mubr.bf16.gmra.mrb[0].mxu0 %v5052
        %v5158 = vpop.f32.mrb[0].mxu0
        %v5159 = vadd.f32 %v5074, %v5158
        %v5160 = vpop.f32.mrb[0].mxu0
        %v5161 = vpop.f32.mrb[0].mxu0
        %v5162 = vpop.f32.mrb[0].mxu0
        %5163 = vdwg.mxu0
        %v5164 = vld [vmem:[#allocation41] sm:$0xff]
        %v5165 = vld [vmem:[#allocation41 + $0x8] sm:$0xff]
        %v5166 = vld [vmem:[#allocation41 + $0x10] sm:$0xff]
        %v5167 = vld [vmem:[#allocation41 + $0x18] sm:$0xff]
        %v5168 = vld [vmem:[#allocation41 + $0x20] sm:$0xff]
        %v5169 = vld [vmem:[#allocation41 + $0x28] sm:$0xff]
        %v5170 = vld [vmem:[#allocation41 + $0x30] sm:$0xff]
        %v5171 = vld [vmem:[#allocation41 + $0x38] sm:$0xff]
        %v5172 = vld [vmem:[#allocation41 + $0x40] sm:$0xff]
        %v5173 = vld [vmem:[#allocation41 + $0x48] sm:$0xff]
        %v5174 = vld [vmem:[#allocation41 + $0x50] sm:$0xff]
        %v5175 = vld [vmem:[#allocation41 + $0x58] sm:$0xff]
        %v5176 = vld [vmem:[#allocation41 + $0x60] sm:$0xff]
        %v5177 = vld [vmem:[#allocation41 + $0x68] sm:$0xff]
        %v5178 = vld [vmem:[#allocation41 + $0x70] sm:$0xff]
        %v5179 = vld [vmem:[#allocation41 + $0x78] sm:$0xff]
        %v5180 = vld [vmem:[#allocation43] sm:$0x3]
        %v5182 = vlaneseq
        %v5183 = vshrl.u32 %v5182, 7
        %v5184 = vsub.s32 0, %v5183
        %v5185 = vrot.slane %v5180, %v5184
        %v5186 = vlaneseq
        %v5187 = vshrl.u32 %v5186, 7
        %v5188 = vsub.s32 1, %v5187
        %v5189 = vrot.slane %v5180, %v5188
        %v5208 = vunpack.c.l.b16 %v5164
        %v5209 = vunpack.c.h.b16 %v5164
        %v5210 = vunpack.c.l.b16 %v5165
        %v5211 = vunpack.c.h.b16 %v5165
        %v5212 = vunpack.c.l.b16 %v5166
        %v5213 = vunpack.c.h.b16 %v5166
        %v5214 = vunpack.c.l.b16 %v5167
        %v5215 = vunpack.c.h.b16 %v5167
        %v5216 = vunpack.c.l.b16 %v5168
        %v5217 = vunpack.c.h.b16 %v5168
        %v5218 = vunpack.c.l.b16 %v5169
        %v5219 = vunpack.c.h.b16 %v5169
        %v5220 = vunpack.c.l.b16 %v5170
        %v5221 = vunpack.c.h.b16 %v5170
        %v5222 = vunpack.c.l.b16 %v5171
        %v5223 = vunpack.c.h.b16 %v5171
        %v5224 = vunpack.c.l.b16 %v5172
        %v5225 = vunpack.c.h.b16 %v5172
        %v5226 = vunpack.c.l.b16 %v5173
        %v5227 = vunpack.c.h.b16 %v5173
        %v5228 = vunpack.c.l.b16 %v5174
        %v5229 = vunpack.c.h.b16 %v5174
        %v5230 = vunpack.c.l.b16 %v5175
        %v5231 = vunpack.c.h.b16 %v5175
        %v5232 = vunpack.c.l.b16 %v5176
        %v5233 = vunpack.c.h.b16 %v5176
        %v5234 = vunpack.c.l.b16 %v5177
        %v5235 = vunpack.c.h.b16 %v5177
        %v5236 = vunpack.c.l.b16 %v5178
        %v5237 = vunpack.c.h.b16 %v5178
        %v5238 = vunpack.c.l.b16 %v5179
        %v5239 = vunpack.c.h.b16 %v5179
        %v5240 = vpack.c.b16 %v5210, %v5208
        %v5241 = vpack.c.b16 %v5211, %v5209
        %v5242 = vpack.c.b16 %v5214, %v5212
        %v5243 = vpack.c.b16 %v5215, %v5213
        %v5244 = vpack.c.b16 %v5218, %v5216
        %v5245 = vpack.c.b16 %v5219, %v5217
        %v5246 = vpack.c.b16 %v5222, %v5220
        %v5247 = vpack.c.b16 %v5223, %v5221
        %v5248 = vpack.c.b16 %v5226, %v5224
        %v5249 = vpack.c.b16 %v5227, %v5225
        %v5250 = vpack.c.b16 %v5230, %v5228
        %v5251 = vpack.c.b16 %v5231, %v5229
        %v5252 = vpack.c.b16 %v5234, %v5232
        %v5253 = vpack.c.b16 %v5235, %v5233
        %v5254 = vpack.c.b16 %v5238, %v5236
        %v5255 = vpack.c.b16 %v5239, %v5237
        %5272 = vmatprep.subr.bf16.mxu0 %v5241
        %5273 = vmatpush1.bf16.msra.mxu0 %v5240
        %5274 = vmatprep.subr.bf16.mxu0 %v5243
        %5275 = vmatpush1.bf16.msra.mxu0 %v5242
        %5276 = vmatprep.subr.bf16.mxu0 %v5245
        %5277 = vmatpush1.bf16.msra.mxu0 %v5244
        %5278 = vmatprep.subr.bf16.mxu0 %v5247
        %5279 = vmatpush1.bf16.msra.mxu0 %v5246
        %5280 = vmatprep.subr.bf16.mxu0 %v5249
        %5281 = vmatpush1.bf16.msra.mxu0 %v5248
        %5282 = vmatprep.subr.bf16.mxu0 %v5251
        %5283 = vmatpush1.bf16.msra.mxu0 %v5250
        %5284 = vmatprep.subr.bf16.mxu0 %v5253
        %5285 = vmatpush1.bf16.msra.mxu0 %v5252
        %5286 = vmatprep.subr.bf16.mxu0 %v5255
        %5287 = vmatpush1.bf16.msra.mxu0 %v5254
        %5288 = vmatprep.subr.bf16.mxu0 0
        %5289 = vmatpush1.bf16.msra.mxu0 0
        %5290 = vmatprep.subr.bf16.mxu0 0
        %5291 = vmatpush1.bf16.msra.mxu0 0
        %5292 = vmatprep.subr.bf16.mxu0 0
        %5293 = vmatpush1.bf16.msra.mxu0 0
        %5294 = vmatprep.subr.bf16.mxu0 0
        %5295 = vmatpush1.bf16.msra.mxu0 0
        %5296 = vmatprep.subr.bf16.mxu0 0
        %5297 = vmatpush1.bf16.msra.mxu0 0
        %5298 = vmatprep.subr.bf16.mxu0 0
        %5299 = vmatpush1.bf16.msra.mxu0 0
        %5300 = vmatprep.subr.bf16.mxu0 0
        %5301 = vmatpush1.bf16.msra.mxu0 0
        %5302 = vmatprep.subr.bf16.mxu0 0
        %5303 = vmatpush1.bf16.msra.mxu0 0
        %5304 = vmatprep.mubr.bf16.mxu0 0
        %5305 = vmatmul.mubr.bf16.gmra.mrb[0].mxu0 %v4130
        %v5306 = vpop.f32.mrb[0].mxu0
        %v5307 = vadd.f32 %v5185, %v5306
        %v5308 = vpop.f32.mrb[0].mxu0
        %v5309 = vadd.f32 %v5189, %v5308
        %v5310 = vpop.f32.mrb[0].mxu0
        %v5311 = vpop.f32.mrb[0].mxu0
        %5312 = vdwg.mxu0
        %v5313 = vpack.c.bf16 %v5159, %v5159
        %v5314 = vpack.c.bf16 %v5307, %v5307
        %v5315 = vpack.c.bf16 %v5309, %v5309
        %v5317 = vsel %vm1849, %v5313, 0
        %v5320 = vsel %vm1849, %v5314, 0
        %5322 = vmatprep.subr.bf16.mxu0 0
        %5323 = vmatpush1.bf16.xpose.msra.mxu0 %v5320
        %5324 = vmatprep.subr.bf16.mxu0 0
        %5325 = vmatpush1.bf16.xpose.msra.mxu0 0
        %5326 = vmatprep.subr.bf16.mxu0 0
        %5327 = vmatpush1.bf16.xpose.msra.mxu0 0
        %5328 = vmatprep.subr.bf16.mxu0 0
        %5329 = vmatpush1.bf16.xpose.msra.mxu0 0
        %5330 = vmatprep.subr.bf16.mxu0 0
        %5331 = vmatpush1.bf16.xpose.msra.mxu0 0
        %5332 = vmatprep.subr.bf16.mxu0 0
        %5333 = vmatpush1.bf16.xpose.msra.mxu0 0
        %5334 = vmatprep.subr.bf16.mxu0 0
        %5335 = vmatpush1.bf16.xpose.msra.mxu0 0
        %5336 = vmatprep.subr.bf16.mxu0 0
        %5337 = vmatpush1.bf16.xpose.msra.mxu0 0
        %5338 = vmatprep.subr.bf16.mxu0 0
        %5339 = vmatpush1.bf16.xpose.msra.mxu0 0
        %5340 = vmatprep.subr.bf16.mxu0 0
        %5341 = vmatpush1.bf16.xpose.msra.mxu0 0
        %5342 = vmatprep.subr.bf16.mxu0 0
        %5343 = vmatpush1.bf16.xpose.msra.mxu0 0
        %5344 = vmatprep.subr.bf16.mxu0 0
        %5345 = vmatpush1.bf16.xpose.msra.mxu0 0
        %5346 = vmatprep.subr.bf16.mxu0 0
        %5347 = vmatpush1.bf16.xpose.msra.mxu0 0
        %5348 = vmatprep.subr.bf16.mxu0 0
        %5349 = vmatpush1.bf16.xpose.msra.mxu0 0
        %5350 = vmatprep.subr.bf16.mxu0 0
        %5351 = vmatpush1.bf16.xpose.msra.mxu0 0
        %5352 = vmatprep.subr.bf16.mxu0 0
        %5353 = vmatpush1.bf16.xpose.msra.mxu0 0
        %5354 = vmatprep.mubr.bf16.mxu0 0
        %5355 = vmatmul.mubr.bf16.gmra.mrb[0].mxu0 %v5317
        %v5356 = vpop.f32.mrb[0].mxu0
        %v5357 = vadd.f32 %v2159, %v5356
        %v5358 = vpop.f32.mrb[0].mxu0
        %v5359 = vpop.f32.mrb[0].mxu0
        %v5360 = vpop.f32.mrb[0].mxu0
        %5361 = vdwg.mxu0
        %v5362 = vsel %vm2207, %v5357, -inf
        %5363 = vmax.xlane.f32.xlu0 %v5362
        %v5364 = vpop.xlane.xlu0 %5363
        %v5365 = vsub.f32 %v5357, %v5364
        %v5366 = vmul.f32 %v5365, 1.442695
        %v5367 = vpow.pop %v5366
        %v5368 = vsel %vm2207, %v5367, 0.0
        %5369 = vadd.xlane.f32.xlu0 %v5368
        %v5370 = vpop.xlane.xlu0 %5369
        %v5371 = vrcp.pop %v5370
        %v5372 = vmul.f32 %v5367, %v5371
        %v5373 = vpack.c.bf16 %v5372, %v5372
        %v5375 = vsel %vm2207, %v5373, 0
        %v5378 = vsel %vm2223, %v5315, 0
        %5380 = vmatprep.subr.bf16.mxu0 0
        %5381 = vmatpush1.bf16.msra.mxu0 %v5378
        %5382 = vmatprep.subr.bf16.mxu0 0
        %5383 = vmatpush1.bf16.msra.mxu0 0
        %5384 = vmatprep.subr.bf16.mxu0 0
        %5385 = vmatpush1.bf16.msra.mxu0 0
        %5386 = vmatprep.subr.bf16.mxu0 0
        %5387 = vmatpush1.bf16.msra.mxu0 0
        %5388 = vmatprep.subr.bf16.mxu0 0
        %5389 = vmatpush1.bf16.msra.mxu0 0
        %5390 = vmatprep.subr.bf16.mxu0 0
        %5391 = vmatpush1.bf16.msra.mxu0 0
        %5392 = vmatprep.subr.bf16.mxu0 0
        %5393 = vmatpush1.bf16.msra.mxu0 0
        %5394 = vmatprep.subr.bf16.mxu0 0
        %5395 = vmatpush1.bf16.msra.mxu0 0
        %5396 = vmatprep.subr.bf16.mxu0 0
        %5397 = vmatpush1.bf16.msra.mxu0 0
        %5398 = vmatprep.subr.bf16.mxu0 0
        %5399 = vmatpush1.bf16.msra.mxu0 0
        %5400 = vmatprep.subr.bf16.mxu0 0
        %5401 = vmatpush1.bf16.msra.mxu0 0
        %5402 = vmatprep.subr.bf16.mxu0 0
        %5403 = vmatpush1.bf16.msra.mxu0 0
        %5404 = vmatprep.subr.bf16.mxu0 0
        %5405 = vmatpush1.bf16.msra.mxu0 0
        %5406 = vmatprep.subr.bf16.mxu0 0
        %5407 = vmatpush1.bf16.msra.mxu0 0
        %5408 = vmatprep.subr.bf16.mxu0 0
        %5409 = vmatpush1.bf16.msra.mxu0 0
        %5410 = vmatprep.subr.bf16.mxu0 0
        %5411 = vmatpush1.bf16.msra.mxu0 0
        %5412 = vmatprep.mubr.bf16.mxu0 0
        %5413 = vmatmul.mubr.bf16.gmra.mrb[0].mxu0 %v5375
        %v5414 = vpop.f32.mrb[0].mxu0
        %v5415 = vadd.f32 0.0, %v5414
        %v5416 = vpop.f32.mrb[0].mxu0
        %v5417 = vpop.f32.mrb[0].mxu0
        %v5418 = vpop.f32.mrb[0].mxu0
        %5419 = vdwg.mxu0
        %5421 = vrot.lane.b32.xlu0 %v5313, 96
        %v5422 = vpop.permute.xlu0 %5421
        %5424 = vrot.lane.b32.xlu0 %v5314, 96
        %v5425 = vpop.permute.xlu0 %5424
        %v5427 = vsel %vm1849, %v5422, 0
        %v5430 = vsel %vm1849, %v5425, 0
        %5432 = vmatprep.subr.bf16.mxu0 0
        %5433 = vmatpush1.bf16.xpose.msra.mxu0 %v5430
        %5434 = vmatprep.subr.bf16.mxu0 0
        %5435 = vmatpush1.bf16.xpose.msra.mxu0 0
        %5436 = vmatprep.subr.bf16.mxu0 0
        %5437 = vmatpush1.bf16.xpose.msra.mxu0 0
        %5438 = vmatprep.subr.bf16.mxu0 0
        %5439 = vmatpush1.bf16.xpose.msra.mxu0 0
        %5440 = vmatprep.subr.bf16.mxu0 0
        %5441 = vmatpush1.bf16.xpose.msra.mxu0 0
        %5442 = vmatprep.subr.bf16.mxu0 0
        %5443 = vmatpush1.bf16.xpose.msra.mxu0 0
        %5444 = vmatprep.subr.bf16.mxu0 0
        %5445 = vmatpush1.bf16.xpose.msra.mxu0 0
        %5446 = vmatprep.subr.bf16.mxu0 0
        %5447 = vmatpush1.bf16.xpose.msra.mxu0 0
        %5448 = vmatprep.subr.bf16.mxu0 0
        %5449 = vmatpush1.bf16.xpose.msra.mxu0 0
        %5450 = vmatprep.subr.bf16.mxu0 0
        %5451 = vmatpush1.bf16.xpose.msra.mxu0 0
        %5452 = vmatprep.subr.bf16.mxu0 0
        %5453 = vmatpush1.bf16.xpose.msra.mxu0 0
        %5454 = vmatprep.subr.bf16.mxu0 0
        %5455 = vmatpush1.bf16.xpose.msra.mxu0 0
        %5456 = vmatprep.subr.bf16.mxu0 0
        %5457 = vmatpush1.bf16.xpose.msra.mxu0 0
        %5458 = vmatprep.subr.bf16.mxu0 0
        %5459 = vmatpush1.bf16.xpose.msra.mxu0 0
        %5460 = vmatprep.subr.bf16.mxu0 0
        %5461 = vmatpush1.bf16.xpose.msra.mxu0 0
        %5462 = vmatprep.subr.bf16.mxu0 0
        %5463 = vmatpush1.bf16.xpose.msra.mxu0 0
        %5464 = vmatprep.mubr.bf16.mxu0 0
        %5465 = vmatmul.mubr.bf16.gmra.mrb[0].mxu0 %v5427
        %v5466 = vpop.f32.mrb[0].mxu0
        %v5467 = vadd.f32 %v2159, %v5466
        %v5468 = vpop.f32.mrb[0].mxu0
        %v5469 = vpop.f32.mrb[0].mxu0
        %v5470 = vpop.f32.mrb[0].mxu0
        %5471 = vdwg.mxu0
        %v5472 = vsel %vm2207, %v5467, -inf
        %5473 = vmax.xlane.f32.xlu0 %v5472
        %v5474 = vpop.xlane.xlu0 %5473
        %v5475 = vsub.f32 %v5467, %v5474
        %v5476 = vmul.f32 %v5475, 1.442695
        %v5477 = vpow.pop %v5476
        %v5478 = vsel %vm2207, %v5477, 0.0
        %5479 = vadd.xlane.f32.xlu0 %v5478
        %v5480 = vpop.xlane.xlu0 %5479
        %v5481 = vrcp.pop %v5480
        %v5482 = vmul.f32 %v5477, %v5481
        %v5483 = vpack.c.bf16 %v5482, %v5482
        %5485 = vrot.lane.b32.xlu0 %v5315, 96
        %v5486 = vpop.permute.xlu0 %5485
        %v5488 = vsel %vm2207, %v5483, 0
        %v5491 = vsel %vm2223, %v5486, 0
        %5493 = vmatprep.subr.bf16.mxu0 0
        %5494 = vmatpush1.bf16.msra.mxu0 %v5491
        %5495 = vmatprep.subr.bf16.mxu0 0
        %5496 = vmatpush1.bf16.msra.mxu0 0
        %5497 = vmatprep.subr.bf16.mxu0 0
        %5498 = vmatpush1.bf16.msra.mxu0 0
        %5499 = vmatprep.subr.bf16.mxu0 0
        %5500 = vmatpush1.bf16.msra.mxu0 0
        %5501 = vmatprep.subr.bf16.mxu0 0
        %5502 = vmatpush1.bf16.msra.mxu0 0
        %5503 = vmatprep.subr.bf16.mxu0 0
        %5504 = vmatpush1.bf16.msra.mxu0 0
        %5505 = vmatprep.subr.bf16.mxu0 0
        %5506 = vmatpush1.bf16.msra.mxu0 0
        %5507 = vmatprep.subr.bf16.mxu0 0
        %5508 = vmatpush1.bf16.msra.mxu0 0
        %5509 = vmatprep.subr.bf16.mxu0 0
        %5510 = vmatpush1.bf16.msra.mxu0 0
        %5511 = vmatprep.subr.bf16.mxu0 0
        %5512 = vmatpush1.bf16.msra.mxu0 0
        %5513 = vmatprep.subr.bf16.mxu0 0
        %5514 = vmatpush1.bf16.msra.mxu0 0
        %5515 = vmatprep.subr.bf16.mxu0 0
        %5516 = vmatpush1.bf16.msra.mxu0 0
        %5517 = vmatprep.subr.bf16.mxu0 0
        %5518 = vmatpush1.bf16.msra.mxu0 0
        %5519 = vmatprep.subr.bf16.mxu0 0
        %5520 = vmatpush1.bf16.msra.mxu0 0
        %5521 = vmatprep.subr.bf16.mxu0 0
        %5522 = vmatpush1.bf16.msra.mxu0 0
        %5523 = vmatprep.subr.bf16.mxu0 0
        %5524 = vmatpush1.bf16.msra.mxu0 0
        %5525 = vmatprep.mubr.bf16.mxu0 0
        %5526 = vmatmul.mubr.bf16.gmra.mrb[0].mxu0 %v5488
        %v5527 = vpop.f32.mrb[0].mxu0
        %v5528 = vadd.f32 0.0, %v5527
        %v5529 = vpop.f32.mrb[0].mxu0
        %v5530 = vpop.f32.mrb[0].mxu0
        %v5531 = vpop.f32.mrb[0].mxu0
        %5532 = vdwg.mxu0
        %5533 = vrot.lane.b32.xlu0 %v5313, 64
        %v5534 = vpop.permute.xlu0 %5533
        %5535 = vrot.lane.b32.xlu0 %v5314, 64
        %v5536 = vpop.permute.xlu0 %5535
        %v5538 = vsel %vm1849, %v5534, 0
        %v5541 = vsel %vm1849, %v5536, 0
        %5543 = vmatprep.subr.bf16.mxu0 0
        %5544 = vmatpush1.bf16.xpose.msra.mxu0 %v5541
        %5545 = vmatprep.subr.bf16.mxu0 0
        %5546 = vmatpush1.bf16.xpose.msra.mxu0 0
        %5547 = vmatprep.subr.bf16.mxu0 0
        %5548 = vmatpush1.bf16.xpose.msra.mxu0 0
        %5549 = vmatprep.subr.bf16.mxu0 0
        %5550 = vmatpush1.bf16.xpose.msra.mxu0 0
        %5551 = vmatprep.subr.bf16.mxu0 0
        %5552 = vmatpush1.bf16.xpose.msra.mxu0 0
        %5553 = vmatprep.subr.bf16.mxu0 0
        %5554 = vmatpush1.bf16.xpose.msra.mxu0 0
        %5555 = vmatprep.subr.bf16.mxu0 0
        %5556 = vmatpush1.bf16.xpose.msra.mxu0 0
        %5557 = vmatprep.subr.bf16.mxu0 0
        %5558 = vmatpush1.bf16.xpose.msra.mxu0 0
        %5559 = vmatprep.subr.bf16.mxu0 0
        %5560 = vmatpush1.bf16.xpose.msra.mxu0 0
        %5561 = vmatprep.subr.bf16.mxu0 0
        %5562 = vmatpush1.bf16.xpose.msra.mxu0 0
        %5563 = vmatprep.subr.bf16.mxu0 0
        %5564 = vmatpush1.bf16.xpose.msra.mxu0 0
        %5565 = vmatprep.subr.bf16.mxu0 0
        %5566 = vmatpush1.bf16.xpose.msra.mxu0 0
        %5567 = vmatprep.subr.bf16.mxu0 0
        %5568 = vmatpush1.bf16.xpose.msra.mxu0 0
        %5569 = vmatprep.subr.bf16.mxu0 0
        %5570 = vmatpush1.bf16.xpose.msra.mxu0 0
        %5571 = vmatprep.subr.bf16.mxu0 0
        %5572 = vmatpush1.bf16.xpose.msra.mxu0 0
        %5573 = vmatprep.subr.bf16.mxu0 0
        %5574 = vmatpush1.bf16.xpose.msra.mxu0 0
        %5575 = vmatprep.mubr.bf16.mxu0 0
        %5576 = vmatmul.mubr.bf16.gmra.mrb[0].mxu0 %v5538
        %v5577 = vpop.f32.mrb[0].mxu0
        %v5578 = vadd.f32 %v2159, %v5577
        %v5579 = vpop.f32.mrb[0].mxu0
        %v5580 = vpop.f32.mrb[0].mxu0
        %v5581 = vpop.f32.mrb[0].mxu0
        %5582 = vdwg.mxu0
        %v5583 = vsel %vm2207, %v5578, -inf
        %5584 = vmax.xlane.f32.xlu0 %v5583
        %v5585 = vpop.xlane.xlu0 %5584
        %v5586 = vsub.f32 %v5578, %v5585
        %v5587 = vmul.f32 %v5586, 1.442695
        %v5588 = vpow.pop %v5587
        %v5589 = vsel %vm2207, %v5588, 0.0
        %5590 = vadd.xlane.f32.xlu0 %v5589
        %v5591 = vpop.xlane.xlu0 %5590
        %v5592 = vrcp.pop %v5591
        %v5593 = vmul.f32 %v5588, %v5592
        %v5594 = vpack.c.bf16 %v5593, %v5593
        %5595 = vrot.lane.b32.xlu0 %v5315, 64
        %v5596 = vpop.permute.xlu0 %5595
        %v5598 = vsel %vm2207, %v5594, 0
        %v5601 = vsel %vm2223, %v5596, 0
        %5603 = vmatprep.subr.bf16.mxu0 0
        %5604 = vmatpush1.bf16.msra.mxu0 %v5601
        %5605 = vmatprep.subr.bf16.mxu0 0
        %5606 = vmatpush1.bf16.msra.mxu0 0
        %5607 = vmatprep.subr.bf16.mxu0 0
        %5608 = vmatpush1.bf16.msra.mxu0 0
        %5609 = vmatprep.subr.bf16.mxu0 0
        %5610 = vmatpush1.bf16.msra.mxu0 0
        %5611 = vmatprep.subr.bf16.mxu0 0
        %5612 = vmatpush1.bf16.msra.mxu0 0
        %5613 = vmatprep.subr.bf16.mxu0 0
        %5614 = vmatpush1.bf16.msra.mxu0 0
        %5615 = vmatprep.subr.bf16.mxu0 0
        %5616 = vmatpush1.bf16.msra.mxu0 0
        %5617 = vmatprep.subr.bf16.mxu0 0
        %5618 = vmatpush1.bf16.msra.mxu0 0
        %5619 = vmatprep.subr.bf16.mxu0 0
        %5620 = vmatpush1.bf16.msra.mxu0 0
        %5621 = vmatprep.subr.bf16.mxu0 0
        %5622 = vmatpush1.bf16.msra.mxu0 0
        %5623 = vmatprep.subr.bf16.mxu0 0
        %5624 = vmatpush1.bf16.msra.mxu0 0
        %5625 = vmatprep.subr.bf16.mxu0 0
        %5626 = vmatpush1.bf16.msra.mxu0 0
        %5627 = vmatprep.subr.bf16.mxu0 0
        %5628 = vmatpush1.bf16.msra.mxu0 0
        %5629 = vmatprep.subr.bf16.mxu0 0
        %5630 = vmatpush1.bf16.msra.mxu0 0
        %5631 = vmatprep.subr.bf16.mxu0 0
        %5632 = vmatpush1.bf16.msra.mxu0 0
        %5633 = vmatprep.subr.bf16.mxu0 0
        %5634 = vmatpush1.bf16.msra.mxu0 0
        %5635 = vmatprep.mubr.bf16.mxu0 0
        %5636 = vmatmul.mubr.bf16.gmra.mrb[0].mxu0 %v5598
        %v5637 = vpop.f32.mrb[0].mxu0
        %v5638 = vadd.f32 0.0, %v5637
        %v5639 = vpop.f32.mrb[0].mxu0
        %v5640 = vpop.f32.mrb[0].mxu0
        %v5641 = vpop.f32.mrb[0].mxu0
        %5642 = vdwg.mxu0
        %5643 = vrot.lane.b32.xlu0 %v5313, 32
        %v5644 = vpop.permute.xlu0 %5643
        %5645 = vrot.lane.b32.xlu0 %v5314, 32
        %v5646 = vpop.permute.xlu0 %5645
        %v5648 = vsel %vm1849, %v5644, 0
        %v5651 = vsel %vm1849, %v5646, 0
        %5653 = vmatprep.subr.bf16.mxu0 0
        %5654 = vmatpush1.bf16.xpose.msra.mxu0 %v5651
        %5655 = vmatprep.subr.bf16.mxu0 0
        %5656 = vmatpush1.bf16.xpose.msra.mxu0 0
        %5657 = vmatprep.subr.bf16.mxu0 0
        %5658 = vmatpush1.bf16.xpose.msra.mxu0 0
        %5659 = vmatprep.subr.bf16.mxu0 0
        %5660 = vmatpush1.bf16.xpose.msra.mxu0 0
        %5661 = vmatprep.subr.bf16.mxu0 0
        %5662 = vmatpush1.bf16.xpose.msra.mxu0 0
        %5663 = vmatprep.subr.bf16.mxu0 0
        %5664 = vmatpush1.bf16.xpose.msra.mxu0 0
        %5665 = vmatprep.subr.bf16.mxu0 0
        %5666 = vmatpush1.bf16.xpose.msra.mxu0 0
        %5667 = vmatprep.subr.bf16.mxu0 0
        %5668 = vmatpush1.bf16.xpose.msra.mxu0 0
        %5669 = vmatprep.subr.bf16.mxu0 0
        %5670 = vmatpush1.bf16.xpose.msra.mxu0 0
        %5671 = vmatprep.subr.bf16.mxu0 0
        %5672 = vmatpush1.bf16.xpose.msra.mxu0 0
        %5673 = vmatprep.subr.bf16.mxu0 0
        %5674 = vmatpush1.bf16.xpose.msra.mxu0 0
        %5675 = vmatprep.subr.bf16.mxu0 0
        %5676 = vmatpush1.bf16.xpose.msra.mxu0 0
        %5677 = vmatprep.subr.bf16.mxu0 0
        %5678 = vmatpush1.bf16.xpose.msra.mxu0 0
        %5679 = vmatprep.subr.bf16.mxu0 0
        %5680 = vmatpush1.bf16.xpose.msra.mxu0 0
        %5681 = vmatprep.subr.bf16.mxu0 0
        %5682 = vmatpush1.bf16.xpose.msra.mxu0 0
        %5683 = vmatprep.subr.bf16.mxu0 0
        %5684 = vmatpush1.bf16.xpose.msra.mxu0 0
        %5685 = vmatprep.mubr.bf16.mxu0 0
        %5686 = vmatmul.mubr.bf16.gmra.mrb[0].mxu0 %v5648
        %v5687 = vpop.f32.mrb[0].mxu0
        %v5688 = vadd.f32 %v2159, %v5687
        %v5689 = vpop.f32.mrb[0].mxu0
        %v5690 = vpop.f32.mrb[0].mxu0
        %v5691 = vpop.f32.mrb[0].mxu0
        %5692 = vdwg.mxu0
        %v5693 = vsel %vm2207, %v5688, -inf
        %5694 = vmax.xlane.f32.xlu0 %v5693
        %v5695 = vpop.xlane.xlu0 %5694
        %v5696 = vsub.f32 %v5688, %v5695
        %v5697 = vmul.f32 %v5696, 1.442695
        %v5698 = vpow.pop %v5697
        %v5699 = vsel %vm2207, %v5698, 0.0
        %5700 = vadd.xlane.f32.xlu0 %v5699
        %v5701 = vpop.xlane.xlu0 %5700
        %v5702 = vrcp.pop %v5701
        %v5703 = vmul.f32 %v5698, %v5702
        %v5704 = vpack.c.bf16 %v5703, %v5703
        %5705 = vrot.lane.b32.xlu0 %v5315, 32
        %v5706 = vpop.permute.xlu0 %5705
        %v5708 = vsel %vm2207, %v5704, 0
        %v5711 = vsel %vm2223, %v5706, 0
        %5713 = vmatprep.subr.bf16.mxu0 0
        %5714 = vmatpush1.bf16.msra.mxu0 %v5711
        %5715 = vmatprep.subr.bf16.mxu0 0
        %5716 = vmatpush1.bf16.msra.mxu0 0
        %5717 = vmatprep.subr.bf16.mxu0 0
        %5718 = vmatpush1.bf16.msra.mxu0 0
        %5719 = vmatprep.subr.bf16.mxu0 0
        %5720 = vmatpush1.bf16.msra.mxu0 0
        %5721 = vmatprep.subr.bf16.mxu0 0
        %5722 = vmatpush1.bf16.msra.mxu0 0
        %5723 = vmatprep.subr.bf16.mxu0 0
        %5724 = vmatpush1.bf16.msra.mxu0 0
        %5725 = vmatprep.subr.bf16.mxu0 0
        %5726 = vmatpush1.bf16.msra.mxu0 0
        %5727 = vmatprep.subr.bf16.mxu0 0
        %5728 = vmatpush1.bf16.msra.mxu0 0
        %5729 = vmatprep.subr.bf16.mxu0 0
        %5730 = vmatpush1.bf16.msra.mxu0 0
        %5731 = vmatprep.subr.bf16.mxu0 0
        %5732 = vmatpush1.bf16.msra.mxu0 0
        %5733 = vmatprep.subr.bf16.mxu0 0
        %5734 = vmatpush1.bf16.msra.mxu0 0
        %5735 = vmatprep.subr.bf16.mxu0 0
        %5736 = vmatpush1.bf16.msra.mxu0 0
        %5737 = vmatprep.subr.bf16.mxu0 0
        %5738 = vmatpush1.bf16.msra.mxu0 0
        %5739 = vmatprep.subr.bf16.mxu0 0
        %5740 = vmatpush1.bf16.msra.mxu0 0
        %5741 = vmatprep.subr.bf16.mxu0 0
        %5742 = vmatpush1.bf16.msra.mxu0 0
        %5743 = vmatprep.subr.bf16.mxu0 0
        %5744 = vmatpush1.bf16.msra.mxu0 0
        %5745 = vmatprep.mubr.bf16.mxu0 0
        %5746 = vmatmul.mubr.bf16.gmra.mrb[0].mxu0 %v5708
        %v5747 = vpop.f32.mrb[0].mxu0
        %v5748 = vadd.f32 0.0, %v5747
        %v5749 = vpop.f32.mrb[0].mxu0
        %v5750 = vpop.f32.mrb[0].mxu0
        %v5751 = vpop.f32.mrb[0].mxu0
        %5752 = vdwg.mxu0
        %5754 = vrot.lane.b32.xlu0 %v5528, 32
        %v5755 = vpop.permute.xlu0 %5754
        %5758 = vrot.lane.b32.xlu0 %v5638, 64
        %v5759 = vpop.permute.xlu0 %5758
        %5762 = vrot.lane.b32.xlu0 %v5748, 96
        %v5763 = vpop.permute.xlu0 %5762
        %v5765 = vsel %vm1849, %v5415, %v5755
        %v5766 = vsel %vm2613, %v5765, %v5759
        %v5767 = vsel %vm2615, %v5766, %v5763
        %v5768 = vpack.c.bf16 %v5767, %v5767
        %v5769 = vld [vmem:[#allocation44] sm:$0xf]
        %v5770 = vld [vmem:[#allocation44 + $0x4] sm:$0xf]
        %v5771 = vld [vmem:[#allocation44 + $0x8] sm:$0xf]
        %v5772 = vld [vmem:[#allocation44 + $0xc] sm:$0xf]
        %v5773 = vld [vmem:[#allocation44 + $0x10] sm:$0xf]
        %v5774 = vld [vmem:[#allocation44 + $0x14] sm:$0xf]
        %v5775 = vld [vmem:[#allocation44 + $0x18] sm:$0xf]
        %v5776 = vld [vmem:[#allocation44 + $0x1c] sm:$0xf]
        %v5777 = vld [vmem:[#allocation44 + $0x20] sm:$0xf]
        %v5778 = vld [vmem:[#allocation44 + $0x24] sm:$0xf]
        %v5779 = vld [vmem:[#allocation44 + $0x28] sm:$0xf]
        %v5780 = vld [vmem:[#allocation44 + $0x2c] sm:$0xf]
        %v5781 = vld [vmem:[#allocation44 + $0x30] sm:$0xf]
        %v5782 = vld [vmem:[#allocation44 + $0x34] sm:$0xf]
        %v5783 = vld [vmem:[#allocation44 + $0x38] sm:$0xf]
        %v5784 = vld [vmem:[#allocation44 + $0x3c] sm:$0xf]
        %v5785 = vld [vmem:[#allocation46] sm:$0x1]
        %v5787 = vlaneseq
        %v5788 = vshrl.u32 %v5787, 7
        %v5789 = vsub.s32 0, %v5788
        %v5790 = vrot.slane %v5785, %v5789
        %v5808 = vunpack.c.l.b16 %v5769
        %v5809 = vunpack.c.l.b16 %v5770
        %v5810 = vunpack.c.l.b16 %v5771
        %v5811 = vunpack.c.l.b16 %v5772
        %v5812 = vunpack.c.l.b16 %v5773
        %v5813 = vunpack.c.l.b16 %v5774
        %v5814 = vunpack.c.l.b16 %v5775
        %v5815 = vunpack.c.l.b16 %v5776
        %v5816 = vunpack.c.l.b16 %v5777
        %v5817 = vunpack.c.l.b16 %v5778
        %v5818 = vunpack.c.l.b16 %v5779
        %v5819 = vunpack.c.l.b16 %v5780
        %v5820 = vunpack.c.l.b16 %v5781
        %v5821 = vunpack.c.l.b16 %v5782
        %v5822 = vunpack.c.l.b16 %v5783
        %v5823 = vunpack.c.l.b16 %v5784
        %v5824 = vpack.c.b16 %v5809, %v5808
        %v5825 = vpack.c.b16 %v5811, %v5810
        %v5826 = vpack.c.b16 %v5813, %v5812
        %v5827 = vpack.c.b16 %v5815, %v5814
        %v5828 = vpack.c.b16 %v5817, %v5816
        %v5829 = vpack.c.b16 %v5819, %v5818
        %v5830 = vpack.c.b16 %v5821, %v5820
        %v5831 = vpack.c.b16 %v5823, %v5822
        %5840 = vmatprep.subr.bf16.mxu0 0
        %5841 = vmatpush1.bf16.msra.mxu0 %v5824
        %5842 = vmatprep.subr.bf16.mxu0 0
        %5843 = vmatpush1.bf16.msra.mxu0 %v5825
        %5844 = vmatprep.subr.bf16.mxu0 0
        %5845 = vmatpush1.bf16.msra.mxu0 %v5826
        %5846 = vmatprep.subr.bf16.mxu0 0
        %5847 = vmatpush1.bf16.msra.mxu0 %v5827
        %5848 = vmatprep.subr.bf16.mxu0 0
        %5849 = vmatpush1.bf16.msra.mxu0 %v5828
        %5850 = vmatprep.subr.bf16.mxu0 0
        %5851 = vmatpush1.bf16.msra.mxu0 %v5829
        %5852 = vmatprep.subr.bf16.mxu0 0
        %5853 = vmatpush1.bf16.msra.mxu0 %v5830
        %5854 = vmatprep.subr.bf16.mxu0 0
        %5855 = vmatpush1.bf16.msra.mxu0 %v5831
        %5856 = vmatprep.subr.bf16.mxu0 0
        %5857 = vmatpush1.bf16.msra.mxu0 0
        %5858 = vmatprep.subr.bf16.mxu0 0
        %5859 = vmatpush1.bf16.msra.mxu0 0
        %5860 = vmatprep.subr.bf16.mxu0 0
        %5861 = vmatpush1.bf16.msra.mxu0 0
        %5862 = vmatprep.subr.bf16.mxu0 0
        %5863 = vmatpush1.bf16.msra.mxu0 0
        %5864 = vmatprep.subr.bf16.mxu0 0
        %5865 = vmatpush1.bf16.msra.mxu0 0
        %5866 = vmatprep.subr.bf16.mxu0 0
        %5867 = vmatpush1.bf16.msra.mxu0 0
        %5868 = vmatprep.subr.bf16.mxu0 0
        %5869 = vmatpush1.bf16.msra.mxu0 0
        %5870 = vmatprep.subr.bf16.mxu0 0
        %5871 = vmatpush1.bf16.msra.mxu0 0
        %5872 = vmatprep.mubr.bf16.mxu0 0
        %5873 = vmatmul.mubr.bf16.gmra.mrb[0].mxu0 %v5768
        %v5874 = vpop.f32.mrb[0].mxu0
        %v5875 = vadd.f32 %v5790, %v5874
        %v5876 = vpop.f32.mrb[0].mxu0
        %v5877 = vpop.f32.mrb[0].mxu0
        %v5878 = vpop.f32.mrb[0].mxu0
        %5879 = vdwg.mxu0
        %v5880 = vld [vmem:[#allocation56] sm:$0x1]
        %v5881 = vld [vmem:[#allocation58] sm:$0x1]
        %v5882 = vadd.f32 %v5875, %v5051
        %5883 = vadd.xlane.f32.xlu0 %v5882
        %v5884 = vpop.xlane.xlu0 %5883
        %v5885 = vmul.f32 %v5884, %v2734
        %v5886 = vsub.f32 %v5882, %v5885
        %v5887 = vmul.f32 %v5886, %v5886
        %5888 = vadd.xlane.f32.xlu0 %v5887
        %v5889 = vpop.xlane.xlu0 %5888
        %v5890 = vmul.f32 %v5889, %v2734
        %v5891 = vadd.f32 %v5890, 1e-05
        %v5892 = vrsqrt.pop %v5891
        %v5893 = vmul.f32 %v5886, %v5892
        %v5895 = vlaneseq
        %v5896 = vshrl.u32 %v5895, 7
        %v5897 = vsub.s32 0, %v5896
        %v5898 = vrot.slane %v5880, %v5897
        %v5900 = vmul.f32 %v5893, %v5898
        %v5902 = vlaneseq
        %v5903 = vshrl.u32 %v5902, 7
        %v5904 = vsub.s32 0, %v5903
        %v5905 = vrot.slane %v5881, %v5904
        %v5907 = vadd.f32 %v5900, %v5905
        %v5908 = vld [vmem:[#allocation47] sm:$0xf]
        %v5909 = vld [vmem:[#allocation47 + $0x4] sm:$0xf]
        %v5910 = vld [vmem:[#allocation47 + $0x8] sm:$0xf]
        %v5911 = vld [vmem:[#allocation47 + $0xc] sm:$0xf]
        %v5912 = vld [vmem:[#allocation47 + $0x10] sm:$0xf]
        %v5913 = vld [vmem:[#allocation47 + $0x14] sm:$0xf]
        %v5914 = vld [vmem:[#allocation47 + $0x18] sm:$0xf]
        %v5915 = vld [vmem:[#allocation47 + $0x1c] sm:$0xf]
        %v5916 = vld [vmem:[#allocation47 + $0x20] sm:$0xf]
        %v5917 = vld [vmem:[#allocation47 + $0x24] sm:$0xf]
        %v5918 = vld [vmem:[#allocation47 + $0x28] sm:$0xf]
        %v5919 = vld [vmem:[#allocation47 + $0x2c] sm:$0xf]
        %v5920 = vld [vmem:[#allocation47 + $0x30] sm:$0xf]
        %v5921 = vld [vmem:[#allocation47 + $0x34] sm:$0xf]
        %v5922 = vld [vmem:[#allocation47 + $0x38] sm:$0xf]
        %v5923 = vld [vmem:[#allocation47 + $0x3c] sm:$0xf]
        %v5924 = vld [vmem:[#allocation49] sm:$0x1]
        %v5925 = vld [vmem:[#allocation50] sm:$0xf]
        %v5926 = vld [vmem:[#allocation50 + $0x4] sm:$0xf]
        %v5927 = vld [vmem:[#allocation50 + $0x8] sm:$0xf]
        %v5928 = vld [vmem:[#allocation50 + $0xc] sm:$0xf]
        %v5929 = vld [vmem:[#allocation50 + $0x10] sm:$0xf]
        %v5930 = vld [vmem:[#allocation50 + $0x14] sm:$0xf]
        %v5931 = vld [vmem:[#allocation50 + $0x18] sm:$0xf]
        %v5932 = vld [vmem:[#allocation50 + $0x1c] sm:$0xf]
        %v5933 = vld [vmem:[#allocation50 + $0x20] sm:$0xf]
        %v5934 = vld [vmem:[#allocation50 + $0x24] sm:$0xf]
        %v5935 = vld [vmem:[#allocation50 + $0x28] sm:$0xf]
        %v5936 = vld [vmem:[#allocation50 + $0x2c] sm:$0xf]
        %v5937 = vld [vmem:[#allocation50 + $0x30] sm:$0xf]
        %v5938 = vld [vmem:[#allocation50 + $0x34] sm:$0xf]
        %v5939 = vld [vmem:[#allocation50 + $0x38] sm:$0xf]
        %v5940 = vld [vmem:[#allocation50 + $0x3c] sm:$0xf]
        %v5941 = vld [vmem:[#allocation52] sm:$0x1]
        %v5942 = vpack.c.bf16 %v5907, %v5907
        %v5944 = vlaneseq
        %v5945 = vshrl.u32 %v5944, 7
        %v5946 = vsub.s32 0, %v5945
        %v5947 = vrot.slane %v5924, %v5946
        %v5965 = vunpack.c.l.b16 %v5908
        %v5966 = vunpack.c.l.b16 %v5909
        %v5967 = vunpack.c.l.b16 %v5910
        %v5968 = vunpack.c.l.b16 %v5911
        %v5969 = vunpack.c.l.b16 %v5912
        %v5970 = vunpack.c.l.b16 %v5913
        %v5971 = vunpack.c.l.b16 %v5914
        %v5972 = vunpack.c.l.b16 %v5915
        %v5973 = vunpack.c.l.b16 %v5916
        %v5974 = vunpack.c.l.b16 %v5917
        %v5975 = vunpack.c.l.b16 %v5918
        %v5976 = vunpack.c.l.b16 %v5919
        %v5977 = vunpack.c.l.b16 %v5920
        %v5978 = vunpack.c.l.b16 %v5921
        %v5979 = vunpack.c.l.b16 %v5922
        %v5980 = vunpack.c.l.b16 %v5923
        %v5981 = vpack.c.b16 %v5966, %v5965
        %v5982 = vpack.c.b16 %v5968, %v5967
        %v5983 = vpack.c.b16 %v5970, %v5969
        %v5984 = vpack.c.b16 %v5972, %v5971
        %v5985 = vpack.c.b16 %v5974, %v5973
        %v5986 = vpack.c.b16 %v5976, %v5975
        %v5987 = vpack.c.b16 %v5978, %v5977
        %v5988 = vpack.c.b16 %v5980, %v5979
        %5997 = vmatprep.subr.bf16.mxu0 0
        %5998 = vmatpush1.bf16.msra.mxu0 %v5981
        %5999 = vmatprep.subr.bf16.mxu0 0
        %6000 = vmatpush1.bf16.msra.mxu0 %v5982
        %6001 = vmatprep.subr.bf16.mxu0 0
        %6002 = vmatpush1.bf16.msra.mxu0 %v5983
        %6003 = vmatprep.subr.bf16.mxu0 0
        %6004 = vmatpush1.bf16.msra.mxu0 %v5984
        %6005 = vmatprep.subr.bf16.mxu0 0
        %6006 = vmatpush1.bf16.msra.mxu0 %v5985
        %6007 = vmatprep.subr.bf16.mxu0 0
        %6008 = vmatpush1.bf16.msra.mxu0 %v5986
        %6009 = vmatprep.subr.bf16.mxu0 0
        %6010 = vmatpush1.bf16.msra.mxu0 %v5987
        %6011 = vmatprep.subr.bf16.mxu0 0
        %6012 = vmatpush1.bf16.msra.mxu0 %v5988
        %6013 = vmatprep.subr.bf16.mxu0 0
        %6014 = vmatpush1.bf16.msra.mxu0 0
        %6015 = vmatprep.subr.bf16.mxu0 0
        %6016 = vmatpush1.bf16.msra.mxu0 0
        %6017 = vmatprep.subr.bf16.mxu0 0
        %6018 = vmatpush1.bf16.msra.mxu0 0
        %6019 = vmatprep.subr.bf16.mxu0 0
        %6020 = vmatpush1.bf16.msra.mxu0 0
        %6021 = vmatprep.subr.bf16.mxu0 0
        %6022 = vmatpush1.bf16.msra.mxu0 0
        %6023 = vmatprep.subr.bf16.mxu0 0
        %6024 = vmatpush1.bf16.msra.mxu0 0
        %6025 = vmatprep.subr.bf16.mxu0 0
        %6026 = vmatpush1.bf16.msra.mxu0 0
        %6027 = vmatprep.subr.bf16.mxu0 0
        %6028 = vmatpush1.bf16.msra.mxu0 0
        %6029 = vmatprep.mubr.bf16.mxu0 0
        %6030 = vmatmul.mubr.bf16.gmra.mrb[0].mxu0 %v5942
        %v6031 = vpop.f32.mrb[0].mxu0
        %v6032 = vadd.f32 %v5947, %v6031
        %v6033 = vpop.f32.mrb[0].mxu0
        %v6034 = vpop.f32.mrb[0].mxu0
        %v6035 = vpop.f32.mrb[0].mxu0
        %6036 = vdwg.mxu0
        %v6037 = vmax.f32 %v6032, 0.0
        %v6038 = vpack.c.bf16 %v6037, %v6037
        %v6040 = vlaneseq
        %v6041 = vshrl.u32 %v6040, 7
        %v6042 = vsub.s32 0, %v6041
        %v6043 = vrot.slane %v5941, %v6042
        %v6061 = vunpack.c.l.b16 %v5925
        %v6062 = vunpack.c.l.b16 %v5926
        %v6063 = vunpack.c.l.b16 %v5927
        %v6064 = vunpack.c.l.b16 %v5928
        %v6065 = vunpack.c.l.b16 %v5929
        %v6066 = vunpack.c.l.b16 %v5930
        %v6067 = vunpack.c.l.b16 %v5931
        %v6068 = vunpack.c.l.b16 %v5932
        %v6069 = vunpack.c.l.b16 %v5933
        %v6070 = vunpack.c.l.b16 %v5934
        %v6071 = vunpack.c.l.b16 %v5935
        %v6072 = vunpack.c.l.b16 %v5936
        %v6073 = vunpack.c.l.b16 %v5937
        %v6074 = vunpack.c.l.b16 %v5938
        %v6075 = vunpack.c.l.b16 %v5939
        %v6076 = vunpack.c.l.b16 %v5940
        %v6077 = vpack.c.b16 %v6062, %v6061
        %v6078 = vpack.c.b16 %v6064, %v6063
        %v6079 = vpack.c.b16 %v6066, %v6065
        %v6080 = vpack.c.b16 %v6068, %v6067
        %v6081 = vpack.c.b16 %v6070, %v6069
        %v6082 = vpack.c.b16 %v6072, %v6071
        %v6083 = vpack.c.b16 %v6074, %v6073
        %v6084 = vpack.c.b16 %v6076, %v6075
        %6093 = vmatprep.subr.bf16.mxu0 0
        %6094 = vmatpush1.bf16.msra.mxu0 %v6077
        %6095 = vmatprep.subr.bf16.mxu0 0
        %6096 = vmatpush1.bf16.msra.mxu0 %v6078
        %6097 = vmatprep.subr.bf16.mxu0 0
        %6098 = vmatpush1.bf16.msra.mxu0 %v6079
        %6099 = vmatprep.subr.bf16.mxu0 0
        %6100 = vmatpush1.bf16.msra.mxu0 %v6080
        %6101 = vmatprep.subr.bf16.mxu0 0
        %6102 = vmatpush1.bf16.msra.mxu0 %v6081
        %6103 = vmatprep.subr.bf16.mxu0 0
        %6104 = vmatpush1.bf16.msra.mxu0 %v6082
        %6105 = vmatprep.subr.bf16.mxu0 0
        %6106 = vmatpush1.bf16.msra.mxu0 %v6083
        %6107 = vmatprep.subr.bf16.mxu0 0
        %6108 = vmatpush1.bf16.msra.mxu0 %v6084
        %6109 = vmatprep.subr.bf16.mxu0 0
        %6110 = vmatpush1.bf16.msra.mxu0 0
        %6111 = vmatprep.subr.bf16.mxu0 0
        %6112 = vmatpush1.bf16.msra.mxu0 0
        %6113 = vmatprep.subr.bf16.mxu0 0
        %6114 = vmatpush1.bf16.msra.mxu0 0
        %6115 = vmatprep.subr.bf16.mxu0 0
        %6116 = vmatpush1.bf16.msra.mxu0 0
        %6117 = vmatprep.subr.bf16.mxu0 0
        %6118 = vmatpush1.bf16.msra.mxu0 0
        %6119 = vmatprep.subr.bf16.mxu0 0
        %6120 = vmatpush1.bf16.msra.mxu0 0
        %6121 = vmatprep.subr.bf16.mxu0 0
        %6122 = vmatpush1.bf16.msra.mxu0 0
        %6123 = vmatprep.subr.bf16.mxu0 0
        %6124 = vmatpush1.bf16.msra.mxu0 0
        %6125 = vmatprep.mubr.bf16.mxu0 0
        %6126 = vmatmul.mubr.bf16.gmra.mrb[0].mxu0 %v6038
        %v6127 = vpop.f32.mrb[0].mxu0
        %v6128 = vadd.f32 %v6043, %v6127
        %v6129 = vpop.f32.mrb[0].mxu0
        %v6130 = vpop.f32.mrb[0].mxu0
        %v6131 = vpop.f32.mrb[0].mxu0
        %6132 = vdwg.mxu0
        %v6133 = vld [vmem:[#allocation59] sm:$0x1]
        %v6134 = vld [vmem:[#allocation61] sm:$0x1]
        %v6135 = vadd.f32 %v6128, %v5907
        %6136 = vadd.xlane.f32.xlu0 %v6135
        %v6137 = vpop.xlane.xlu0 %6136
        %v6138 = vmul.f32 %v6137, %v2734
        %v6139 = vsub.f32 %v6135, %v6138
        %v6140 = vmul.f32 %v6139, %v6139
        %6141 = vadd.xlane.f32.xlu0 %v6140
        %v6142 = vpop.xlane.xlu0 %6141
        %v6143 = vmul.f32 %v6142, %v2734
        %v6144 = vadd.f32 %v6143, 1e-05
        %v6145 = vrsqrt.pop %v6144
        %v6146 = vmul.f32 %v6139, %v6145
        %v6148 = vlaneseq
        %v6149 = vshrl.u32 %v6148, 7
        %v6150 = vsub.s32 0, %v6149
        %v6151 = vrot.slane %v6133, %v6150
        %v6153 = vmul.f32 %v6146, %v6151
        %v6155 = vlaneseq
        %v6156 = vshrl.u32 %v6155, 7
        %v6157 = vsub.s32 0, %v6156
        %v6158 = vrot.slane %v6134, %v6157
        %v6160 = vadd.f32 %v6153, %v6158
        %v6161 = vpack.c.bf16 %v6160, %v6160
        %s6162 = scalar_lea.vmem [#allocation32], 192
        %v6163 = vld [vmem:[%s6162] sm:$0xff]
        %v6164 = vld [vmem:[%s6162 + $0x8] sm:$0xf]
        %v6165 = vld [vmem:[%s6162 + $0xc] sm:$0xff]
        %v6166 = vld [vmem:[%s6162 + $0x14] sm:$0xf]
        %v6167 = vld [vmem:[%s6162 + $0x18] sm:$0xff]
        %v6168 = vld [vmem:[%s6162 + $0x20] sm:$0xf]
        %v6169 = vld [vmem:[%s6162 + $0x24] sm:$0xff]
        %v6170 = vld [vmem:[%s6162 + $0x2c] sm:$0xf]
        %v6171 = vld [vmem:[%s6162 + $0x30] sm:$0xff]
        %v6172 = vld [vmem:[%s6162 + $0x38] sm:$0xf]
        %v6173 = vld [vmem:[%s6162 + $0x3c] sm:$0xff]
        %v6174 = vld [vmem:[%s6162 + $0x44] sm:$0xf]
        %v6175 = vld [vmem:[%s6162 + $0x48] sm:$0xff]
        %v6176 = vld [vmem:[%s6162 + $0x50] sm:$0xf]
        %v6177 = vld [vmem:[%s6162 + $0x54] sm:$0xff]
        %v6178 = vld [vmem:[%s6162 + $0x5c] sm:$0xf]
        %v6179 = vld [vmem:[%s6162 + $0x60] sm:$0xff]
        %v6180 = vld [vmem:[%s6162 + $0x68] sm:$0xf]
        %v6181 = vld [vmem:[%s6162 + $0x6c] sm:$0xff]
        %v6182 = vld [vmem:[%s6162 + $0x74] sm:$0xf]
        %v6183 = vld [vmem:[%s6162 + $0x78] sm:$0xff]
        %v6184 = vld [vmem:[%s6162 + $0x80] sm:$0xf]
        %v6185 = vld [vmem:[%s6162 + $0x84] sm:$0xff]
        %v6186 = vld [vmem:[%s6162 + $0x8c] sm:$0xf]
        %v6187 = vld [vmem:[%s6162 + $0x90] sm:$0xff]
        %v6188 = vld [vmem:[%s6162 + $0x98] sm:$0xf]
        %v6189 = vld [vmem:[%s6162 + $0x9c] sm:$0xff]
        %v6190 = vld [vmem:[%s6162 + $0xa4] sm:$0xf]
        %v6191 = vld [vmem:[%s6162 + $0xa8] sm:$0xff]
        %v6192 = vld [vmem:[%s6162 + $0xb0] sm:$0xf]
        %v6193 = vld [vmem:[%s6162 + $0xb4] sm:$0xff]
        %v6194 = vld [vmem:[%s6162 + $0xbc] sm:$0xf]
        %s6195 = scalar_lea.vmem [#allocation34], 3
        %v6196 = vld [vmem:[%s6195] sm:$0x7]
        %v6198 = vlaneseq
        %v6199 = vshrl.u32 %v6198, 7
        %v6200 = vsub.s32 0, %v6199
        %v6201 = vrot.slane %v6196, %v6200
        %v6202 = vlaneseq
        %v6203 = vshrl.u32 %v6202, 7
        %v6204 = vsub.s32 1, %v6203
        %v6205 = vrot.slane %v6196, %v6204
        %v6206 = vlaneseq
        %v6207 = vshrl.u32 %v6206, 7
        %v6208 = vsub.s32 2, %v6207
        %v6209 = vrot.slane %v6196, %v6208
        %v6245 = vunpack.c.l.b16 %v6163
        %v6246 = vunpack.c.h.b16 %v6163
        %v6247 = vunpack.c.l.b16 %v6164
        %v6248 = vunpack.c.l.b16 %v6165
        %v6249 = vunpack.c.h.b16 %v6165
        %v6250 = vunpack.c.l.b16 %v6166
        %v6251 = vunpack.c.l.b16 %v6167
        %v6252 = vunpack.c.h.b16 %v6167
        %v6253 = vunpack.c.l.b16 %v6168
        %v6254 = vunpack.c.l.b16 %v6169
        %v6255 = vunpack.c.h.b16 %v6169
        %v6256 = vunpack.c.l.b16 %v6170
        %v6257 = vunpack.c.l.b16 %v6171
        %v6258 = vunpack.c.h.b16 %v6171
        %v6259 = vunpack.c.l.b16 %v6172
        %v6260 = vunpack.c.l.b16 %v6173
        %v6261 = vunpack.c.h.b16 %v6173
        %v6262 = vunpack.c.l.b16 %v6174
        %v6263 = vunpack.c.l.b16 %v6175
        %v6264 = vunpack.c.h.b16 %v6175
        %v6265 = vunpack.c.l.b16 %v6176
        %v6266 = vunpack.c.l.b16 %v6177
        %v6267 = vunpack.c.h.b16 %v6177
        %v6268 = vunpack.c.l.b16 %v6178
        %v6269 = vunpack.c.l.b16 %v6179
        %v6270 = vunpack.c.h.b16 %v6179
        %v6271 = vunpack.c.l.b16 %v6180
        %v6272 = vunpack.c.l.b16 %v6181
        %v6273 = vunpack.c.h.b16 %v6181
        %v6274 = vunpack.c.l.b16 %v6182
        %v6275 = vunpack.c.l.b16 %v6183
        %v6276 = vunpack.c.h.b16 %v6183
        %v6277 = vunpack.c.l.b16 %v6184
        %v6278 = vunpack.c.l.b16 %v6185
        %v6279 = vunpack.c.h.b16 %v6185
        %v6280 = vunpack.c.l.b16 %v6186
        %v6281 = vunpack.c.l.b16 %v6187
        %v6282 = vunpack.c.h.b16 %v6187
        %v6283 = vunpack.c.l.b16 %v6188
        %v6284 = vunpack.c.l.b16 %v6189
        %v6285 = vunpack.c.h.b16 %v6189
        %v6286 = vunpack.c.l.b16 %v6190
        %v6287 = vunpack.c.l.b16 %v6191
        %v6288 = vunpack.c.h.b16 %v6191
        %v6289 = vunpack.c.l.b16 %v6192
        %v6290 = vunpack.c.l.b16 %v6193
        %v6291 = vunpack.c.h.b16 %v6193
        %v6292 = vunpack.c.l.b16 %v6194
        %v6293 = vpack.c.b16 %v6248, %v6245
        %v6294 = vpack.c.b16 %v6249, %v6246
        %v6295 = vpack.c.b16 %v6250, %v6247
        %v6296 = vpack.c.b16 %v6254, %v6251
        %v6297 = vpack.c.b16 %v6255, %v6252
        %v6298 = vpack.c.b16 %v6256, %v6253
        %v6299 = vpack.c.b16 %v6260, %v6257
        %v6300 = vpack.c.b16 %v6261, %v6258
        %v6301 = vpack.c.b16 %v6262, %v6259
        %v6302 = vpack.c.b16 %v6266, %v6263
        %v6303 = vpack.c.b16 %v6267, %v6264
        %v6304 = vpack.c.b16 %v6268, %v6265
        %v6305 = vpack.c.b16 %v6272, %v6269
        %v6306 = vpack.c.b16 %v6273, %v6270
        %v6307 = vpack.c.b16 %v6274, %v6271
        %v6308 = vpack.c.b16 %v6278, %v6275
        %v6309 = vpack.c.b16 %v6279, %v6276
        %v6310 = vpack.c.b16 %v6280, %v6277
        %v6311 = vpack.c.b16 %v6284, %v6281
        %v6312 = vpack.c.b16 %v6285, %v6282
        %v6313 = vpack.c.b16 %v6286, %v6283
        %v6314 = vpack.c.b16 %v6290, %v6287
        %v6315 = vpack.c.b16 %v6291, %v6288
        %v6316 = vpack.c.b16 %v6292, %v6289
        %6341 = vmatprep.subr.bf16.mxu0 %v6294
        %6342 = vmatpush1.bf16.msra.mxu0 %v6293
        %6343 = vmatprep.subr.bf16.mxu0 %v6297
        %6344 = vmatpush1.bf16.msra.mxu0 %v6296
        %6345 = vmatprep.subr.bf16.mxu0 %v6300
        %6346 = vmatpush1.bf16.msra.mxu0 %v6299
        %6347 = vmatprep.subr.bf16.mxu0 %v6303
        %6348 = vmatpush1.bf16.msra.mxu0 %v6302
        %6349 = vmatprep.subr.bf16.mxu0 %v6306
        %6350 = vmatpush1.bf16.msra.mxu0 %v6305
        %6351 = vmatprep.subr.bf16.mxu0 %v6309
        %6352 = vmatpush1.bf16.msra.mxu0 %v6308
        %6353 = vmatprep.subr.bf16.mxu0 %v6312
        %6354 = vmatpush1.bf16.msra.mxu0 %v6311
        %6355 = vmatprep.subr.bf16.mxu0 %v6315
        %6356 = vmatpush1.bf16.msra.mxu0 %v6314
        %6357 = vmatprep.subr.bf16.mxu0 0
        %6358 = vmatpush1.bf16.msra.mxu0 0
        %6359 = vmatprep.subr.bf16.mxu0 0
        %6360 = vmatpush1.bf16.msra.mxu0 0
        %6361 = vmatprep.subr.bf16.mxu0 0
        %6362 = vmatpush1.bf16.msra.mxu0 0
        %6363 = vmatprep.subr.bf16.mxu0 0
        %6364 = vmatpush1.bf16.msra.mxu0 0
        %6365 = vmatprep.subr.bf16.mxu0 0
        %6366 = vmatpush1.bf16.msra.mxu0 0
        %6367 = vmatprep.subr.bf16.mxu0 0
        %6368 = vmatpush1.bf16.msra.mxu0 0
        %6369 = vmatprep.subr.bf16.mxu0 0
        %6370 = vmatpush1.bf16.msra.mxu0 0
        %6371 = vmatprep.subr.bf16.mxu0 0
        %6372 = vmatpush1.bf16.msra.mxu0 0
        %6373 = vmatprep.mubr.bf16.mxu0 0
        %6374 = vmatmul.mubr.bf16.gmra.mrb[0].mxu0 %v6161
        %v6375 = vpop.f32.mrb[0].mxu0
        %v6376 = vadd.f32 %v6201, %v6375
        %v6377 = vpop.f32.mrb[0].mxu0
        %v6378 = vadd.f32 %v6205, %v6377
        %v6379 = vpop.f32.mrb[0].mxu0
        %v6380 = vpop.f32.mrb[0].mxu0
        %6381 = vdwg.mxu0
        %6382 = vmatprep.subr.bf16.mxu0 0
        %6383 = vmatpush1.bf16.msra.mxu0 %v6295
        %6384 = vmatprep.subr.bf16.mxu0 0
        %6385 = vmatpush1.bf16.msra.mxu0 %v6298
        %6386 = vmatprep.subr.bf16.mxu0 0
        %6387 = vmatpush1.bf16.msra.mxu0 %v6301
        %6388 = vmatprep.subr.bf16.mxu0 0
        %6389 = vmatpush1.bf16.msra.mxu0 %v6304
        %6390 = vmatprep.subr.bf16.mxu0 0
        %6391 = vmatpush1.bf16.msra.mxu0 %v6307
        %6392 = vmatprep.subr.bf16.mxu0 0
        %6393 = vmatpush1.bf16.msra.mxu0 %v6310
        %6394 = vmatprep.subr.bf16.mxu0 0
        %6395 = vmatpush1.bf16.msra.mxu0 %v6313
        %6396 = vmatprep.subr.bf16.mxu0 0
        %6397 = vmatpush1.bf16.msra.mxu0 %v6316
        %6398 = vmatprep.subr.bf16.mxu0 0
        %6399 = vmatpush1.bf16.msra.mxu0 0
        %6400 = vmatprep.subr.bf16.mxu0 0
        %6401 = vmatpush1.bf16.msra.mxu0 0
        %6402 = vmatprep.subr.bf16.mxu0 0
        %6403 = vmatpush1.bf16.msra.mxu0 0
        %6404 = vmatprep.subr.bf16.mxu0 0
        %6405 = vmatpush1.bf16.msra.mxu0 0
        %6406 = vmatprep.subr.bf16.mxu0 0
        %6407 = vmatpush1.bf16.msra.mxu0 0
        %6408 = vmatprep.subr.bf16.mxu0 0
        %6409 = vmatpush1.bf16.msra.mxu0 0
        %6410 = vmatprep.subr.bf16.mxu0 0
        %6411 = vmatpush1.bf16.msra.mxu0 0
        %6412 = vmatprep.subr.bf16.mxu0 0
        %6413 = vmatpush1.bf16.msra.mxu0 0
        %6414 = vmatprep.mubr.bf16.mxu0 0
        %6415 = vmatmul.mubr.bf16.gmra.mrb[0].mxu0 %v6161
        %v6416 = vpop.f32.mrb[0].mxu0
        %v6417 = vadd.f32 %v6209, %v6416
        %v6418 = vpop.f32.mrb[0].mxu0
        %v6419 = vpop.f32.mrb[0].mxu0
        %v6420 = vpop.f32.mrb[0].mxu0
        %6421 = vdwg.mxu0
        %v6422 = vpack.c.bf16 %v6376, %v6376
        %v6423 = vpack.c.bf16 %v6378, %v6378
        %v6424 = vpack.c.bf16 %v6417, %v6417
        %v6426 = vsel %vm1849, %v6422, 0
        %v6429 = vsel %vm1849, %v6423, 0
        %6431 = vmatprep.subr.bf16.mxu0 0
        %6432 = vmatpush1.bf16.xpose.msra.mxu0 %v6429
        %6433 = vmatprep.subr.bf16.mxu0 0
        %6434 = vmatpush1.bf16.xpose.msra.mxu0 0
        %6435 = vmatprep.subr.bf16.mxu0 0
        %6436 = vmatpush1.bf16.xpose.msra.mxu0 0
        %6437 = vmatprep.subr.bf16.mxu0 0
        %6438 = vmatpush1.bf16.xpose.msra.mxu0 0
        %6439 = vmatprep.subr.bf16.mxu0 0
        %6440 = vmatpush1.bf16.xpose.msra.mxu0 0
        %6441 = vmatprep.subr.bf16.mxu0 0
        %6442 = vmatpush1.bf16.xpose.msra.mxu0 0
        %6443 = vmatprep.subr.bf16.mxu0 0
        %6444 = vmatpush1.bf16.xpose.msra.mxu0 0
        %6445 = vmatprep.subr.bf16.mxu0 0
        %6446 = vmatpush1.bf16.xpose.msra.mxu0 0
        %6447 = vmatprep.subr.bf16.mxu0 0
        %6448 = vmatpush1.bf16.xpose.msra.mxu0 0
        %6449 = vmatprep.subr.bf16.mxu0 0
        %6450 = vmatpush1.bf16.xpose.msra.mxu0 0
        %6451 = vmatprep.subr.bf16.mxu0 0
        %6452 = vmatpush1.bf16.xpose.msra.mxu0 0
        %6453 = vmatprep.subr.bf16.mxu0 0
        %6454 = vmatpush1.bf16.xpose.msra.mxu0 0
        %6455 = vmatprep.subr.bf16.mxu0 0
        %6456 = vmatpush1.bf16.xpose.msra.mxu0 0
        %6457 = vmatprep.subr.bf16.mxu0 0
        %6458 = vmatpush1.bf16.xpose.msra.mxu0 0
        %6459 = vmatprep.subr.bf16.mxu0 0
        %6460 = vmatpush1.bf16.xpose.msra.mxu0 0
        %6461 = vmatprep.subr.bf16.mxu0 0
        %6462 = vmatpush1.bf16.xpose.msra.mxu0 0
        %6463 = vmatprep.mubr.bf16.mxu0 0
        %6464 = vmatmul.mubr.bf16.gmra.mrb[0].mxu0 %v6426
        %v6465 = vpop.f32.mrb[0].mxu0
        %v6466 = vadd.f32 %v4458, %v6465
        %v6467 = vpop.f32.mrb[0].mxu0
        %v6468 = vpop.f32.mrb[0].mxu0
        %v6469 = vpop.f32.mrb[0].mxu0
        %6470 = vdwg.mxu0
        %v6471 = vsel %vm2207, %v6466, -inf
        %6472 = vmax.xlane.f32.xlu0 %v6471
        %v6473 = vpop.xlane.xlu0 %6472
        %v6474 = vsub.f32 %v6466, %v6473
        %v6475 = vmul.f32 %v6474, 1.442695
        %v6476 = vpow.pop %v6475
        %v6477 = vsel %vm2207, %v6476, 0.0
        %6478 = vadd.xlane.f32.xlu0 %v6477
        %v6479 = vpop.xlane.xlu0 %6478
        %v6480 = vrcp.pop %v6479
        %v6481 = vmul.f32 %v6476, %v6480
        %v6482 = vpack.c.bf16 %v6481, %v6481
        %v6484 = vsel %vm2207, %v6482, 0
        %v6487 = vsel %vm2223, %v6424, 0
        %6489 = vmatprep.subr.bf16.mxu0 0
        %6490 = vmatpush1.bf16.msra.mxu0 %v6487
        %6491 = vmatprep.subr.bf16.mxu0 0
        %6492 = vmatpush1.bf16.msra.mxu0 0
        %6493 = vmatprep.subr.bf16.mxu0 0
        %6494 = vmatpush1.bf16.msra.mxu0 0
        %6495 = vmatprep.subr.bf16.mxu0 0
        %6496 = vmatpush1.bf16.msra.mxu0 0
        %6497 = vmatprep.subr.bf16.mxu0 0
        %6498 = vmatpush1.bf16.msra.mxu0 0
        %6499 = vmatprep.subr.bf16.mxu0 0
        %6500 = vmatpush1.bf16.msra.mxu0 0
        %6501 = vmatprep.subr.bf16.mxu0 0
        %6502 = vmatpush1.bf16.msra.mxu0 0
        %6503 = vmatprep.subr.bf16.mxu0 0
        %6504 = vmatpush1.bf16.msra.mxu0 0
        %6505 = vmatprep.subr.bf16.mxu0 0
        %6506 = vmatpush1.bf16.msra.mxu0 0
        %6507 = vmatprep.subr.bf16.mxu0 0
        %6508 = vmatpush1.bf16.msra.mxu0 0
        %6509 = vmatprep.subr.bf16.mxu0 0
        %6510 = vmatpush1.bf16.msra.mxu0 0
        %6511 = vmatprep.subr.bf16.mxu0 0
        %6512 = vmatpush1.bf16.msra.mxu0 0
        %6513 = vmatprep.subr.bf16.mxu0 0
        %6514 = vmatpush1.bf16.msra.mxu0 0
        %6515 = vmatprep.subr.bf16.mxu0 0
        %6516 = vmatpush1.bf16.msra.mxu0 0
        %6517 = vmatprep.subr.bf16.mxu0 0
        %6518 = vmatpush1.bf16.msra.mxu0 0
        %6519 = vmatprep.subr.bf16.mxu0 0
        %6520 = vmatpush1.bf16.msra.mxu0 0
        %6521 = vmatprep.mubr.bf16.mxu0 0
        %6522 = vmatmul.mubr.bf16.gmra.mrb[0].mxu0 %v6484
        %v6523 = vpop.f32.mrb[0].mxu0
        %v6524 = vadd.f32 0.0, %v6523
        %v6525 = vpop.f32.mrb[0].mxu0
        %v6526 = vpop.f32.mrb[0].mxu0
        %v6527 = vpop.f32.mrb[0].mxu0
        %6528 = vdwg.mxu0
        %6530 = vrot.lane.b32.xlu0 %v6422, 96
        %v6531 = vpop.permute.xlu0 %6530
        %6533 = vrot.lane.b32.xlu0 %v6423, 96
        %v6534 = vpop.permute.xlu0 %6533
        %v6536 = vsel %vm1849, %v6531, 0
        %v6539 = vsel %vm1849, %v6534, 0
        %6541 = vmatprep.subr.bf16.mxu0 0
        %6542 = vmatpush1.bf16.xpose.msra.mxu0 %v6539
        %6543 = vmatprep.subr.bf16.mxu0 0
        %6544 = vmatpush1.bf16.xpose.msra.mxu0 0
        %6545 = vmatprep.subr.bf16.mxu0 0
        %6546 = vmatpush1.bf16.xpose.msra.mxu0 0
        %6547 = vmatprep.subr.bf16.mxu0 0
        %6548 = vmatpush1.bf16.xpose.msra.mxu0 0
        %6549 = vmatprep.subr.bf16.mxu0 0
        %6550 = vmatpush1.bf16.xpose.msra.mxu0 0
        %6551 = vmatprep.subr.bf16.mxu0 0
        %6552 = vmatpush1.bf16.xpose.msra.mxu0 0
        %6553 = vmatprep.subr.bf16.mxu0 0
        %6554 = vmatpush1.bf16.xpose.msra.mxu0 0
        %6555 = vmatprep.subr.bf16.mxu0 0
        %6556 = vmatpush1.bf16.xpose.msra.mxu0 0
        %6557 = vmatprep.subr.bf16.mxu0 0
        %6558 = vmatpush1.bf16.xpose.msra.mxu0 0
        %6559 = vmatprep.subr.bf16.mxu0 0
        %6560 = vmatpush1.bf16.xpose.msra.mxu0 0
        %6561 = vmatprep.subr.bf16.mxu0 0
        %6562 = vmatpush1.bf16.xpose.msra.mxu0 0
        %6563 = vmatprep.subr.bf16.mxu0 0
        %6564 = vmatpush1.bf16.xpose.msra.mxu0 0
        %6565 = vmatprep.subr.bf16.mxu0 0
        %6566 = vmatpush1.bf16.xpose.msra.mxu0 0
        %6567 = vmatprep.subr.bf16.mxu0 0
        %6568 = vmatpush1.bf16.xpose.msra.mxu0 0
        %6569 = vmatprep.subr.bf16.mxu0 0
        %6570 = vmatpush1.bf16.xpose.msra.mxu0 0
        %6571 = vmatprep.subr.bf16.mxu0 0
        %6572 = vmatpush1.bf16.xpose.msra.mxu0 0
        %6573 = vmatprep.mubr.bf16.mxu0 0
        %6574 = vmatmul.mubr.bf16.gmra.mrb[0].mxu0 %v6536
        %v6575 = vpop.f32.mrb[0].mxu0
        %v6576 = vadd.f32 %v4458, %v6575
        %v6577 = vpop.f32.mrb[0].mxu0
        %v6578 = vpop.f32.mrb[0].mxu0
        %v6579 = vpop.f32.mrb[0].mxu0
        %6580 = vdwg.mxu0
        %v6581 = vsel %vm2207, %v6576, -inf
        %6582 = vmax.xlane.f32.xlu0 %v6581
        %v6583 = vpop.xlane.xlu0 %6582
        %v6584 = vsub.f32 %v6576, %v6583
        %v6585 = vmul.f32 %v6584, 1.442695
        %v6586 = vpow.pop %v6585
        %v6587 = vsel %vm2207, %v6586, 0.0
        %6588 = vadd.xlane.f32.xlu0 %v6587
        %v6589 = vpop.xlane.xlu0 %6588
        %v6590 = vrcp.pop %v6589
        %v6591 = vmul.f32 %v6586, %v6590
        %v6592 = vpack.c.bf16 %v6591, %v6591
        %6594 = vrot.lane.b32.xlu0 %v6424, 96
        %v6595 = vpop.permute.xlu0 %6594
        %v6597 = vsel %vm2207, %v6592, 0
        %v6600 = vsel %vm2223, %v6595, 0
        %6602 = vmatprep.subr.bf16.mxu0 0
        %6603 = vmatpush1.bf16.msra.mxu0 %v6600
        %6604 = vmatprep.subr.bf16.mxu0 0
        %6605 = vmatpush1.bf16.msra.mxu0 0
        %6606 = vmatprep.subr.bf16.mxu0 0
        %6607 = vmatpush1.bf16.msra.mxu0 0
        %6608 = vmatprep.subr.bf16.mxu0 0
        %6609 = vmatpush1.bf16.msra.mxu0 0
        %6610 = vmatprep.subr.bf16.mxu0 0
        %6611 = vmatpush1.bf16.msra.mxu0 0
        %6612 = vmatprep.subr.bf16.mxu0 0
        %6613 = vmatpush1.bf16.msra.mxu0 0
        %6614 = vmatprep.subr.bf16.mxu0 0
        %6615 = vmatpush1.bf16.msra.mxu0 0
        %6616 = vmatprep.subr.bf16.mxu0 0
        %6617 = vmatpush1.bf16.msra.mxu0 0
        %6618 = vmatprep.subr.bf16.mxu0 0
        %6619 = vmatpush1.bf16.msra.mxu0 0
        %6620 = vmatprep.subr.bf16.mxu0 0
        %6621 = vmatpush1.bf16.msra.mxu0 0
        %6622 = vmatprep.subr.bf16.mxu0 0
        %6623 = vmatpush1.bf16.msra.mxu0 0
        %6624 = vmatprep.subr.bf16.mxu0 0
        %6625 = vmatpush1.bf16.msra.mxu0 0
        %6626 = vmatprep.subr.bf16.mxu0 0
        %6627 = vmatpush1.bf16.msra.mxu0 0
        %6628 = vmatprep.subr.bf16.mxu0 0
        %6629 = vmatpush1.bf16.msra.mxu0 0
        %6630 = vmatprep.subr.bf16.mxu0 0
        %6631 = vmatpush1.bf16.msra.mxu0 0
        %6632 = vmatprep.subr.bf16.mxu0 0
        %6633 = vmatpush1.bf16.msra.mxu0 0
        %6634 = vmatprep.mubr.bf16.mxu0 0
        %6635 = vmatmul.mubr.bf16.gmra.mrb[0].mxu0 %v6597
        %v6636 = vpop.f32.mrb[0].mxu0
        %v6637 = vadd.f32 0.0, %v6636
        %v6638 = vpop.f32.mrb[0].mxu0
        %v6639 = vpop.f32.mrb[0].mxu0
        %v6640 = vpop.f32.mrb[0].mxu0
        %6641 = vdwg.mxu0
        %6642 = vrot.lane.b32.xlu0 %v6422, 64
        %v6643 = vpop.permute.xlu0 %6642
        %6644 = vrot.lane.b32.xlu0 %v6423, 64
        %v6645 = vpop.permute.xlu0 %6644
        %v6647 = vsel %vm1849, %v6643, 0
        %v6650 = vsel %vm1849, %v6645, 0
        %6652 = vmatprep.subr.bf16.mxu0 0
        %6653 = vmatpush1.bf16.xpose.msra.mxu0 %v6650
        %6654 = vmatprep.subr.bf16.mxu0 0
        %6655 = vmatpush1.bf16.xpose.msra.mxu0 0
        %6656 = vmatprep.subr.bf16.mxu0 0
        %6657 = vmatpush1.bf16.xpose.msra.mxu0 0
        %6658 = vmatprep.subr.bf16.mxu0 0
        %6659 = vmatpush1.bf16.xpose.msra.mxu0 0
        %6660 = vmatprep.subr.bf16.mxu0 0
        %6661 = vmatpush1.bf16.xpose.msra.mxu0 0
        %6662 = vmatprep.subr.bf16.mxu0 0
        %6663 = vmatpush1.bf16.xpose.msra.mxu0 0
        %6664 = vmatprep.subr.bf16.mxu0 0
        %6665 = vmatpush1.bf16.xpose.msra.mxu0 0
        %6666 = vmatprep.subr.bf16.mxu0 0
        %6667 = vmatpush1.bf16.xpose.msra.mxu0 0
        %6668 = vmatprep.subr.bf16.mxu0 0
        %6669 = vmatpush1.bf16.xpose.msra.mxu0 0
        %6670 = vmatprep.subr.bf16.mxu0 0
        %6671 = vmatpush1.bf16.xpose.msra.mxu0 0
        %6672 = vmatprep.subr.bf16.mxu0 0
        %6673 = vmatpush1.bf16.xpose.msra.mxu0 0
        %6674 = vmatprep.subr.bf16.mxu0 0
        %6675 = vmatpush1.bf16.xpose.msra.mxu0 0
        %6676 = vmatprep.subr.bf16.mxu0 0
        %6677 = vmatpush1.bf16.xpose.msra.mxu0 0
        %6678 = vmatprep.subr.bf16.mxu0 0
        %6679 = vmatpush1.bf16.xpose.msra.mxu0 0
        %6680 = vmatprep.subr.bf16.mxu0 0
        %6681 = vmatpush1.bf16.xpose.msra.mxu0 0
        %6682 = vmatprep.subr.bf16.mxu0 0
        %6683 = vmatpush1.bf16.xpose.msra.mxu0 0
        %6684 = vmatprep.mubr.bf16.mxu0 0
        %6685 = vmatmul.mubr.bf16.gmra.mrb[0].mxu0 %v6647
        %v6686 = vpop.f32.mrb[0].mxu0
        %v6687 = vadd.f32 %v4458, %v6686
        %v6688 = vpop.f32.mrb[0].mxu0
        %v6689 = vpop.f32.mrb[0].mxu0
        %v6690 = vpop.f32.mrb[0].mxu0
        %6691 = vdwg.mxu0
        %v6692 = vsel %vm2207, %v6687, -inf
        %6693 = vmax.xlane.f32.xlu0 %v6692
        %v6694 = vpop.xlane.xlu0 %6693
        %v6695 = vsub.f32 %v6687, %v6694
        %v6696 = vmul.f32 %v6695, 1.442695
        %v6697 = vpow.pop %v6696
        %v6698 = vsel %vm2207, %v6697, 0.0
        %6699 = vadd.xlane.f32.xlu0 %v6698
        %v6700 = vpop.xlane.xlu0 %6699
        %v6701 = vrcp.pop %v6700
        %v6702 = vmul.f32 %v6697, %v6701
        %v6703 = vpack.c.bf16 %v6702, %v6702
        %6704 = vrot.lane.b32.xlu0 %v6424, 64
        %v6705 = vpop.permute.xlu0 %6704
        %v6707 = vsel %vm2207, %v6703, 0
        %v6710 = vsel %vm2223, %v6705, 0
        %6712 = vmatprep.subr.bf16.mxu0 0
        %6713 = vmatpush1.bf16.msra.mxu0 %v6710
        %6714 = vmatprep.subr.bf16.mxu0 0
        %6715 = vmatpush1.bf16.msra.mxu0 0
        %6716 = vmatprep.subr.bf16.mxu0 0
        %6717 = vmatpush1.bf16.msra.mxu0 0
        %6718 = vmatprep.subr.bf16.mxu0 0
        %6719 = vmatpush1.bf16.msra.mxu0 0
        %6720 = vmatprep.subr.bf16.mxu0 0
        %6721 = vmatpush1.bf16.msra.mxu0 0
        %6722 = vmatprep.subr.bf16.mxu0 0
        %6723 = vmatpush1.bf16.msra.mxu0 0
        %6724 = vmatprep.subr.bf16.mxu0 0
        %6725 = vmatpush1.bf16.msra.mxu0 0
        %6726 = vmatprep.subr.bf16.mxu0 0
        %6727 = vmatpush1.bf16.msra.mxu0 0
        %6728 = vmatprep.subr.bf16.mxu0 0
        %6729 = vmatpush1.bf16.msra.mxu0 0
        %6730 = vmatprep.subr.bf16.mxu0 0
        %6731 = vmatpush1.bf16.msra.mxu0 0
        %6732 = vmatprep.subr.bf16.mxu0 0
        %6733 = vmatpush1.bf16.msra.mxu0 0
        %6734 = vmatprep.subr.bf16.mxu0 0
        %6735 = vmatpush1.bf16.msra.mxu0 0
        %6736 = vmatprep.subr.bf16.mxu0 0
        %6737 = vmatpush1.bf16.msra.mxu0 0
        %6738 = vmatprep.subr.bf16.mxu0 0
        %6739 = vmatpush1.bf16.msra.mxu0 0
        %6740 = vmatprep.subr.bf16.mxu0 0
        %6741 = vmatpush1.bf16.msra.mxu0 0
        %6742 = vmatprep.subr.bf16.mxu0 0
        %6743 = vmatpush1.bf16.msra.mxu0 0
        %6744 = vmatprep.mubr.bf16.mxu0 0
        %6745 = vmatmul.mubr.bf16.gmra.mrb[0].mxu0 %v6707
        %v6746 = vpop.f32.mrb[0].mxu0
        %v6747 = vadd.f32 0.0, %v6746
        %v6748 = vpop.f32.mrb[0].mxu0
        %v6749 = vpop.f32.mrb[0].mxu0
        %v6750 = vpop.f32.mrb[0].mxu0
        %6751 = vdwg.mxu0
        %6752 = vrot.lane.b32.xlu0 %v6422, 32
        %v6753 = vpop.permute.xlu0 %6752
        %6754 = vrot.lane.b32.xlu0 %v6423, 32
        %v6755 = vpop.permute.xlu0 %6754
        %v6757 = vsel %vm1849, %v6753, 0
        %v6760 = vsel %vm1849, %v6755, 0
        %6762 = vmatprep.subr.bf16.mxu0 0
        %6763 = vmatpush1.bf16.xpose.msra.mxu0 %v6760
        %6764 = vmatprep.subr.bf16.mxu0 0
        %6765 = vmatpush1.bf16.xpose.msra.mxu0 0
        %6766 = vmatprep.subr.bf16.mxu0 0
        %6767 = vmatpush1.bf16.xpose.msra.mxu0 0
        %6768 = vmatprep.subr.bf16.mxu0 0
        %6769 = vmatpush1.bf16.xpose.msra.mxu0 0
        %6770 = vmatprep.subr.bf16.mxu0 0
        %6771 = vmatpush1.bf16.xpose.msra.mxu0 0
        %6772 = vmatprep.subr.bf16.mxu0 0
        %6773 = vmatpush1.bf16.xpose.msra.mxu0 0
        %6774 = vmatprep.subr.bf16.mxu0 0
        %6775 = vmatpush1.bf16.xpose.msra.mxu0 0
        %6776 = vmatprep.subr.bf16.mxu0 0
        %6777 = vmatpush1.bf16.xpose.msra.mxu0 0
        %6778 = vmatprep.subr.bf16.mxu0 0
        %6779 = vmatpush1.bf16.xpose.msra.mxu0 0
        %6780 = vmatprep.subr.bf16.mxu0 0
        %6781 = vmatpush1.bf16.xpose.msra.mxu0 0
        %6782 = vmatprep.subr.bf16.mxu0 0
        %6783 = vmatpush1.bf16.xpose.msra.mxu0 0
        %6784 = vmatprep.subr.bf16.mxu0 0
        %6785 = vmatpush1.bf16.xpose.msra.mxu0 0
        %6786 = vmatprep.subr.bf16.mxu0 0
        %6787 = vmatpush1.bf16.xpose.msra.mxu0 0
        %6788 = vmatprep.subr.bf16.mxu0 0
        %6789 = vmatpush1.bf16.xpose.msra.mxu0 0
        %6790 = vmatprep.subr.bf16.mxu0 0
        %6791 = vmatpush1.bf16.xpose.msra.mxu0 0
        %6792 = vmatprep.subr.bf16.mxu0 0
        %6793 = vmatpush1.bf16.xpose.msra.mxu0 0
        %6794 = vmatprep.mubr.bf16.mxu0 0
        %6795 = vmatmul.mubr.bf16.gmra.mrb[0].mxu0 %v6757
        %v6796 = vpop.f32.mrb[0].mxu0
        %v6797 = vadd.f32 %v4458, %v6796
        %v6798 = vpop.f32.mrb[0].mxu0
        %v6799 = vpop.f32.mrb[0].mxu0
        %v6800 = vpop.f32.mrb[0].mxu0
        %6801 = vdwg.mxu0
        %v6802 = vsel %vm2207, %v6797, -inf
        %6803 = vmax.xlane.f32.xlu0 %v6802
        %v6804 = vpop.xlane.xlu0 %6803
        %v6805 = vsub.f32 %v6797, %v6804
        %v6806 = vmul.f32 %v6805, 1.442695
        %v6807 = vpow.pop %v6806
        %v6808 = vsel %vm2207, %v6807, 0.0
        %6809 = vadd.xlane.f32.xlu0 %v6808
        %v6810 = vpop.xlane.xlu0 %6809
        %v6811 = vrcp.pop %v6810
        %v6812 = vmul.f32 %v6807, %v6811
        %v6813 = vpack.c.bf16 %v6812, %v6812
        %6814 = vrot.lane.b32.xlu0 %v6424, 32
        %v6815 = vpop.permute.xlu0 %6814
        %v6817 = vsel %vm2207, %v6813, 0
        %v6820 = vsel %vm2223, %v6815, 0
        %6822 = vmatprep.subr.bf16.mxu0 0
        %6823 = vmatpush1.bf16.msra.mxu0 %v6820
        %6824 = vmatprep.subr.bf16.mxu0 0
        %6825 = vmatpush1.bf16.msra.mxu0 0
        %6826 = vmatprep.subr.bf16.mxu0 0
        %6827 = vmatpush1.bf16.msra.mxu0 0
        %6828 = vmatprep.subr.bf16.mxu0 0
        %6829 = vmatpush1.bf16.msra.mxu0 0
        %6830 = vmatprep.subr.bf16.mxu0 0
        %6831 = vmatpush1.bf16.msra.mxu0 0
        %6832 = vmatprep.subr.bf16.mxu0 0
        %6833 = vmatpush1.bf16.msra.mxu0 0
        %6834 = vmatprep.subr.bf16.mxu0 0
        %6835 = vmatpush1.bf16.msra.mxu0 0
        %6836 = vmatprep.subr.bf16.mxu0 0
        %6837 = vmatpush1.bf16.msra.mxu0 0
        %6838 = vmatprep.subr.bf16.mxu0 0
        %6839 = vmatpush1.bf16.msra.mxu0 0
        %6840 = vmatprep.subr.bf16.mxu0 0
        %6841 = vmatpush1.bf16.msra.mxu0 0
        %6842 = vmatprep.subr.bf16.mxu0 0
        %6843 = vmatpush1.bf16.msra.mxu0 0
        %6844 = vmatprep.subr.bf16.mxu0 0
        %6845 = vmatpush1.bf16.msra.mxu0 0
        %6846 = vmatprep.subr.bf16.mxu0 0
        %6847 = vmatpush1.bf16.msra.mxu0 0
        %6848 = vmatprep.subr.bf16.mxu0 0
        %6849 = vmatpush1.bf16.msra.mxu0 0
        %6850 = vmatprep.subr.bf16.mxu0 0
        %6851 = vmatpush1.bf16.msra.mxu0 0
        %6852 = vmatprep.subr.bf16.mxu0 0
        %6853 = vmatpush1.bf16.msra.mxu0 0
        %6854 = vmatprep.mubr.bf16.mxu0 0
        %6855 = vmatmul.mubr.bf16.gmra.mrb[0].mxu0 %v6817
        %v6856 = vpop.f32.mrb[0].mxu0
        %v6857 = vadd.f32 0.0, %v6856
        %v6858 = vpop.f32.mrb[0].mxu0
        %v6859 = vpop.f32.mrb[0].mxu0
        %v6860 = vpop.f32.mrb[0].mxu0
        %6861 = vdwg.mxu0
        %6863 = vrot.lane.b32.xlu0 %v6637, 32
        %v6864 = vpop.permute.xlu0 %6863
        %6867 = vrot.lane.b32.xlu0 %v6747, 64
        %v6868 = vpop.permute.xlu0 %6867
        %6871 = vrot.lane.b32.xlu0 %v6857, 96
        %v6872 = vpop.permute.xlu0 %6871
        %v6874 = vsel %vm1849, %v6524, %v6864
        %v6875 = vsel %vm2613, %v6874, %v6868
        %v6876 = vsel %vm2615, %v6875, %v6872
        %v6877 = vpack.c.bf16 %v6876, %v6876
        %s6878 = scalar_lea.vmem [#allocation35], 64
        %v6879 = vld [vmem:[%s6878] sm:$0xf]
        %v6880 = vld [vmem:[%s6878 + $0x4] sm:$0xf]
        %v6881 = vld [vmem:[%s6878 + $0x8] sm:$0xf]
        %v6882 = vld [vmem:[%s6878 + $0xc] sm:$0xf]
        %v6883 = vld [vmem:[%s6878 + $0x10] sm:$0xf]
        %v6884 = vld [vmem:[%s6878 + $0x14] sm:$0xf]
        %v6885 = vld [vmem:[%s6878 + $0x18] sm:$0xf]
        %v6886 = vld [vmem:[%s6878 + $0x1c] sm:$0xf]
        %v6887 = vld [vmem:[%s6878 + $0x20] sm:$0xf]
        %v6888 = vld [vmem:[%s6878 + $0x24] sm:$0xf]
        %v6889 = vld [vmem:[%s6878 + $0x28] sm:$0xf]
        %v6890 = vld [vmem:[%s6878 + $0x2c] sm:$0xf]
        %v6891 = vld [vmem:[%s6878 + $0x30] sm:$0xf]
        %v6892 = vld [vmem:[%s6878 + $0x34] sm:$0xf]
        %v6893 = vld [vmem:[%s6878 + $0x38] sm:$0xf]
        %v6894 = vld [vmem:[%s6878 + $0x3c] sm:$0xf]
        %s6895 = scalar_lea.vmem [#allocation37], 1
        %v6896 = vld [vmem:[%s6895] sm:$0x1]
        %v6898 = vlaneseq
        %v6899 = vshrl.u32 %v6898, 7
        %v6900 = vsub.s32 0, %v6899
        %v6901 = vrot.slane %v6896, %v6900
        %v6919 = vunpack.c.l.b16 %v6879
        %v6920 = vunpack.c.l.b16 %v6880
        %v6921 = vunpack.c.l.b16 %v6881
        %v6922 = vunpack.c.l.b16 %v6882
        %v6923 = vunpack.c.l.b16 %v6883
        %v6924 = vunpack.c.l.b16 %v6884
        %v6925 = vunpack.c.l.b16 %v6885
        %v6926 = vunpack.c.l.b16 %v6886
        %v6927 = vunpack.c.l.b16 %v6887
        %v6928 = vunpack.c.l.b16 %v6888
        %v6929 = vunpack.c.l.b16 %v6889
        %v6930 = vunpack.c.l.b16 %v6890
        %v6931 = vunpack.c.l.b16 %v6891
        %v6932 = vunpack.c.l.b16 %v6892
        %v6933 = vunpack.c.l.b16 %v6893
        %v6934 = vunpack.c.l.b16 %v6894
        %v6935 = vpack.c.b16 %v6920, %v6919
        %v6936 = vpack.c.b16 %v6922, %v6921
        %v6937 = vpack.c.b16 %v6924, %v6923
        %v6938 = vpack.c.b16 %v6926, %v6925
        %v6939 = vpack.c.b16 %v6928, %v6927
        %v6940 = vpack.c.b16 %v6930, %v6929
        %v6941 = vpack.c.b16 %v6932, %v6931
        %v6942 = vpack.c.b16 %v6934, %v6933
        %6951 = vmatprep.subr.bf16.mxu0 0
        %6952 = vmatpush1.bf16.msra.mxu0 %v6935
        %6953 = vmatprep.subr.bf16.mxu0 0
        %6954 = vmatpush1.bf16.msra.mxu0 %v6936
        %6955 = vmatprep.subr.bf16.mxu0 0
        %6956 = vmatpush1.bf16.msra.mxu0 %v6937
        %6957 = vmatprep.subr.bf16.mxu0 0
        %6958 = vmatpush1.bf16.msra.mxu0 %v6938
        %6959 = vmatprep.subr.bf16.mxu0 0
        %6960 = vmatpush1.bf16.msra.mxu0 %v6939
        %6961 = vmatprep.subr.bf16.mxu0 0
        %6962 = vmatpush1.bf16.msra.mxu0 %v6940
        %6963 = vmatprep.subr.bf16.mxu0 0
        %6964 = vmatpush1.bf16.msra.mxu0 %v6941
        %6965 = vmatprep.subr.bf16.mxu0 0
        %6966 = vmatpush1.bf16.msra.mxu0 %v6942
        %6967 = vmatprep.subr.bf16.mxu0 0
        %6968 = vmatpush1.bf16.msra.mxu0 0
        %6969 = vmatprep.subr.bf16.mxu0 0
        %6970 = vmatpush1.bf16.msra.mxu0 0
        %6971 = vmatprep.subr.bf16.mxu0 0
        %6972 = vmatpush1.bf16.msra.mxu0 0
        %6973 = vmatprep.subr.bf16.mxu0 0
        %6974 = vmatpush1.bf16.msra.mxu0 0
        %6975 = vmatprep.subr.bf16.mxu0 0
        %6976 = vmatpush1.bf16.msra.mxu0 0
        %6977 = vmatprep.subr.bf16.mxu0 0
        %6978 = vmatpush1.bf16.msra.mxu0 0
        %6979 = vmatprep.subr.bf16.mxu0 0
        %6980 = vmatpush1.bf16.msra.mxu0 0
        %6981 = vmatprep.subr.bf16.mxu0 0
        %6982 = vmatpush1.bf16.msra.mxu0 0
        %6983 = vmatprep.mubr.bf16.mxu0 0
        %6984 = vmatmul.mubr.bf16.gmra.mrb[0].mxu0 %v6877
        %v6985 = vpop.f32.mrb[0].mxu0
        %v6986 = vadd.f32 %v6901, %v6985
        %v6987 = vpop.f32.mrb[0].mxu0
        %v6988 = vpop.f32.mrb[0].mxu0
        %v6989 = vpop.f32.mrb[0].mxu0
        %6990 = vdwg.mxu0
        %s6991 = scalar_lea.vmem [#allocation53], 1
        %v6992 = vld [vmem:[%s6991] sm:$0x1]
        %s6993 = scalar_lea.vmem [#allocation55], 1
        %v6994 = vld [vmem:[%s6993] sm:$0x1]
        %v6995 = vadd.f32 %v6986, %v6160
        %6996 = vadd.xlane.f32.xlu0 %v6995
        %v6997 = vpop.xlane.xlu0 %6996
        %v6998 = vmul.f32 %v6997, %v2734
        %v6999 = vsub.f32 %v6995, %v6998
        %v7000 = vmul.f32 %v6999, %v6999
        %7001 = vadd.xlane.f32.xlu0 %v7000
        %v7002 = vpop.xlane.xlu0 %7001
        %v7003 = vmul.f32 %v7002, %v2734
        %v7004 = vadd.f32 %v7003, 1e-05
        %v7005 = vrsqrt.pop %v7004
        %v7006 = vmul.f32 %v6999, %v7005
        %v7008 = vlaneseq
        %v7009 = vshrl.u32 %v7008, 7
        %v7010 = vsub.s32 0, %v7009
        %v7011 = vrot.slane %v6992, %v7010
        %v7013 = vmul.f32 %v7006, %v7011
        %v7015 = vlaneseq
        %v7016 = vshrl.u32 %v7015, 7
        %v7017 = vsub.s32 0, %v7016
        %v7018 = vrot.slane %v6994, %v7017
        %v7020 = vadd.f32 %v7013, %v7018
        %v7021 = vpack.c.bf16 %v7020, %v7020
        %s7022 = scalar_lea.vmem [#allocation38], 64
        %v7023 = vld [vmem:[%s7022] sm:$0xf]
        %v7024 = vld [vmem:[%s7022 + $0x4] sm:$0xf]
        %v7025 = vld [vmem:[%s7022 + $0x8] sm:$0xf]
        %v7026 = vld [vmem:[%s7022 + $0xc] sm:$0xf]
        %v7027 = vld [vmem:[%s7022 + $0x10] sm:$0xf]
        %v7028 = vld [vmem:[%s7022 + $0x14] sm:$0xf]
        %v7029 = vld [vmem:[%s7022 + $0x18] sm:$0xf]
        %v7030 = vld [vmem:[%s7022 + $0x1c] sm:$0xf]
        %v7031 = vld [vmem:[%s7022 + $0x20] sm:$0xf]
        %v7032 = vld [vmem:[%s7022 + $0x24] sm:$0xf]
        %v7033 = vld [vmem:[%s7022 + $0x28] sm:$0xf]
        %v7034 = vld [vmem:[%s7022 + $0x2c] sm:$0xf]
        %v7035 = vld [vmem:[%s7022 + $0x30] sm:$0xf]
        %v7036 = vld [vmem:[%s7022 + $0x34] sm:$0xf]
        %v7037 = vld [vmem:[%s7022 + $0x38] sm:$0xf]
        %v7038 = vld [vmem:[%s7022 + $0x3c] sm:$0xf]
        %s7039 = scalar_lea.vmem [#allocation40], 1
        %v7040 = vld [vmem:[%s7039] sm:$0x1]
        %v7042 = vlaneseq
        %v7043 = vshrl.u32 %v7042, 7
        %v7044 = vsub.s32 0, %v7043
        %v7045 = vrot.slane %v7040, %v7044
        %v7063 = vunpack.c.l.b16 %v7023
        %v7064 = vunpack.c.l.b16 %v7024
        %v7065 = vunpack.c.l.b16 %v7025
        %v7066 = vunpack.c.l.b16 %v7026
        %v7067 = vunpack.c.l.b16 %v7027
        %v7068 = vunpack.c.l.b16 %v7028
        %v7069 = vunpack.c.l.b16 %v7029
        %v7070 = vunpack.c.l.b16 %v7030
        %v7071 = vunpack.c.l.b16 %v7031
        %v7072 = vunpack.c.l.b16 %v7032
        %v7073 = vunpack.c.l.b16 %v7033
        %v7074 = vunpack.c.l.b16 %v7034
        %v7075 = vunpack.c.l.b16 %v7035
        %v7076 = vunpack.c.l.b16 %v7036
        %v7077 = vunpack.c.l.b16 %v7037
        %v7078 = vunpack.c.l.b16 %v7038
        %v7079 = vpack.c.b16 %v7064, %v7063
        %v7080 = vpack.c.b16 %v7066, %v7065
        %v7081 = vpack.c.b16 %v7068, %v7067
        %v7082 = vpack.c.b16 %v7070, %v7069
        %v7083 = vpack.c.b16 %v7072, %v7071
        %v7084 = vpack.c.b16 %v7074, %v7073
        %v7085 = vpack.c.b16 %v7076, %v7075
        %v7086 = vpack.c.b16 %v7078, %v7077
        %7095 = vmatprep.subr.bf16.mxu0 0
        %7096 = vmatpush1.bf16.msra.mxu0 %v7079
        %7097 = vmatprep.subr.bf16.mxu0 0
        %7098 = vmatpush1.bf16.msra.mxu0 %v7080
        %7099 = vmatprep.subr.bf16.mxu0 0
        %7100 = vmatpush1.bf16.msra.mxu0 %v7081
        %7101 = vmatprep.subr.bf16.mxu0 0
        %7102 = vmatpush1.bf16.msra.mxu0 %v7082
        %7103 = vmatprep.subr.bf16.mxu0 0
        %7104 = vmatpush1.bf16.msra.mxu0 %v7083
        %7105 = vmatprep.subr.bf16.mxu0 0
        %7106 = vmatpush1.bf16.msra.mxu0 %v7084
        %7107 = vmatprep.subr.bf16.mxu0 0
        %7108 = vmatpush1.bf16.msra.mxu0 %v7085
        %7109 = vmatprep.subr.bf16.mxu0 0
        %7110 = vmatpush1.bf16.msra.mxu0 %v7086
        %7111 = vmatprep.subr.bf16.mxu0 0
        %7112 = vmatpush1.bf16.msra.mxu0 0
        %7113 = vmatprep.subr.bf16.mxu0 0
        %7114 = vmatpush1.bf16.msra.mxu0 0
        %7115 = vmatprep.subr.bf16.mxu0 0
        %7116 = vmatpush1.bf16.msra.mxu0 0
        %7117 = vmatprep.subr.bf16.mxu0 0
        %7118 = vmatpush1.bf16.msra.mxu0 0
        %7119 = vmatprep.subr.bf16.mxu0 0
        %7120 = vmatpush1.bf16.msra.mxu0 0
        %7121 = vmatprep.subr.bf16.mxu0 0
        %7122 = vmatpush1.bf16.msra.mxu0 0
        %7123 = vmatprep.subr.bf16.mxu0 0
        %7124 = vmatpush1.bf16.msra.mxu0 0
        %7125 = vmatprep.subr.bf16.mxu0 0
        %7126 = vmatpush1.bf16.msra.mxu0 0
        %7127 = vmatprep.mubr.bf16.mxu0 0
        %7128 = vmatmul.mubr.bf16.gmra.mrb[0].mxu0 %v7021
        %v7129 = vpop.f32.mrb[0].mxu0
        %v7130 = vadd.f32 %v7045, %v7129
        %v7131 = vpop.f32.mrb[0].mxu0
        %v7132 = vpop.f32.mrb[0].mxu0
        %v7133 = vpop.f32.mrb[0].mxu0
        %7134 = vdwg.mxu0
        %s7135 = scalar_lea.vmem [#allocation41], 128
        %v7136 = vld [vmem:[%s7135] sm:$0xff]
        %v7137 = vld [vmem:[%s7135 + $0x8] sm:$0xff]
        %v7138 = vld [vmem:[%s7135 + $0x10] sm:$0xff]
        %v7139 = vld [vmem:[%s7135 + $0x18] sm:$0xff]
        %v7140 = vld [vmem:[%s7135 + $0x20] sm:$0xff]
        %v7141 = vld [vmem:[%s7135 + $0x28] sm:$0xff]
        %v7142 = vld [vmem:[%s7135 + $0x30] sm:$0xff]
        %v7143 = vld [vmem:[%s7135 + $0x38] sm:$0xff]
        %v7144 = vld [vmem:[%s7135 + $0x40] sm:$0xff]
        %v7145 = vld [vmem:[%s7135 + $0x48] sm:$0xff]
        %v7146 = vld [vmem:[%s7135 + $0x50] sm:$0xff]
        %v7147 = vld [vmem:[%s7135 + $0x58] sm:$0xff]
        %v7148 = vld [vmem:[%s7135 + $0x60] sm:$0xff]
        %v7149 = vld [vmem:[%s7135 + $0x68] sm:$0xff]
        %v7150 = vld [vmem:[%s7135 + $0x70] sm:$0xff]
        %v7151 = vld [vmem:[%s7135 + $0x78] sm:$0xff]
        %s7152 = scalar_lea.vmem [#allocation43], 2
        %v7153 = vld [vmem:[%s7152] sm:$0x3]
        %v7155 = vlaneseq
        %v7156 = vshrl.u32 %v7155, 7
        %v7157 = vsub.s32 0, %v7156
        %v7158 = vrot.slane %v7153, %v7157
        %v7159 = vlaneseq
        %v7160 = vshrl.u32 %v7159, 7
        %v7161 = vsub.s32 1, %v7160
        %v7162 = vrot.slane %v7153, %v7161
        %v7181 = vunpack.c.l.b16 %v7136
        %v7182 = vunpack.c.h.b16 %v7136
        %v7183 = vunpack.c.l.b16 %v7137
        %v7184 = vunpack.c.h.b16 %v7137
        %v7185 = vunpack.c.l.b16 %v7138
        %v7186 = vunpack.c.h.b16 %v7138
        %v7187 = vunpack.c.l.b16 %v7139
        %v7188 = vunpack.c.h.b16 %v7139
        %v7189 = vunpack.c.l.b16 %v7140
        %v7190 = vunpack.c.h.b16 %v7140
        %v7191 = vunpack.c.l.b16 %v7141
        %v7192 = vunpack.c.h.b16 %v7141
        %v7193 = vunpack.c.l.b16 %v7142
        %v7194 = vunpack.c.h.b16 %v7142
        %v7195 = vunpack.c.l.b16 %v7143
        %v7196 = vunpack.c.h.b16 %v7143
        %v7197 = vunpack.c.l.b16 %v7144
        %v7198 = vunpack.c.h.b16 %v7144
        %v7199 = vunpack.c.l.b16 %v7145
        %v7200 = vunpack.c.h.b16 %v7145
        %v7201 = vunpack.c.l.b16 %v7146
        %v7202 = vunpack.c.h.b16 %v7146
        %v7203 = vunpack.c.l.b16 %v7147
        %v7204 = vunpack.c.h.b16 %v7147
        %v7205 = vunpack.c.l.b16 %v7148
        %v7206 = vunpack.c.h.b16 %v7148
        %v7207 = vunpack.c.l.b16 %v7149
        %v7208 = vunpack.c.h.b16 %v7149
        %v7209 = vunpack.c.l.b16 %v7150
        %v7210 = vunpack.c.h.b16 %v7150
        %v7211 = vunpack.c.l.b16 %v7151
        %v7212 = vunpack.c.h.b16 %v7151
        %v7213 = vpack.c.b16 %v7183, %v7181
        %v7214 = vpack.c.b16 %v7184, %v7182
        %v7215 = vpack.c.b16 %v7187, %v7185
        %v7216 = vpack.c.b16 %v7188, %v7186
        %v7217 = vpack.c.b16 %v7191, %v7189
        %v7218 = vpack.c.b16 %v7192, %v7190
        %v7219 = vpack.c.b16 %v7195, %v7193
        %v7220 = vpack.c.b16 %v7196, %v7194
        %v7221 = vpack.c.b16 %v7199, %v7197
        %v7222 = vpack.c.b16 %v7200, %v7198
        %v7223 = vpack.c.b16 %v7203, %v7201
        %v7224 = vpack.c.b16 %v7204, %v7202
        %v7225 = vpack.c.b16 %v7207, %v7205
        %v7226 = vpack.c.b16 %v7208, %v7206
        %v7227 = vpack.c.b16 %v7211, %v7209
        %v7228 = vpack.c.b16 %v7212, %v7210
        %7245 = vmatprep.subr.bf16.mxu0 %v7214
        %7246 = vmatpush1.bf16.msra.mxu0 %v7213
        %7247 = vmatprep.subr.bf16.mxu0 %v7216
        %7248 = vmatpush1.bf16.msra.mxu0 %v7215
        %7249 = vmatprep.subr.bf16.mxu0 %v7218
        %7250 = vmatpush1.bf16.msra.mxu0 %v7217
        %7251 = vmatprep.subr.bf16.mxu0 %v7220
        %7252 = vmatpush1.bf16.msra.mxu0 %v7219
        %7253 = vmatprep.subr.bf16.mxu0 %v7222
        %7254 = vmatpush1.bf16.msra.mxu0 %v7221
        %7255 = vmatprep.subr.bf16.mxu0 %v7224
        %7256 = vmatpush1.bf16.msra.mxu0 %v7223
        %7257 = vmatprep.subr.bf16.mxu0 %v7226
        %7258 = vmatpush1.bf16.msra.mxu0 %v7225
        %7259 = vmatprep.subr.bf16.mxu0 %v7228
        %7260 = vmatpush1.bf16.msra.mxu0 %v7227
        %7261 = vmatprep.subr.bf16.mxu0 0
        %7262 = vmatpush1.bf16.msra.mxu0 0
        %7263 = vmatprep.subr.bf16.mxu0 0
        %7264 = vmatpush1.bf16.msra.mxu0 0
        %7265 = vmatprep.subr.bf16.mxu0 0
        %7266 = vmatpush1.bf16.msra.mxu0 0
        %7267 = vmatprep.subr.bf16.mxu0 0
        %7268 = vmatpush1.bf16.msra.mxu0 0
        %7269 = vmatprep.subr.bf16.mxu0 0
        %7270 = vmatpush1.bf16.msra.mxu0 0
        %7271 = vmatprep.subr.bf16.mxu0 0
        %7272 = vmatpush1.bf16.msra.mxu0 0
        %7273 = vmatprep.subr.bf16.mxu0 0
        %7274 = vmatpush1.bf16.msra.mxu0 0
        %7275 = vmatprep.subr.bf16.mxu0 0
        %7276 = vmatpush1.bf16.msra.mxu0 0
        %7277 = vmatprep.mubr.bf16.mxu0 0
        %7278 = vmatmul.mubr.bf16.gmra.mrb[0].mxu0 %v4130
        %v7279 = vpop.f32.mrb[0].mxu0
        %v7280 = vadd.f32 %v7158, %v7279
        %v7281 = vpop.f32.mrb[0].mxu0
        %v7282 = vadd.f32 %v7162, %v7281
        %v7283 = vpop.f32.mrb[0].mxu0
        %v7284 = vpop.f32.mrb[0].mxu0
        %7285 = vdwg.mxu0
        %v7286 = vpack.c.bf16 %v7130, %v7130
        %v7287 = vpack.c.bf16 %v7280, %v7280
        %v7288 = vpack.c.bf16 %v7282, %v7282
        %v7290 = vsel %vm1849, %v7286, 0
        %v7293 = vsel %vm1849, %v7287, 0
        %7295 = vmatprep.subr.bf16.mxu0 0
        %7296 = vmatpush1.bf16.xpose.msra.mxu0 %v7293
        %7297 = vmatprep.subr.bf16.mxu0 0
        %7298 = vmatpush1.bf16.xpose.msra.mxu0 0
        %7299 = vmatprep.subr.bf16.mxu0 0
        %7300 = vmatpush1.bf16.xpose.msra.mxu0 0
        %7301 = vmatprep.subr.bf16.mxu0 0
        %7302 = vmatpush1.bf16.xpose.msra.mxu0 0
        %7303 = vmatprep.subr.bf16.mxu0 0
        %7304 = vmatpush1.bf16.xpose.msra.mxu0 0
        %7305 = vmatprep.subr.bf16.mxu0 0
        %7306 = vmatpush1.bf16.xpose.msra.mxu0 0
        %7307 = vmatprep.subr.bf16.mxu0 0
        %7308 = vmatpush1.bf16.xpose.msra.mxu0 0
        %7309 = vmatprep.subr.bf16.mxu0 0
        %7310 = vmatpush1.bf16.xpose.msra.mxu0 0
        %7311 = vmatprep.subr.bf16.mxu0 0
        %7312 = vmatpush1.bf16.xpose.msra.mxu0 0
        %7313 = vmatprep.subr.bf16.mxu0 0
        %7314 = vmatpush1.bf16.xpose.msra.mxu0 0
        %7315 = vmatprep.subr.bf16.mxu0 0
        %7316 = vmatpush1.bf16.xpose.msra.mxu0 0
        %7317 = vmatprep.subr.bf16.mxu0 0
        %7318 = vmatpush1.bf16.xpose.msra.mxu0 0
        %7319 = vmatprep.subr.bf16.mxu0 0
        %7320 = vmatpush1.bf16.xpose.msra.mxu0 0
        %7321 = vmatprep.subr.bf16.mxu0 0
        %7322 = vmatpush1.bf16.xpose.msra.mxu0 0
        %7323 = vmatprep.subr.bf16.mxu0 0
        %7324 = vmatpush1.bf16.xpose.msra.mxu0 0
        %7325 = vmatprep.subr.bf16.mxu0 0
        %7326 = vmatpush1.bf16.xpose.msra.mxu0 0
        %7327 = vmatprep.mubr.bf16.mxu0 0
        %7328 = vmatmul.mubr.bf16.gmra.mrb[0].mxu0 %v7290
        %v7329 = vpop.f32.mrb[0].mxu0
        %v7330 = vadd.f32 %v2159, %v7329
        %v7331 = vpop.f32.mrb[0].mxu0
        %v7332 = vpop.f32.mrb[0].mxu0
        %v7333 = vpop.f32.mrb[0].mxu0
        %7334 = vdwg.mxu0
        %v7335 = vsel %vm2207, %v7330, -inf
        %7336 = vmax.xlane.f32.xlu0 %v7335
        %v7337 = vpop.xlane.xlu0 %7336
        %v7338 = vsub.f32 %v7330, %v7337
        %v7339 = vmul.f32 %v7338, 1.442695
        %v7340 = vpow.pop %v7339
        %v7341 = vsel %vm2207, %v7340, 0.0
        %7342 = vadd.xlane.f32.xlu0 %v7341
        %v7343 = vpop.xlane.xlu0 %7342
        %v7344 = vrcp.pop %v7343
        %v7345 = vmul.f32 %v7340, %v7344
        %v7346 = vpack.c.bf16 %v7345, %v7345
        %v7348 = vsel %vm2207, %v7346, 0
        %v7351 = vsel %vm2223, %v7288, 0
        %7353 = vmatprep.subr.bf16.mxu0 0
        %7354 = vmatpush1.bf16.msra.mxu0 %v7351
        %7355 = vmatprep.subr.bf16.mxu0 0
        %7356 = vmatpush1.bf16.msra.mxu0 0
        %7357 = vmatprep.subr.bf16.mxu0 0
        %7358 = vmatpush1.bf16.msra.mxu0 0
        %7359 = vmatprep.subr.bf16.mxu0 0
        %7360 = vmatpush1.bf16.msra.mxu0 0
        %7361 = vmatprep.subr.bf16.mxu0 0
        %7362 = vmatpush1.bf16.msra.mxu0 0
        %7363 = vmatprep.subr.bf16.mxu0 0
        %7364 = vmatpush1.bf16.msra.mxu0 0
        %7365 = vmatprep.subr.bf16.mxu0 0
        %7366 = vmatpush1.bf16.msra.mxu0 0
        %7367 = vmatprep.subr.bf16.mxu0 0
        %7368 = vmatpush1.bf16.msra.mxu0 0
        %7369 = vmatprep.subr.bf16.mxu0 0
        %7370 = vmatpush1.bf16.msra.mxu0 0
        %7371 = vmatprep.subr.bf16.mxu0 0
        %7372 = vmatpush1.bf16.msra.mxu0 0
        %7373 = vmatprep.subr.bf16.mxu0 0
        %7374 = vmatpush1.bf16.msra.mxu0 0
        %7375 = vmatprep.subr.bf16.mxu0 0
        %7376 = vmatpush1.bf16.msra.mxu0 0
        %7377 = vmatprep.subr.bf16.mxu0 0
        %7378 = vmatpush1.bf16.msra.mxu0 0
        %7379 = vmatprep.subr.bf16.mxu0 0
        %7380 = vmatpush1.bf16.msra.mxu0 0
        %7381 = vmatprep.subr.bf16.mxu0 0
        %7382 = vmatpush1.bf16.msra.mxu0 0
        %7383 = vmatprep.subr.bf16.mxu0 0
        %7384 = vmatpush1.bf16.msra.mxu0 0
        %7385 = vmatprep.mubr.bf16.mxu0 0
        %7386 = vmatmul.mubr.bf16.gmra.mrb[0].mxu0 %v7348
        %v7387 = vpop.f32.mrb[0].mxu0
        %v7388 = vadd.f32 0.0, %v7387
        %v7389 = vpop.f32.mrb[0].mxu0
        %v7390 = vpop.f32.mrb[0].mxu0
        %v7391 = vpop.f32.mrb[0].mxu0
        %7392 = vdwg.mxu0
        %7394 = vrot.lane.b32.xlu0 %v7286, 96
        %v7395 = vpop.permute.xlu0 %7394
        %7397 = vrot.lane.b32.xlu0 %v7287, 96
        %v7398 = vpop.permute.xlu0 %7397
        %v7400 = vsel %vm1849, %v7395, 0
        %v7403 = vsel %vm1849, %v7398, 0
        %7405 = vmatprep.subr.bf16.mxu0 0
        %7406 = vmatpush1.bf16.xpose.msra.mxu0 %v7403
        %7407 = vmatprep.subr.bf16.mxu0 0
        %7408 = vmatpush1.bf16.xpose.msra.mxu0 0
        %7409 = vmatprep.subr.bf16.mxu0 0
        %7410 = vmatpush1.bf16.xpose.msra.mxu0 0
        %7411 = vmatprep.subr.bf16.mxu0 0
        %7412 = vmatpush1.bf16.xpose.msra.mxu0 0
        %7413 = vmatprep.subr.bf16.mxu0 0
        %7414 = vmatpush1.bf16.xpose.msra.mxu0 0
        %7415 = vmatprep.subr.bf16.mxu0 0
        %7416 = vmatpush1.bf16.xpose.msra.mxu0 0
        %7417 = vmatprep.subr.bf16.mxu0 0
        %7418 = vmatpush1.bf16.xpose.msra.mxu0 0
        %7419 = vmatprep.subr.bf16.mxu0 0
        %7420 = vmatpush1.bf16.xpose.msra.mxu0 0
        %7421 = vmatprep.subr.bf16.mxu0 0
        %7422 = vmatpush1.bf16.xpose.msra.mxu0 0
        %7423 = vmatprep.subr.bf16.mxu0 0
        %7424 = vmatpush1.bf16.xpose.msra.mxu0 0
        %7425 = vmatprep.subr.bf16.mxu0 0
        %7426 = vmatpush1.bf16.xpose.msra.mxu0 0
        %7427 = vmatprep.subr.bf16.mxu0 0
        %7428 = vmatpush1.bf16.xpose.msra.mxu0 0
        %7429 = vmatprep.subr.bf16.mxu0 0
        %7430 = vmatpush1.bf16.xpose.msra.mxu0 0
        %7431 = vmatprep.subr.bf16.mxu0 0
        %7432 = vmatpush1.bf16.xpose.msra.mxu0 0
        %7433 = vmatprep.subr.bf16.mxu0 0
        %7434 = vmatpush1.bf16.xpose.msra.mxu0 0
        %7435 = vmatprep.subr.bf16.mxu0 0
        %7436 = vmatpush1.bf16.xpose.msra.mxu0 0
        %7437 = vmatprep.mubr.bf16.mxu0 0
        %7438 = vmatmul.mubr.bf16.gmra.mrb[0].mxu0 %v7400
        %v7439 = vpop.f32.mrb[0].mxu0
        %v7440 = vadd.f32 %v2159, %v7439
        %v7441 = vpop.f32.mrb[0].mxu0
        %v7442 = vpop.f32.mrb[0].mxu0
        %v7443 = vpop.f32.mrb[0].mxu0
        %7444 = vdwg.mxu0
        %v7445 = vsel %vm2207, %v7440, -inf
        %7446 = vmax.xlane.f32.xlu0 %v7445
        %v7447 = vpop.xlane.xlu0 %7446
        %v7448 = vsub.f32 %v7440, %v7447
        %v7449 = vmul.f32 %v7448, 1.442695
        %v7450 = vpow.pop %v7449
        %v7451 = vsel %vm2207, %v7450, 0.0
        %7452 = vadd.xlane.f32.xlu0 %v7451
        %v7453 = vpop.xlane.xlu0 %7452
        %v7454 = vrcp.pop %v7453
        %v7455 = vmul.f32 %v7450, %v7454
        %v7456 = vpack.c.bf16 %v7455, %v7455
        %7458 = vrot.lane.b32.xlu0 %v7288, 96
        %v7459 = vpop.permute.xlu0 %7458
        %v7461 = vsel %vm2207, %v7456, 0
        %v7464 = vsel %vm2223, %v7459, 0
        %7466 = vmatprep.subr.bf16.mxu0 0
        %7467 = vmatpush1.bf16.msra.mxu0 %v7464
        %7468 = vmatprep.subr.bf16.mxu0 0
        %7469 = vmatpush1.bf16.msra.mxu0 0
        %7470 = vmatprep.subr.bf16.mxu0 0
        %7471 = vmatpush1.bf16.msra.mxu0 0
        %7472 = vmatprep.subr.bf16.mxu0 0
        %7473 = vmatpush1.bf16.msra.mxu0 0
        %7474 = vmatprep.subr.bf16.mxu0 0
        %7475 = vmatpush1.bf16.msra.mxu0 0
        %7476 = vmatprep.subr.bf16.mxu0 0
        %7477 = vmatpush1.bf16.msra.mxu0 0
        %7478 = vmatprep.subr.bf16.mxu0 0
        %7479 = vmatpush1.bf16.msra.mxu0 0
        %7480 = vmatprep.subr.bf16.mxu0 0
        %7481 = vmatpush1.bf16.msra.mxu0 0
        %7482 = vmatprep.subr.bf16.mxu0 0
        %7483 = vmatpush1.bf16.msra.mxu0 0
        %7484 = vmatprep.subr.bf16.mxu0 0
        %7485 = vmatpush1.bf16.msra.mxu0 0
        %7486 = vmatprep.subr.bf16.mxu0 0
        %7487 = vmatpush1.bf16.msra.mxu0 0
        %7488 = vmatprep.subr.bf16.mxu0 0
        %7489 = vmatpush1.bf16.msra.mxu0 0
        %7490 = vmatprep.subr.bf16.mxu0 0
        %7491 = vmatpush1.bf16.msra.mxu0 0
        %7492 = vmatprep.subr.bf16.mxu0 0
        %7493 = vmatpush1.bf16.msra.mxu0 0
        %7494 = vmatprep.subr.bf16.mxu0 0
        %7495 = vmatpush1.bf16.msra.mxu0 0
        %7496 = vmatprep.subr.bf16.mxu0 0
        %7497 = vmatpush1.bf16.msra.mxu0 0
        %7498 = vmatprep.mubr.bf16.mxu0 0
        %7499 = vmatmul.mubr.bf16.gmra.mrb[0].mxu0 %v7461
        %v7500 = vpop.f32.mrb[0].mxu0
        %v7501 = vadd.f32 0.0, %v7500
        %v7502 = vpop.f32.mrb[0].mxu0
        %v7503 = vpop.f32.mrb[0].mxu0
        %v7504 = vpop.f32.mrb[0].mxu0
        %7505 = vdwg.mxu0
        %7506 = vrot.lane.b32.xlu0 %v7286, 64
        %v7507 = vpop.permute.xlu0 %7506
        %7508 = vrot.lane.b32.xlu0 %v7287, 64
        %v7509 = vpop.permute.xlu0 %7508
        %v7511 = vsel %vm1849, %v7507, 0
        %v7514 = vsel %vm1849, %v7509, 0
        %7516 = vmatprep.subr.bf16.mxu0 0
        %7517 = vmatpush1.bf16.xpose.msra.mxu0 %v7514
        %7518 = vmatprep.subr.bf16.mxu0 0
        %7519 = vmatpush1.bf16.xpose.msra.mxu0 0
        %7520 = vmatprep.subr.bf16.mxu0 0
        %7521 = vmatpush1.bf16.xpose.msra.mxu0 0
        %7522 = vmatprep.subr.bf16.mxu0 0
        %7523 = vmatpush1.bf16.xpose.msra.mxu0 0
        %7524 = vmatprep.subr.bf16.mxu0 0
        %7525 = vmatpush1.bf16.xpose.msra.mxu0 0
        %7526 = vmatprep.subr.bf16.mxu0 0
        %7527 = vmatpush1.bf16.xpose.msra.mxu0 0
        %7528 = vmatprep.subr.bf16.mxu0 0
        %7529 = vmatpush1.bf16.xpose.msra.mxu0 0
        %7530 = vmatprep.subr.bf16.mxu0 0
        %7531 = vmatpush1.bf16.xpose.msra.mxu0 0
        %7532 = vmatprep.subr.bf16.mxu0 0
        %7533 = vmatpush1.bf16.xpose.msra.mxu0 0
        %7534 = vmatprep.subr.bf16.mxu0 0
        %7535 = vmatpush1.bf16.xpose.msra.mxu0 0
        %7536 = vmatprep.subr.bf16.mxu0 0
        %7537 = vmatpush1.bf16.xpose.msra.mxu0 0
        %7538 = vmatprep.subr.bf16.mxu0 0
        %7539 = vmatpush1.bf16.xpose.msra.mxu0 0
        %7540 = vmatprep.subr.bf16.mxu0 0
        %7541 = vmatpush1.bf16.xpose.msra.mxu0 0
        %7542 = vmatprep.subr.bf16.mxu0 0
        %7543 = vmatpush1.bf16.xpose.msra.mxu0 0
        %7544 = vmatprep.subr.bf16.mxu0 0
        %7545 = vmatpush1.bf16.xpose.msra.mxu0 0
        %7546 = vmatprep.subr.bf16.mxu0 0
        %7547 = vmatpush1.bf16.xpose.msra.mxu0 0
        %7548 = vmatprep.mubr.bf16.mxu0 0
        %7549 = vmatmul.mubr.bf16.gmra.mrb[0].mxu0 %v7511
        %v7550 = vpop.f32.mrb[0].mxu0
        %v7551 = vadd.f32 %v2159, %v7550
        %v7552 = vpop.f32.mrb[0].mxu0
        %v7553 = vpop.f32.mrb[0].mxu0
        %v7554 = vpop.f32.mrb[0].mxu0
        %7555 = vdwg.mxu0
        %v7556 = vsel %vm2207, %v7551, -inf
        %7557 = vmax.xlane.f32.xlu0 %v7556
        %v7558 = vpop.xlane.xlu0 %7557
        %v7559 = vsub.f32 %v7551, %v7558
        %v7560 = vmul.f32 %v7559, 1.442695
        %v7561 = vpow.pop %v7560
        %v7562 = vsel %vm2207, %v7561, 0.0
        %7563 = vadd.xlane.f32.xlu0 %v7562
        %v7564 = vpop.xlane.xlu0 %7563
        %v7565 = vrcp.pop %v7564
        %v7566 = vmul.f32 %v7561, %v7565
        %v7567 = vpack.c.bf16 %v7566, %v7566
        %7568 = vrot.lane.b32.xlu0 %v7288, 64
        %v7569 = vpop.permute.xlu0 %7568
        %v7571 = vsel %vm2207, %v7567, 0
        %v7574 = vsel %vm2223, %v7569, 0
        %7576 = vmatprep.subr.bf16.mxu0 0
        %7577 = vmatpush1.bf16.msra.mxu0 %v7574
        %7578 = vmatprep.subr.bf16.mxu0 0
        %7579 = vmatpush1.bf16.msra.mxu0 0
        %7580 = vmatprep.subr.bf16.mxu0 0
        %7581 = vmatpush1.bf16.msra.mxu0 0
        %7582 = vmatprep.subr.bf16.mxu0 0
        %7583 = vmatpush1.bf16.msra.mxu0 0
        %7584 = vmatprep.subr.bf16.mxu0 0
        %7585 = vmatpush1.bf16.msra.mxu0 0
        %7586 = vmatprep.subr.bf16.mxu0 0
        %7587 = vmatpush1.bf16.msra.mxu0 0
        %7588 = vmatprep.subr.bf16.mxu0 0
        %7589 = vmatpush1.bf16.msra.mxu0 0
        %7590 = vmatprep.subr.bf16.mxu0 0
        %7591 = vmatpush1.bf16.msra.mxu0 0
        %7592 = vmatprep.subr.bf16.mxu0 0
        %7593 = vmatpush1.bf16.msra.mxu0 0
        %7594 = vmatprep.subr.bf16.mxu0 0
        %7595 = vmatpush1.bf16.msra.mxu0 0
        %7596 = vmatprep.subr.bf16.mxu0 0
        %7597 = vmatpush1.bf16.msra.mxu0 0
        %7598 = vmatprep.subr.bf16.mxu0 0
        %7599 = vmatpush1.bf16.msra.mxu0 0
        %7600 = vmatprep.subr.bf16.mxu0 0
        %7601 = vmatpush1.bf16.msra.mxu0 0
        %7602 = vmatprep.subr.bf16.mxu0 0
        %7603 = vmatpush1.bf16.msra.mxu0 0
        %7604 = vmatprep.subr.bf16.mxu0 0
        %7605 = vmatpush1.bf16.msra.mxu0 0
        %7606 = vmatprep.subr.bf16.mxu0 0
        %7607 = vmatpush1.bf16.msra.mxu0 0
        %7608 = vmatprep.mubr.bf16.mxu0 0
        %7609 = vmatmul.mubr.bf16.gmra.mrb[0].mxu0 %v7571
        %v7610 = vpop.f32.mrb[0].mxu0
        %v7611 = vadd.f32 0.0, %v7610
        %v7612 = vpop.f32.mrb[0].mxu0
        %v7613 = vpop.f32.mrb[0].mxu0
        %v7614 = vpop.f32.mrb[0].mxu0
        %7615 = vdwg.mxu0
        %7616 = vrot.lane.b32.xlu0 %v7286, 32
        %v7617 = vpop.permute.xlu0 %7616
        %7618 = vrot.lane.b32.xlu0 %v7287, 32
        %v7619 = vpop.permute.xlu0 %7618
        %v7621 = vsel %vm1849, %v7617, 0
        %v7624 = vsel %vm1849, %v7619, 0
        %7626 = vmatprep.subr.bf16.mxu0 0
        %7627 = vmatpush1.bf16.xpose.msra.mxu0 %v7624
        %7628 = vmatprep.subr.bf16.mxu0 0
        %7629 = vmatpush1.bf16.xpose.msra.mxu0 0
        %7630 = vmatprep.subr.bf16.mxu0 0
        %7631 = vmatpush1.bf16.xpose.msra.mxu0 0
        %7632 = vmatprep.subr.bf16.mxu0 0
        %7633 = vmatpush1.bf16.xpose.msra.mxu0 0
        %7634 = vmatprep.subr.bf16.mxu0 0
        %7635 = vmatpush1.bf16.xpose.msra.mxu0 0
        %7636 = vmatprep.subr.bf16.mxu0 0
        %7637 = vmatpush1.bf16.xpose.msra.mxu0 0
        %7638 = vmatprep.subr.bf16.mxu0 0
        %7639 = vmatpush1.bf16.xpose.msra.mxu0 0
        %7640 = vmatprep.subr.bf16.mxu0 0
        %7641 = vmatpush1.bf16.xpose.msra.mxu0 0
        %7642 = vmatprep.subr.bf16.mxu0 0
        %7643 = vmatpush1.bf16.xpose.msra.mxu0 0
        %7644 = vmatprep.subr.bf16.mxu0 0
        %7645 = vmatpush1.bf16.xpose.msra.mxu0 0
        %7646 = vmatprep.subr.bf16.mxu0 0
        %7647 = vmatpush1.bf16.xpose.msra.mxu0 0
        %7648 = vmatprep.subr.bf16.mxu0 0
        %7649 = vmatpush1.bf16.xpose.msra.mxu0 0
        %7650 = vmatprep.subr.bf16.mxu0 0
        %7651 = vmatpush1.bf16.xpose.msra.mxu0 0
        %7652 = vmatprep.subr.bf16.mxu0 0
        %7653 = vmatpush1.bf16.xpose.msra.mxu0 0
        %7654 = vmatprep.subr.bf16.mxu0 0
        %7655 = vmatpush1.bf16.xpose.msra.mxu0 0
        %7656 = vmatprep.subr.bf16.mxu0 0
        %7657 = vmatpush1.bf16.xpose.msra.mxu0 0
        %7658 = vmatprep.mubr.bf16.mxu0 0
        %7659 = vmatmul.mubr.bf16.gmra.mrb[0].mxu0 %v7621
        %v7660 = vpop.f32.mrb[0].mxu0
        %v7661 = vadd.f32 %v2159, %v7660
        %v7662 = vpop.f32.mrb[0].mxu0
        %v7663 = vpop.f32.mrb[0].mxu0
        %v7664 = vpop.f32.mrb[0].mxu0
        %7665 = vdwg.mxu0
        %v7666 = vsel %vm2207, %v7661, -inf
        %7667 = vmax.xlane.f32.xlu0 %v7666
        %v7668 = vpop.xlane.xlu0 %7667
        %v7669 = vsub.f32 %v7661, %v7668
        %v7670 = vmul.f32 %v7669, 1.442695
        %v7671 = vpow.pop %v7670
        %v7672 = vsel %vm2207, %v7671, 0.0
        %7673 = vadd.xlane.f32.xlu0 %v7672
        %v7674 = vpop.xlane.xlu0 %7673
        %v7675 = vrcp.pop %v7674
        %v7676 = vmul.f32 %v7671, %v7675
        %v7677 = vpack.c.bf16 %v7676, %v7676
        %7678 = vrot.lane.b32.xlu0 %v7288, 32
        %v7679 = vpop.permute.xlu0 %7678
        %v7681 = vsel %vm2207, %v7677, 0
        %v7684 = vsel %vm2223, %v7679, 0
        %7686 = vmatprep.subr.bf16.mxu0 0
        %7687 = vmatpush1.bf16.msra.mxu0 %v7684
        %7688 = vmatprep.subr.bf16.mxu0 0
        %7689 = vmatpush1.bf16.msra.mxu0 0
        %7690 = vmatprep.subr.bf16.mxu0 0
        %7691 = vmatpush1.bf16.msra.mxu0 0
        %7692 = vmatprep.subr.bf16.mxu0 0
        %7693 = vmatpush1.bf16.msra.mxu0 0
        %7694 = vmatprep.subr.bf16.mxu0 0
        %7695 = vmatpush1.bf16.msra.mxu0 0
        %7696 = vmatprep.subr.bf16.mxu0 0
        %7697 = vmatpush1.bf16.msra.mxu0 0
        %7698 = vmatprep.subr.bf16.mxu0 0
        %7699 = vmatpush1.bf16.msra.mxu0 0
        %7700 = vmatprep.subr.bf16.mxu0 0
        %7701 = vmatpush1.bf16.msra.mxu0 0
        %7702 = vmatprep.subr.bf16.mxu0 0
        %7703 = vmatpush1.bf16.msra.mxu0 0
        %7704 = vmatprep.subr.bf16.mxu0 0
        %7705 = vmatpush1.bf16.msra.mxu0 0
        %7706 = vmatprep.subr.bf16.mxu0 0
        %7707 = vmatpush1.bf16.msra.mxu0 0
        %7708 = vmatprep.subr.bf16.mxu0 0
        %7709 = vmatpush1.bf16.msra.mxu0 0
        %7710 = vmatprep.subr.bf16.mxu0 0
        %7711 = vmatpush1.bf16.msra.mxu0 0
        %7712 = vmatprep.subr.bf16.mxu0 0
        %7713 = vmatpush1.bf16.msra.mxu0 0
        %7714 = vmatprep.subr.bf16.mxu0 0
        %7715 = vmatpush1.bf16.msra.mxu0 0
        %7716 = vmatprep.subr.bf16.mxu0 0
        %7717 = vmatpush1.bf16.msra.mxu0 0
        %7718 = vmatprep.mubr.bf16.mxu0 0
        %7719 = vmatmul.mubr.bf16.gmra.mrb[0].mxu0 %v7681
        %v7720 = vpop.f32.mrb[0].mxu0
        %v7721 = vadd.f32 0.0, %v7720
        %v7722 = vpop.f32.mrb[0].mxu0
        %v7723 = vpop.f32.mrb[0].mxu0
        %v7724 = vpop.f32.mrb[0].mxu0
        %7725 = vdwg.mxu0
        %7727 = vrot.lane.b32.xlu0 %v7501, 32
        %v7728 = vpop.permute.xlu0 %7727
        %7731 = vrot.lane.b32.xlu0 %v7611, 64
        %v7732 = vpop.permute.xlu0 %7731
        %7735 = vrot.lane.b32.xlu0 %v7721, 96
        %v7736 = vpop.permute.xlu0 %7735
        %v7738 = vsel %vm1849, %v7388, %v7728
        %v7739 = vsel %vm2613, %v7738, %v7732
        %v7740 = vsel %vm2615, %v7739, %v7736
        %v7741 = vpack.c.bf16 %v7740, %v7740
        %s7742 = scalar_lea.vmem [#allocation44], 64
        %v7743 = vld [vmem:[%s7742] sm:$0xf]
        %v7744 = vld [vmem:[%s7742 + $0x4] sm:$0xf]
        %v7745 = vld [vmem:[%s7742 + $0x8] sm:$0xf]
        %v7746 = vld [vmem:[%s7742 + $0xc] sm:$0xf]
        %v7747 = vld [vmem:[%s7742 + $0x10] sm:$0xf]
        %v7748 = vld [vmem:[%s7742 + $0x14] sm:$0xf]
        %v7749 = vld [vmem:[%s7742 + $0x18] sm:$0xf]
        %v7750 = vld [vmem:[%s7742 + $0x1c] sm:$0xf]
        %v7751 = vld [vmem:[%s7742 + $0x20] sm:$0xf]
        %v7752 = vld [vmem:[%s7742 + $0x24] sm:$0xf]
        %v7753 = vld [vmem:[%s7742 + $0x28] sm:$0xf]
        %v7754 = vld [vmem:[%s7742 + $0x2c] sm:$0xf]
        %v7755 = vld [vmem:[%s7742 + $0x30] sm:$0xf]
        %v7756 = vld [vmem:[%s7742 + $0x34] sm:$0xf]
        %v7757 = vld [vmem:[%s7742 + $0x38] sm:$0xf]
        %v7758 = vld [vmem:[%s7742 + $0x3c] sm:$0xf]
        %s7759 = scalar_lea.vmem [#allocation46], 1
        %v7760 = vld [vmem:[%s7759] sm:$0x1]
        %v7762 = vlaneseq
        %v7763 = vshrl.u32 %v7762, 7
        %v7764 = vsub.s32 0, %v7763
        %v7765 = vrot.slane %v7760, %v7764
        %v7783 = vunpack.c.l.b16 %v7743
        %v7784 = vunpack.c.l.b16 %v7744
        %v7785 = vunpack.c.l.b16 %v7745
        %v7786 = vunpack.c.l.b16 %v7746
        %v7787 = vunpack.c.l.b16 %v7747
        %v7788 = vunpack.c.l.b16 %v7748
        %v7789 = vunpack.c.l.b16 %v7749
        %v7790 = vunpack.c.l.b16 %v7750
        %v7791 = vunpack.c.l.b16 %v7751
        %v7792 = vunpack.c.l.b16 %v7752
        %v7793 = vunpack.c.l.b16 %v7753
        %v7794 = vunpack.c.l.b16 %v7754
        %v7795 = vunpack.c.l.b16 %v7755
        %v7796 = vunpack.c.l.b16 %v7756
        %v7797 = vunpack.c.l.b16 %v7757
        %v7798 = vunpack.c.l.b16 %v7758
        %v7799 = vpack.c.b16 %v7784, %v7783
        %v7800 = vpack.c.b16 %v7786, %v7785
        %v7801 = vpack.c.b16 %v7788, %v7787
        %v7802 = vpack.c.b16 %v7790, %v7789
        %v7803 = vpack.c.b16 %v7792, %v7791
        %v7804 = vpack.c.b16 %v7794, %v7793
        %v7805 = vpack.c.b16 %v7796, %v7795
        %v7806 = vpack.c.b16 %v7798, %v7797
        %7815 = vmatprep.subr.bf16.mxu0 0
        %7816 = vmatpush1.bf16.msra.mxu0 %v7799
        %7817 = vmatprep.subr.bf16.mxu0 0
        %7818 = vmatpush1.bf16.msra.mxu0 %v7800
        %7819 = vmatprep.subr.bf16.mxu0 0
        %7820 = vmatpush1.bf16.msra.mxu0 %v7801
        %7821 = vmatprep.subr.bf16.mxu0 0
        %7822 = vmatpush1.bf16.msra.mxu0 %v7802
        %7823 = vmatprep.subr.bf16.mxu0 0
        %7824 = vmatpush1.bf16.msra.mxu0 %v7803
        %7825 = vmatprep.subr.bf16.mxu0 0
        %7826 = vmatpush1.bf16.msra.mxu0 %v7804
        %7827 = vmatprep.subr.bf16.mxu0 0
        %7828 = vmatpush1.bf16.msra.mxu0 %v7805
        %7829 = vmatprep.subr.bf16.mxu0 0
        %7830 = vmatpush1.bf16.msra.mxu0 %v7806
        %7831 = vmatprep.subr.bf16.mxu0 0
        %7832 = vmatpush1.bf16.msra.mxu0 0
        %7833 = vmatprep.subr.bf16.mxu0 0
        %7834 = vmatpush1.bf16.msra.mxu0 0
        %7835 = vmatprep.subr.bf16.mxu0 0
        %7836 = vmatpush1.bf16.msra.mxu0 0
        %7837 = vmatprep.subr.bf16.mxu0 0
        %7838 = vmatpush1.bf16.msra.mxu0 0
        %7839 = vmatprep.subr.bf16.mxu0 0
        %7840 = vmatpush1.bf16.msra.mxu0 0
        %7841 = vmatprep.subr.bf16.mxu0 0
        %7842 = vmatpush1.bf16.msra.mxu0 0
        %7843 = vmatprep.subr.bf16.mxu0 0
        %7844 = vmatpush1.bf16.msra.mxu0 0
        %7845 = vmatprep.subr.bf16.mxu0 0
        %7846 = vmatpush1.bf16.msra.mxu0 0
        %7847 = vmatprep.mubr.bf16.mxu0 0
        %7848 = vmatmul.mubr.bf16.gmra.mrb[0].mxu0 %v7741
        %v7849 = vpop.f32.mrb[0].mxu0
        %v7850 = vadd.f32 %v7765, %v7849
        %v7851 = vpop.f32.mrb[0].mxu0
        %v7852 = vpop.f32.mrb[0].mxu0
        %v7853 = vpop.f32.mrb[0].mxu0
        %7854 = vdwg.mxu0
        %s7855 = scalar_lea.vmem [#allocation56], 1
        %v7856 = vld [vmem:[%s7855] sm:$0x1]
        %s7857 = scalar_lea.vmem [#allocation58], 1
        %v7858 = vld [vmem:[%s7857] sm:$0x1]
        %v7859 = vadd.f32 %v7850, %v7020
        %7860 = vadd.xlane.f32.xlu0 %v7859
        %v7861 = vpop.xlane.xlu0 %7860
        %v7862 = vmul.f32 %v7861, %v2734
        %v7863 = vsub.f32 %v7859, %v7862
        %v7864 = vmul.f32 %v7863, %v7863
        %7865 = vadd.xlane.f32.xlu0 %v7864
        %v7866 = vpop.xlane.xlu0 %7865
        %v7867 = vmul.f32 %v7866, %v2734
        %v7868 = vadd.f32 %v7867, 1e-05
        %v7869 = vrsqrt.pop %v7868
        %v7870 = vmul.f32 %v7863, %v7869
        %v7872 = vlaneseq
        %v7873 = vshrl.u32 %v7872, 7
        %v7874 = vsub.s32 0, %v7873
        %v7875 = vrot.slane %v7856, %v7874
        %v7877 = vmul.f32 %v7870, %v7875
        %v7879 = vlaneseq
        %v7880 = vshrl.u32 %v7879, 7
        %v7881 = vsub.s32 0, %v7880
        %v7882 = vrot.slane %v7858, %v7881
        %v7884 = vadd.f32 %v7877, %v7882
        %s7885 = scalar_lea.vmem [#allocation47], 64
        %v7886 = vld [vmem:[%s7885] sm:$0xf]
        %v7887 = vld [vmem:[%s7885 + $0x4] sm:$0xf]
        %v7888 = vld [vmem:[%s7885 + $0x8] sm:$0xf]
        %v7889 = vld [vmem:[%s7885 + $0xc] sm:$0xf]
        %v7890 = vld [vmem:[%s7885 + $0x10] sm:$0xf]
        %v7891 = vld [vmem:[%s7885 + $0x14] sm:$0xf]
        %v7892 = vld [vmem:[%s7885 + $0x18] sm:$0xf]
        %v7893 = vld [vmem:[%s7885 + $0x1c] sm:$0xf]
        %v7894 = vld [vmem:[%s7885 + $0x20] sm:$0xf]
        %v7895 = vld [vmem:[%s7885 + $0x24] sm:$0xf]
        %v7896 = vld [vmem:[%s7885 + $0x28] sm:$0xf]
        %v7897 = vld [vmem:[%s7885 + $0x2c] sm:$0xf]
        %v7898 = vld [vmem:[%s7885 + $0x30] sm:$0xf]
        %v7899 = vld [vmem:[%s7885 + $0x34] sm:$0xf]
        %v7900 = vld [vmem:[%s7885 + $0x38] sm:$0xf]
        %v7901 = vld [vmem:[%s7885 + $0x3c] sm:$0xf]
        %s7902 = scalar_lea.vmem [#allocation49], 1
        %v7903 = vld [vmem:[%s7902] sm:$0x1]
        %s7904 = scalar_lea.vmem [#allocation50], 64
        %v7905 = vld [vmem:[%s7904] sm:$0xf]
        %v7906 = vld [vmem:[%s7904 + $0x4] sm:$0xf]
        %v7907 = vld [vmem:[%s7904 + $0x8] sm:$0xf]
        %v7908 = vld [vmem:[%s7904 + $0xc] sm:$0xf]
        %v7909 = vld [vmem:[%s7904 + $0x10] sm:$0xf]
        %v7910 = vld [vmem:[%s7904 + $0x14] sm:$0xf]
        %v7911 = vld [vmem:[%s7904 + $0x18] sm:$0xf]
        %v7912 = vld [vmem:[%s7904 + $0x1c] sm:$0xf]
        %v7913 = vld [vmem:[%s7904 + $0x20] sm:$0xf]
        %v7914 = vld [vmem:[%s7904 + $0x24] sm:$0xf]
        %v7915 = vld [vmem:[%s7904 + $0x28] sm:$0xf]
        %v7916 = vld [vmem:[%s7904 + $0x2c] sm:$0xf]
        %v7917 = vld [vmem:[%s7904 + $0x30] sm:$0xf]
        %v7918 = vld [vmem:[%s7904 + $0x34] sm:$0xf]
        %v7919 = vld [vmem:[%s7904 + $0x38] sm:$0xf]
        %v7920 = vld [vmem:[%s7904 + $0x3c] sm:$0xf]
        %s7921 = scalar_lea.vmem [#allocation52], 1
        %v7922 = vld [vmem:[%s7921] sm:$0x1]
        %v7923 = vpack.c.bf16 %v7884, %v7884
        %v7925 = vlaneseq
        %v7926 = vshrl.u32 %v7925, 7
        %v7927 = vsub.s32 0, %v7926
        %v7928 = vrot.slane %v7903, %v7927
        %v7946 = vunpack.c.l.b16 %v7886
        %v7947 = vunpack.c.l.b16 %v7887
        %v7948 = vunpack.c.l.b16 %v7888
        %v7949 = vunpack.c.l.b16 %v7889
        %v7950 = vunpack.c.l.b16 %v7890
        %v7951 = vunpack.c.l.b16 %v7891
        %v7952 = vunpack.c.l.b16 %v7892
        %v7953 = vunpack.c.l.b16 %v7893
        %v7954 = vunpack.c.l.b16 %v7894
        %v7955 = vunpack.c.l.b16 %v7895
        %v7956 = vunpack.c.l.b16 %v7896
        %v7957 = vunpack.c.l.b16 %v7897
        %v7958 = vunpack.c.l.b16 %v7898
        %v7959 = vunpack.c.l.b16 %v7899
        %v7960 = vunpack.c.l.b16 %v7900
        %v7961 = vunpack.c.l.b16 %v7901
        %v7962 = vpack.c.b16 %v7947, %v7946
        %v7963 = vpack.c.b16 %v7949, %v7948
        %v7964 = vpack.c.b16 %v7951, %v7950
        %v7965 = vpack.c.b16 %v7953, %v7952
        %v7966 = vpack.c.b16 %v7955, %v7954
        %v7967 = vpack.c.b16 %v7957, %v7956
        %v7968 = vpack.c.b16 %v7959, %v7958
        %v7969 = vpack.c.b16 %v7961, %v7960
        %7978 = vmatprep.subr.bf16.mxu0 0
        %7979 = vmatpush1.bf16.msra.mxu0 %v7962
        %7980 = vmatprep.subr.bf16.mxu0 0
        %7981 = vmatpush1.bf16.msra.mxu0 %v7963
        %7982 = vmatprep.subr.bf16.mxu0 0
        %7983 = vmatpush1.bf16.msra.mxu0 %v7964
        %7984 = vmatprep.subr.bf16.mxu0 0
        %7985 = vmatpush1.bf16.msra.mxu0 %v7965
        %7986 = vmatprep.subr.bf16.mxu0 0
        %7987 = vmatpush1.bf16.msra.mxu0 %v7966
        %7988 = vmatprep.subr.bf16.mxu0 0
        %7989 = vmatpush1.bf16.msra.mxu0 %v7967
        %7990 = vmatprep.subr.bf16.mxu0 0
        %7991 = vmatpush1.bf16.msra.mxu0 %v7968
        %7992 = vmatprep.subr.bf16.mxu0 0
        %7993 = vmatpush1.bf16.msra.mxu0 %v7969
        %7994 = vmatprep.subr.bf16.mxu0 0
        %7995 = vmatpush1.bf16.msra.mxu0 0
        %7996 = vmatprep.subr.bf16.mxu0 0
        %7997 = vmatpush1.bf16.msra.mxu0 0
        %7998 = vmatprep.subr.bf16.mxu0 0
        %7999 = vmatpush1.bf16.msra.mxu0 0
        %8000 = vmatprep.subr.bf16.mxu0 0
        %8001 = vmatpush1.bf16.msra.mxu0 0
        %8002 = vmatprep.subr.bf16.mxu0 0
        %8003 = vmatpush1.bf16.msra.mxu0 0
        %8004 = vmatprep.subr.bf16.mxu0 0
        %8005 = vmatpush1.bf16.msra.mxu0 0
        %8006 = vmatprep.subr.bf16.mxu0 0
        %8007 = vmatpush1.bf16.msra.mxu0 0
        %8008 = vmatprep.subr.bf16.mxu0 0
        %8009 = vmatpush1.bf16.msra.mxu0 0
        %8010 = vmatprep.mubr.bf16.mxu0 0
        %8011 = vmatmul.mubr.bf16.gmra.mrb[0].mxu0 %v7923
        %v8012 = vpop.f32.mrb[0].mxu0
        %v8013 = vadd.f32 %v7928, %v8012
        %v8014 = vpop.f32.mrb[0].mxu0
        %v8015 = vpop.f32.mrb[0].mxu0
        %v8016 = vpop.f32.mrb[0].mxu0
        %8017 = vdwg.mxu0
        %v8018 = vmax.f32 %v8013, 0.0
        %v8019 = vpack.c.bf16 %v8018, %v8018
        %v8021 = vlaneseq
        %v8022 = vshrl.u32 %v8021, 7
        %v8023 = vsub.s32 0, %v8022
        %v8024 = vrot.slane %v7922, %v8023
        %v8042 = vunpack.c.l.b16 %v7905
        %v8043 = vunpack.c.l.b16 %v7906
        %v8044 = vunpack.c.l.b16 %v7907
        %v8045 = vunpack.c.l.b16 %v7908
        %v8046 = vunpack.c.l.b16 %v7909
        %v8047 = vunpack.c.l.b16 %v7910
        %v8048 = vunpack.c.l.b16 %v7911
        %v8049 = vunpack.c.l.b16 %v7912
        %v8050 = vunpack.c.l.b16 %v7913
        %v8051 = vunpack.c.l.b16 %v7914
        %v8052 = vunpack.c.l.b16 %v7915
        %v8053 = vunpack.c.l.b16 %v7916
        %v8054 = vunpack.c.l.b16 %v7917
        %v8055 = vunpack.c.l.b16 %v7918
        %v8056 = vunpack.c.l.b16 %v7919
        %v8057 = vunpack.c.l.b16 %v7920
        %v8058 = vpack.c.b16 %v8043, %v8042
        %v8059 = vpack.c.b16 %v8045, %v8044
        %v8060 = vpack.c.b16 %v8047, %v8046
        %v8061 = vpack.c.b16 %v8049, %v8048
        %v8062 = vpack.c.b16 %v8051, %v8050
        %v8063 = vpack.c.b16 %v8053, %v8052
        %v8064 = vpack.c.b16 %v8055, %v8054
        %v8065 = vpack.c.b16 %v8057, %v8056
        %8074 = vmatprep.subr.bf16.mxu0 0
        %8075 = vmatpush1.bf16.msra.mxu0 %v8058
        %8076 = vmatprep.subr.bf16.mxu0 0
        %8077 = vmatpush1.bf16.msra.mxu0 %v8059
        %8078 = vmatprep.subr.bf16.mxu0 0
        %8079 = vmatpush1.bf16.msra.mxu0 %v8060
        %8080 = vmatprep.subr.bf16.mxu0 0
        %8081 = vmatpush1.bf16.msra.mxu0 %v8061
        %8082 = vmatprep.subr.bf16.mxu0 0
        %8083 = vmatpush1.bf16.msra.mxu0 %v8062
        %8084 = vmatprep.subr.bf16.mxu0 0
        %8085 = vmatpush1.bf16.msra.mxu0 %v8063
        %8086 = vmatprep.subr.bf16.mxu0 0
        %8087 = vmatpush1.bf16.msra.mxu0 %v8064
        %8088 = vmatprep.subr.bf16.mxu0 0
        %8089 = vmatpush1.bf16.msra.mxu0 %v8065
        %8090 = vmatprep.subr.bf16.mxu0 0
        %8091 = vmatpush1.bf16.msra.mxu0 0
        %8092 = vmatprep.subr.bf16.mxu0 0
        %8093 = vmatpush1.bf16.msra.mxu0 0
        %8094 = vmatprep.subr.bf16.mxu0 0
        %8095 = vmatpush1.bf16.msra.mxu0 0
        %8096 = vmatprep.subr.bf16.mxu0 0
        %8097 = vmatpush1.bf16.msra.mxu0 0
        %8098 = vmatprep.subr.bf16.mxu0 0
        %8099 = vmatpush1.bf16.msra.mxu0 0
        %8100 = vmatprep.subr.bf16.mxu0 0
        %8101 = vmatpush1.bf16.msra.mxu0 0
        %8102 = vmatprep.subr.bf16.mxu0 0
        %8103 = vmatpush1.bf16.msra.mxu0 0
        %8104 = vmatprep.subr.bf16.mxu0 0
        %8105 = vmatpush1.bf16.msra.mxu0 0
        %8106 = vmatprep.mubr.bf16.mxu0 0
        %8107 = vmatmul.mubr.bf16.gmra.mrb[0].mxu0 %v8019
        %v8108 = vpop.f32.mrb[0].mxu0
        %v8109 = vadd.f32 %v8024, %v8108
        %v8110 = vpop.f32.mrb[0].mxu0
        %v8111 = vpop.f32.mrb[0].mxu0
        %v8112 = vpop.f32.mrb[0].mxu0
        %8113 = vdwg.mxu0
        %s8114 = scalar_lea.vmem [#allocation59], 1
        %v8115 = vld [vmem:[%s8114] sm:$0x1]
        %s8116 = scalar_lea.vmem [#allocation61], 1
        %v8117 = vld [vmem:[%s8116] sm:$0x1]
        %v8118 = vadd.f32 %v8109, %v7884
        %8119 = vadd.xlane.f32.xlu0 %v8118
        %v8120 = vpop.xlane.xlu0 %8119
        %v8121 = vmul.f32 %v8120, %v2734
        %v8122 = vsub.f32 %v8118, %v8121
        %v8123 = vmul.f32 %v8122, %v8122
        %8124 = vadd.xlane.f32.xlu0 %v8123
        %v8125 = vpop.xlane.xlu0 %8124
        %v8126 = vmul.f32 %v8125, %v2734
        %v8127 = vadd.f32 %v8126, 1e-05
        %v8128 = vrsqrt.pop %v8127
        %v8129 = vmul.f32 %v8122, %v8128
        %v8131 = vlaneseq
        %v8132 = vshrl.u32 %v8131, 7
        %v8133 = vsub.s32 0, %v8132
        %v8134 = vrot.slane %v8115, %v8133
        %v8136 = vmul.f32 %v8129, %v8134
        %v8138 = vlaneseq
        %v8139 = vshrl.u32 %v8138, 7
        %v8140 = vsub.s32 0, %v8139
        %v8141 = vrot.slane %v8117, %v8140
        %v8143 = vadd.f32 %v8136, %v8141
        %8144 = vst [vmem:[%s1826] sm:$0xff] %v8143
        %s8145 = sand.u32 %s971, 1
        %s8146 = scalar_lea.sflag [#allocation4], %s8145
        %s8147 = sand.u32 %s971, 1
        %s8148 = smul.addr %s8147, 8
        %s8149 = scalar_lea.vmem [#allocation62], %s8148
        // Predicated region
        $region333: #{transformer_global_graph.1} parent=175 // pred_check
          %p8150 = pneg %p981
        $region334: #{transformer_global_graph.1} parent=175 // pred_check_branch
          %8152 = sbr.rel (%p8150) target = $region336
        $region335: #{transformer_global_graph.1} parent=175 // pred_region
          %s8154 = ssub.s32 128, 128
          %8155 = vsyncadd %s8146, %s8154
          %s8156 = smul.addr %s119, 128
          %s8157 = scalar_lea.hbm %s79, %s8156
          %s8159 = sshll.u32 %s8149, 4
          %s8160 = int_to_ptr.vmem [resolvable:$true] %s8159
          %8162 = dma.vmem_to_hbm [thread:$0]  %s8160, 128, %s8157, %s8146
        $region336: #{transformer_global_graph.1} parent=175 // pred_fallthru
          _
      $region176: #{transformer_global_graph.1} parent=5 // pred_fallthru
        _
      %p8163 = scmp.le.s32.totalorder 2, %s114
      // Predicated region
      $region337: #{transformer_global_graph.1} parent=5 // pred_check
        %p8164 = pneg %p8163
      $region338: #{transformer_global_graph.1} parent=5 // pred_check_branch
        %8166 = sbr.rel (%p8164) target = $region340
      $region339: #{transformer_global_graph.1} parent=5 // pred_region
        %s8167 = ssub.s32 %s114, 2
        // Predicated region
        $region341: #{transformer_global_graph.1} parent=339 // pred_check
          %p8168 = pneg %p987
        $region342: #{transformer_global_graph.1} parent=339 // pred_check_branch
          %8170 = sbr.rel (%p8168) target = $region344
        $region343: #{transformer_global_graph.1} parent=339 // pred_region
          %s8171 = sand.u32 %s972, 1
          %s8172 = scalar_lea.sflag [#allocation4], %s8171
          %s8173 = sand.u32 %s972, 1
          %s8174 = smul.addr %s8173, 8
          %s8175 = scalar_lea.vmem [#allocation62], %s8174
          %8176 = dma.done %s8172, 128
        $region344: #{transformer_global_graph.1} parent=339 // pred_fallthru
          _
      $region340: #{transformer_global_graph.1} parent=5 // pred_fallthru
        _
    $region6: #{transformer_global_graph.1} parent=1 // loop_footer
      %s118 = sadd.s32 1, %s114
    $region7: #{transformer_global_graph.1} parent=1 // loop_footer_branch
      %113 = sbr.rel target = $region3
    $region8: #{transformer_global_graph.1} parent=1 // loop_exit
      _
    %8177 = vsyncpa [#allocation3], 1
    %s8178 = scalar_lea.sflag [#allocation3], 1
    %8179 = vsyncpa %s8178, 1
    %8180 = vsyncpa [#allocation6], 1
    %s8181 = scalar_lea.sflag [#allocation6], 1
    %8182 = vsyncpa %s8181, 1
    %8183 = vsyncpa [#allocation9], 1
    %s8184 = scalar_lea.sflag [#allocation9], 1
    %8185 = vsyncpa %s8184, 1
    %8186 = vsyncpa [#allocation12], 1
    %8187 = vsyncpa [#allocation15], 1
    %8188 = vsyncpa [#allocation18], 1
    %8189 = vsyncpa [#allocation21], 1
    %8190 = vsyncpa [#allocation24], 1
    %8191 = vsyncpa [#allocation27], 1
    %8192 = vsyncpa [#allocation30], 1
    %8193 = vsyncpa [#allocation33], 1
    %8194 = vsyncpa [#allocation36], 1
    %8195 = vsyncpa [#allocation39], 1
    %8196 = vsyncpa [#allocation42], 1
    %8197 = vsyncpa [#allocation45], 1
    %8198 = vsyncpa [#allocation48], 1
    %8199 = vsyncpa [#allocation51], 1
    %8200 = vsyncpa [#allocation54], 1
    %8201 = vsyncpa [#allocation57], 1
    %8202 = vsyncpa [#allocation60], 1
    %8203 = vsyncpa [#allocation4], 1
    %s8204 = scalar_lea.sflag [#allocation4], 1
    %8205 = vsyncpa %s8204, 1

</llo_original>
